<compile_context>
chip_gen: v6e
topology: v6e:2x2x1
jax: 0.10.0
libtpu: 0.0.40
codegen_flags: <defaults>
</compile_context>

<pallas_src>
import jax
import jax.numpy as jnp
import numpy as np
from jax.experimental import pallas as pl
from jax.experimental.pallas import tpu as pltpu

BN_EPS = 1e-5


# ----------------------------------------------------------------------------
# Deterministic parameter construction (synthetic "purged" weights).
# Purging / L0-mask bookkeeping is a construction-time transform; the forward
# only sees dense conv + (folded) inference BatchNorm parameters.
# ----------------------------------------------------------------------------
def init_conv_bn(key, cin, cout, k):
    k1, k2, k3, k4, k5, k6 = jax.random.split(key, 6)
    return dict(
        w=jax.random.normal(k1, (cout, cin, k, k), jnp.float32) * 0.1,
        b=jax.random.normal(k2, (cout,), jnp.float32) * 0.01,
        gamma=1.0 + 0.1 * jax.random.normal(k3, (cout,), jnp.float32),
        beta=0.1 * jax.random.normal(k4, (cout,), jnp.float32),
        mean=0.1 * jax.random.normal(k5, (cout,), jnp.float32),
        var=jnp.abs(jax.random.normal(k6, (cout,), jnp.float32)) * 0.1 + 0.5,
    )


def init_basic_block(key, cin, cout, stride):
    keys = jax.random.split(key, 3)
    blk = dict(
        conv1=init_conv_bn(keys[0], cin, cout, 3),
        conv2=init_conv_bn(keys[1], cout, cout, 3),
        stride=stride,
        downsample=None,
    )
    if stride != 1 or cin != cout:   # has_downsampler: 1x1 shortcut conv + bn
        blk["downsample"] = init_conv_bn(keys[2], cin, cout, 1)
    return blk


def init_model(key, cin=4, base=8, num_classes=10):
    keys = jax.random.split(key, 6)
    params = dict()
    params["conv1"] = init_conv_bn(keys[0], cin, base, 3)
    widths = [base, base * 2, base * 4, base * 8]
    strides = [1, 2, 2, 2]
    in_c = base
    layers = []
    for li in range(4):              # layer1..layer4, 2 PurgedBasicBlocks each
        lkeys = jax.random.split(keys[1 + li], 2)
        blocks = []
        for bi in range(2):
            s = strides[li] if bi == 0 else 1
            blocks.append(init_basic_block(lkeys[bi], in_c, widths[li], s))
            in_c = widths[li]
        layers.append(blocks)
    params["layers"] = layers
    kf1, kf2 = jax.random.split(keys[5], 2)
    params["fc_w"] = jax.random.normal(kf1, (num_classes, widths[-1]),
                                       jnp.float32) * 0.1
    params["fc_b"] = jax.random.normal(kf2, (num_classes,), jnp.float32) * 0.01
    return params


# ----------------------------------------------------------------------------
# Wrapper-side weight preparation: fold BN into banded, MXU-friendly matrices.
# ----------------------------------------------------------------------------
def _fold_bn(p):
    inv_std = 1.0 / jnp.sqrt(p["var"] + BN_EPS)
    scale = p["gamma"] * inv_std
    bias = p["beta"] + scale * (p["b"] - p["mean"])
    return scale, bias


def _out_size(n, k, s, pad):
    return (n + 2 * pad - k) // s + 1


def _banded_taps(p, Win, Cin, stride, conv_pad, w_override=None):
    """Per-row-tap banded weights + folded BN bias.

    Canvas layout: canvas[h + canvas_pad, w*Cin + ci] = x[h, w, ci].
    Returns kh matrices of shape (Win*Cin, Wo*Cout) (W-taps, W-pad and
    W-stride folded in) and a bias row of shape (Wo*Cout,).
    """
    w = p["w"] if w_override is None else w_override       # (Cout,Cin,kh,kw)
    Cout, Cin_w, kh, kw = w.shape
    assert Cin_w == Cin
    scale, bias = _fold_bn(p)
    Wo = _out_size(Win, kw, stride, conv_pad)
    dj = np.arange(kw)[:, None, None]
    wcol = np.arange(Win)[None, :, None]
    oj = np.arange(Wo)[None, None, :]
    M = (wcol == oj * stride + dj - conv_pad).astype(np.float32)  # (kw,Win,Wo)
    wscaled = (w * scale[:, None, None, None]).astype(jnp.float32)
    wbig = jnp.einsum("awo,nida->dwion", jnp.asarray(M), wscaled)
    wbig = wbig.reshape(kh, Win * Cin, Wo * Cout)
    bias_row = jnp.tile(bias, Wo)                                 # (Wo*Cout,)
    return [wbig[d] for d in range(kh)], bias_row, Wo, Cout, kh


def _build_plan(params, input_shape, cin_pad):
    """Static execution plan: packed weight slabs, canvases, conv descriptors."""
    B, C0, H0, W0 = input_shape
    narrow_taps, wide_taps, bias_rows = [], [], []
    canvases, ops = [], []

    def new_canvas(h, cols, pad):
        cv = dict(idx=len(canvases), rows=h + 2 * pad, cols=cols, pad=pad)
        canvases.append(cv)
        return cv

    def push_narrow(arr):
        narrow_taps.append(arr.astype(jnp.bfloat16)); return len(narrow_taps) - 1

    def push_wide(arr):
        wide_taps.append(arr.astype(jnp.bfloat16)); return len(wide_taps) - 1

    def push_bias(arr):
        bias_rows.append(arr.astype(jnp.float32)); return len(bias_rows) - 1

    def add_conv(p, in_cv, hin, win, cin, stride, conv_pad, relu,
                 res_cv=None, out_pad=1, ds=None, w_override=None):
        taps, brow, Wo, Cout, kh = _banded_taps(p, win, cin, stride, conv_pad,
                                                w_override=w_override)
        Ho = _out_size(hin, kh, stride, conv_pad)
        N = Wo * Cout
        row_off = in_cv["pad"] - conv_pad
        mid = kh // 2
        ds_info = None
        if ds is not None:
            # 1x1 shortcut conv+bn reads exactly the same strided rows of the
            # same input canvas as conv1's middle row tap -> fuse along N.
            dtaps, dbrow, dWo, dCout, dkh = _banded_taps(ds, win, cin, stride, 0)
            assert dkh == 1 and dWo == Wo and dWo * dCout == N
            wide_w = jnp.concatenate([taps[mid], dtaps[0]], axis=1)   # (K, 2N)
            ds_cv = new_canvas(Ho, N, pad=0)
            ds_info = dict(out_idx=ds_cv["idx"], bias_idx=push_bias(dbrow))
        tap_ids = []
        for d in range(kh):
            if ds_info is not None and d == mid:
                tap_ids.append(("w", push_wide(wide_w)))
            else:
                tap_ids.append(("n", push_narrow(taps[d])))
        out_cv = new_canvas(Ho, N, pad=out_pad)
        ops.append(dict(
            in_idx=in_cv["idx"], out_idx=out_cv["idx"], out_pad=out_pad,
            row_off=row_off, stride=stride, Ho=Ho, N=N,
            tap_ids=tap_ids, bias_idx=push_bias(brow), relu=relu, ds=ds_info,
            res_idx=(None if res_cv is None else res_cv["idx"]),
            res_pad=(0 if res_cv is None else res_cv["pad"])))
        sc_cv = canvases[ds_info["out_idx"]] if ds_info is not None else None
        return out_cv, Ho, Wo, Cout, sc_cv

    # Image canvas: lanes = W0 * cin_pad (Cin zero-padded so the canvas is a
    # lane-dense (H0, 128) slab and the stem conv gets K=128).
    cv_x = new_canvas(H0, W0 * cin_pad, pad=1)

    # Stem: conv1 + bn1 + act1 (Cin padded with zero weight columns).
    w0 = params["conv1"]["w"]
    w0p = jnp.pad(w0, ((0, 0), (0, cin_pad - w0.shape[1]), (0, 0), (0, 0)))
    cur, h, w, c, _ = add_conv(params["conv1"], cv_x, H0, W0, cin_pad,
                               stride=1, conv_pad=1, relu=True, w_override=w0p)
    # TODO(synk): do_initial_maxpool=True (ImageNet 3x3/s2 maxpool stem) is not
    #             implemented; CIFAR-style stem (no maxpool) is used.

    for blocks in params["layers"]:                      # layer1 .. layer4
        for blk in blocks:
            s = blk["stride"]
            ds = blk["downsample"]
            cv1, h1, w1, c1, sc_cv = add_conv(blk["conv1"], cur, h, w, c,
                                              stride=s, conv_pad=1, relu=True,
                                              ds=ds)
            res_cv = sc_cv if ds is not None else cur    # identity shortcut
            cur, h, w, c, _ = add_conv(blk["conv2"], cv1, h1, w1, c1,
                                       stride=1, conv_pad=1, relu=True,
                                       res_cv=res_cv)

    # Head: global avgpool + flatten + fcout folded into one (128,128) matmul
    # (divide by h*w folded in, class dim zero-padded 10 -> 128 lanes).
    nc = params["fc_w"].shape[0]
    ncls_pad = 128
    fcw = jnp.tile(params["fc_w"].T.astype(jnp.float32) / float(h * w), (w, 1))
    fcw = jnp.pad(fcw, ((0, 0), (0, ncls_pad - nc)))               # (w*c, 128)
    fcb = jnp.pad(params["fc_b"].astype(jnp.float32), (0, ncls_pad - nc))
    head = dict(in_idx=cur["idx"], in_pad=cur["pad"], h=h, nc=nc,
                ncls_pad=ncls_pad, w_idx=push_narrow(fcw), b_idx=push_bias(fcb))

    if not wide_taps:                                    # keep slab non-empty
        wide_taps.append(jnp.zeros((128, 256), jnp.bfloat16))
    slab_n = jnp.stack(narrow_taps, axis=0)              # (Tn, 128, 128) bf16
    slab_w = jnp.stack(wide_taps, axis=0)                # (Tw, 128, 256) bf16
    slab_b = jnp.stack(bias_rows, axis=0)                # (Tb, 128)      f32
    return slab_n, slab_w, slab_b, canvases, ops, head


# ----------------------------------------------------------------------------
# Fused Pallas kernel (whole forward pass, one image per grid step).
# ----------------------------------------------------------------------------
def build_purged_resnet(params, input_shape, cin_pad=8):
    B, C0, H0, W0 = input_shape
    slab_n, slab_w, slab_b, canvases, ops, head = _build_plan(
        params, input_shape, cin_pad)
    ncls_pad = head["ncls_pad"]
    nc = head["nc"]

    def kernel(x_ref, wn_ref, ww_ref, bias_ref, out_ref, *cv_refs):
        # Zero ONLY the padding rows.  Interior rows are fully overwritten
        # every step; pad=0 canvases (shortcuts) are fully overwritten and
        # skipped.  Done every step (not program_id==0) because the parallel
        # grid may be split across TensorCores, each with its own scratch.
        for cv in canvases:
            if cv["pad"] == 0:
                continue
            ref = cv_refs[cv["idx"]]
            zpad = jnp.zeros((cv["pad"], cv["cols"]), jnp.float32)
            ref[pl.ds(0, cv["pad"]), :] = zpad
            ref[pl.ds(cv["rows"] - cv["pad"], cv["pad"]), :] = zpad

        # Place this grid step's image (rows, W*Cpad lanes) into its canvas.
        cv_refs[0][pl.ds(canvases[0]["pad"], H0), :] = x_ref[0]

        # Run every conv of the static plan, fully VMEM-resident.
        for op in ops:
            cv_in = cv_refs[op["in_idx"]]
            Ho, stride, N = op["Ho"], op["stride"], op["N"]
            z = None
            sc = None
            for d, (kind, t) in enumerate(op["tap_ids"]):
                start = op["row_off"] + d
                if stride == 1:
                    lhs = cv_in[pl.ds(start, Ho), :]
                else:  # H-stride folded into a strided row slice (no select matmul)
                    lhs = cv_in[pl.ds(start, Ho, stride=stride), :]
                lhs = lhs.astype(jnp.bfloat16)
                if kind == "w":          # conv1 middle tap fused with 1x1 shortcut
                    wide = jnp.dot(lhs, ww_ref[t],
                                   preferred_element_type=jnp.float32)
                    part = wide[:, :N]
                    sc = wide[:, N:]
                else:
                    part = jnp.dot(lhs, wn_ref[t],
                                   preferred_element_type=jnp.float32)
                z = part if z is None else z + part
            y = z + bias_ref[pl.ds(op["bias_idx"], 1), :]
            if op["res_idx"] is not None:            # residual add (shortcut)
                rcv = cv_refs[op["res_idx"]]
                y = y + rcv[pl.ds(op["res_pad"], Ho), :]
            if op["relu"]:
                y = jnp.maximum(y, 0.0)
            cv_refs[op["out_idx"]][pl.ds(op["out_pad"], Ho), :] = y
            if op["ds"] is not None:                 # store fused shortcut branch
                dsi = op["ds"]
                y_sc = sc + bias_ref[pl.ds(dsi["bias_idx"], 1), :]
                cv_refs[dsi["out_idx"]][pl.ds(0, Ho), :] = y_sc

        # Head: global average pool + fcout as one lane-dense matmul epilogue.
        fcv = cv_refs[head["in_idx"]]
        act = fcv[pl.ds(head["in_pad"], head["h"]), :].astype(jnp.bfloat16)
        t = jnp.dot(act, wn_ref[head["w_idx"]],
                    preferred_element_type=jnp.float32)
        logits = (jnp.sum(t, axis=0, keepdims=True)
                  + bias_ref[pl.ds(head["b_idx"], 1), :])
        out_ref[...] = logits.reshape((1, 1, ncls_pad))

    in_specs = [
        pl.BlockSpec((1, H0, W0 * cin_pad), lambda b: (b, 0, 0)),
        pl.BlockSpec(slab_n.shape, lambda b: (0, 0, 0)),
        pl.BlockSpec(slab_w.shape, lambda b: (0, 0, 0)),
        pl.BlockSpec(slab_b.shape, lambda b: (0, 0)),
    ]
    call = pl.pallas_call(
        kernel,
        out_shape=jax.ShapeDtypeStruct((B, 1, ncls_pad), jnp.float32),
        grid=(B,),
        in_specs=in_specs,
        out_specs=pl.BlockSpec((1, 1, ncls_pad), lambda b: (b, 0, 0)),
        scratch_shapes=[pltpu.VMEM((cv["rows"], cv["cols"]), jnp.float32)
                        for cv in canvases],
        compiler_params=pltpu.CompilerParams(
            dimension_semantics=("parallel",)),
    )

    def forward(x_nchw):
        x = jnp.transpose(x_nchw, (0, 2, 3, 1)).astype(jnp.float32)   # NHWC
        x = jnp.pad(x, ((0, 0), (0, 0), (0, 0), (0, cin_pad - C0)))
        x = x.reshape(B, H0, W0 * cin_pad)       # lanes = w*Cpad + c (dense 128)
        out = call(x, slab_n, slab_w, slab_b)
        return out[:, 0, :nc]

    return forward


# ----------------------------------------------------------------------------
# Plain-XLA float32 reference (self-check; kernel feeds the MXU bf16 operands).
# ----------------------------------------------------------------------------
def _ref_conv_bn(x, p, stride, relu, residual=None):
    w = jnp.transpose(p["w"], (2, 3, 1, 0))      # HWIO
    pad = (p["w"].shape[2] - 1) // 2
    y = jax.lax.conv_general_dilated(
        x, w, window_strides=(stride, stride),
        padding=[(pad, pad), (pad, pad)],
        dimension_numbers=("NHWC", "HWIO", "NHWC"))
    scale, bias = _fold_bn(p)
    y = y * scale + bias
    if residual is not None:
        y = y + residual
    if relu:
        y = jnp.maximum(y, 0.0)
    return y


def _ref_forward(x_nchw, params):
    x = jnp.transpose(x_nchw, (0, 2, 3, 1))
    out = _ref_conv_bn(x, params["conv1"], 1, True)
    for blocks in params["layers"]:
        for blk in blocks:
            o1 = _ref_conv_bn(out, blk["conv1"], blk["stride"], True)
            if blk["downsample"] is not None:
                sc = _ref_conv_bn(out, blk["downsample"], blk["stride"], False)
            else:
                sc = out
            out = _ref_conv_bn(o1, blk["conv2"], 1, True, residual=sc)
    pooled = jnp.mean(out, axis=(1, 2))
    return pooled @ params["fc_w"].T + params["fc_b"]


if __name__ == "__main__":
    key = jax.random.PRNGKey(0)
    kx, kp = jax.random.split(key)
    x = jax.random.normal(kx, (2, 4, 16, 16), jnp.float32)   # NCHW input
    params = init_model(kp, cin=4, base=8, num_classes=10)

    forward = build_purged_resnet(params, x.shape)
    fwd = jax.jit(forward)
    out = fwd(x)
    jax.block_until_ready(out)
    assert out.shape == (2, 10) and out.dtype == jnp.float32
    assert bool(jnp.all(jnp.isfinite(out)))

    # Self-check against a plain-XLA float32 reference (loose tolerance:
    # the kernel feeds the MXU bfloat16 operands).
    ref = jax.jit(lambda xin: _ref_forward(xin, params))(x)
    jax.block_until_ready(ref)
    rel = float(jnp.sqrt(jnp.mean((out - ref) ** 2))
                / (jnp.sqrt(jnp.mean(ref ** 2)) + 1e-6))
    assert rel < 0.15, f"kernel vs reference mismatch: rel_rms={rel:.4f}"
    print("KERNEL_OK")
</pallas_src>

<mosaic_0001>
module attributes {stable_mosaic.version = 11 : i64} {
  func.func @kernel(%arg0: i32, %arg1: memref<1x16x128xf32, #tpu.memory_space<vmem>>, %arg2: memref<49x128x128xbf16, #tpu.memory_space<vmem>>, %arg3: memref<3x128x256xbf16, #tpu.memory_space<vmem>>, %arg4: memref<21x128xf32, #tpu.memory_space<vmem>>, %arg5: memref<1x1x128xf32, #tpu.memory_space<vmem>>, %arg6: memref<18x128xf32, #tpu.memory_space<vmem>>, %arg7: memref<18x128xf32, #tpu.memory_space<vmem>>, %arg8: memref<18x128xf32, #tpu.memory_space<vmem>>, %arg9: memref<18x128xf32, #tpu.memory_space<vmem>>, %arg10: memref<18x128xf32, #tpu.memory_space<vmem>>, %arg11: memref<18x128xf32, #tpu.memory_space<vmem>>, %arg12: memref<8x128xf32, #tpu.memory_space<vmem>>, %arg13: memref<10x128xf32, #tpu.memory_space<vmem>>, %arg14: memref<10x128xf32, #tpu.memory_space<vmem>>, %arg15: memref<10x128xf32, #tpu.memory_space<vmem>>, %arg16: memref<10x128xf32, #tpu.memory_space<vmem>>, %arg17: memref<4x128xf32, #tpu.memory_space<vmem>>, %arg18: memref<6x128xf32, #tpu.memory_space<vmem>>, %arg19: memref<6x128xf32, #tpu.memory_space<vmem>>, %arg20: memref<6x128xf32, #tpu.memory_space<vmem>>, %arg21: memref<6x128xf32, #tpu.memory_space<vmem>>, %arg22: memref<2x128xf32, #tpu.memory_space<vmem>>, %arg23: memref<4x128xf32, #tpu.memory_space<vmem>>, %arg24: memref<4x128xf32, #tpu.memory_space<vmem>>, %arg25: memref<4x128xf32, #tpu.memory_space<vmem>>, %arg26: memref<4x128xf32, #tpu.memory_space<vmem>>) attributes {dimension_semantics = [#tpu.dimension_semantics<parallel>], iteration_bounds = array<i64: 2>, scalar_prefetch = 0 : i64, scratch_operands = 21 : i64, tpu.core_type = #tpu.core_type<tc>, window_params = [{transform_indices = @transform_0, window_bounds = array<i64: 1, 16, 128>}, {pipeline_mode = #tpu.pipeline_mode<synchronous>, transform_indices = @transform_1, window_bounds = array<i64: 49, 128, 128>}, {pipeline_mode = #tpu.pipeline_mode<synchronous>, transform_indices = @transform_2, window_bounds = array<i64: 3, 128, 256>}, {pipeline_mode = #tpu.pipeline_mode<synchronous>, transform_indices = @transform_3, window_bounds = array<i64: 21, 128>}, {transform_indices = @transform_4, window_bounds = array<i64: 1, 1, 128>}]} {
    %cst = arith.constant 0.000000e+00 : f32
    %0 = vector.broadcast %cst : f32 to vector<1x128xf32>
    %c0 = arith.constant 0 : index
    %c0_0 = arith.constant 0 : index
    %1 = vector.load %arg6[%c0, %c0_0] : memref<18x128xf32, #tpu.memory_space<vmem>>, vector<1x128xf32>
    tpu.vector_store %arg6[%c0, %c0_0], %0 {strides = array<i32>} : memref<18x128xf32, #tpu.memory_space<vmem>>, vector<1x128xf32>,
    %c17 = arith.constant 17 : index
    %c0_1 = arith.constant 0 : index
    %2 = vector.load %arg6[%c17, %c0_1] : memref<18x128xf32, #tpu.memory_space<vmem>>, vector<1x128xf32>
    tpu.vector_store %arg6[%c17, %c0_1], %0 {strides = array<i32>} : memref<18x128xf32, #tpu.memory_space<vmem>>, vector<1x128xf32>,
    %cst_2 = arith.constant 0.000000e+00 : f32
    %3 = vector.broadcast %cst_2 : f32 to vector<1x128xf32>
    %c0_3 = arith.constant 0 : index
    %c0_4 = arith.constant 0 : index
    %4 = vector.load %arg7[%c0_3, %c0_4] : memref<18x128xf32, #tpu.memory_space<vmem>>, vector<1x128xf32>
    tpu.vector_store %arg7[%c0_3, %c0_4], %3 {strides = array<i32>} : memref<18x128xf32, #tpu.memory_space<vmem>>, vector<1x128xf32>,
    %c17_5 = arith.constant 17 : index
    %c0_6 = arith.constant 0 : index
    %5 = vector.load %arg7[%c17_5, %c0_6] : memref<18x128xf32, #tpu.memory_space<vmem>>, vector<1x128xf32>
    tpu.vector_store %arg7[%c17_5, %c0_6], %3 {strides = array<i32>} : memref<18x128xf32, #tpu.memory_space<vmem>>, vector<1x128xf32>,
    %cst_7 = arith.constant 0.000000e+00 : f32
    %6 = vector.broadcast %cst_7 : f32 to vector<1x128xf32>
    %c0_8 = arith.constant 0 : index
    %c0_9 = arith.constant 0 : index
    %7 = vector.load %arg8[%c0_8, %c0_9] : memref<18x128xf32, #tpu.memory_space<vmem>>, vector<1x128xf32>
    tpu.vector_store %arg8[%c0_8, %c0_9], %6 {strides = array<i32>} : memref<18x128xf32, #tpu.memory_space<vmem>>, vector<1x128xf32>,
    %c17_10 = arith.constant 17 : index
    %c0_11 = arith.constant 0 : index
    %8 = vector.load %arg8[%c17_10, %c0_11] : memref<18x128xf32, #tpu.memory_space<vmem>>, vector<1x128xf32>
    tpu.vector_store %arg8[%c17_10, %c0_11], %6 {strides = array<i32>} : memref<18x128xf32, #tpu.memory_space<vmem>>, vector<1x128xf32>,
    %cst_12 = arith.constant 0.000000e+00 : f32
    %9 = vector.broadcast %cst_12 : f32 to vector<1x128xf32>
    %c0_13 = arith.constant 0 : index
    %c0_14 = arith.constant 0 : index
    %10 = vector.load %arg9[%c0_13, %c0_14] : memref<18x128xf32, #tpu.memory_space<vmem>>, vector<1x128xf32>
    tpu.vector_store %arg9[%c0_13, %c0_14], %9 {strides = array<i32>} : memref<18x128xf32, #tpu.memory_space<vmem>>, vector<1x128xf32>,
    %c17_15 = arith.constant 17 : index
    %c0_16 = arith.constant 0 : index
    %11 = vector.load %arg9[%c17_15, %c0_16] : memref<18x128xf32, #tpu.memory_space<vmem>>, vector<1x128xf32>
    tpu.vector_store %arg9[%c17_15, %c0_16], %9 {strides = array<i32>} : memref<18x128xf32, #tpu.memory_space<vmem>>, vector<1x128xf32>,
    %cst_17 = arith.constant 0.000000e+00 : f32
    %12 = vector.broadcast %cst_17 : f32 to vector<1x128xf32>
    %c0_18 = arith.constant 0 : index
    %c0_19 = arith.constant 0 : index
    %13 = vector.load %arg10[%c0_18, %c0_19] : memref<18x128xf32, #tpu.memory_space<vmem>>, vector<1x128xf32>
    tpu.vector_store %arg10[%c0_18, %c0_19], %12 {strides = array<i32>} : memref<18x128xf32, #tpu.memory_space<vmem>>, vector<1x128xf32>,
    %c17_20 = arith.constant 17 : index
    %c0_21 = arith.constant 0 : index
    %14 = vector.load %arg10[%c17_20, %c0_21] : memref<18x128xf32, #tpu.memory_space<vmem>>, vector<1x128xf32>
    tpu.vector_store %arg10[%c17_20, %c0_21], %12 {strides = array<i32>} : memref<18x128xf32, #tpu.memory_space<vmem>>, vector<1x128xf32>,
    %cst_22 = arith.constant 0.000000e+00 : f32
    %15 = vector.broadcast %cst_22 : f32 to vector<1x128xf32>
    %c0_23 = arith.constant 0 : index
    %c0_24 = arith.constant 0 : index
    %16 = vector.load %arg11[%c0_23, %c0_24] : memref<18x128xf32, #tpu.memory_space<vmem>>, vector<1x128xf32>
    tpu.vector_store %arg11[%c0_23, %c0_24], %15 {strides = array<i32>} : memref<18x128xf32, #tpu.memory_space<vmem>>, vector<1x128xf32>,
    %c17_25 = arith.constant 17 : index
    %c0_26 = arith.constant 0 : index
    %17 = vector.load %arg11[%c17_25, %c0_26] : memref<18x128xf32, #tpu.memory_space<vmem>>, vector<1x128xf32>
    tpu.vector_store %arg11[%c17_25, %c0_26], %15 {strides = array<i32>} : memref<18x128xf32, #tpu.memory_space<vmem>>, vector<1x128xf32>,
    %cst_27 = arith.constant 0.000000e+00 : f32
    %18 = vector.broadcast %cst_27 : f32 to vector<1x128xf32>
    %c0_28 = arith.constant 0 : index
    %c0_29 = arith.constant 0 : index
    %19 = vector.load %arg13[%c0_28, %c0_29] : memref<10x128xf32, #tpu.memory_space<vmem>>, vector<1x128xf32>
    tpu.vector_store %arg13[%c0_28, %c0_29], %18 {strides = array<i32>} : memref<10x128xf32, #tpu.memory_space<vmem>>, vector<1x128xf32>,
    %c9 = arith.constant 9 : index
    %c0_30 = arith.constant 0 : index
    %20 = vector.load %arg13[%c9, %c0_30] : memref<10x128xf32, #tpu.memory_space<vmem>>, vector<1x128xf32>
    tpu.vector_store %arg13[%c9, %c0_30], %18 {strides = array<i32>} : memref<10x128xf32, #tpu.memory_space<vmem>>, vector<1x128xf32>,
    %cst_31 = arith.constant 0.000000e+00 : f32
    %21 = vector.broadcast %cst_31 : f32 to vector<1x128xf32>
    %c0_32 = arith.constant 0 : index
    %c0_33 = arith.constant 0 : index
    %22 = vector.load %arg14[%c0_32, %c0_33] : memref<10x128xf32, #tpu.memory_space<vmem>>, vector<1x128xf32>
    tpu.vector_store %arg14[%c0_32, %c0_33], %21 {strides = array<i32>} : memref<10x128xf32, #tpu.memory_space<vmem>>, vector<1x128xf32>,
    %c9_34 = arith.constant 9 : index
    %c0_35 = arith.constant 0 : index
    %23 = vector.load %arg14[%c9_34, %c0_35] : memref<10x128xf32, #tpu.memory_space<vmem>>, vector<1x128xf32>
    tpu.vector_store %arg14[%c9_34, %c0_35], %21 {strides = array<i32>} : memref<10x128xf32, #tpu.memory_space<vmem>>, vector<1x128xf32>,
    %cst_36 = arith.constant 0.000000e+00 : f32
    %24 = vector.broadcast %cst_36 : f32 to vector<1x128xf32>
    %c0_37 = arith.constant 0 : index
    %c0_38 = arith.constant 0 : index
    %25 = vector.load %arg15[%c0_37, %c0_38] : memref<10x128xf32, #tpu.memory_space<vmem>>, vector<1x128xf32>
    tpu.vector_store %arg15[%c0_37, %c0_38], %24 {strides = array<i32>} : memref<10x128xf32, #tpu.memory_space<vmem>>, vector<1x128xf32>,
    %c9_39 = arith.constant 9 : index
    %c0_40 = arith.constant 0 : index
    %26 = vector.load %arg15[%c9_39, %c0_40] : memref<10x128xf32, #tpu.memory_space<vmem>>, vector<1x128xf32>
    tpu.vector_store %arg15[%c9_39, %c0_40], %24 {strides = array<i32>} : memref<10x128xf32, #tpu.memory_space<vmem>>, vector<1x128xf32>,
    %cst_41 = arith.constant 0.000000e+00 : f32
    %27 = vector.broadcast %cst_41 : f32 to vector<1x128xf32>
    %c0_42 = arith.constant 0 : index
    %c0_43 = arith.constant 0 : index
    %28 = vector.load %arg16[%c0_42, %c0_43] : memref<10x128xf32, #tpu.memory_space<vmem>>, vector<1x128xf32>
    tpu.vector_store %arg16[%c0_42, %c0_43], %27 {strides = array<i32>} : memref<10x128xf32, #tpu.memory_space<vmem>>, vector<1x128xf32>,
    %c9_44 = arith.constant 9 : index
    %c0_45 = arith.constant 0 : index
    %29 = vector.load %arg16[%c9_44, %c0_45] : memref<10x128xf32, #tpu.memory_space<vmem>>, vector<1x128xf32>
    tpu.vector_store %arg16[%c9_44, %c0_45], %27 {strides = array<i32>} : memref<10x128xf32, #tpu.memory_space<vmem>>, vector<1x128xf32>,
    %cst_46 = arith.constant 0.000000e+00 : f32
    %30 = vector.broadcast %cst_46 : f32 to vector<1x128xf32>
    %c0_47 = arith.constant 0 : index
    %c0_48 = arith.constant 0 : index
    %31 = vector.load %arg18[%c0_47, %c0_48] : memref<6x128xf32, #tpu.memory_space<vmem>>, vector<1x128xf32>
    tpu.vector_store %arg18[%c0_47, %c0_48], %30 {strides = array<i32>} : memref<6x128xf32, #tpu.memory_space<vmem>>, vector<1x128xf32>,
    %c5 = arith.constant 5 : index
    %c0_49 = arith.constant 0 : index
    %32 = vector.load %arg18[%c5, %c0_49] : memref<6x128xf32, #tpu.memory_space<vmem>>, vector<1x128xf32>
    tpu.vector_store %arg18[%c5, %c0_49], %30 {strides = array<i32>} : memref<6x128xf32, #tpu.memory_space<vmem>>, vector<1x128xf32>,
    %cst_50 = arith.constant 0.000000e+00 : f32
    %33 = vector.broadcast %cst_50 : f32 to vector<1x128xf32>
    %c0_51 = arith.constant 0 : index
    %c0_52 = arith.constant 0 : index
    %34 = vector.load %arg19[%c0_51, %c0_52] : memref<6x128xf32, #tpu.memory_space<vmem>>, vector<1x128xf32>
    tpu.vector_store %arg19[%c0_51, %c0_52], %33 {strides = array<i32>} : memref<6x128xf32, #tpu.memory_space<vmem>>, vector<1x128xf32>,
    %c5_53 = arith.constant 5 : index
    %c0_54 = arith.constant 0 : index
    %35 = vector.load %arg19[%c5_53, %c0_54] : memref<6x128xf32, #tpu.memory_space<vmem>>, vector<1x128xf32>
    tpu.vector_store %arg19[%c5_53, %c0_54], %33 {strides = array<i32>} : memref<6x128xf32, #tpu.memory_space<vmem>>, vector<1x128xf32>,
    %cst_55 = arith.constant 0.000000e+00 : f32
    %36 = vector.broadcast %cst_55 : f32 to vector<1x128xf32>
    %c0_56 = arith.constant 0 : index
    %c0_57 = arith.constant 0 : index
    %37 = vector.load %arg20[%c0_56, %c0_57] : memref<6x128xf32, #tpu.memory_space<vmem>>, vector<1x128xf32>
    tpu.vector_store %arg20[%c0_56, %c0_57], %36 {strides = array<i32>} : memref<6x128xf32, #tpu.memory_space<vmem>>, vector<1x128xf32>,
    %c5_58 = arith.constant 5 : index
    %c0_59 = arith.constant 0 : index
    %38 = vector.load %arg20[%c5_58, %c0_59] : memref<6x128xf32, #tpu.memory_space<vmem>>, vector<1x128xf32>
    tpu.vector_store %arg20[%c5_58, %c0_59], %36 {strides = array<i32>} : memref<6x128xf32, #tpu.memory_space<vmem>>, vector<1x128xf32>,
    %cst_60 = arith.constant 0.000000e+00 : f32
    %39 = vector.broadcast %cst_60 : f32 to vector<1x128xf32>
    %c0_61 = arith.constant 0 : index
    %c0_62 = arith.constant 0 : index
    %40 = vector.load %arg21[%c0_61, %c0_62] : memref<6x128xf32, #tpu.memory_space<vmem>>, vector<1x128xf32>
    tpu.vector_store %arg21[%c0_61, %c0_62], %39 {strides = array<i32>} : memref<6x128xf32, #tpu.memory_space<vmem>>, vector<1x128xf32>,
    %c5_63 = arith.constant 5 : index
    %c0_64 = arith.constant 0 : index
    %41 = vector.load %arg21[%c5_63, %c0_64] : memref<6x128xf32, #tpu.memory_space<vmem>>, vector<1x128xf32>
    tpu.vector_store %arg21[%c5_63, %c0_64], %39 {strides = array<i32>} : memref<6x128xf32, #tpu.memory_space<vmem>>, vector<1x128xf32>,
    %cst_65 = arith.constant 0.000000e+00 : f32
    %42 = vector.broadcast %cst_65 : f32 to vector<1x128xf32>
    %c0_66 = arith.constant 0 : index
    %c0_67 = arith.constant 0 : index
    %43 = vector.load %arg23[%c0_66, %c0_67] : memref<4x128xf32, #tpu.memory_space<vmem>>, vector<1x128xf32>
    tpu.vector_store %arg23[%c0_66, %c0_67], %42 {strides = array<i32>} : memref<4x128xf32, #tpu.memory_space<vmem>>, vector<1x128xf32>,
    %c3 = arith.constant 3 : index
    %c0_68 = arith.constant 0 : index
    %44 = vector.load %arg23[%c3, %c0_68] : memref<4x128xf32, #tpu.memory_space<vmem>>, vector<1x128xf32>
    tpu.vector_store %arg23[%c3, %c0_68], %42 {strides = array<i32>} : memref<4x128xf32, #tpu.memory_space<vmem>>, vector<1x128xf32>,
    %cst_69 = arith.constant 0.000000e+00 : f32
    %45 = vector.broadcast %cst_69 : f32 to vector<1x128xf32>
    %c0_70 = arith.constant 0 : index
    %c0_71 = arith.constant 0 : index
    %46 = vector.load %arg24[%c0_70, %c0_71] : memref<4x128xf32, #tpu.memory_space<vmem>>, vector<1x128xf32>
    tpu.vector_store %arg24[%c0_70, %c0_71], %45 {strides = array<i32>} : memref<4x128xf32, #tpu.memory_space<vmem>>, vector<1x128xf32>,
    %c3_72 = arith.constant 3 : index
    %c0_73 = arith.constant 0 : index
    %47 = vector.load %arg24[%c3_72, %c0_73] : memref<4x128xf32, #tpu.memory_space<vmem>>, vector<1x128xf32>
    tpu.vector_store %arg24[%c3_72, %c0_73], %45 {strides = array<i32>} : memref<4x128xf32, #tpu.memory_space<vmem>>, vector<1x128xf32>,
    %cst_74 = arith.constant 0.000000e+00 : f32
    %48 = vector.broadcast %cst_74 : f32 to vector<1x128xf32>
    %c0_75 = arith.constant 0 : index
    %c0_76 = arith.constant 0 : index
    %49 = vector.load %arg25[%c0_75, %c0_76] : memref<4x128xf32, #tpu.memory_space<vmem>>, vector<1x128xf32>
    tpu.vector_store %arg25[%c0_75, %c0_76], %48 {strides = array<i32>} : memref<4x128xf32, #tpu.memory_space<vmem>>, vector<1x128xf32>,
    %c3_77 = arith.constant 3 : index
    %c0_78 = arith.constant 0 : index
    %50 = vector.load %arg25[%c3_77, %c0_78] : memref<4x128xf32, #tpu.memory_space<vmem>>, vector<1x128xf32>
    tpu.vector_store %arg25[%c3_77, %c0_78], %48 {strides = array<i32>} : memref<4x128xf32, #tpu.memory_space<vmem>>, vector<1x128xf32>,
    %cst_79 = arith.constant 0.000000e+00 : f32
    %51 = vector.broadcast %cst_79 : f32 to vector<1x128xf32>
    %c0_80 = arith.constant 0 : index
    %c0_81 = arith.constant 0 : index
    %52 = vector.load %arg26[%c0_80, %c0_81] : memref<4x128xf32, #tpu.memory_space<vmem>>, vector<1x128xf32>
    tpu.vector_store %arg26[%c0_80, %c0_81], %51 {strides = array<i32>} : memref<4x128xf32, #tpu.memory_space<vmem>>, vector<1x128xf32>,
    %c3_82 = arith.constant 3 : index
    %c0_83 = arith.constant 0 : index
    %53 = vector.load %arg26[%c3_82, %c0_83] : memref<4x128xf32, #tpu.memory_space<vmem>>, vector<1x128xf32>
    tpu.vector_store %arg26[%c3_82, %c0_83], %51 {strides = array<i32>} : memref<4x128xf32, #tpu.memory_space<vmem>>, vector<1x128xf32>,
    %c0_84 = arith.constant 0 : index
    %c0_85 = arith.constant 0 : index
    %c0_86 = arith.constant 0 : index
    %54 = vector.load %arg1[%c0_84, %c0_85, %c0_86] : memref<1x16x128xf32, #tpu.memory_space<vmem>>, vector<1x16x128xf32>
    %55 = vector.shape_cast %54 : vector<1x16x128xf32> to vector<16x128xf32>
    %c1 = arith.constant 1 : index
    %c0_87 = arith.constant 0 : index
    %56 = vector.load %arg6[%c1, %c0_87] : memref<18x128xf32, #tpu.memory_space<vmem>>, vector<16x128xf32>
    tpu.vector_store %arg6[%c1, %c0_87], %55 {strides = array<i32>} : memref<18x128xf32, #tpu.memory_space<vmem>>, vector<16x128xf32>,
    %c0_88 = arith.constant 0 : index
    %c0_89 = arith.constant 0 : index
    %57 = vector.load %arg6[%c0_88, %c0_89] : memref<18x128xf32, #tpu.memory_space<vmem>>, vector<16x128xf32>
    %58 = arith.truncf %57 : vector<16x128xf32> to vector<16x128xbf16>
    %c0_90 = arith.constant 0 : index
    %c0_91 = arith.constant 0 : index
    %c0_92 = arith.constant 0 : index
    %59 = vector.load %arg2[%c0_90, %c0_91, %c0_92] : memref<49x128x128xbf16, #tpu.memory_space<vmem>>, vector<1x128x128xbf16>
    %60 = vector.shape_cast %59 : vector<1x128x128xbf16> to vector<128x128xbf16>
    %cst_93 = arith.constant dense<0.000000e+00> : vector<16x128xf32>
    %61 = tpu.matmul %58, %60, %cst_93 {dimension_numbers = #tpu.dot_dimension_numbers<[1], [0], [0], [1], [0, 0, 1, 1], [], []>} : vector<16x128xbf16>, vector<128x128xbf16>, vector<16x128xf32> -> vector<16x128xf32>
    %c1_94 = arith.constant 1 : index
    %c0_95 = arith.constant 0 : index
    %62 = vector.load %arg6[%c1_94, %c0_95] : memref<18x128xf32, #tpu.memory_space<vmem>>, vector<16x128xf32>
    %63 = arith.truncf %62 : vector<16x128xf32> to vector<16x128xbf16>
    %c1_96 = arith.constant 1 : index
    %c0_97 = arith.constant 0 : index
    %c0_98 = arith.constant 0 : index
    %64 = vector.load %arg2[%c1_96, %c0_97, %c0_98] : memref<49x128x128xbf16, #tpu.memory_space<vmem>>, vector<1x128x128xbf16>
    %65 = vector.shape_cast %64 : vector<1x128x128xbf16> to vector<128x128xbf16>
    %cst_99 = arith.constant dense<0.000000e+00> : vector<16x128xf32>
    %66 = tpu.matmul %63, %65, %cst_99 {dimension_numbers = #tpu.dot_dimension_numbers<[1], [0], [0], [1], [0, 0, 1, 1], [], []>} : vector<16x128xbf16>, vector<128x128xbf16>, vector<16x128xf32> -> vector<16x128xf32>
    %67 = arith.addf %61, %66 : vector<16x128xf32>
    %c2 = arith.constant 2 : index
    %c0_100 = arith.constant 0 : index
    %68 = vector.load %arg6[%c2, %c0_100] : memref<18x128xf32, #tpu.memory_space<vmem>>, vector<16x128xf32>
    %69 = arith.truncf %68 : vector<16x128xf32> to vector<16x128xbf16>
    %c2_101 = arith.constant 2 : index
    %c0_102 = arith.constant 0 : index
    %c0_103 = arith.constant 0 : index
    %70 = vector.load %arg2[%c2_101, %c0_102, %c0_103] : memref<49x128x128xbf16, #tpu.memory_space<vmem>>, vector<1x128x128xbf16>
    %71 = vector.shape_cast %70 : vector<1x128x128xbf16> to vector<128x128xbf16>
    %cst_104 = arith.constant dense<0.000000e+00> : vector<16x128xf32>
    %72 = tpu.matmul %69, %71, %cst_104 {dimension_numbers = #tpu.dot_dimension_numbers<[1], [0], [0], [1], [0, 0, 1, 1], [], []>} : vector<16x128xbf16>, vector<128x128xbf16>, vector<16x128xf32> -> vector<16x128xf32>
    %73 = arith.addf %67, %72 : vector<16x128xf32>
    %c0_105 = arith.constant 0 : index
    %c0_106 = arith.constant 0 : index
    %74 = vector.load %arg4[%c0_105, %c0_106] : memref<21x128xf32, #tpu.memory_space<vmem>>, vector<1x128xf32>
    %75 = vector.broadcast %74 : vector<1x128xf32> to vector<16x128xf32>
    %76 = arith.addf %73, %75 : vector<16x128xf32>
    %cst_107 = arith.constant 0.000000e+00 : f32
    %77 = vector.broadcast %cst_107 : f32 to vector<16x128xf32>
    %78 = arith.maximumf %76, %77 : vector<16x128xf32>
    %c1_108 = arith.constant 1 : index
    %c0_109 = arith.constant 0 : index
    %79 = vector.load %arg7[%c1_108, %c0_109] : memref<18x128xf32, #tpu.memory_space<vmem>>, vector<16x128xf32>
    tpu.vector_store %arg7[%c1_108, %c0_109], %78 {strides = array<i32>} : memref<18x128xf32, #tpu.memory_space<vmem>>, vector<16x128xf32>,
    %c0_110 = arith.constant 0 : index
    %c0_111 = arith.constant 0 : index
    %80 = vector.load %arg7[%c0_110, %c0_111] : memref<18x128xf32, #tpu.memory_space<vmem>>, vector<16x128xf32>
    %81 = arith.truncf %80 : vector<16x128xf32> to vector<16x128xbf16>
    %c3_112 = arith.constant 3 : index
    %c0_113 = arith.constant 0 : index
    %c0_114 = arith.constant 0 : index
    %82 = vector.load %arg2[%c3_112, %c0_113, %c0_114] : memref<49x128x128xbf16, #tpu.memory_space<vmem>>, vector<1x128x128xbf16>
    %83 = vector.shape_cast %82 : vector<1x128x128xbf16> to vector<128x128xbf16>
    %cst_115 = arith.constant dense<0.000000e+00> : vector<16x128xf32>
    %84 = tpu.matmul %81, %83, %cst_115 {dimension_numbers = #tpu.dot_dimension_numbers<[1], [0], [0], [1], [0, 0, 1, 1], [], []>} : vector<16x128xbf16>, vector<128x128xbf16>, vector<16x128xf32> -> vector<16x128xf32>
    %c1_116 = arith.constant 1 : index
    %c0_117 = arith.constant 0 : index
    %85 = vector.load %arg7[%c1_116, %c0_117] : memref<18x128xf32, #tpu.memory_space<vmem>>, vector<16x128xf32>
    %86 = arith.truncf %85 : vector<16x128xf32> to vector<16x128xbf16>
    %c4 = arith.constant 4 : index
    %c0_118 = arith.constant 0 : index
    %c0_119 = arith.constant 0 : index
    %87 = vector.load %arg2[%c4, %c0_118, %c0_119] : memref<49x128x128xbf16, #tpu.memory_space<vmem>>, vector<1x128x128xbf16>
    %88 = vector.shape_cast %87 : vector<1x128x128xbf16> to vector<128x128xbf16>
    %cst_120 = arith.constant dense<0.000000e+00> : vector<16x128xf32>
    %89 = tpu.matmul %86, %88, %cst_120 {dimension_numbers = #tpu.dot_dimension_numbers<[1], [0], [0], [1], [0, 0, 1, 1], [], []>} : vector<16x128xbf16>, vector<128x128xbf16>, vector<16x128xf32> -> vector<16x128xf32>
    %90 = arith.addf %84, %89 : vector<16x128xf32>
    %c2_121 = arith.constant 2 : index
    %c0_122 = arith.constant 0 : index
    %91 = vector.load %arg7[%c2_121, %c0_122] : memref<18x128xf32, #tpu.memory_space<vmem>>, vector<16x128xf32>
    %92 = arith.truncf %91 : vector<16x128xf32> to vector<16x128xbf16>
    %c5_123 = arith.constant 5 : index
    %c0_124 = arith.constant 0 : index
    %c0_125 = arith.constant 0 : index
    %93 = vector.load %arg2[%c5_123, %c0_124, %c0_125] : memref<49x128x128xbf16, #tpu.memory_space<vmem>>, vector<1x128x128xbf16>
    %94 = vector.shape_cast %93 : vector<1x128x128xbf16> to vector<128x128xbf16>
    %cst_126 = arith.constant dense<0.000000e+00> : vector<16x128xf32>
    %95 = tpu.matmul %92, %94, %cst_126 {dimension_numbers = #tpu.dot_dimension_numbers<[1], [0], [0], [1], [0, 0, 1, 1], [], []>} : vector<16x128xbf16>, vector<128x128xbf16>, vector<16x128xf32> -> vector<16x128xf32>
    %96 = arith.addf %90, %95 : vector<16x128xf32>
    %c1_127 = arith.constant 1 : index
    %c0_128 = arith.constant 0 : index
    %97 = vector.load %arg4[%c1_127, %c0_128] : memref<21x128xf32, #tpu.memory_space<vmem>>, vector<1x128xf32>
    %98 = vector.broadcast %97 : vector<1x128xf32> to vector<16x128xf32>
    %99 = arith.addf %96, %98 : vector<16x128xf32>
    %cst_129 = arith.constant 0.000000e+00 : f32
    %100 = vector.broadcast %cst_129 : f32 to vector<16x128xf32>
    %101 = arith.maximumf %99, %100 : vector<16x128xf32>
    %c1_130 = arith.constant 1 : index
    %c0_131 = arith.constant 0 : index
    %102 = vector.load %arg8[%c1_130, %c0_131] : memref<18x128xf32, #tpu.memory_space<vmem>>, vector<16x128xf32>
    tpu.vector_store %arg8[%c1_130, %c0_131], %101 {strides = array<i32>} : memref<18x128xf32, #tpu.memory_space<vmem>>, vector<16x128xf32>,
    %c0_132 = arith.constant 0 : index
    %c0_133 = arith.constant 0 : index
    %103 = vector.load %arg8[%c0_132, %c0_133] : memref<18x128xf32, #tpu.memory_space<vmem>>, vector<16x128xf32>
    %104 = arith.truncf %103 : vector<16x128xf32> to vector<16x128xbf16>
    %c6 = arith.constant 6 : index
    %c0_134 = arith.constant 0 : index
    %c0_135 = arith.constant 0 : index
    %105 = vector.load %arg2[%c6, %c0_134, %c0_135] : memref<49x128x128xbf16, #tpu.memory_space<vmem>>, vector<1x128x128xbf16>
    %106 = vector.shape_cast %105 : vector<1x128x128xbf16> to vector<128x128xbf16>
    %cst_136 = arith.constant dense<0.000000e+00> : vector<16x128xf32>
    %107 = tpu.matmul %104, %106, %cst_136 {dimension_numbers = #tpu.dot_dimension_numbers<[1], [0], [0], [1], [0, 0, 1, 1], [], []>} : vector<16x128xbf16>, vector<128x128xbf16>, vector<16x128xf32> -> vector<16x128xf32>
    %c1_137 = arith.constant 1 : index
    %c0_138 = arith.constant 0 : index
    %108 = vector.load %arg8[%c1_137, %c0_138] : memref<18x128xf32, #tpu.memory_space<vmem>>, vector<16x128xf32>
    %109 = arith.truncf %108 : vector<16x128xf32> to vector<16x128xbf16>
    %c7 = arith.constant 7 : index
    %c0_139 = arith.constant 0 : index
    %c0_140 = arith.constant 0 : index
    %110 = vector.load %arg2[%c7, %c0_139, %c0_140] : memref<49x128x128xbf16, #tpu.memory_space<vmem>>, vector<1x128x128xbf16>
    %111 = vector.shape_cast %110 : vector<1x128x128xbf16> to vector<128x128xbf16>
    %cst_141 = arith.constant dense<0.000000e+00> : vector<16x128xf32>
    %112 = tpu.matmul %109, %111, %cst_141 {dimension_numbers = #tpu.dot_dimension_numbers<[1], [0], [0], [1], [0, 0, 1, 1], [], []>} : vector<16x128xbf16>, vector<128x128xbf16>, vector<16x128xf32> -> vector<16x128xf32>
    %113 = arith.addf %107, %112 : vector<16x128xf32>
    %c2_142 = arith.constant 2 : index
    %c0_143 = arith.constant 0 : index
    %114 = vector.load %arg8[%c2_142, %c0_143] : memref<18x128xf32, #tpu.memory_space<vmem>>, vector<16x128xf32>
    %115 = arith.truncf %114 : vector<16x128xf32> to vector<16x128xbf16>
    %c8 = arith.constant 8 : index
    %c0_144 = arith.constant 0 : index
    %c0_145 = arith.constant 0 : index
    %116 = vector.load %arg2[%c8, %c0_144, %c0_145] : memref<49x128x128xbf16, #tpu.memory_space<vmem>>, vector<1x128x128xbf16>
    %117 = vector.shape_cast %116 : vector<1x128x128xbf16> to vector<128x128xbf16>
    %cst_146 = arith.constant dense<0.000000e+00> : vector<16x128xf32>
    %118 = tpu.matmul %115, %117, %cst_146 {dimension_numbers = #tpu.dot_dimension_numbers<[1], [0], [0], [1], [0, 0, 1, 1], [], []>} : vector<16x128xbf16>, vector<128x128xbf16>, vector<16x128xf32> -> vector<16x128xf32>
    %119 = arith.addf %113, %118 : vector<16x128xf32>
    %c2_147 = arith.constant 2 : index
    %c0_148 = arith.constant 0 : index
    %120 = vector.load %arg4[%c2_147, %c0_148] : memref<21x128xf32, #tpu.memory_space<vmem>>, vector<1x128xf32>
    %121 = vector.broadcast %120 : vector<1x128xf32> to vector<16x128xf32>
    %122 = arith.addf %119, %121 : vector<16x128xf32>
    %c1_149 = arith.constant 1 : index
    %c0_150 = arith.constant 0 : index
    %123 = vector.load %arg7[%c1_149, %c0_150] : memref<18x128xf32, #tpu.memory_space<vmem>>, vector<16x128xf32>
    %124 = arith.addf %122, %123 : vector<16x128xf32>
    %cst_151 = arith.constant 0.000000e+00 : f32
    %125 = vector.broadcast %cst_151 : f32 to vector<16x128xf32>
    %126 = arith.maximumf %124, %125 : vector<16x128xf32>
    %c1_152 = arith.constant 1 : index
    %c0_153 = arith.constant 0 : index
    %127 = vector.load %arg9[%c1_152, %c0_153] : memref<18x128xf32, #tpu.memory_space<vmem>>, vector<16x128xf32>
    tpu.vector_store %arg9[%c1_152, %c0_153], %126 {strides = array<i32>} : memref<18x128xf32, #tpu.memory_space<vmem>>, vector<16x128xf32>,
    %c0_154 = arith.constant 0 : index
    %c0_155 = arith.constant 0 : index
    %128 = vector.load %arg9[%c0_154, %c0_155] : memref<18x128xf32, #tpu.memory_space<vmem>>, vector<16x128xf32>
    %129 = arith.truncf %128 : vector<16x128xf32> to vector<16x128xbf16>
    %c9_156 = arith.constant 9 : index
    %c0_157 = arith.constant 0 : index
    %c0_158 = arith.constant 0 : index
    %130 = vector.load %arg2[%c9_156, %c0_157, %c0_158] : memref<49x128x128xbf16, #tpu.memory_space<vmem>>, vector<1x128x128xbf16>
    %131 = vector.shape_cast %130 : vector<1x128x128xbf16> to vector<128x128xbf16>
    %cst_159 = arith.constant dense<0.000000e+00> : vector<16x128xf32>
    %132 = tpu.matmul %129, %131, %cst_159 {dimension_numbers = #tpu.dot_dimension_numbers<[1], [0], [0], [1], [0, 0, 1, 1], [], []>} : vector<16x128xbf16>, vector<128x128xbf16>, vector<16x128xf32> -> vector<16x128xf32>
    %c1_160 = arith.constant 1 : index
    %c0_161 = arith.constant 0 : index
    %133 = vector.load %arg9[%c1_160, %c0_161] : memref<18x128xf32, #tpu.memory_space<vmem>>, vector<16x128xf32>
    %134 = arith.truncf %133 : vector<16x128xf32> to vector<16x128xbf16>
    %c10 = arith.constant 10 : index
    %c0_162 = arith.constant 0 : index
    %c0_163 = arith.constant 0 : index
    %135 = vector.load %arg2[%c10, %c0_162, %c0_163] : memref<49x128x128xbf16, #tpu.memory_space<vmem>>, vector<1x128x128xbf16>
    %136 = vector.shape_cast %135 : vector<1x128x128xbf16> to vector<128x128xbf16>
    %cst_164 = arith.constant dense<0.000000e+00> : vector<16x128xf32>
    %137 = tpu.matmul %134, %136, %cst_164 {dimension_numbers = #tpu.dot_dimension_numbers<[1], [0], [0], [1], [0, 0, 1, 1], [], []>} : vector<16x128xbf16>, vector<128x128xbf16>, vector<16x128xf32> -> vector<16x128xf32>
    %138 = arith.addf %132, %137 : vector<16x128xf32>
    %c2_165 = arith.constant 2 : index
    %c0_166 = arith.constant 0 : index
    %139 = vector.load %arg9[%c2_165, %c0_166] : memref<18x128xf32, #tpu.memory_space<vmem>>, vector<16x128xf32>
    %140 = arith.truncf %139 : vector<16x128xf32> to vector<16x128xbf16>
    %c11 = arith.constant 11 : index
    %c0_167 = arith.constant 0 : index
    %c0_168 = arith.constant 0 : index
    %141 = vector.load %arg2[%c11, %c0_167, %c0_168] : memref<49x128x128xbf16, #tpu.memory_space<vmem>>, vector<1x128x128xbf16>
    %142 = vector.shape_cast %141 : vector<1x128x128xbf16> to vector<128x128xbf16>
    %cst_169 = arith.constant dense<0.000000e+00> : vector<16x128xf32>
    %143 = tpu.matmul %140, %142, %cst_169 {dimension_numbers = #tpu.dot_dimension_numbers<[1], [0], [0], [1], [0, 0, 1, 1], [], []>} : vector<16x128xbf16>, vector<128x128xbf16>, vector<16x128xf32> -> vector<16x128xf32>
    %144 = arith.addf %138, %143 : vector<16x128xf32>
    %c3_170 = arith.constant 3 : index
    %c0_171 = arith.constant 0 : index
    %145 = vector.load %arg4[%c3_170, %c0_171] : memref<21x128xf32, #tpu.memory_space<vmem>>, vector<1x128xf32>
    %146 = vector.broadcast %145 : vector<1x128xf32> to vector<16x128xf32>
    %147 = arith.addf %144, %146 : vector<16x128xf32>
    %cst_172 = arith.constant 0.000000e+00 : f32
    %148 = vector.broadcast %cst_172 : f32 to vector<16x128xf32>
    %149 = arith.maximumf %147, %148 : vector<16x128xf32>
    %c1_173 = arith.constant 1 : index
    %c0_174 = arith.constant 0 : index
    %150 = vector.load %arg10[%c1_173, %c0_174] : memref<18x128xf32, #tpu.memory_space<vmem>>, vector<16x128xf32>
    tpu.vector_store %arg10[%c1_173, %c0_174], %149 {strides = array<i32>} : memref<18x128xf32, #tpu.memory_space<vmem>>, vector<16x128xf32>,
    %c0_175 = arith.constant 0 : index
    %c0_176 = arith.constant 0 : index
    %151 = vector.load %arg10[%c0_175, %c0_176] : memref<18x128xf32, #tpu.memory_space<vmem>>, vector<16x128xf32>
    %152 = arith.truncf %151 : vector<16x128xf32> to vector<16x128xbf16>
    %c12 = arith.constant 12 : index
    %c0_177 = arith.constant 0 : index
    %c0_178 = arith.constant 0 : index
    %153 = vector.load %arg2[%c12, %c0_177, %c0_178] : memref<49x128x128xbf16, #tpu.memory_space<vmem>>, vector<1x128x128xbf16>
    %154 = vector.shape_cast %153 : vector<1x128x128xbf16> to vector<128x128xbf16>
    %cst_179 = arith.constant dense<0.000000e+00> : vector<16x128xf32>
    %155 = tpu.matmul %152, %154, %cst_179 {dimension_numbers = #tpu.dot_dimension_numbers<[1], [0], [0], [1], [0, 0, 1, 1], [], []>} : vector<16x128xbf16>, vector<128x128xbf16>, vector<16x128xf32> -> vector<16x128xf32>
    %c1_180 = arith.constant 1 : index
    %c0_181 = arith.constant 0 : index
    %156 = vector.load %arg10[%c1_180, %c0_181] : memref<18x128xf32, #tpu.memory_space<vmem>>, vector<16x128xf32>
    %157 = arith.truncf %156 : vector<16x128xf32> to vector<16x128xbf16>
    %c13 = arith.constant 13 : index
    %c0_182 = arith.constant 0 : index
    %c0_183 = arith.constant 0 : index
    %158 = vector.load %arg2[%c13, %c0_182, %c0_183] : memref<49x128x128xbf16, #tpu.memory_space<vmem>>, vector<1x128x128xbf16>
    %159 = vector.shape_cast %158 : vector<1x128x128xbf16> to vector<128x128xbf16>
    %cst_184 = arith.constant dense<0.000000e+00> : vector<16x128xf32>
    %160 = tpu.matmul %157, %159, %cst_184 {dimension_numbers = #tpu.dot_dimension_numbers<[1], [0], [0], [1], [0, 0, 1, 1], [], []>} : vector<16x128xbf16>, vector<128x128xbf16>, vector<16x128xf32> -> vector<16x128xf32>
    %161 = arith.addf %155, %160 : vector<16x128xf32>
    %c2_185 = arith.constant 2 : index
    %c0_186 = arith.constant 0 : index
    %162 = vector.load %arg10[%c2_185, %c0_186] : memref<18x128xf32, #tpu.memory_space<vmem>>, vector<16x128xf32>
    %163 = arith.truncf %162 : vector<16x128xf32> to vector<16x128xbf16>
    %c14 = arith.constant 14 : index
    %c0_187 = arith.constant 0 : index
    %c0_188 = arith.constant 0 : index
    %164 = vector.load %arg2[%c14, %c0_187, %c0_188] : memref<49x128x128xbf16, #tpu.memory_space<vmem>>, vector<1x128x128xbf16>
    %165 = vector.shape_cast %164 : vector<1x128x128xbf16> to vector<128x128xbf16>
    %cst_189 = arith.constant dense<0.000000e+00> : vector<16x128xf32>
    %166 = tpu.matmul %163, %165, %cst_189 {dimension_numbers = #tpu.dot_dimension_numbers<[1], [0], [0], [1], [0, 0, 1, 1], [], []>} : vector<16x128xbf16>, vector<128x128xbf16>, vector<16x128xf32> -> vector<16x128xf32>
    %167 = arith.addf %161, %166 : vector<16x128xf32>
    %c4_190 = arith.constant 4 : index
    %c0_191 = arith.constant 0 : index
    %168 = vector.load %arg4[%c4_190, %c0_191] : memref<21x128xf32, #tpu.memory_space<vmem>>, vector<1x128xf32>
    %169 = vector.broadcast %168 : vector<1x128xf32> to vector<16x128xf32>
    %170 = arith.addf %167, %169 : vector<16x128xf32>
    %c1_192 = arith.constant 1 : index
    %c0_193 = arith.constant 0 : index
    %171 = vector.load %arg9[%c1_192, %c0_193] : memref<18x128xf32, #tpu.memory_space<vmem>>, vector<16x128xf32>
    %172 = arith.addf %170, %171 : vector<16x128xf32>
    %cst_194 = arith.constant 0.000000e+00 : f32
    %173 = vector.broadcast %cst_194 : f32 to vector<16x128xf32>
    %174 = arith.maximumf %172, %173 : vector<16x128xf32>
    %c1_195 = arith.constant 1 : index
    %c0_196 = arith.constant 0 : index
    %175 = vector.load %arg11[%c1_195, %c0_196] : memref<18x128xf32, #tpu.memory_space<vmem>>, vector<16x128xf32>
    tpu.vector_store %arg11[%c1_195, %c0_196], %174 {strides = array<i32>} : memref<18x128xf32, #tpu.memory_space<vmem>>, vector<16x128xf32>,
    %c0_197 = arith.constant 0 : index
    %c0_198 = arith.constant 0 : index
    %176 = tpu.strided_load %arg11[%c0_197, %c0_198] {strides = array<i32: 2, 1>} : memref<18x128xf32, #tpu.memory_space<vmem>>, vector<8x128xf32>
    %177 = arith.truncf %176 : vector<8x128xf32> to vector<8x128xbf16>
    %c15 = arith.constant 15 : index
    %c0_199 = arith.constant 0 : index
    %c0_200 = arith.constant 0 : index
    %178 = vector.load %arg2[%c15, %c0_199, %c0_200] : memref<49x128x128xbf16, #tpu.memory_space<vmem>>, vector<1x128x128xbf16>
    %179 = vector.shape_cast %178 : vector<1x128x128xbf16> to vector<128x128xbf16>
    %cst_201 = arith.constant dense<0.000000e+00> : vector<8x128xf32>
    %180 = tpu.matmul %177, %179, %cst_201 {dimension_numbers = #tpu.dot_dimension_numbers<[1], [0], [0], [1], [0, 0, 1, 1], [], []>} : vector<8x128xbf16>, vector<128x128xbf16>, vector<8x128xf32> -> vector<8x128xf32>
    %c1_202 = arith.constant 1 : index
    %c0_203 = arith.constant 0 : index
    %181 = tpu.strided_load %arg11[%c1_202, %c0_203] {strides = array<i32: 2, 1>} : memref<18x128xf32, #tpu.memory_space<vmem>>, vector<8x128xf32>
    %182 = arith.truncf %181 : vector<8x128xf32> to vector<8x128xbf16>
    %c0_204 = arith.constant 0 : index
    %c0_205 = arith.constant 0 : index
    %c0_206 = arith.constant 0 : index
    %183 = vector.load %arg3[%c0_204, %c0_205, %c0_206] : memref<3x128x256xbf16, #tpu.memory_space<vmem>>, vector<1x128x256xbf16>
    %184 = vector.shape_cast %183 : vector<1x128x256xbf16> to vector<128x256xbf16>
    %cst_207 = arith.constant dense<0.000000e+00> : vector<8x256xf32>
    %185 = tpu.matmul %182, %184, %cst_207 {dimension_numbers = #tpu.dot_dimension_numbers<[1], [0], [0], [1], [0, 0, 1, 1], [], []>} : vector<8x128xbf16>, vector<128x256xbf16>, vector<8x256xf32> -> vector<8x256xf32>
    %186 = vector.extract_strided_slice %185 {offsets = [0, 0], sizes = [8, 128], strides = [1, 1]} : vector<8x256xf32> to vector<8x128xf32>
    %187 = vector.extract_strided_slice %185 {offsets = [0, 128], sizes = [8, 128], strides = [1, 1]} : vector<8x256xf32> to vector<8x128xf32>
    %188 = arith.addf %180, %186 : vector<8x128xf32>
    %c2_208 = arith.constant 2 : index
    %c0_209 = arith.constant 0 : index
    %189 = tpu.strided_load %arg11[%c2_208, %c0_209] {strides = array<i32: 2, 1>} : memref<18x128xf32, #tpu.memory_space<vmem>>, vector<8x128xf32>
    %190 = arith.truncf %189 : vector<8x128xf32> to vector<8x128xbf16>
    %c16 = arith.constant 16 : index
    %c0_210 = arith.constant 0 : index
    %c0_211 = arith.constant 0 : index
    %191 = vector.load %arg2[%c16, %c0_210, %c0_211] : memref<49x128x128xbf16, #tpu.memory_space<vmem>>, vector<1x128x128xbf16>
    %192 = vector.shape_cast %191 : vector<1x128x128xbf16> to vector<128x128xbf16>
    %cst_212 = arith.constant dense<0.000000e+00> : vector<8x128xf32>
    %193 = tpu.matmul %190, %192, %cst_212 {dimension_numbers = #tpu.dot_dimension_numbers<[1], [0], [0], [1], [0, 0, 1, 1], [], []>} : vector<8x128xbf16>, vector<128x128xbf16>, vector<8x128xf32> -> vector<8x128xf32>
    %194 = arith.addf %188, %193 : vector<8x128xf32>
    %c6_213 = arith.constant 6 : index
    %c0_214 = arith.constant 0 : index
    %195 = vector.load %arg4[%c6_213, %c0_214] : memref<21x128xf32, #tpu.memory_space<vmem>>, vector<1x128xf32>
    %196 = vector.broadcast %195 : vector<1x128xf32> to vector<8x128xf32>
    %197 = arith.addf %194, %196 : vector<8x128xf32>
    %cst_215 = arith.constant 0.000000e+00 : f32
    %198 = vector.broadcast %cst_215 : f32 to vector<8x128xf32>
    %199 = arith.maximumf %197, %198 : vector<8x128xf32>
    %c1_216 = arith.constant 1 : index
    %c0_217 = arith.constant 0 : index
    %200 = vector.load %arg13[%c1_216, %c0_217] : memref<10x128xf32, #tpu.memory_space<vmem>>, vector<8x128xf32>
    tpu.vector_store %arg13[%c1_216, %c0_217], %199 {strides = array<i32>} : memref<10x128xf32, #tpu.memory_space<vmem>>, vector<8x128xf32>,
    %c5_218 = arith.constant 5 : index
    %c0_219 = arith.constant 0 : index
    %201 = vector.load %arg4[%c5_218, %c0_219] : memref<21x128xf32, #tpu.memory_space<vmem>>, vector<1x128xf32>
    %202 = vector.broadcast %201 : vector<1x128xf32> to vector<8x128xf32>
    %203 = arith.addf %187, %202 : vector<8x128xf32>
    %c0_220 = arith.constant 0 : index
    %c0_221 = arith.constant 0 : index
    %204 = vector.load %arg12[%c0_220, %c0_221] : memref<8x128xf32, #tpu.memory_space<vmem>>, vector<8x128xf32>
    tpu.vector_store %arg12[%c0_220, %c0_221], %203 {strides = array<i32>} : memref<8x128xf32, #tpu.memory_space<vmem>>, vector<8x128xf32>,
    %c0_222 = arith.constant 0 : index
    %c0_223 = arith.constant 0 : index
    %205 = vector.load %arg13[%c0_222, %c0_223] : memref<10x128xf32, #tpu.memory_space<vmem>>, vector<8x128xf32>
    %206 = arith.truncf %205 : vector<8x128xf32> to vector<8x128xbf16>
    %c17_224 = arith.constant 17 : index
    %c0_225 = arith.constant 0 : index
    %c0_226 = arith.constant 0 : index
    %207 = vector.load %arg2[%c17_224, %c0_225, %c0_226] : memref<49x128x128xbf16, #tpu.memory_space<vmem>>, vector<1x128x128xbf16>
    %208 = vector.shape_cast %207 : vector<1x128x128xbf16> to vector<128x128xbf16>
    %cst_227 = arith.constant dense<0.000000e+00> : vector<8x128xf32>
    %209 = tpu.matmul %206, %208, %cst_227 {dimension_numbers = #tpu.dot_dimension_numbers<[1], [0], [0], [1], [0, 0, 1, 1], [], []>} : vector<8x128xbf16>, vector<128x128xbf16>, vector<8x128xf32> -> vector<8x128xf32>
    %c1_228 = arith.constant 1 : index
    %c0_229 = arith.constant 0 : index
    %210 = vector.load %arg13[%c1_228, %c0_229] : memref<10x128xf32, #tpu.memory_space<vmem>>, vector<8x128xf32>
    %211 = arith.truncf %210 : vector<8x128xf32> to vector<8x128xbf16>
    %c18 = arith.constant 18 : index
    %c0_230 = arith.constant 0 : index
    %c0_231 = arith.constant 0 : index
    %212 = vector.load %arg2[%c18, %c0_230, %c0_231] : memref<49x128x128xbf16, #tpu.memory_space<vmem>>, vector<1x128x128xbf16>
    %213 = vector.shape_cast %212 : vector<1x128x128xbf16> to vector<128x128xbf16>
    %cst_232 = arith.constant dense<0.000000e+00> : vector<8x128xf32>
    %214 = tpu.matmul %211, %213, %cst_232 {dimension_numbers = #tpu.dot_dimension_numbers<[1], [0], [0], [1], [0, 0, 1, 1], [], []>} : vector<8x128xbf16>, vector<128x128xbf16>, vector<8x128xf32> -> vector<8x128xf32>
    %215 = arith.addf %209, %214 : vector<8x128xf32>
    %c2_233 = arith.constant 2 : index
    %c0_234 = arith.constant 0 : index
    %216 = vector.load %arg13[%c2_233, %c0_234] : memref<10x128xf32, #tpu.memory_space<vmem>>, vector<8x128xf32>
    %217 = arith.truncf %216 : vector<8x128xf32> to vector<8x128xbf16>
    %c19 = arith.constant 19 : index
    %c0_235 = arith.constant 0 : index
    %c0_236 = arith.constant 0 : index
    %218 = vector.load %arg2[%c19, %c0_235, %c0_236] : memref<49x128x128xbf16, #tpu.memory_space<vmem>>, vector<1x128x128xbf16>
    %219 = vector.shape_cast %218 : vector<1x128x128xbf16> to vector<128x128xbf16>
    %cst_237 = arith.constant dense<0.000000e+00> : vector<8x128xf32>
    %220 = tpu.matmul %217, %219, %cst_237 {dimension_numbers = #tpu.dot_dimension_numbers<[1], [0], [0], [1], [0, 0, 1, 1], [], []>} : vector<8x128xbf16>, vector<128x128xbf16>, vector<8x128xf32> -> vector<8x128xf32>
    %221 = arith.addf %215, %220 : vector<8x128xf32>
    %c7_238 = arith.constant 7 : index
    %c0_239 = arith.constant 0 : index
    %222 = vector.load %arg4[%c7_238, %c0_239] : memref<21x128xf32, #tpu.memory_space<vmem>>, vector<1x128xf32>
    %223 = vector.broadcast %222 : vector<1x128xf32> to vector<8x128xf32>
    %224 = arith.addf %221, %223 : vector<8x128xf32>
    %c0_240 = arith.constant 0 : index
    %c0_241 = arith.constant 0 : index
    %225 = vector.load %arg12[%c0_240, %c0_241] : memref<8x128xf32, #tpu.memory_space<vmem>>, vector<8x128xf32>
    %226 = arith.addf %224, %225 : vector<8x128xf32>
    %cst_242 = arith.constant 0.000000e+00 : f32
    %227 = vector.broadcast %cst_242 : f32 to vector<8x128xf32>
    %228 = arith.maximumf %226, %227 : vector<8x128xf32>
    %c1_243 = arith.constant 1 : index
    %c0_244 = arith.constant 0 : index
    %229 = vector.load %arg14[%c1_243, %c0_244] : memref<10x128xf32, #tpu.memory_space<vmem>>, vector<8x128xf32>
    tpu.vector_store %arg14[%c1_243, %c0_244], %228 {strides = array<i32>} : memref<10x128xf32, #tpu.memory_space<vmem>>, vector<8x128xf32>,
    %c0_245 = arith.constant 0 : index
    %c0_246 = arith.constant 0 : index
    %230 = vector.load %arg14[%c0_245, %c0_246] : memref<10x128xf32, #tpu.memory_space<vmem>>, vector<8x128xf32>
    %231 = arith.truncf %230 : vector<8x128xf32> to vector<8x128xbf16>
    %c20 = arith.constant 20 : index
    %c0_247 = arith.constant 0 : index
    %c0_248 = arith.constant 0 : index
    %232 = vector.load %arg2[%c20, %c0_247, %c0_248] : memref<49x128x128xbf16, #tpu.memory_space<vmem>>, vector<1x128x128xbf16>
    %233 = vector.shape_cast %232 : vector<1x128x128xbf16> to vector<128x128xbf16>
    %cst_249 = arith.constant dense<0.000000e+00> : vector<8x128xf32>
    %234 = tpu.matmul %231, %233, %cst_249 {dimension_numbers = #tpu.dot_dimension_numbers<[1], [0], [0], [1], [0, 0, 1, 1], [], []>} : vector<8x128xbf16>, vector<128x128xbf16>, vector<8x128xf32> -> vector<8x128xf32>
    %c1_250 = arith.constant 1 : index
    %c0_251 = arith.constant 0 : index
    %235 = vector.load %arg14[%c1_250, %c0_251] : memref<10x128xf32, #tpu.memory_space<vmem>>, vector<8x128xf32>
    %236 = arith.truncf %235 : vector<8x128xf32> to vector<8x128xbf16>
    %c21 = arith.constant 21 : index
    %c0_252 = arith.constant 0 : index
    %c0_253 = arith.constant 0 : index
    %237 = vector.load %arg2[%c21, %c0_252, %c0_253] : memref<49x128x128xbf16, #tpu.memory_space<vmem>>, vector<1x128x128xbf16>
    %238 = vector.shape_cast %237 : vector<1x128x128xbf16> to vector<128x128xbf16>
    %cst_254 = arith.constant dense<0.000000e+00> : vector<8x128xf32>
    %239 = tpu.matmul %236, %238, %cst_254 {dimension_numbers = #tpu.dot_dimension_numbers<[1], [0], [0], [1], [0, 0, 1, 1], [], []>} : vector<8x128xbf16>, vector<128x128xbf16>, vector<8x128xf32> -> vector<8x128xf32>
    %240 = arith.addf %234, %239 : vector<8x128xf32>
    %c2_255 = arith.constant 2 : index
    %c0_256 = arith.constant 0 : index
    %241 = vector.load %arg14[%c2_255, %c0_256] : memref<10x128xf32, #tpu.memory_space<vmem>>, vector<8x128xf32>
    %242 = arith.truncf %241 : vector<8x128xf32> to vector<8x128xbf16>
    %c22 = arith.constant 22 : index
    %c0_257 = arith.constant 0 : index
    %c0_258 = arith.constant 0 : index
    %243 = vector.load %arg2[%c22, %c0_257, %c0_258] : memref<49x128x128xbf16, #tpu.memory_space<vmem>>, vector<1x128x128xbf16>
    %244 = vector.shape_cast %243 : vector<1x128x128xbf16> to vector<128x128xbf16>
    %cst_259 = arith.constant dense<0.000000e+00> : vector<8x128xf32>
    %245 = tpu.matmul %242, %244, %cst_259 {dimension_numbers = #tpu.dot_dimension_numbers<[1], [0], [0], [1], [0, 0, 1, 1], [], []>} : vector<8x128xbf16>, vector<128x128xbf16>, vector<8x128xf32> -> vector<8x128xf32>
    %246 = arith.addf %240, %245 : vector<8x128xf32>
    %c8_260 = arith.constant 8 : index
    %c0_261 = arith.constant 0 : index
    %247 = vector.load %arg4[%c8_260, %c0_261] : memref<21x128xf32, #tpu.memory_space<vmem>>, vector<1x128xf32>
    %248 = vector.broadcast %247 : vector<1x128xf32> to vector<8x128xf32>
    %249 = arith.addf %246, %248 : vector<8x128xf32>
    %cst_262 = arith.constant 0.000000e+00 : f32
    %250 = vector.broadcast %cst_262 : f32 to vector<8x128xf32>
    %251 = arith.maximumf %249, %250 : vector<8x128xf32>
    %c1_263 = arith.constant 1 : index
    %c0_264 = arith.constant 0 : index
    %252 = vector.load %arg15[%c1_263, %c0_264] : memref<10x128xf32, #tpu.memory_space<vmem>>, vector<8x128xf32>
    tpu.vector_store %arg15[%c1_263, %c0_264], %251 {strides = array<i32>} : memref<10x128xf32, #tpu.memory_space<vmem>>, vector<8x128xf32>,
    %c0_265 = arith.constant 0 : index
    %c0_266 = arith.constant 0 : index
    %253 = vector.load %arg15[%c0_265, %c0_266] : memref<10x128xf32, #tpu.memory_space<vmem>>, vector<8x128xf32>
    %254 = arith.truncf %253 : vector<8x128xf32> to vector<8x128xbf16>
    %c23 = arith.constant 23 : index
    %c0_267 = arith.constant 0 : index
    %c0_268 = arith.constant 0 : index
    %255 = vector.load %arg2[%c23, %c0_267, %c0_268] : memref<49x128x128xbf16, #tpu.memory_space<vmem>>, vector<1x128x128xbf16>
    %256 = vector.shape_cast %255 : vector<1x128x128xbf16> to vector<128x128xbf16>
    %cst_269 = arith.constant dense<0.000000e+00> : vector<8x128xf32>
    %257 = tpu.matmul %254, %256, %cst_269 {dimension_numbers = #tpu.dot_dimension_numbers<[1], [0], [0], [1], [0, 0, 1, 1], [], []>} : vector<8x128xbf16>, vector<128x128xbf16>, vector<8x128xf32> -> vector<8x128xf32>
    %c1_270 = arith.constant 1 : index
    %c0_271 = arith.constant 0 : index
    %258 = vector.load %arg15[%c1_270, %c0_271] : memref<10x128xf32, #tpu.memory_space<vmem>>, vector<8x128xf32>
    %259 = arith.truncf %258 : vector<8x128xf32> to vector<8x128xbf16>
    %c24 = arith.constant 24 : index
    %c0_272 = arith.constant 0 : index
    %c0_273 = arith.constant 0 : index
    %260 = vector.load %arg2[%c24, %c0_272, %c0_273] : memref<49x128x128xbf16, #tpu.memory_space<vmem>>, vector<1x128x128xbf16>
    %261 = vector.shape_cast %260 : vector<1x128x128xbf16> to vector<128x128xbf16>
    %cst_274 = arith.constant dense<0.000000e+00> : vector<8x128xf32>
    %262 = tpu.matmul %259, %261, %cst_274 {dimension_numbers = #tpu.dot_dimension_numbers<[1], [0], [0], [1], [0, 0, 1, 1], [], []>} : vector<8x128xbf16>, vector<128x128xbf16>, vector<8x128xf32> -> vector<8x128xf32>
    %263 = arith.addf %257, %262 : vector<8x128xf32>
    %c2_275 = arith.constant 2 : index
    %c0_276 = arith.constant 0 : index
    %264 = vector.load %arg15[%c2_275, %c0_276] : memref<10x128xf32, #tpu.memory_space<vmem>>, vector<8x128xf32>
    %265 = arith.truncf %264 : vector<8x128xf32> to vector<8x128xbf16>
    %c25 = arith.constant 25 : index
    %c0_277 = arith.constant 0 : index
    %c0_278 = arith.constant 0 : index
    %266 = vector.load %arg2[%c25, %c0_277, %c0_278] : memref<49x128x128xbf16, #tpu.memory_space<vmem>>, vector<1x128x128xbf16>
    %267 = vector.shape_cast %266 : vector<1x128x128xbf16> to vector<128x128xbf16>
    %cst_279 = arith.constant dense<0.000000e+00> : vector<8x128xf32>
    %268 = tpu.matmul %265, %267, %cst_279 {dimension_numbers = #tpu.dot_dimension_numbers<[1], [0], [0], [1], [0, 0, 1, 1], [], []>} : vector<8x128xbf16>, vector<128x128xbf16>, vector<8x128xf32> -> vector<8x128xf32>
    %269 = arith.addf %263, %268 : vector<8x128xf32>
    %c9_280 = arith.constant 9 : index
    %c0_281 = arith.constant 0 : index
    %270 = vector.load %arg4[%c9_280, %c0_281] : memref<21x128xf32, #tpu.memory_space<vmem>>, vector<1x128xf32>
    %271 = vector.broadcast %270 : vector<1x128xf32> to vector<8x128xf32>
    %272 = arith.addf %269, %271 : vector<8x128xf32>
    %c1_282 = arith.constant 1 : index
    %c0_283 = arith.constant 0 : index
    %273 = vector.load %arg14[%c1_282, %c0_283] : memref<10x128xf32, #tpu.memory_space<vmem>>, vector<8x128xf32>
    %274 = arith.addf %272, %273 : vector<8x128xf32>
    %cst_284 = arith.constant 0.000000e+00 : f32
    %275 = vector.broadcast %cst_284 : f32 to vector<8x128xf32>
    %276 = arith.maximumf %274, %275 : vector<8x128xf32>
    %c1_285 = arith.constant 1 : index
    %c0_286 = arith.constant 0 : index
    %277 = vector.load %arg16[%c1_285, %c0_286] : memref<10x128xf32, #tpu.memory_space<vmem>>, vector<8x128xf32>
    tpu.vector_store %arg16[%c1_285, %c0_286], %276 {strides = array<i32>} : memref<10x128xf32, #tpu.memory_space<vmem>>, vector<8x128xf32>,
    %c0_287 = arith.constant 0 : index
    %c0_288 = arith.constant 0 : index
    %278 = tpu.strided_load %arg16[%c0_287, %c0_288] {strides = array<i32: 2, 1>} : memref<10x128xf32, #tpu.memory_space<vmem>>, vector<4x128xf32>
    %279 = arith.truncf %278 : vector<4x128xf32> to vector<4x128xbf16>
    %c26 = arith.constant 26 : index
    %c0_289 = arith.constant 0 : index
    %c0_290 = arith.constant 0 : index
    %280 = vector.load %arg2[%c26, %c0_289, %c0_290] : memref<49x128x128xbf16, #tpu.memory_space<vmem>>, vector<1x128x128xbf16>
    %281 = vector.shape_cast %280 : vector<1x128x128xbf16> to vector<128x128xbf16>
    %cst_291 = arith.constant dense<0.000000e+00> : vector<4x128xf32>
    %282 = tpu.matmul %279, %281, %cst_291 {dimension_numbers = #tpu.dot_dimension_numbers<[1], [0], [0], [1], [0, 0, 1, 1], [], []>} : vector<4x128xbf16>, vector<128x128xbf16>, vector<4x128xf32> -> vector<4x128xf32>
    %c1_292 = arith.constant 1 : index
    %c0_293 = arith.constant 0 : index
    %283 = tpu.strided_load %arg16[%c1_292, %c0_293] {strides = array<i32: 2, 1>} : memref<10x128xf32, #tpu.memory_space<vmem>>, vector<4x128xf32>
    %284 = arith.truncf %283 : vector<4x128xf32> to vector<4x128xbf16>
    %c1_294 = arith.constant 1 : index
    %c0_295 = arith.constant 0 : index
    %c0_296 = arith.constant 0 : index
    %285 = vector.load %arg3[%c1_294, %c0_295, %c0_296] : memref<3x128x256xbf16, #tpu.memory_space<vmem>>, vector<1x128x256xbf16>
    %286 = vector.shape_cast %285 : vector<1x128x256xbf16> to vector<128x256xbf16>
    %cst_297 = arith.constant dense<0.000000e+00> : vector<4x256xf32>
    %287 = tpu.matmul %284, %286, %cst_297 {dimension_numbers = #tpu.dot_dimension_numbers<[1], [0], [0], [1], [0, 0, 1, 1], [], []>} : vector<4x128xbf16>, vector<128x256xbf16>, vector<4x256xf32> -> vector<4x256xf32>
    %288 = vector.extract_strided_slice %287 {offsets = [0, 0], sizes = [4, 128], strides = [1, 1]} : vector<4x256xf32> to vector<4x128xf32>
    %289 = vector.extract_strided_slice %287 {offsets = [0, 128], sizes = [4, 128], strides = [1, 1]} : vector<4x256xf32> to vector<4x128xf32>
    %290 = arith.addf %282, %288 : vector<4x128xf32>
    %c2_298 = arith.constant 2 : index
    %c0_299 = arith.constant 0 : index
    %291 = tpu.strided_load %arg16[%c2_298, %c0_299] {strides = array<i32: 2, 1>} : memref<10x128xf32, #tpu.memory_space<vmem>>, vector<4x128xf32>
    %292 = arith.truncf %291 : vector<4x128xf32> to vector<4x128xbf16>
    %c27 = arith.constant 27 : index
    %c0_300 = arith.constant 0 : index
    %c0_301 = arith.constant 0 : index
    %293 = vector.load %arg2[%c27, %c0_300, %c0_301] : memref<49x128x128xbf16, #tpu.memory_space<vmem>>, vector<1x128x128xbf16>
    %294 = vector.shape_cast %293 : vector<1x128x128xbf16> to vector<128x128xbf16>
    %cst_302 = arith.constant dense<0.000000e+00> : vector<4x128xf32>
    %295 = tpu.matmul %292, %294, %cst_302 {dimension_numbers = #tpu.dot_dimension_numbers<[1], [0], [0], [1], [0, 0, 1, 1], [], []>} : vector<4x128xbf16>, vector<128x128xbf16>, vector<4x128xf32> -> vector<4x128xf32>
    %296 = arith.addf %290, %295 : vector<4x128xf32>
    %c11_303 = arith.constant 11 : index
    %c0_304 = arith.constant 0 : index
    %297 = vector.load %arg4[%c11_303, %c0_304] : memref<21x128xf32, #tpu.memory_space<vmem>>, vector<1x128xf32>
    %298 = vector.broadcast %297 : vector<1x128xf32> to vector<4x128xf32>
    %299 = arith.addf %296, %298 : vector<4x128xf32>
    %cst_305 = arith.constant 0.000000e+00 : f32
    %300 = vector.broadcast %cst_305 : f32 to vector<4x128xf32>
    %301 = arith.maximumf %299, %300 : vector<4x128xf32>
    %c1_306 = arith.constant 1 : index
    %c0_307 = arith.constant 0 : index
    %302 = vector.load %arg18[%c1_306, %c0_307] : memref<6x128xf32, #tpu.memory_space<vmem>>, vector<4x128xf32>
    tpu.vector_store %arg18[%c1_306, %c0_307], %301 {strides = array<i32>} : memref<6x128xf32, #tpu.memory_space<vmem>>, vector<4x128xf32>,
    %c10_308 = arith.constant 10 : index
    %c0_309 = arith.constant 0 : index
    %303 = vector.load %arg4[%c10_308, %c0_309] : memref<21x128xf32, #tpu.memory_space<vmem>>, vector<1x128xf32>
    %304 = vector.broadcast %303 : vector<1x128xf32> to vector<4x128xf32>
    %305 = arith.addf %289, %304 : vector<4x128xf32>
    %c0_310 = arith.constant 0 : index
    %c0_311 = arith.constant 0 : index
    %306 = vector.load %arg17[%c0_310, %c0_311] : memref<4x128xf32, #tpu.memory_space<vmem>>, vector<4x128xf32>
    tpu.vector_store %arg17[%c0_310, %c0_311], %305 {strides = array<i32>} : memref<4x128xf32, #tpu.memory_space<vmem>>, vector<4x128xf32>,
    %c0_312 = arith.constant 0 : index
    %c0_313 = arith.constant 0 : index
    %307 = vector.load %arg18[%c0_312, %c0_313] : memref<6x128xf32, #tpu.memory_space<vmem>>, vector<4x128xf32>
    %308 = arith.truncf %307 : vector<4x128xf32> to vector<4x128xbf16>
    %c28 = arith.constant 28 : index
    %c0_314 = arith.constant 0 : index
    %c0_315 = arith.constant 0 : index
    %309 = vector.load %arg2[%c28, %c0_314, %c0_315] : memref<49x128x128xbf16, #tpu.memory_space<vmem>>, vector<1x128x128xbf16>
    %310 = vector.shape_cast %309 : vector<1x128x128xbf16> to vector<128x128xbf16>
    %cst_316 = arith.constant dense<0.000000e+00> : vector<4x128xf32>
    %311 = tpu.matmul %308, %310, %cst_316 {dimension_numbers = #tpu.dot_dimension_numbers<[1], [0], [0], [1], [0, 0, 1, 1], [], []>} : vector<4x128xbf16>, vector<128x128xbf16>, vector<4x128xf32> -> vector<4x128xf32>
    %c1_317 = arith.constant 1 : index
    %c0_318 = arith.constant 0 : index
    %312 = vector.load %arg18[%c1_317, %c0_318] : memref<6x128xf32, #tpu.memory_space<vmem>>, vector<4x128xf32>
    %313 = arith.truncf %312 : vector<4x128xf32> to vector<4x128xbf16>
    %c29 = arith.constant 29 : index
    %c0_319 = arith.constant 0 : index
    %c0_320 = arith.constant 0 : index
    %314 = vector.load %arg2[%c29, %c0_319, %c0_320] : memref<49x128x128xbf16, #tpu.memory_space<vmem>>, vector<1x128x128xbf16>
    %315 = vector.shape_cast %314 : vector<1x128x128xbf16> to vector<128x128xbf16>
    %cst_321 = arith.constant dense<0.000000e+00> : vector<4x128xf32>
    %316 = tpu.matmul %313, %315, %cst_321 {dimension_numbers = #tpu.dot_dimension_numbers<[1], [0], [0], [1], [0, 0, 1, 1], [], []>} : vector<4x128xbf16>, vector<128x128xbf16>, vector<4x128xf32> -> vector<4x128xf32>
    %317 = arith.addf %311, %316 : vector<4x128xf32>
    %c2_322 = arith.constant 2 : index
    %c0_323 = arith.constant 0 : index
    %318 = vector.load %arg18[%c2_322, %c0_323] : memref<6x128xf32, #tpu.memory_space<vmem>>, vector<4x128xf32>
    %319 = arith.truncf %318 : vector<4x128xf32> to vector<4x128xbf16>
    %c30 = arith.constant 30 : index
    %c0_324 = arith.constant 0 : index
    %c0_325 = arith.constant 0 : index
    %320 = vector.load %arg2[%c30, %c0_324, %c0_325] : memref<49x128x128xbf16, #tpu.memory_space<vmem>>, vector<1x128x128xbf16>
    %321 = vector.shape_cast %320 : vector<1x128x128xbf16> to vector<128x128xbf16>
    %cst_326 = arith.constant dense<0.000000e+00> : vector<4x128xf32>
    %322 = tpu.matmul %319, %321, %cst_326 {dimension_numbers = #tpu.dot_dimension_numbers<[1], [0], [0], [1], [0, 0, 1, 1], [], []>} : vector<4x128xbf16>, vector<128x128xbf16>, vector<4x128xf32> -> vector<4x128xf32>
    %323 = arith.addf %317, %322 : vector<4x128xf32>
    %c12_327 = arith.constant 12 : index
    %c0_328 = arith.constant 0 : index
    %324 = vector.load %arg4[%c12_327, %c0_328] : memref<21x128xf32, #tpu.memory_space<vmem>>, vector<1x128xf32>
    %325 = vector.broadcast %324 : vector<1x128xf32> to vector<4x128xf32>
    %326 = arith.addf %323, %325 : vector<4x128xf32>
    %c0_329 = arith.constant 0 : index
    %c0_330 = arith.constant 0 : index
    %327 = vector.load %arg17[%c0_329, %c0_330] : memref<4x128xf32, #tpu.memory_space<vmem>>, vector<4x128xf32>
    %328 = arith.addf %326, %327 : vector<4x128xf32>
    %cst_331 = arith.constant 0.000000e+00 : f32
    %329 = vector.broadcast %cst_331 : f32 to vector<4x128xf32>
    %330 = arith.maximumf %328, %329 : vector<4x128xf32>
    %c1_332 = arith.constant 1 : index
    %c0_333 = arith.constant 0 : index
    %331 = vector.load %arg19[%c1_332, %c0_333] : memref<6x128xf32, #tpu.memory_space<vmem>>, vector<4x128xf32>
    tpu.vector_store %arg19[%c1_332, %c0_333], %330 {strides = array<i32>} : memref<6x128xf32, #tpu.memory_space<vmem>>, vector<4x128xf32>,
    %c0_334 = arith.constant 0 : index
    %c0_335 = arith.constant 0 : index
    %332 = vector.load %arg19[%c0_334, %c0_335] : memref<6x128xf32, #tpu.memory_space<vmem>>, vector<4x128xf32>
    %333 = arith.truncf %332 : vector<4x128xf32> to vector<4x128xbf16>
    %c31 = arith.constant 31 : index
    %c0_336 = arith.constant 0 : index
    %c0_337 = arith.constant 0 : index
    %334 = vector.load %arg2[%c31, %c0_336, %c0_337] : memref<49x128x128xbf16, #tpu.memory_space<vmem>>, vector<1x128x128xbf16>
    %335 = vector.shape_cast %334 : vector<1x128x128xbf16> to vector<128x128xbf16>
    %cst_338 = arith.constant dense<0.000000e+00> : vector<4x128xf32>
    %336 = tpu.matmul %333, %335, %cst_338 {dimension_numbers = #tpu.dot_dimension_numbers<[1], [0], [0], [1], [0, 0, 1, 1], [], []>} : vector<4x128xbf16>, vector<128x128xbf16>, vector<4x128xf32> -> vector<4x128xf32>
    %c1_339 = arith.constant 1 : index
    %c0_340 = arith.constant 0 : index
    %337 = vector.load %arg19[%c1_339, %c0_340] : memref<6x128xf32, #tpu.memory_space<vmem>>, vector<4x128xf32>
    %338 = arith.truncf %337 : vector<4x128xf32> to vector<4x128xbf16>
    %c32 = arith.constant 32 : index
    %c0_341 = arith.constant 0 : index
    %c0_342 = arith.constant 0 : index
    %339 = vector.load %arg2[%c32, %c0_341, %c0_342] : memref<49x128x128xbf16, #tpu.memory_space<vmem>>, vector<1x128x128xbf16>
    %340 = vector.shape_cast %339 : vector<1x128x128xbf16> to vector<128x128xbf16>
    %cst_343 = arith.constant dense<0.000000e+00> : vector<4x128xf32>
    %341 = tpu.matmul %338, %340, %cst_343 {dimension_numbers = #tpu.dot_dimension_numbers<[1], [0], [0], [1], [0, 0, 1, 1], [], []>} : vector<4x128xbf16>, vector<128x128xbf16>, vector<4x128xf32> -> vector<4x128xf32>
    %342 = arith.addf %336, %341 : vector<4x128xf32>
    %c2_344 = arith.constant 2 : index
    %c0_345 = arith.constant 0 : index
    %343 = vector.load %arg19[%c2_344, %c0_345] : memref<6x128xf32, #tpu.memory_space<vmem>>, vector<4x128xf32>
    %344 = arith.truncf %343 : vector<4x128xf32> to vector<4x128xbf16>
    %c33 = arith.constant 33 : index
    %c0_346 = arith.constant 0 : index
    %c0_347 = arith.constant 0 : index
    %345 = vector.load %arg2[%c33, %c0_346, %c0_347] : memref<49x128x128xbf16, #tpu.memory_space<vmem>>, vector<1x128x128xbf16>
    %346 = vector.shape_cast %345 : vector<1x128x128xbf16> to vector<128x128xbf16>
    %cst_348 = arith.constant dense<0.000000e+00> : vector<4x128xf32>
    %347 = tpu.matmul %344, %346, %cst_348 {dimension_numbers = #tpu.dot_dimension_numbers<[1], [0], [0], [1], [0, 0, 1, 1], [], []>} : vector<4x128xbf16>, vector<128x128xbf16>, vector<4x128xf32> -> vector<4x128xf32>
    %348 = arith.addf %342, %347 : vector<4x128xf32>
    %c13_349 = arith.constant 13 : index
    %c0_350 = arith.constant 0 : index
    %349 = vector.load %arg4[%c13_349, %c0_350] : memref<21x128xf32, #tpu.memory_space<vmem>>, vector<1x128xf32>
    %350 = vector.broadcast %349 : vector<1x128xf32> to vector<4x128xf32>
    %351 = arith.addf %348, %350 : vector<4x128xf32>
    %cst_351 = arith.constant 0.000000e+00 : f32
    %352 = vector.broadcast %cst_351 : f32 to vector<4x128xf32>
    %353 = arith.maximumf %351, %352 : vector<4x128xf32>
    %c1_352 = arith.constant 1 : index
    %c0_353 = arith.constant 0 : index
    %354 = vector.load %arg20[%c1_352, %c0_353] : memref<6x128xf32, #tpu.memory_space<vmem>>, vector<4x128xf32>
    tpu.vector_store %arg20[%c1_352, %c0_353], %353 {strides = array<i32>} : memref<6x128xf32, #tpu.memory_space<vmem>>, vector<4x128xf32>,
    %c0_354 = arith.constant 0 : index
    %c0_355 = arith.constant 0 : index
    %355 = vector.load %arg20[%c0_354, %c0_355] : memref<6x128xf32, #tpu.memory_space<vmem>>, vector<4x128xf32>
    %356 = arith.truncf %355 : vector<4x128xf32> to vector<4x128xbf16>
    %c34 = arith.constant 34 : index
    %c0_356 = arith.constant 0 : index
    %c0_357 = arith.constant 0 : index
    %357 = vector.load %arg2[%c34, %c0_356, %c0_357] : memref<49x128x128xbf16, #tpu.memory_space<vmem>>, vector<1x128x128xbf16>
    %358 = vector.shape_cast %357 : vector<1x128x128xbf16> to vector<128x128xbf16>
    %cst_358 = arith.constant dense<0.000000e+00> : vector<4x128xf32>
    %359 = tpu.matmul %356, %358, %cst_358 {dimension_numbers = #tpu.dot_dimension_numbers<[1], [0], [0], [1], [0, 0, 1, 1], [], []>} : vector<4x128xbf16>, vector<128x128xbf16>, vector<4x128xf32> -> vector<4x128xf32>
    %c1_359 = arith.constant 1 : index
    %c0_360 = arith.constant 0 : index
    %360 = vector.load %arg20[%c1_359, %c0_360] : memref<6x128xf32, #tpu.memory_space<vmem>>, vector<4x128xf32>
    %361 = arith.truncf %360 : vector<4x128xf32> to vector<4x128xbf16>
    %c35 = arith.constant 35 : index
    %c0_361 = arith.constant 0 : index
    %c0_362 = arith.constant 0 : index
    %362 = vector.load %arg2[%c35, %c0_361, %c0_362] : memref<49x128x128xbf16, #tpu.memory_space<vmem>>, vector<1x128x128xbf16>
    %363 = vector.shape_cast %362 : vector<1x128x128xbf16> to vector<128x128xbf16>
    %cst_363 = arith.constant dense<0.000000e+00> : vector<4x128xf32>
    %364 = tpu.matmul %361, %363, %cst_363 {dimension_numbers = #tpu.dot_dimension_numbers<[1], [0], [0], [1], [0, 0, 1, 1], [], []>} : vector<4x128xbf16>, vector<128x128xbf16>, vector<4x128xf32> -> vector<4x128xf32>
    %365 = arith.addf %359, %364 : vector<4x128xf32>
    %c2_364 = arith.constant 2 : index
    %c0_365 = arith.constant 0 : index
    %366 = vector.load %arg20[%c2_364, %c0_365] : memref<6x128xf32, #tpu.memory_space<vmem>>, vector<4x128xf32>
    %367 = arith.truncf %366 : vector<4x128xf32> to vector<4x128xbf16>
    %c36 = arith.constant 36 : index
    %c0_366 = arith.constant 0 : index
    %c0_367 = arith.constant 0 : index
    %368 = vector.load %arg2[%c36, %c0_366, %c0_367] : memref<49x128x128xbf16, #tpu.memory_space<vmem>>, vector<1x128x128xbf16>
    %369 = vector.shape_cast %368 : vector<1x128x128xbf16> to vector<128x128xbf16>
    %cst_368 = arith.constant dense<0.000000e+00> : vector<4x128xf32>
    %370 = tpu.matmul %367, %369, %cst_368 {dimension_numbers = #tpu.dot_dimension_numbers<[1], [0], [0], [1], [0, 0, 1, 1], [], []>} : vector<4x128xbf16>, vector<128x128xbf16>, vector<4x128xf32> -> vector<4x128xf32>
    %371 = arith.addf %365, %370 : vector<4x128xf32>
    %c14_369 = arith.constant 14 : index
    %c0_370 = arith.constant 0 : index
    %372 = vector.load %arg4[%c14_369, %c0_370] : memref<21x128xf32, #tpu.memory_space<vmem>>, vector<1x128xf32>
    %373 = vector.broadcast %372 : vector<1x128xf32> to vector<4x128xf32>
    %374 = arith.addf %371, %373 : vector<4x128xf32>
    %c1_371 = arith.constant 1 : index
    %c0_372 = arith.constant 0 : index
    %375 = vector.load %arg19[%c1_371, %c0_372] : memref<6x128xf32, #tpu.memory_space<vmem>>, vector<4x128xf32>
    %376 = arith.addf %374, %375 : vector<4x128xf32>
    %cst_373 = arith.constant 0.000000e+00 : f32
    %377 = vector.broadcast %cst_373 : f32 to vector<4x128xf32>
    %378 = arith.maximumf %376, %377 : vector<4x128xf32>
    %c1_374 = arith.constant 1 : index
    %c0_375 = arith.constant 0 : index
    %379 = vector.load %arg21[%c1_374, %c0_375] : memref<6x128xf32, #tpu.memory_space<vmem>>, vector<4x128xf32>
    tpu.vector_store %arg21[%c1_374, %c0_375], %378 {strides = array<i32>} : memref<6x128xf32, #tpu.memory_space<vmem>>, vector<4x128xf32>,
    %c0_376 = arith.constant 0 : index
    %c0_377 = arith.constant 0 : index
    %380 = tpu.strided_load %arg21[%c0_376, %c0_377] {strides = array<i32: 2, 1>} : memref<6x128xf32, #tpu.memory_space<vmem>>, vector<2x128xf32>
    %381 = arith.truncf %380 : vector<2x128xf32> to vector<2x128xbf16>
    %c37 = arith.constant 37 : index
    %c0_378 = arith.constant 0 : index
    %c0_379 = arith.constant 0 : index
    %382 = vector.load %arg2[%c37, %c0_378, %c0_379] : memref<49x128x128xbf16, #tpu.memory_space<vmem>>, vector<1x128x128xbf16>
    %383 = vector.shape_cast %382 : vector<1x128x128xbf16> to vector<128x128xbf16>
    %cst_380 = arith.constant dense<0.000000e+00> : vector<2x128xf32>
    %384 = tpu.matmul %381, %383, %cst_380 {dimension_numbers = #tpu.dot_dimension_numbers<[1], [0], [0], [1], [0, 0, 1, 1], [], []>} : vector<2x128xbf16>, vector<128x128xbf16>, vector<2x128xf32> -> vector<2x128xf32>
    %c1_381 = arith.constant 1 : index
    %c0_382 = arith.constant 0 : index
    %385 = tpu.strided_load %arg21[%c1_381, %c0_382] {strides = array<i32: 2, 1>} : memref<6x128xf32, #tpu.memory_space<vmem>>, vector<2x128xf32>
    %386 = arith.truncf %385 : vector<2x128xf32> to vector<2x128xbf16>
    %c2_383 = arith.constant 2 : index
    %c0_384 = arith.constant 0 : index
    %c0_385 = arith.constant 0 : index
    %387 = vector.load %arg3[%c2_383, %c0_384, %c0_385] : memref<3x128x256xbf16, #tpu.memory_space<vmem>>, vector<1x128x256xbf16>
    %388 = vector.shape_cast %387 : vector<1x128x256xbf16> to vector<128x256xbf16>
    %cst_386 = arith.constant dense<0.000000e+00> : vector<2x256xf32>
    %389 = tpu.matmul %386, %388, %cst_386 {dimension_numbers = #tpu.dot_dimension_numbers<[1], [0], [0], [1], [0, 0, 1, 1], [], []>} : vector<2x128xbf16>, vector<128x256xbf16>, vector<2x256xf32> -> vector<2x256xf32>
    %390 = vector.extract_strided_slice %389 {offsets = [0, 0], sizes = [2, 128], strides = [1, 1]} : vector<2x256xf32> to vector<2x128xf32>
    %391 = vector.extract_strided_slice %389 {offsets = [0, 128], sizes = [2, 128], strides = [1, 1]} : vector<2x256xf32> to vector<2x128xf32>
    %392 = arith.addf %384, %390 : vector<2x128xf32>
    %c2_387 = arith.constant 2 : index
    %c0_388 = arith.constant 0 : index
    %393 = tpu.strided_load %arg21[%c2_387, %c0_388] {strides = array<i32: 2, 1>} : memref<6x128xf32, #tpu.memory_space<vmem>>, vector<2x128xf32>
    %394 = arith.truncf %393 : vector<2x128xf32> to vector<2x128xbf16>
    %c38 = arith.constant 38 : index
    %c0_389 = arith.constant 0 : index
    %c0_390 = arith.constant 0 : index
    %395 = vector.load %arg2[%c38, %c0_389, %c0_390] : memref<49x128x128xbf16, #tpu.memory_space<vmem>>, vector<1x128x128xbf16>
    %396 = vector.shape_cast %395 : vector<1x128x128xbf16> to vector<128x128xbf16>
    %cst_391 = arith.constant dense<0.000000e+00> : vector<2x128xf32>
    %397 = tpu.matmul %394, %396, %cst_391 {dimension_numbers = #tpu.dot_dimension_numbers<[1], [0], [0], [1], [0, 0, 1, 1], [], []>} : vector<2x128xbf16>, vector<128x128xbf16>, vector<2x128xf32> -> vector<2x128xf32>
    %398 = arith.addf %392, %397 : vector<2x128xf32>
    %c16_392 = arith.constant 16 : index
    %c0_393 = arith.constant 0 : index
    %399 = vector.load %arg4[%c16_392, %c0_393] : memref<21x128xf32, #tpu.memory_space<vmem>>, vector<1x128xf32>
    %400 = vector.broadcast %399 : vector<1x128xf32> to vector<2x128xf32>
    %401 = arith.addf %398, %400 : vector<2x128xf32>
    %cst_394 = arith.constant 0.000000e+00 : f32
    %402 = vector.broadcast %cst_394 : f32 to vector<2x128xf32>
    %403 = arith.maximumf %401, %402 : vector<2x128xf32>
    %c1_395 = arith.constant 1 : index
    %c0_396 = arith.constant 0 : index
    %404 = vector.load %arg23[%c1_395, %c0_396] : memref<4x128xf32, #tpu.memory_space<vmem>>, vector<2x128xf32>
    tpu.vector_store %arg23[%c1_395, %c0_396], %403 {strides = array<i32>} : memref<4x128xf32, #tpu.memory_space<vmem>>, vector<2x128xf32>,
    %c15_397 = arith.constant 15 : index
    %c0_398 = arith.constant 0 : index
    %405 = vector.load %arg4[%c15_397, %c0_398] : memref<21x128xf32, #tpu.memory_space<vmem>>, vector<1x128xf32>
    %406 = vector.broadcast %405 : vector<1x128xf32> to vector<2x128xf32>
    %407 = arith.addf %391, %406 : vector<2x128xf32>
    %c0_399 = arith.constant 0 : index
    %c0_400 = arith.constant 0 : index
    %408 = vector.load %arg22[%c0_399, %c0_400] : memref<2x128xf32, #tpu.memory_space<vmem>>, vector<2x128xf32>
    tpu.vector_store %arg22[%c0_399, %c0_400], %407 {strides = array<i32>} : memref<2x128xf32, #tpu.memory_space<vmem>>, vector<2x128xf32>,
    %c0_401 = arith.constant 0 : index
    %c0_402 = arith.constant 0 : index
    %409 = vector.load %arg23[%c0_401, %c0_402] : memref<4x128xf32, #tpu.memory_space<vmem>>, vector<2x128xf32>
    %410 = arith.truncf %409 : vector<2x128xf32> to vector<2x128xbf16>
    %c39 = arith.constant 39 : index
    %c0_403 = arith.constant 0 : index
    %c0_404 = arith.constant 0 : index
    %411 = vector.load %arg2[%c39, %c0_403, %c0_404] : memref<49x128x128xbf16, #tpu.memory_space<vmem>>, vector<1x128x128xbf16>
    %412 = vector.shape_cast %411 : vector<1x128x128xbf16> to vector<128x128xbf16>
    %cst_405 = arith.constant dense<0.000000e+00> : vector<2x128xf32>
    %413 = tpu.matmul %410, %412, %cst_405 {dimension_numbers = #tpu.dot_dimension_numbers<[1], [0], [0], [1], [0, 0, 1, 1], [], []>} : vector<2x128xbf16>, vector<128x128xbf16>, vector<2x128xf32> -> vector<2x128xf32>
    %c1_406 = arith.constant 1 : index
    %c0_407 = arith.constant 0 : index
    %414 = vector.load %arg23[%c1_406, %c0_407] : memref<4x128xf32, #tpu.memory_space<vmem>>, vector<2x128xf32>
    %415 = arith.truncf %414 : vector<2x128xf32> to vector<2x128xbf16>
    %c40 = arith.constant 40 : index
    %c0_408 = arith.constant 0 : index
    %c0_409 = arith.constant 0 : index
    %416 = vector.load %arg2[%c40, %c0_408, %c0_409] : memref<49x128x128xbf16, #tpu.memory_space<vmem>>, vector<1x128x128xbf16>
    %417 = vector.shape_cast %416 : vector<1x128x128xbf16> to vector<128x128xbf16>
    %cst_410 = arith.constant dense<0.000000e+00> : vector<2x128xf32>
    %418 = tpu.matmul %415, %417, %cst_410 {dimension_numbers = #tpu.dot_dimension_numbers<[1], [0], [0], [1], [0, 0, 1, 1], [], []>} : vector<2x128xbf16>, vector<128x128xbf16>, vector<2x128xf32> -> vector<2x128xf32>
    %419 = arith.addf %413, %418 : vector<2x128xf32>
    %c2_411 = arith.constant 2 : index
    %c0_412 = arith.constant 0 : index
    %420 = vector.load %arg23[%c2_411, %c0_412] : memref<4x128xf32, #tpu.memory_space<vmem>>, vector<2x128xf32>
    %421 = arith.truncf %420 : vector<2x128xf32> to vector<2x128xbf16>
    %c41 = arith.constant 41 : index
    %c0_413 = arith.constant 0 : index
    %c0_414 = arith.constant 0 : index
    %422 = vector.load %arg2[%c41, %c0_413, %c0_414] : memref<49x128x128xbf16, #tpu.memory_space<vmem>>, vector<1x128x128xbf16>
    %423 = vector.shape_cast %422 : vector<1x128x128xbf16> to vector<128x128xbf16>
    %cst_415 = arith.constant dense<0.000000e+00> : vector<2x128xf32>
    %424 = tpu.matmul %421, %423, %cst_415 {dimension_numbers = #tpu.dot_dimension_numbers<[1], [0], [0], [1], [0, 0, 1, 1], [], []>} : vector<2x128xbf16>, vector<128x128xbf16>, vector<2x128xf32> -> vector<2x128xf32>
    %425 = arith.addf %419, %424 : vector<2x128xf32>
    %c17_416 = arith.constant 17 : index
    %c0_417 = arith.constant 0 : index
    %426 = vector.load %arg4[%c17_416, %c0_417] : memref<21x128xf32, #tpu.memory_space<vmem>>, vector<1x128xf32>
    %427 = vector.broadcast %426 : vector<1x128xf32> to vector<2x128xf32>
    %428 = arith.addf %425, %427 : vector<2x128xf32>
    %c0_418 = arith.constant 0 : index
    %c0_419 = arith.constant 0 : index
    %429 = vector.load %arg22[%c0_418, %c0_419] : memref<2x128xf32, #tpu.memory_space<vmem>>, vector<2x128xf32>
    %430 = arith.addf %428, %429 : vector<2x128xf32>
    %cst_420 = arith.constant 0.000000e+00 : f32
    %431 = vector.broadcast %cst_420 : f32 to vector<2x128xf32>
    %432 = arith.maximumf %430, %431 : vector<2x128xf32>
    %c1_421 = arith.constant 1 : index
    %c0_422 = arith.constant 0 : index
    %433 = vector.load %arg24[%c1_421, %c0_422] : memref<4x128xf32, #tpu.memory_space<vmem>>, vector<2x128xf32>
    tpu.vector_store %arg24[%c1_421, %c0_422], %432 {strides = array<i32>} : memref<4x128xf32, #tpu.memory_space<vmem>>, vector<2x128xf32>,
    %c0_423 = arith.constant 0 : index
    %c0_424 = arith.constant 0 : index
    %434 = vector.load %arg24[%c0_423, %c0_424] : memref<4x128xf32, #tpu.memory_space<vmem>>, vector<2x128xf32>
    %435 = arith.truncf %434 : vector<2x128xf32> to vector<2x128xbf16>
    %c42 = arith.constant 42 : index
    %c0_425 = arith.constant 0 : index
    %c0_426 = arith.constant 0 : index
    %436 = vector.load %arg2[%c42, %c0_425, %c0_426] : memref<49x128x128xbf16, #tpu.memory_space<vmem>>, vector<1x128x128xbf16>
    %437 = vector.shape_cast %436 : vector<1x128x128xbf16> to vector<128x128xbf16>
    %cst_427 = arith.constant dense<0.000000e+00> : vector<2x128xf32>
    %438 = tpu.matmul %435, %437, %cst_427 {dimension_numbers = #tpu.dot_dimension_numbers<[1], [0], [0], [1], [0, 0, 1, 1], [], []>} : vector<2x128xbf16>, vector<128x128xbf16>, vector<2x128xf32> -> vector<2x128xf32>
    %c1_428 = arith.constant 1 : index
    %c0_429 = arith.constant 0 : index
    %439 = vector.load %arg24[%c1_428, %c0_429] : memref<4x128xf32, #tpu.memory_space<vmem>>, vector<2x128xf32>
    %440 = arith.truncf %439 : vector<2x128xf32> to vector<2x128xbf16>
    %c43 = arith.constant 43 : index
    %c0_430 = arith.constant 0 : index
    %c0_431 = arith.constant 0 : index
    %441 = vector.load %arg2[%c43, %c0_430, %c0_431] : memref<49x128x128xbf16, #tpu.memory_space<vmem>>, vector<1x128x128xbf16>
    %442 = vector.shape_cast %441 : vector<1x128x128xbf16> to vector<128x128xbf16>
    %cst_432 = arith.constant dense<0.000000e+00> : vector<2x128xf32>
    %443 = tpu.matmul %440, %442, %cst_432 {dimension_numbers = #tpu.dot_dimension_numbers<[1], [0], [0], [1], [0, 0, 1, 1], [], []>} : vector<2x128xbf16>, vector<128x128xbf16>, vector<2x128xf32> -> vector<2x128xf32>
    %444 = arith.addf %438, %443 : vector<2x128xf32>
    %c2_433 = arith.constant 2 : index
    %c0_434 = arith.constant 0 : index
    %445 = vector.load %arg24[%c2_433, %c0_434] : memref<4x128xf32, #tpu.memory_space<vmem>>, vector<2x128xf32>
    %446 = arith.truncf %445 : vector<2x128xf32> to vector<2x128xbf16>
    %c44 = arith.constant 44 : index
    %c0_435 = arith.constant 0 : index
    %c0_436 = arith.constant 0 : index
    %447 = vector.load %arg2[%c44, %c0_435, %c0_436] : memref<49x128x128xbf16, #tpu.memory_space<vmem>>, vector<1x128x128xbf16>
    %448 = vector.shape_cast %447 : vector<1x128x128xbf16> to vector<128x128xbf16>
    %cst_437 = arith.constant dense<0.000000e+00> : vector<2x128xf32>
    %449 = tpu.matmul %446, %448, %cst_437 {dimension_numbers = #tpu.dot_dimension_numbers<[1], [0], [0], [1], [0, 0, 1, 1], [], []>} : vector<2x128xbf16>, vector<128x128xbf16>, vector<2x128xf32> -> vector<2x128xf32>
    %450 = arith.addf %444, %449 : vector<2x128xf32>
    %c18_438 = arith.constant 18 : index
    %c0_439 = arith.constant 0 : index
    %451 = vector.load %arg4[%c18_438, %c0_439] : memref<21x128xf32, #tpu.memory_space<vmem>>, vector<1x128xf32>
    %452 = vector.broadcast %451 : vector<1x128xf32> to vector<2x128xf32>
    %453 = arith.addf %450, %452 : vector<2x128xf32>
    %cst_440 = arith.constant 0.000000e+00 : f32
    %454 = vector.broadcast %cst_440 : f32 to vector<2x128xf32>
    %455 = arith.maximumf %453, %454 : vector<2x128xf32>
    %c1_441 = arith.constant 1 : index
    %c0_442 = arith.constant 0 : index
    %456 = vector.load %arg25[%c1_441, %c0_442] : memref<4x128xf32, #tpu.memory_space<vmem>>, vector<2x128xf32>
    tpu.vector_store %arg25[%c1_441, %c0_442], %455 {strides = array<i32>} : memref<4x128xf32, #tpu.memory_space<vmem>>, vector<2x128xf32>,
    %c0_443 = arith.constant 0 : index
    %c0_444 = arith.constant 0 : index
    %457 = vector.load %arg25[%c0_443, %c0_444] : memref<4x128xf32, #tpu.memory_space<vmem>>, vector<2x128xf32>
    %458 = arith.truncf %457 : vector<2x128xf32> to vector<2x128xbf16>
    %c45 = arith.constant 45 : index
    %c0_445 = arith.constant 0 : index
    %c0_446 = arith.constant 0 : index
    %459 = vector.load %arg2[%c45, %c0_445, %c0_446] : memref<49x128x128xbf16, #tpu.memory_space<vmem>>, vector<1x128x128xbf16>
    %460 = vector.shape_cast %459 : vector<1x128x128xbf16> to vector<128x128xbf16>
    %cst_447 = arith.constant dense<0.000000e+00> : vector<2x128xf32>
    %461 = tpu.matmul %458, %460, %cst_447 {dimension_numbers = #tpu.dot_dimension_numbers<[1], [0], [0], [1], [0, 0, 1, 1], [], []>} : vector<2x128xbf16>, vector<128x128xbf16>, vector<2x128xf32> -> vector<2x128xf32>
    %c1_448 = arith.constant 1 : index
    %c0_449 = arith.constant 0 : index
    %462 = vector.load %arg25[%c1_448, %c0_449] : memref<4x128xf32, #tpu.memory_space<vmem>>, vector<2x128xf32>
    %463 = arith.truncf %462 : vector<2x128xf32> to vector<2x128xbf16>
    %c46 = arith.constant 46 : index
    %c0_450 = arith.constant 0 : index
    %c0_451 = arith.constant 0 : index
    %464 = vector.load %arg2[%c46, %c0_450, %c0_451] : memref<49x128x128xbf16, #tpu.memory_space<vmem>>, vector<1x128x128xbf16>
    %465 = vector.shape_cast %464 : vector<1x128x128xbf16> to vector<128x128xbf16>
    %cst_452 = arith.constant dense<0.000000e+00> : vector<2x128xf32>
    %466 = tpu.matmul %463, %465, %cst_452 {dimension_numbers = #tpu.dot_dimension_numbers<[1], [0], [0], [1], [0, 0, 1, 1], [], []>} : vector<2x128xbf16>, vector<128x128xbf16>, vector<2x128xf32> -> vector<2x128xf32>
    %467 = arith.addf %461, %466 : vector<2x128xf32>
    %c2_453 = arith.constant 2 : index
    %c0_454 = arith.constant 0 : index
    %468 = vector.load %arg25[%c2_453, %c0_454] : memref<4x128xf32, #tpu.memory_space<vmem>>, vector<2x128xf32>
    %469 = arith.truncf %468 : vector<2x128xf32> to vector<2x128xbf16>
    %c47 = arith.constant 47 : index
    %c0_455 = arith.constant 0 : index
    %c0_456 = arith.constant 0 : index
    %470 = vector.load %arg2[%c47, %c0_455, %c0_456] : memref<49x128x128xbf16, #tpu.memory_space<vmem>>, vector<1x128x128xbf16>
    %471 = vector.shape_cast %470 : vector<1x128x128xbf16> to vector<128x128xbf16>
    %cst_457 = arith.constant dense<0.000000e+00> : vector<2x128xf32>
    %472 = tpu.matmul %469, %471, %cst_457 {dimension_numbers = #tpu.dot_dimension_numbers<[1], [0], [0], [1], [0, 0, 1, 1], [], []>} : vector<2x128xbf16>, vector<128x128xbf16>, vector<2x128xf32> -> vector<2x128xf32>
    %473 = arith.addf %467, %472 : vector<2x128xf32>
    %c19_458 = arith.constant 19 : index
    %c0_459 = arith.constant 0 : index
    %474 = vector.load %arg4[%c19_458, %c0_459] : memref<21x128xf32, #tpu.memory_space<vmem>>, vector<1x128xf32>
    %475 = vector.broadcast %474 : vector<1x128xf32> to vector<2x128xf32>
    %476 = arith.addf %473, %475 : vector<2x128xf32>
    %c1_460 = arith.constant 1 : index
    %c0_461 = arith.constant 0 : index
    %477 = vector.load %arg24[%c1_460, %c0_461] : memref<4x128xf32, #tpu.memory_space<vmem>>, vector<2x128xf32>
    %478 = arith.addf %476, %477 : vector<2x128xf32>
    %cst_462 = arith.constant 0.000000e+00 : f32
    %479 = vector.broadcast %cst_462 : f32 to vector<2x128xf32>
    %480 = arith.maximumf %478, %479 : vector<2x128xf32>
    %c1_463 = arith.constant 1 : index
    %c0_464 = arith.constant 0 : index
    %481 = vector.load %arg26[%c1_463, %c0_464] : memref<4x128xf32, #tpu.memory_space<vmem>>, vector<2x128xf32>
    tpu.vector_store %arg26[%c1_463, %c0_464], %480 {strides = array<i32>} : memref<4x128xf32, #tpu.memory_space<vmem>>, vector<2x128xf32>,
    %c1_465 = arith.constant 1 : index
    %c0_466 = arith.constant 0 : index
    %482 = vector.load %arg26[%c1_465, %c0_466] : memref<4x128xf32, #tpu.memory_space<vmem>>, vector<2x128xf32>
    %483 = arith.truncf %482 : vector<2x128xf32> to vector<2x128xbf16>
    %c48 = arith.constant 48 : index
    %c0_467 = arith.constant 0 : index
    %c0_468 = arith.constant 0 : index
    %484 = vector.load %arg2[%c48, %c0_467, %c0_468] : memref<49x128x128xbf16, #tpu.memory_space<vmem>>, vector<1x128x128xbf16>
    %485 = vector.shape_cast %484 : vector<1x128x128xbf16> to vector<128x128xbf16>
    %cst_469 = arith.constant dense<0.000000e+00> : vector<2x128xf32>
    %486 = tpu.matmul %483, %485, %cst_469 {dimension_numbers = #tpu.dot_dimension_numbers<[1], [0], [0], [1], [0, 0, 1, 1], [], []>} : vector<2x128xbf16>, vector<128x128xbf16>, vector<2x128xf32> -> vector<2x128xf32>
    %cst_470 = arith.constant dense<0.000000e+00> : vector<128xf32>
    %487 = vector.multi_reduction <add>, %486, %cst_470 [0] : vector<2x128xf32> to vector<128xf32>
    %488 = vector.shape_cast %487 : vector<128xf32> to vector<1x128xf32>
    %c20_471 = arith.constant 20 : index
    %c0_472 = arith.constant 0 : index
    %489 = vector.load %arg4[%c20_471, %c0_472] : memref<21x128xf32, #tpu.memory_space<vmem>>, vector<1x128xf32>
    %490 = arith.addf %488, %489 : vector<1x128xf32>
    %491 = vector.shape_cast %490 : vector<1x128xf32> to vector<1x1x128xf32>
    %c0_473 = arith.constant 0 : index
    %c0_474 = arith.constant 0 : index
    %c0_475 = arith.constant 0 : index
    %492 = vector.load %arg5[%c0_473, %c0_474, %c0_475] : memref<1x1x128xf32, #tpu.memory_space<vmem>>, vector<1x1x128xf32>
    tpu.vector_store %arg5[%c0_473, %c0_474, %c0_475], %491 {strides = array<i32>} : memref<1x1x128xf32, #tpu.memory_space<vmem>>, vector<1x1x128xf32>,
    return
  }
  func.func @transform_0(%arg0: i32) -> (i32, i32, i32) {
    %c0_i32 = arith.constant 0 : i32
    %c0_i32_0 = arith.constant 0 : i32
    %c0_i32_1 = arith.constant 0 : i32
    return %arg0, %c0_i32, %c0_i32_0 : i32, i32, i32
  }
  func.func @transform_1(%arg0: i32) -> (i32, i32, i32) {
    %c0_i32 = arith.constant 0 : i32
    %c0_i32_0 = arith.constant 0 : i32
    %c0_i32_1 = arith.constant 0 : i32
    %c0_i32_2 = arith.constant 0 : i32
    return %c0_i32, %c0_i32_0, %c0_i32_1 : i32, i32, i32
  }
  func.func @transform_2(%arg0: i32) -> (i32, i32, i32) {
    %c0_i32 = arith.constant 0 : i32
    %c0_i32_0 = arith.constant 0 : i32
    %c0_i32_1 = arith.constant 0 : i32
    %c0_i32_2 = arith.constant 0 : i32
    return %c0_i32, %c0_i32_0, %c0_i32_1 : i32, i32, i32
  }
  func.func @transform_3(%arg0: i32) -> (i32, i32) {
    %c0_i32 = arith.constant 0 : i32
    %c0_i32_0 = arith.constant 0 : i32
    %c0_i32_1 = arith.constant 0 : i32
    return %c0_i32, %c0_i32_0 : i32, i32
  }
  func.func @transform_4(%arg0: i32) -> (i32, i32, i32) {
    %c0_i32 = arith.constant 0 : i32
    %c0_i32_0 = arith.constant 0 : i32
    %c0_i32_1 = arith.constant 0 : i32
    return %arg0, %c0_i32, %c0_i32_0 : i32, i32, i32
  }
}

</mosaic_0001>

<llo_original>
// kernel: forward.1
$region0: #{forward.1}
  #allocation0 [shape = 'u32[]', space=smem, size = 0x4, offset = 0x4, fixed_abs, tag = 'smem constant byte address 0x4 - core index']
  #allocation1 [shape = 'u32[144,128]{1,0:T(1,128)}', space=vmem, size = 0x12000, scoped, tag = 'internal scratch']
  #allocation2 [shape = 'f32[18,128]{1,0:T(8,128)}', space=vmem, size = 0x3000, scoped, tag = 'scratch operand']
  #allocation3 [shape = 'f32[18,128]{1,0:T(8,128)}', space=vmem, size = 0x3000, scoped, tag = 'scratch operand']
  #allocation4 [shape = 'f32[18,128]{1,0:T(8,128)}', space=vmem, size = 0x3000, scoped, tag = 'scratch operand']
  #allocation5 [shape = 'f32[18,128]{1,0:T(8,128)}', space=vmem, size = 0x3000, scoped, tag = 'scratch operand']
  #allocation6 [shape = 'f32[18,128]{1,0:T(8,128)}', space=vmem, size = 0x3000, scoped, tag = 'scratch operand']
  #allocation7 [shape = 'f32[18,128]{1,0:T(8,128)}', space=vmem, size = 0x3000, scoped, tag = 'scratch operand']
  #allocation8 [shape = 'f32[8,128]{1,0:T(8,128)}', space=vmem, size = 0x1000, scoped, tag = 'scratch operand']
  #allocation9 [shape = 'f32[10,128]{1,0:T(8,128)}', space=vmem, size = 0x2000, scoped, tag = 'scratch operand']
  #allocation10 [shape = 'f32[10,128]{1,0:T(8,128)}', space=vmem, size = 0x2000, scoped, tag = 'scratch operand']
  #allocation11 [shape = 'f32[10,128]{1,0:T(8,128)}', space=vmem, size = 0x2000, scoped, tag = 'scratch operand']
  #allocation12 [shape = 'f32[10,128]{1,0:T(8,128)}', space=vmem, size = 0x2000, scoped, tag = 'scratch operand']
  #allocation13 [shape = 'f32[4,128]{1,0:T(4,128)}', space=vmem, size = 0x800, scoped, tag = 'scratch operand']
  #allocation14 [shape = 'f32[6,128]{1,0:T(8,128)}', space=vmem, size = 0x1000, scoped, tag = 'scratch operand']
  #allocation15 [shape = 'f32[6,128]{1,0:T(8,128)}', space=vmem, size = 0x1000, scoped, tag = 'scratch operand']
  #allocation16 [shape = 'f32[6,128]{1,0:T(8,128)}', space=vmem, size = 0x1000, scoped, tag = 'scratch operand']
  #allocation17 [shape = 'f32[6,128]{1,0:T(8,128)}', space=vmem, size = 0x1000, scoped, tag = 'scratch operand']
  #allocation18 [shape = 'f32[2,128]{1,0:T(2,128)}', space=vmem, size = 0x400, scoped, tag = 'scratch operand']
  #allocation19 [shape = 'f32[4,128]{1,0:T(4,128)}', space=vmem, size = 0x800, scoped, tag = 'scratch operand']
  #allocation20 [shape = 'f32[4,128]{1,0:T(4,128)}', space=vmem, size = 0x800, scoped, tag = 'scratch operand']
  #allocation21 [shape = 'f32[4,128]{1,0:T(4,128)}', space=vmem, size = 0x800, scoped, tag = 'scratch operand']
  #allocation22 [shape = 'f32[4,128]{1,0:T(4,128)}', space=vmem, size = 0x800, scoped, tag = 'scratch operand']
  %s0 = inlined_call_operand.vmem [shape: f32[2,16,128], index: 0, kind: input, shape index: {}]
  %s1 = inlined_call_operand.hbm [shape: bf16[49,128,128], index: 1, kind: input, shape index: {}]
  %s2 = inlined_call_operand.hbm [shape: bf16[3,128,256], index: 2, kind: input, shape index: {}]
  %s3 = inlined_call_operand.hbm [shape: f32[21,128], index: 3, kind: input, shape index: {}]
  %s4 = inlined_call_operand.hbm [shape: f32[2,1,128], index: 4, kind: output, shape index: {}]
  %s5 = sld [smem:[#allocation0]]
  $region61: #{forward.1} parent=0
    _
  %s7 = ssub.s32 1, %s5
  %s8 = scalar_select 0, %s7, %s5
  $region1: #{forward.1} parent=0
    #allocation23 [shape = 'u8[1605632]{0}', space=vmem, size = 0x188000, scoped, tag = 'input window, operand 1, single buffered']
    #allocation24 [shape = 's32[2]{0}', space=sflag, size = 0x8, scoped, tag = 'scoped memory for forward.1']
    #allocation25 [shape = 's32[2]{0}', space=sflag, size = 0x8, scoped, tag = 'scoped memory for forward.1']
    #allocation26 [shape = 'u8[196608]{0}', space=vmem, size = 0x30000, scoped, tag = 'input window, operand 2, single buffered']
    #allocation27 [shape = 's32[1]{0}', space=sflag, size = 0x4, scoped, tag = 'scoped memory for forward.1']
    #allocation28 [shape = 'u8[12288]{0}', space=vmem, size = 0x3000, scoped, tag = 'input window, operand 3, single buffered']
    #allocation29 [shape = 'u8[1024]{0}', space=vmem, size = 0x400, scoped, tag = 'output window, operand 0']
    %9 = vsyncpa [#allocation24], 0
    %10 = vsyncpa [#allocation27], 0
    %11 = vsyncpa [#allocation25], 0
    %s12 = scalar_lea.sflag [#allocation25], 1
    %13 = vsyncpa %s12, 0
    loop: start=0, step=1, limit=4
    $region2: #{forward.1} parent=1 // loop_pre_header
      _
    $region3: #{forward.1} parent=1 // loop_header
      %s15 = sphi 0, %s19
      %p16 = scmp.ge.s32.totalorder %s15, 4
      %s25 = sphi 0, %s27
      %s28 = sphi 0, %s25
      %s29 = sphi 0, %s28
      %s45 = sphi 0, %s29
      %s49 = sphi 0, %s49
      %s51 = sphi 0, %s49
      %s52 = sphi 0, %s51
      %s66 = sphi 0, %s52
      %s70 = sphi 0, %s70
      %s72 = sphi 0, %s70
      %s73 = sphi 0, %s72
      %s87 = sphi 0, %s73
      %s91 = sphi 0, %s91
      %s93 = sphi 0, %s91
      %s94 = sphi 0, %s93
      %s108 = sphi 0, %s94
      %s114 = sphi 0, %s116
      %s117 = sphi 0, %s114
      %s118 = sphi 0, %s117
      %s134 = sphi 0, %s118
    $region4: #{forward.1} parent=1 // loop_header_branch
      %18 = sbr.rel (%p16) target = $region8
    $region5: #{forward.1} parent=1 // loop_body
      %s20 = ssub.s32 %s15, 1
      %s21 = ssub.s32 %s15, 2
      %s22 = sadd.s32 %s15, 1
      %s23 = ssub.s32 %s15, %s22
      %p24 = scmp.eq.s32.totalorder %s23, 0
      %s26 = sadd.s32 %s25, 1
      %s27 = scalar_select %p24, %s25, %s26
      %p30 = pneg %p24
      %p31 = scmp.eq.s32.totalorder %s15, 1
      %p32 = por %p30, %p31
      %p33 = scmp.ne.s32.totalorder %s25, %s28
      %p34 = scmp.eq.s32.totalorder %s15, 0
      %p35 = por %p33, %p34
      %p36 = scmp.ne.s32.totalorder %s25, %s28
      %p37 = scmp.eq.s32.totalorder %s20, 1
      %p38 = por %p36, %p37
      %p39 = scmp.ne.s32.totalorder %s28, %s29
      %p40 = scmp.eq.s32.totalorder %s20, 0
      %p41 = por %p39, %p40
      %p42 = scmp.ne.s32.totalorder %s28, %s29
      %p43 = scmp.eq.s32.totalorder %s21, 1
      %p44 = por %p42, %p43
      %p46 = scmp.ne.s32.totalorder %s29, %s45
      %p47 = scmp.eq.s32.totalorder %s21, 0
      %p48 = por %p46, %p47
      %s50 = sadd.s32 %s49, 1
      %p53 = scmp.eq.s32.totalorder %s15, 1
      %p54 = scmp.ne.s32.totalorder %s49, %s51
      %p55 = scmp.eq.s32.totalorder %s15, 0
      %p56 = por %p54, %p55
      %p57 = scmp.ne.s32.totalorder %s49, %s51
      %p58 = scmp.eq.s32.totalorder %s20, 1
      %p59 = por %p57, %p58
      %p60 = scmp.ne.s32.totalorder %s51, %s52
      %p61 = scmp.eq.s32.totalorder %s20, 0
      %p62 = por %p60, %p61
      %p63 = scmp.ne.s32.totalorder %s51, %s52
      %p64 = scmp.eq.s32.totalorder %s21, 1
      %p65 = por %p63, %p64
      %p67 = scmp.ne.s32.totalorder %s52, %s66
      %p68 = scmp.eq.s32.totalorder %s21, 0
      %p69 = por %p67, %p68
      %s71 = sadd.s32 %s70, 1
      %p74 = scmp.eq.s32.totalorder %s15, 1
      %p75 = scmp.ne.s32.totalorder %s70, %s72
      %p76 = scmp.eq.s32.totalorder %s15, 0
      %p77 = por %p75, %p76
      %p78 = scmp.ne.s32.totalorder %s70, %s72
      %p79 = scmp.eq.s32.totalorder %s20, 1
      %p80 = por %p78, %p79
      %p81 = scmp.ne.s32.totalorder %s72, %s73
      %p82 = scmp.eq.s32.totalorder %s20, 0
      %p83 = por %p81, %p82
      %p84 = scmp.ne.s32.totalorder %s72, %s73
      %p85 = scmp.eq.s32.totalorder %s21, 1
      %p86 = por %p84, %p85
      %p88 = scmp.ne.s32.totalorder %s73, %s87
      %p89 = scmp.eq.s32.totalorder %s21, 0
      %p90 = por %p88, %p89
      %s92 = sadd.s32 %s91, 1
      %p95 = scmp.eq.s32.totalorder %s15, 1
      %p96 = scmp.ne.s32.totalorder %s91, %s93
      %p97 = scmp.eq.s32.totalorder %s15, 0
      %p98 = por %p96, %p97
      %p99 = scmp.ne.s32.totalorder %s91, %s93
      %p100 = scmp.eq.s32.totalorder %s20, 1
      %p101 = por %p99, %p100
      %p102 = scmp.ne.s32.totalorder %s93, %s94
      %p103 = scmp.eq.s32.totalorder %s20, 0
      %p104 = por %p102, %p103
      %p105 = scmp.ne.s32.totalorder %s93, %s94
      %p106 = scmp.eq.s32.totalorder %s21, 1
      %p107 = por %p105, %p106
      %p109 = scmp.ne.s32.totalorder %s94, %s108
      %p110 = scmp.eq.s32.totalorder %s21, 0
      %p111 = por %p109, %p110
      %s112 = ssub.s32 %s15, %s22
      %p113 = scmp.eq.s32.totalorder %s112, 0
      %s115 = sadd.s32 %s114, 1
      %s116 = scalar_select %p113, %s114, %s115
      %p119 = pneg %p113
      %p120 = scmp.eq.s32.totalorder %s15, 1
      %p121 = por %p119, %p120
      %p122 = scmp.ne.s32.totalorder %s114, %s117
      %p123 = scmp.eq.s32.totalorder %s15, 0
      %p124 = por %p122, %p123
      %p125 = scmp.ne.s32.totalorder %s114, %s117
      %p126 = scmp.eq.s32.totalorder %s20, 1
      %p127 = por %p125, %p126
      %p128 = scmp.ne.s32.totalorder %s117, %s118
      %p129 = scmp.eq.s32.totalorder %s20, 0
      %p130 = por %p128, %p129
      %p131 = scmp.ne.s32.totalorder %s117, %s118
      %p132 = scmp.eq.s32.totalorder %s21, 1
      %p133 = por %p131, %p132
      %p135 = scmp.ne.s32.totalorder %s118, %s134
      %p136 = scmp.eq.s32.totalorder %s21, 0
      %p137 = por %p135, %p136
      %p138 = scmp.le.s32.totalorder 1, %s15
      %p139 = scmp.lt.s32.totalorder %s15, 3
      %p140 = pnand %p138, %p139
      %p141 = pneg %p140
      // Predicated region
      $region9: #{forward.1} parent=5 // pred_check
        _
      $region10: #{forward.1} parent=5 // pred_check_branch
        %143 = sbr.rel (%p140) target = $region12
      $region11: #{forward.1} parent=5 // pred_region
        %s144 = ssub.s32 %s15, 1
        // Predicated region
        $region13: #{forward.1} parent=11 // pred_check
          %p145 = pneg %p62
        $region14: #{forward.1} parent=11 // pred_check_branch
          %147 = sbr.rel (%p145) target = $region16
        $region15: #{forward.1} parent=11 // pred_region
          %s149 = ssub.s32 50176, 50176
          %150 = vsyncadd [#allocation24], %s149
          %s151 = sshll.u32 [#allocation23], 4
          %s152 = int_to_ptr.vmem [resolvable:$true] %s151
          %157 = dma.hbm_to_vmem [thread:$0]  %s1, 50176, %s152, [#allocation24], 64, 64, 4
        $region16: #{forward.1} parent=11 // pred_fallthru
          _
        // Predicated region
        $region17: #{forward.1} parent=11 // pred_check
          %p158 = pneg %p83
        $region18: #{forward.1} parent=11 // pred_check_branch
          %160 = sbr.rel (%p158) target = $region20
        $region19: #{forward.1} parent=11 // pred_region
          %s162 = ssub.s32 6144, 6144
          %163 = vsyncadd [#allocation27], %s162
          %s164 = sshll.u32 [#allocation26], 4
          %s165 = int_to_ptr.vmem [resolvable:$true] %s164
          %170 = dma.hbm_to_vmem [thread:$0]  %s2, 6144, %s165, [#allocation27], 128, 128, 8
        $region20: #{forward.1} parent=11 // pred_fallthru
          _
        // Predicated region
        $region21: #{forward.1} parent=11 // pred_check
          %p171 = pneg %p104
        $region22: #{forward.1} parent=11 // pred_check_branch
          %173 = sbr.rel (%p171) target = $region24
        $region23: #{forward.1} parent=11 // pred_region
          %s175 = ssub.s32 384, 384
          %176 = vsyncadd [#allocation27], %s175
          %s177 = sshll.u32 [#allocation28], 4
          %s178 = int_to_ptr.vmem [resolvable:$true] %s177
          %183 = dma.hbm_to_vmem [thread:$0]  %s3, 384, %s178, [#allocation27], 128, 128, 8
        $region24: #{forward.1} parent=11 // pred_fallthru
          _
      $region12: #{forward.1} parent=5 // pred_fallthru
        _
      %p184 = scmp.lt.s32.totalorder %s15, 2
      // Predicated region
      $region25: #{forward.1} parent=5 // pred_check
        %p185 = pneg %p184
      $region26: #{forward.1} parent=5 // pred_check_branch
        %187 = sbr.rel (%p185) target = $region28
      $region27: #{forward.1} parent=5 // pred_region
        // Predicated region
        $region29: #{forward.1} parent=27 // pred_check
          %p188 = pneg %p35
        $region30: #{forward.1} parent=27 // pred_check_branch
          %190 = sbr.rel (%p188) target = $region32
        $region31: #{forward.1} parent=27 // pred_region
          %p191 = scmp.lt.s32.totalorder %s15, 1
          %s192 = scalar_select %p191, %s15, 1
          %s193 = smul.addr %s192, 2
          %s194 = smul.addr %s193, 8
          %s195 = scalar_lea.vmem %s0, %s194
        $region32: #{forward.1} parent=27 // pred_fallthru
          _
      $region28: #{forward.1} parent=5 // pred_fallthru
        _
      %p196 = scmp.le.s32.totalorder 1, %s15
      %p197 = scmp.lt.s32.totalorder %s15, 3
      %p198 = pnand %p196, %p197
      %p199 = pneg %p198
      // Predicated region
      $region33: #{forward.1} parent=5 // pred_check
        _
      $region34: #{forward.1} parent=5 // pred_check_branch
        %201 = sbr.rel (%p198) target = $region36
      $region35: #{forward.1} parent=5 // pred_region
        %s202 = ssub.s32 %s15, 1
        // Predicated region
        $region37: #{forward.1} parent=35 // pred_check
          %p203 = pneg %p62
        $region38: #{forward.1} parent=35 // pred_check_branch
          %205 = sbr.rel (%p203) target = $region40
        $region39: #{forward.1} parent=35 // pred_region
          %206 = dma.done [#allocation24], 50176
        $region40: #{forward.1} parent=35 // pred_fallthru
          _
        // Predicated region
        $region41: #{forward.1} parent=35 // pred_check
          %p207 = pneg %p83
        $region42: #{forward.1} parent=35 // pred_check_branch
          %209 = sbr.rel (%p207) target = $region44
        $region43: #{forward.1} parent=35 // pred_region
          %210 = dma.done [#allocation27], 6144
        $region44: #{forward.1} parent=35 // pred_fallthru
          _
        // Predicated region
        $region45: #{forward.1} parent=35 // pred_check
          %p211 = pneg %p104
        $region46: #{forward.1} parent=35 // pred_check_branch
          %213 = sbr.rel (%p211) target = $region48
        $region47: #{forward.1} parent=35 // pred_region
          %214 = dma.done [#allocation27], 384
        $region48: #{forward.1} parent=35 // pred_fallthru
          _
        %p215 = scmp.lt.s32.totalorder %s20, 1
        %s216 = scalar_select %p215, %s20, 1
        %s217 = smul.addr %s216, 2
        %s218 = smul.addr %s217, 8
        %s219 = scalar_lea.vmem %s0, %s218
        %p220 = pneg %p41
        %p221 = pneg %p38
        %p222 = pneg %p62
        %p223 = pneg %p59
        %p224 = pneg %p83
        %p225 = pneg %p80
        %p226 = pneg %p104
        %p227 = pneg %p101
        %p228 = pneg %p130
        %p229 = pneg %p127
        %s230 = sand.u32 %s117, 1
        %s231 = scalar_lea.sflag [#allocation25], %s230
        %s232 = sand.u32 %s117, 1
        %s233 = scalar_lea.vmem [#allocation29], %s232
        %p234 = scmp.lt.s32.totalorder %s20, 1
        %s235 = scalar_select %p234, %s20, 1
        %s236 = smul.addr %s235, 2
        %s237 = smul.addr %s236, 8
        %s238 = scalar_lea.vmem %s0, %s237
        %240 = vst [vmem:[#allocation2] sm:$0x1] 0.0
        %241 = vst [vmem:[#allocation2 + $0x11] sm:$0x1] 0.0
        %242 = vst [vmem:[#allocation3] sm:$0x1] 0.0
        %243 = vst [vmem:[#allocation3 + $0x11] sm:$0x1] 0.0
        %244 = vst [vmem:[#allocation4] sm:$0x1] 0.0
        %245 = vst [vmem:[#allocation4 + $0x11] sm:$0x1] 0.0
        %246 = vst [vmem:[#allocation5] sm:$0x1] 0.0
        %247 = vst [vmem:[#allocation5 + $0x11] sm:$0x1] 0.0
        %248 = vst [vmem:[#allocation6] sm:$0x1] 0.0
        %249 = vst [vmem:[#allocation6 + $0x11] sm:$0x1] 0.0
        %250 = vst [vmem:[#allocation7] sm:$0x1] 0.0
        %251 = vst [vmem:[#allocation7 + $0x11] sm:$0x1] 0.0
        %252 = vst [vmem:[#allocation9] sm:$0x1] 0.0
        %253 = vst [vmem:[#allocation9 + $0x9] sm:$0x1] 0.0
        %254 = vst [vmem:[#allocation10] sm:$0x1] 0.0
        %255 = vst [vmem:[#allocation10 + $0x9] sm:$0x1] 0.0
        %256 = vst [vmem:[#allocation11] sm:$0x1] 0.0
        %257 = vst [vmem:[#allocation11 + $0x9] sm:$0x1] 0.0
        %258 = vst [vmem:[#allocation12] sm:$0x1] 0.0
        %259 = vst [vmem:[#allocation12 + $0x9] sm:$0x1] 0.0
        %260 = vst [vmem:[#allocation14] sm:$0x1] 0.0
        %261 = vst [vmem:[#allocation14 + $0x5] sm:$0x1] 0.0
        %262 = vst [vmem:[#allocation15] sm:$0x1] 0.0
        %263 = vst [vmem:[#allocation15 + $0x5] sm:$0x1] 0.0
        %264 = vst [vmem:[#allocation16] sm:$0x1] 0.0
        %265 = vst [vmem:[#allocation16 + $0x5] sm:$0x1] 0.0
        %266 = vst [vmem:[#allocation17] sm:$0x1] 0.0
        %267 = vst [vmem:[#allocation17 + $0x5] sm:$0x1] 0.0
        %268 = vst [vmem:[#allocation19] sm:$0x1] 0.0
        %269 = vst [vmem:[#allocation19 + $0x3] sm:$0x1] 0.0
        %270 = vst [vmem:[#allocation20] sm:$0x1] 0.0
        %271 = vst [vmem:[#allocation20 + $0x3] sm:$0x1] 0.0
        %272 = vst [vmem:[#allocation21] sm:$0x1] 0.0
        %273 = vst [vmem:[#allocation21 + $0x3] sm:$0x1] 0.0
        %274 = vst [vmem:[#allocation22] sm:$0x1] 0.0
        %275 = vst [vmem:[#allocation22 + $0x3] sm:$0x1] 0.0
        %v276 = vld [vmem:[%s238] sm:$0xff]
        %v277 = vld [vmem:[%s238 + $0x8] sm:$0xff]
        %278 = vst [vmem:[#allocation2 + $0x1] sm:$0xff] %v276
        %279 = vst [vmem:[#allocation2 + $0x9] sm:$0xff] %v277
        %v280 = vld [vmem:[#allocation2] sm:$0xff]
        %v281 = vld [vmem:[#allocation2 + $0x8] sm:$0xff]
        %v282 = vpack.c.bf16 %v281, %v280
        %v283 = vld [vmem:[#allocation23] sm:$0xf]
        %v284 = vld [vmem:[#allocation23 + $0x4] sm:$0xf]
        %v285 = vld [vmem:[#allocation23 + $0x8] sm:$0xf]
        %v286 = vld [vmem:[#allocation23 + $0xc] sm:$0xf]
        %v287 = vld [vmem:[#allocation23 + $0x10] sm:$0xf]
        %v288 = vld [vmem:[#allocation23 + $0x14] sm:$0xf]
        %v289 = vld [vmem:[#allocation23 + $0x18] sm:$0xf]
        %v290 = vld [vmem:[#allocation23 + $0x1c] sm:$0xf]
        %v291 = vld [vmem:[#allocation23 + $0x20] sm:$0xf]
        %v292 = vld [vmem:[#allocation23 + $0x24] sm:$0xf]
        %v293 = vld [vmem:[#allocation23 + $0x28] sm:$0xf]
        %v294 = vld [vmem:[#allocation23 + $0x2c] sm:$0xf]
        %v295 = vld [vmem:[#allocation23 + $0x30] sm:$0xf]
        %v296 = vld [vmem:[#allocation23 + $0x34] sm:$0xf]
        %v297 = vld [vmem:[#allocation23 + $0x38] sm:$0xf]
        %v298 = vld [vmem:[#allocation23 + $0x3c] sm:$0xf]
        %v299 = vld [vmem:[#allocation2 + $0x1] sm:$0xff]
        %v300 = vld [vmem:[#allocation2 + $0x9] sm:$0xff]
        %v301 = vpack.c.bf16 %v300, %v299
        %s302 = scalar_lea.vmem [#allocation23], 64
        %v303 = vld [vmem:[%s302] sm:$0xf]
        %v304 = vld [vmem:[%s302 + $0x4] sm:$0xf]
        %v305 = vld [vmem:[%s302 + $0x8] sm:$0xf]
        %v306 = vld [vmem:[%s302 + $0xc] sm:$0xf]
        %v307 = vld [vmem:[%s302 + $0x10] sm:$0xf]
        %v308 = vld [vmem:[%s302 + $0x14] sm:$0xf]
        %v309 = vld [vmem:[%s302 + $0x18] sm:$0xf]
        %v310 = vld [vmem:[%s302 + $0x1c] sm:$0xf]
        %v311 = vld [vmem:[%s302 + $0x20] sm:$0xf]
        %v312 = vld [vmem:[%s302 + $0x24] sm:$0xf]
        %v313 = vld [vmem:[%s302 + $0x28] sm:$0xf]
        %v314 = vld [vmem:[%s302 + $0x2c] sm:$0xf]
        %v315 = vld [vmem:[%s302 + $0x30] sm:$0xf]
        %v316 = vld [vmem:[%s302 + $0x34] sm:$0xf]
        %v317 = vld [vmem:[%s302 + $0x38] sm:$0xf]
        %v318 = vld [vmem:[%s302 + $0x3c] sm:$0xf]
        %v335 = vunpack.c.l.b16 %v303
        %v336 = vunpack.c.l.b16 %v304
        %v337 = vunpack.c.l.b16 %v305
        %v338 = vunpack.c.l.b16 %v306
        %v339 = vunpack.c.l.b16 %v307
        %v340 = vunpack.c.l.b16 %v308
        %v341 = vunpack.c.l.b16 %v309
        %v342 = vunpack.c.l.b16 %v310
        %v343 = vunpack.c.l.b16 %v311
        %v344 = vunpack.c.l.b16 %v312
        %v345 = vunpack.c.l.b16 %v313
        %v346 = vunpack.c.l.b16 %v314
        %v347 = vunpack.c.l.b16 %v315
        %v348 = vunpack.c.l.b16 %v316
        %v349 = vunpack.c.l.b16 %v317
        %v350 = vunpack.c.l.b16 %v318
        %v351 = vpack.c.b16 %v336, %v335
        %v352 = vpack.c.b16 %v338, %v337
        %v353 = vpack.c.b16 %v340, %v339
        %v354 = vpack.c.b16 %v342, %v341
        %v355 = vpack.c.b16 %v344, %v343
        %v356 = vpack.c.b16 %v346, %v345
        %v357 = vpack.c.b16 %v348, %v347
        %v358 = vpack.c.b16 %v350, %v349
        %367 = vmatprep.subr.bf16.mxu0 0
        %368 = vmatpush1.bf16.msra.mxu0 %v358
        %369 = vmatprep.subr.bf16.mxu0 0
        %370 = vmatpush1.bf16.msra.mxu0 %v357
        %371 = vmatprep.subr.bf16.mxu0 0
        %372 = vmatpush1.bf16.msra.mxu0 %v356
        %373 = vmatprep.subr.bf16.mxu0 0
        %374 = vmatpush1.bf16.msra.mxu0 %v355
        %375 = vmatprep.subr.bf16.mxu0 0
        %376 = vmatpush1.bf16.msra.mxu0 %v354
        %377 = vmatprep.subr.bf16.mxu0 0
        %378 = vmatpush1.bf16.msra.mxu0 %v353
        %379 = vmatprep.subr.bf16.mxu0 0
        %380 = vmatpush1.bf16.msra.mxu0 %v352
        %381 = vmatprep.subr.bf16.mxu0 0
        %382 = vmatpush1.bf16.msra.mxu0 %v351
        %383 = vmatprep.subr.bf16.mxu0 0
        %384 = vmatpush2.bf16.msra.mxu0 0
        %385 = vmatprep.subr.bf16.mxu0 0
        %386 = vmatpush2.bf16.msra.mxu0 0
        %387 = vmatprep.subr.bf16.mxu0 0
        %388 = vmatpush2.bf16.msra.mxu0 0
        %389 = vmatprep.subr.bf16.mxu0 0
        %390 = vmatpush2.bf16.msra.mxu0 0
        %391 = vmatprep.subr.bf16.mxu0 0
        %392 = vmatpush2.bf16.msra.mxu0 0
        %393 = vmatprep.subr.bf16.mxu0 0
        %394 = vmatpush2.bf16.msra.mxu0 0
        %395 = vmatprep.subr.bf16.mxu0 0
        %396 = vmatpush2.bf16.msra.mxu0 0
        %397 = vmatprep.subr.bf16.mxu0 0
        %398 = vmatpush2.bf16.msra.mxu0 0
        %399 = vmatprep.mubr.bf16.mxu0 0
        %400 = vmatmul.mubr.bf16.gmra.mxu0 %v301
        %v401 = vpop.f32.mrf.mxu0
        %v402 = vadd.f32 0.0, %v401
        %v403 = vpop.f32.mrf.mxu0
        %v404 = vpop.f32.mrf.mxu0
        %v405 = vadd.f32 0.0, %v404
        %v406 = vpop.f32.mrf.mxu0
        %407 = vdwg.mxu0
        %v424 = vunpack.c.l.b16 %v283
        %v425 = vunpack.c.l.b16 %v284
        %v426 = vunpack.c.l.b16 %v285
        %v427 = vunpack.c.l.b16 %v286
        %v428 = vunpack.c.l.b16 %v287
        %v429 = vunpack.c.l.b16 %v288
        %v430 = vunpack.c.l.b16 %v289
        %v431 = vunpack.c.l.b16 %v290
        %v432 = vunpack.c.l.b16 %v291
        %v433 = vunpack.c.l.b16 %v292
        %v434 = vunpack.c.l.b16 %v293
        %v435 = vunpack.c.l.b16 %v294
        %v436 = vunpack.c.l.b16 %v295
        %v437 = vunpack.c.l.b16 %v296
        %v438 = vunpack.c.l.b16 %v297
        %v439 = vunpack.c.l.b16 %v298
        %v440 = vpack.c.b16 %v425, %v424
        %v441 = vpack.c.b16 %v427, %v426
        %v442 = vpack.c.b16 %v429, %v428
        %v443 = vpack.c.b16 %v431, %v430
        %v444 = vpack.c.b16 %v433, %v432
        %v445 = vpack.c.b16 %v435, %v434
        %v446 = vpack.c.b16 %v437, %v436
        %v447 = vpack.c.b16 %v439, %v438
        %456 = vmatprep.subr.bf16.mxu0 0
        %457 = vmatpush1.bf16.msra.mxu0 %v447
        %458 = vmatprep.subr.bf16.mxu0 0
        %459 = vmatpush1.bf16.msra.mxu0 %v446
        %460 = vmatprep.subr.bf16.mxu0 0
        %461 = vmatpush1.bf16.msra.mxu0 %v445
        %462 = vmatprep.subr.bf16.mxu0 0
        %463 = vmatpush1.bf16.msra.mxu0 %v444
        %464 = vmatprep.subr.bf16.mxu0 0
        %465 = vmatpush1.bf16.msra.mxu0 %v443
        %466 = vmatprep.subr.bf16.mxu0 0
        %467 = vmatpush1.bf16.msra.mxu0 %v442
        %468 = vmatprep.subr.bf16.mxu0 0
        %469 = vmatpush1.bf16.msra.mxu0 %v441
        %470 = vmatprep.subr.bf16.mxu0 0
        %471 = vmatpush1.bf16.msra.mxu0 %v440
        %472 = vmatprep.subr.bf16.mxu0 0
        %473 = vmatpush2.bf16.msra.mxu0 0
        %474 = vmatprep.subr.bf16.mxu0 0
        %475 = vmatpush2.bf16.msra.mxu0 0
        %476 = vmatprep.subr.bf16.mxu0 0
        %477 = vmatpush2.bf16.msra.mxu0 0
        %478 = vmatprep.subr.bf16.mxu0 0
        %479 = vmatpush2.bf16.msra.mxu0 0
        %480 = vmatprep.subr.bf16.mxu0 0
        %481 = vmatpush2.bf16.msra.mxu0 0
        %482 = vmatprep.subr.bf16.mxu0 0
        %483 = vmatpush2.bf16.msra.mxu0 0
        %484 = vmatprep.subr.bf16.mxu0 0
        %485 = vmatpush2.bf16.msra.mxu0 0
        %486 = vmatprep.subr.bf16.mxu0 0
        %487 = vmatpush2.bf16.msra.mxu0 0
        %488 = vmatprep.mubr.bf16.mxu0 0
        %489 = vmatmul.mubr.bf16.gmra.mxu0 %v282
        %v490 = vpop.f32.mrf.mxu0
        %v491 = vadd.f32 %v402, %v490
        %v492 = vpop.f32.mrf.mxu0
        %v493 = vpop.f32.mrf.mxu0
        %v494 = vadd.f32 %v405, %v493
        %v495 = vpop.f32.mrf.mxu0
        %496 = vdwg.mxu0
        %v497 = vld [vmem:[#allocation2 + $0x2] sm:$0xff]
        %v498 = vld [vmem:[#allocation2 + $0xa] sm:$0xff]
        %v499 = vpack.c.bf16 %v498, %v497
        %s500 = scalar_lea.vmem [#allocation23], 128
        %v501 = vld [vmem:[%s500] sm:$0xf]
        %v502 = vld [vmem:[%s500 + $0x4] sm:$0xf]
        %v503 = vld [vmem:[%s500 + $0x8] sm:$0xf]
        %v504 = vld [vmem:[%s500 + $0xc] sm:$0xf]
        %v505 = vld [vmem:[%s500 + $0x10] sm:$0xf]
        %v506 = vld [vmem:[%s500 + $0x14] sm:$0xf]
        %v507 = vld [vmem:[%s500 + $0x18] sm:$0xf]
        %v508 = vld [vmem:[%s500 + $0x1c] sm:$0xf]
        %v509 = vld [vmem:[%s500 + $0x20] sm:$0xf]
        %v510 = vld [vmem:[%s500 + $0x24] sm:$0xf]
        %v511 = vld [vmem:[%s500 + $0x28] sm:$0xf]
        %v512 = vld [vmem:[%s500 + $0x2c] sm:$0xf]
        %v513 = vld [vmem:[%s500 + $0x30] sm:$0xf]
        %v514 = vld [vmem:[%s500 + $0x34] sm:$0xf]
        %v515 = vld [vmem:[%s500 + $0x38] sm:$0xf]
        %v516 = vld [vmem:[%s500 + $0x3c] sm:$0xf]
        %v533 = vunpack.c.l.b16 %v501
        %v534 = vunpack.c.l.b16 %v502
        %v535 = vunpack.c.l.b16 %v503
        %v536 = vunpack.c.l.b16 %v504
        %v537 = vunpack.c.l.b16 %v505
        %v538 = vunpack.c.l.b16 %v506
        %v539 = vunpack.c.l.b16 %v507
        %v540 = vunpack.c.l.b16 %v508
        %v541 = vunpack.c.l.b16 %v509
        %v542 = vunpack.c.l.b16 %v510
        %v543 = vunpack.c.l.b16 %v511
        %v544 = vunpack.c.l.b16 %v512
        %v545 = vunpack.c.l.b16 %v513
        %v546 = vunpack.c.l.b16 %v514
        %v547 = vunpack.c.l.b16 %v515
        %v548 = vunpack.c.l.b16 %v516
        %v549 = vpack.c.b16 %v534, %v533
        %v550 = vpack.c.b16 %v536, %v535
        %v551 = vpack.c.b16 %v538, %v537
        %v552 = vpack.c.b16 %v540, %v539
        %v553 = vpack.c.b16 %v542, %v541
        %v554 = vpack.c.b16 %v544, %v543
        %v555 = vpack.c.b16 %v546, %v545
        %v556 = vpack.c.b16 %v548, %v547
        %565 = vmatprep.subr.bf16.mxu0 0
        %566 = vmatpush1.bf16.msra.mxu0 %v556
        %567 = vmatprep.subr.bf16.mxu0 0
        %568 = vmatpush1.bf16.msra.mxu0 %v555
        %569 = vmatprep.subr.bf16.mxu0 0
        %570 = vmatpush1.bf16.msra.mxu0 %v554
        %571 = vmatprep.subr.bf16.mxu0 0
        %572 = vmatpush1.bf16.msra.mxu0 %v553
        %573 = vmatprep.subr.bf16.mxu0 0
        %574 = vmatpush1.bf16.msra.mxu0 %v552
        %575 = vmatprep.subr.bf16.mxu0 0
        %576 = vmatpush1.bf16.msra.mxu0 %v551
        %577 = vmatprep.subr.bf16.mxu0 0
        %578 = vmatpush1.bf16.msra.mxu0 %v550
        %579 = vmatprep.subr.bf16.mxu0 0
        %580 = vmatpush1.bf16.msra.mxu0 %v549
        %581 = vmatprep.subr.bf16.mxu0 0
        %582 = vmatpush2.bf16.msra.mxu0 0
        %583 = vmatprep.subr.bf16.mxu0 0
        %584 = vmatpush2.bf16.msra.mxu0 0
        %585 = vmatprep.subr.bf16.mxu0 0
        %586 = vmatpush2.bf16.msra.mxu0 0
        %587 = vmatprep.subr.bf16.mxu0 0
        %588 = vmatpush2.bf16.msra.mxu0 0
        %589 = vmatprep.subr.bf16.mxu0 0
        %590 = vmatpush2.bf16.msra.mxu0 0
        %591 = vmatprep.subr.bf16.mxu0 0
        %592 = vmatpush2.bf16.msra.mxu0 0
        %593 = vmatprep.subr.bf16.mxu0 0
        %594 = vmatpush2.bf16.msra.mxu0 0
        %595 = vmatprep.subr.bf16.mxu0 0
        %596 = vmatpush2.bf16.msra.mxu0 0
        %597 = vmatprep.mubr.bf16.mxu0 0
        %598 = vmatmul.mubr.bf16.gmra.mxu0 %v499
        %v599 = vpop.f32.mrf.mxu0
        %v600 = vadd.f32 0.0, %v599
        %v601 = vpop.f32.mrf.mxu0
        %v602 = vpop.f32.mrf.mxu0
        %v603 = vadd.f32 0.0, %v602
        %v604 = vpop.f32.mrf.mxu0
        %605 = vdwg.mxu0
        %v606 = vadd.f32 %v491, %v600
        %v607 = vadd.f32 %v494, %v603
        %v608 = vld [vmem:[#allocation28] sm:$0x1]
        %v609 = vlaneseq
        %v610 = vshrl.u32 %v609, 7
        %v611 = vsub.s32 0, %v610
        %v612 = vrot.slane %v608, %v611
        %v613 = vadd.f32 %v606, %v612
        %v614 = vadd.f32 %v607, %v612
        %v615 = vmax.f32 %v613, 0.0
        %v616 = vmax.f32 %v614, 0.0
        %617 = vst [vmem:[#allocation3 + $0x1] sm:$0xff] %v615
        %618 = vst [vmem:[#allocation3 + $0x9] sm:$0xff] %v616
        %v619 = vld [vmem:[#allocation3] sm:$0xff]
        %v620 = vld [vmem:[#allocation3 + $0x8] sm:$0xff]
        %v621 = vpack.c.bf16 %v620, %v619
        %s622 = scalar_lea.vmem [#allocation23], 192
        %v623 = vld [vmem:[%s622] sm:$0xf]
        %v624 = vld [vmem:[%s622 + $0x4] sm:$0xf]
        %v625 = vld [vmem:[%s622 + $0x8] sm:$0xf]
        %v626 = vld [vmem:[%s622 + $0xc] sm:$0xf]
        %v627 = vld [vmem:[%s622 + $0x10] sm:$0xf]
        %v628 = vld [vmem:[%s622 + $0x14] sm:$0xf]
        %v629 = vld [vmem:[%s622 + $0x18] sm:$0xf]
        %v630 = vld [vmem:[%s622 + $0x1c] sm:$0xf]
        %v631 = vld [vmem:[%s622 + $0x20] sm:$0xf]
        %v632 = vld [vmem:[%s622 + $0x24] sm:$0xf]
        %v633 = vld [vmem:[%s622 + $0x28] sm:$0xf]
        %v634 = vld [vmem:[%s622 + $0x2c] sm:$0xf]
        %v635 = vld [vmem:[%s622 + $0x30] sm:$0xf]
        %v636 = vld [vmem:[%s622 + $0x34] sm:$0xf]
        %v637 = vld [vmem:[%s622 + $0x38] sm:$0xf]
        %v638 = vld [vmem:[%s622 + $0x3c] sm:$0xf]
        %v639 = vld [vmem:[#allocation3 + $0x1] sm:$0xff]
        %v640 = vld [vmem:[#allocation3 + $0x9] sm:$0xff]
        %v641 = vpack.c.bf16 %v640, %v639
        %s642 = scalar_lea.vmem [#allocation23], 256
        %v643 = vld [vmem:[%s642] sm:$0xf]
        %v644 = vld [vmem:[%s642 + $0x4] sm:$0xf]
        %v645 = vld [vmem:[%s642 + $0x8] sm:$0xf]
        %v646 = vld [vmem:[%s642 + $0xc] sm:$0xf]
        %v647 = vld [vmem:[%s642 + $0x10] sm:$0xf]
        %v648 = vld [vmem:[%s642 + $0x14] sm:$0xf]
        %v649 = vld [vmem:[%s642 + $0x18] sm:$0xf]
        %v650 = vld [vmem:[%s642 + $0x1c] sm:$0xf]
        %v651 = vld [vmem:[%s642 + $0x20] sm:$0xf]
        %v652 = vld [vmem:[%s642 + $0x24] sm:$0xf]
        %v653 = vld [vmem:[%s642 + $0x28] sm:$0xf]
        %v654 = vld [vmem:[%s642 + $0x2c] sm:$0xf]
        %v655 = vld [vmem:[%s642 + $0x30] sm:$0xf]
        %v656 = vld [vmem:[%s642 + $0x34] sm:$0xf]
        %v657 = vld [vmem:[%s642 + $0x38] sm:$0xf]
        %v658 = vld [vmem:[%s642 + $0x3c] sm:$0xf]
        %v675 = vunpack.c.l.b16 %v643
        %v676 = vunpack.c.l.b16 %v644
        %v677 = vunpack.c.l.b16 %v645
        %v678 = vunpack.c.l.b16 %v646
        %v679 = vunpack.c.l.b16 %v647
        %v680 = vunpack.c.l.b16 %v648
        %v681 = vunpack.c.l.b16 %v649
        %v682 = vunpack.c.l.b16 %v650
        %v683 = vunpack.c.l.b16 %v651
        %v684 = vunpack.c.l.b16 %v652
        %v685 = vunpack.c.l.b16 %v653
        %v686 = vunpack.c.l.b16 %v654
        %v687 = vunpack.c.l.b16 %v655
        %v688 = vunpack.c.l.b16 %v656
        %v689 = vunpack.c.l.b16 %v657
        %v690 = vunpack.c.l.b16 %v658
        %v691 = vpack.c.b16 %v676, %v675
        %v692 = vpack.c.b16 %v678, %v677
        %v693 = vpack.c.b16 %v680, %v679
        %v694 = vpack.c.b16 %v682, %v681
        %v695 = vpack.c.b16 %v684, %v683
        %v696 = vpack.c.b16 %v686, %v685
        %v697 = vpack.c.b16 %v688, %v687
        %v698 = vpack.c.b16 %v690, %v689
        %707 = vmatprep.subr.bf16.mxu0 0
        %708 = vmatpush1.bf16.msra.mxu0 %v698
        %709 = vmatprep.subr.bf16.mxu0 0
        %710 = vmatpush1.bf16.msra.mxu0 %v697
        %711 = vmatprep.subr.bf16.mxu0 0
        %712 = vmatpush1.bf16.msra.mxu0 %v696
        %713 = vmatprep.subr.bf16.mxu0 0
        %714 = vmatpush1.bf16.msra.mxu0 %v695
        %715 = vmatprep.subr.bf16.mxu0 0
        %716 = vmatpush1.bf16.msra.mxu0 %v694
        %717 = vmatprep.subr.bf16.mxu0 0
        %718 = vmatpush1.bf16.msra.mxu0 %v693
        %719 = vmatprep.subr.bf16.mxu0 0
        %720 = vmatpush1.bf16.msra.mxu0 %v692
        %721 = vmatprep.subr.bf16.mxu0 0
        %722 = vmatpush1.bf16.msra.mxu0 %v691
        %723 = vmatprep.subr.bf16.mxu0 0
        %724 = vmatpush2.bf16.msra.mxu0 0
        %725 = vmatprep.subr.bf16.mxu0 0
        %726 = vmatpush2.bf16.msra.mxu0 0
        %727 = vmatprep.subr.bf16.mxu0 0
        %728 = vmatpush2.bf16.msra.mxu0 0
        %729 = vmatprep.subr.bf16.mxu0 0
        %730 = vmatpush2.bf16.msra.mxu0 0
        %731 = vmatprep.subr.bf16.mxu0 0
        %732 = vmatpush2.bf16.msra.mxu0 0
        %733 = vmatprep.subr.bf16.mxu0 0
        %734 = vmatpush2.bf16.msra.mxu0 0
        %735 = vmatprep.subr.bf16.mxu0 0
        %736 = vmatpush2.bf16.msra.mxu0 0
        %737 = vmatprep.subr.bf16.mxu0 0
        %738 = vmatpush2.bf16.msra.mxu0 0
        %739 = vmatprep.mubr.bf16.mxu0 0
        %740 = vmatmul.mubr.bf16.gmra.mxu0 %v641
        %v741 = vpop.f32.mrf.mxu0
        %v742 = vadd.f32 0.0, %v741
        %v743 = vpop.f32.mrf.mxu0
        %v744 = vpop.f32.mrf.mxu0
        %v745 = vadd.f32 0.0, %v744
        %v746 = vpop.f32.mrf.mxu0
        %747 = vdwg.mxu0
        %v764 = vunpack.c.l.b16 %v623
        %v765 = vunpack.c.l.b16 %v624
        %v766 = vunpack.c.l.b16 %v625
        %v767 = vunpack.c.l.b16 %v626
        %v768 = vunpack.c.l.b16 %v627
        %v769 = vunpack.c.l.b16 %v628
        %v770 = vunpack.c.l.b16 %v629
        %v771 = vunpack.c.l.b16 %v630
        %v772 = vunpack.c.l.b16 %v631
        %v773 = vunpack.c.l.b16 %v632
        %v774 = vunpack.c.l.b16 %v633
        %v775 = vunpack.c.l.b16 %v634
        %v776 = vunpack.c.l.b16 %v635
        %v777 = vunpack.c.l.b16 %v636
        %v778 = vunpack.c.l.b16 %v637
        %v779 = vunpack.c.l.b16 %v638
        %v780 = vpack.c.b16 %v765, %v764
        %v781 = vpack.c.b16 %v767, %v766
        %v782 = vpack.c.b16 %v769, %v768
        %v783 = vpack.c.b16 %v771, %v770
        %v784 = vpack.c.b16 %v773, %v772
        %v785 = vpack.c.b16 %v775, %v774
        %v786 = vpack.c.b16 %v777, %v776
        %v787 = vpack.c.b16 %v779, %v778
        %796 = vmatprep.subr.bf16.mxu0 0
        %797 = vmatpush1.bf16.msra.mxu0 %v787
        %798 = vmatprep.subr.bf16.mxu0 0
        %799 = vmatpush1.bf16.msra.mxu0 %v786
        %800 = vmatprep.subr.bf16.mxu0 0
        %801 = vmatpush1.bf16.msra.mxu0 %v785
        %802 = vmatprep.subr.bf16.mxu0 0
        %803 = vmatpush1.bf16.msra.mxu0 %v784
        %804 = vmatprep.subr.bf16.mxu0 0
        %805 = vmatpush1.bf16.msra.mxu0 %v783
        %806 = vmatprep.subr.bf16.mxu0 0
        %807 = vmatpush1.bf16.msra.mxu0 %v782
        %808 = vmatprep.subr.bf16.mxu0 0
        %809 = vmatpush1.bf16.msra.mxu0 %v781
        %810 = vmatprep.subr.bf16.mxu0 0
        %811 = vmatpush1.bf16.msra.mxu0 %v780
        %812 = vmatprep.subr.bf16.mxu0 0
        %813 = vmatpush2.bf16.msra.mxu0 0
        %814 = vmatprep.subr.bf16.mxu0 0
        %815 = vmatpush2.bf16.msra.mxu0 0
        %816 = vmatprep.subr.bf16.mxu0 0
        %817 = vmatpush2.bf16.msra.mxu0 0
        %818 = vmatprep.subr.bf16.mxu0 0
        %819 = vmatpush2.bf16.msra.mxu0 0
        %820 = vmatprep.subr.bf16.mxu0 0
        %821 = vmatpush2.bf16.msra.mxu0 0
        %822 = vmatprep.subr.bf16.mxu0 0
        %823 = vmatpush2.bf16.msra.mxu0 0
        %824 = vmatprep.subr.bf16.mxu0 0
        %825 = vmatpush2.bf16.msra.mxu0 0
        %826 = vmatprep.subr.bf16.mxu0 0
        %827 = vmatpush2.bf16.msra.mxu0 0
        %828 = vmatprep.mubr.bf16.mxu0 0
        %829 = vmatmul.mubr.bf16.gmra.mxu0 %v621
        %v830 = vpop.f32.mrf.mxu0
        %v831 = vadd.f32 %v742, %v830
        %v832 = vpop.f32.mrf.mxu0
        %v833 = vpop.f32.mrf.mxu0
        %v834 = vadd.f32 %v745, %v833
        %v835 = vpop.f32.mrf.mxu0
        %836 = vdwg.mxu0
        %v837 = vld [vmem:[#allocation3 + $0x2] sm:$0xff]
        %v838 = vld [vmem:[#allocation3 + $0xa] sm:$0xff]
        %v839 = vpack.c.bf16 %v838, %v837
        %s840 = scalar_lea.vmem [#allocation23], 320
        %v841 = vld [vmem:[%s840] sm:$0xf]
        %v842 = vld [vmem:[%s840 + $0x4] sm:$0xf]
        %v843 = vld [vmem:[%s840 + $0x8] sm:$0xf]
        %v844 = vld [vmem:[%s840 + $0xc] sm:$0xf]
        %v845 = vld [vmem:[%s840 + $0x10] sm:$0xf]
        %v846 = vld [vmem:[%s840 + $0x14] sm:$0xf]
        %v847 = vld [vmem:[%s840 + $0x18] sm:$0xf]
        %v848 = vld [vmem:[%s840 + $0x1c] sm:$0xf]
        %v849 = vld [vmem:[%s840 + $0x20] sm:$0xf]
        %v850 = vld [vmem:[%s840 + $0x24] sm:$0xf]
        %v851 = vld [vmem:[%s840 + $0x28] sm:$0xf]
        %v852 = vld [vmem:[%s840 + $0x2c] sm:$0xf]
        %v853 = vld [vmem:[%s840 + $0x30] sm:$0xf]
        %v854 = vld [vmem:[%s840 + $0x34] sm:$0xf]
        %v855 = vld [vmem:[%s840 + $0x38] sm:$0xf]
        %v856 = vld [vmem:[%s840 + $0x3c] sm:$0xf]
        %v873 = vunpack.c.l.b16 %v841
        %v874 = vunpack.c.l.b16 %v842
        %v875 = vunpack.c.l.b16 %v843
        %v876 = vunpack.c.l.b16 %v844
        %v877 = vunpack.c.l.b16 %v845
        %v878 = vunpack.c.l.b16 %v846
        %v879 = vunpack.c.l.b16 %v847
        %v880 = vunpack.c.l.b16 %v848
        %v881 = vunpack.c.l.b16 %v849
        %v882 = vunpack.c.l.b16 %v850
        %v883 = vunpack.c.l.b16 %v851
        %v884 = vunpack.c.l.b16 %v852
        %v885 = vunpack.c.l.b16 %v853
        %v886 = vunpack.c.l.b16 %v854
        %v887 = vunpack.c.l.b16 %v855
        %v888 = vunpack.c.l.b16 %v856
        %v889 = vpack.c.b16 %v874, %v873
        %v890 = vpack.c.b16 %v876, %v875
        %v891 = vpack.c.b16 %v878, %v877
        %v892 = vpack.c.b16 %v880, %v879
        %v893 = vpack.c.b16 %v882, %v881
        %v894 = vpack.c.b16 %v884, %v883
        %v895 = vpack.c.b16 %v886, %v885
        %v896 = vpack.c.b16 %v888, %v887
        %905 = vmatprep.subr.bf16.mxu0 0
        %906 = vmatpush1.bf16.msra.mxu0 %v896
        %907 = vmatprep.subr.bf16.mxu0 0
        %908 = vmatpush1.bf16.msra.mxu0 %v895
        %909 = vmatprep.subr.bf16.mxu0 0
        %910 = vmatpush1.bf16.msra.mxu0 %v894
        %911 = vmatprep.subr.bf16.mxu0 0
        %912 = vmatpush1.bf16.msra.mxu0 %v893
        %913 = vmatprep.subr.bf16.mxu0 0
        %914 = vmatpush1.bf16.msra.mxu0 %v892
        %915 = vmatprep.subr.bf16.mxu0 0
        %916 = vmatpush1.bf16.msra.mxu0 %v891
        %917 = vmatprep.subr.bf16.mxu0 0
        %918 = vmatpush1.bf16.msra.mxu0 %v890
        %919 = vmatprep.subr.bf16.mxu0 0
        %920 = vmatpush1.bf16.msra.mxu0 %v889
        %921 = vmatprep.subr.bf16.mxu0 0
        %922 = vmatpush2.bf16.msra.mxu0 0
        %923 = vmatprep.subr.bf16.mxu0 0
        %924 = vmatpush2.bf16.msra.mxu0 0
        %925 = vmatprep.subr.bf16.mxu0 0
        %926 = vmatpush2.bf16.msra.mxu0 0
        %927 = vmatprep.subr.bf16.mxu0 0
        %928 = vmatpush2.bf16.msra.mxu0 0
        %929 = vmatprep.subr.bf16.mxu0 0
        %930 = vmatpush2.bf16.msra.mxu0 0
        %931 = vmatprep.subr.bf16.mxu0 0
        %932 = vmatpush2.bf16.msra.mxu0 0
        %933 = vmatprep.subr.bf16.mxu0 0
        %934 = vmatpush2.bf16.msra.mxu0 0
        %935 = vmatprep.subr.bf16.mxu0 0
        %936 = vmatpush2.bf16.msra.mxu0 0
        %937 = vmatprep.mubr.bf16.mxu0 0
        %938 = vmatmul.mubr.bf16.gmra.mxu0 %v839
        %v939 = vpop.f32.mrf.mxu0
        %v940 = vadd.f32 0.0, %v939
        %v941 = vpop.f32.mrf.mxu0
        %v942 = vpop.f32.mrf.mxu0
        %v943 = vadd.f32 0.0, %v942
        %v944 = vpop.f32.mrf.mxu0
        %945 = vdwg.mxu0
        %v946 = vadd.f32 %v831, %v940
        %v947 = vadd.f32 %v834, %v943
        %v948 = vld [vmem:[#allocation28 + $0x1] sm:$0x1]
        %v949 = vlaneseq
        %v950 = vshrl.u32 %v949, 7
        %v951 = vsub.s32 0, %v950
        %v952 = vrot.slane %v948, %v951
        %v953 = vadd.f32 %v946, %v952
        %v954 = vadd.f32 %v947, %v952
        %v955 = vmax.f32 %v953, 0.0
        %v956 = vmax.f32 %v954, 0.0
        %957 = vst [vmem:[#allocation4 + $0x1] sm:$0xff] %v955
        %958 = vst [vmem:[#allocation4 + $0x9] sm:$0xff] %v956
        %v959 = vld [vmem:[#allocation4] sm:$0xff]
        %v960 = vld [vmem:[#allocation4 + $0x8] sm:$0xff]
        %v961 = vpack.c.bf16 %v960, %v959
        %s962 = scalar_lea.vmem [#allocation23], 384
        %v963 = vld [vmem:[%s962] sm:$0xf]
        %v964 = vld [vmem:[%s962 + $0x4] sm:$0xf]
        %v965 = vld [vmem:[%s962 + $0x8] sm:$0xf]
        %v966 = vld [vmem:[%s962 + $0xc] sm:$0xf]
        %v967 = vld [vmem:[%s962 + $0x10] sm:$0xf]
        %v968 = vld [vmem:[%s962 + $0x14] sm:$0xf]
        %v969 = vld [vmem:[%s962 + $0x18] sm:$0xf]
        %v970 = vld [vmem:[%s962 + $0x1c] sm:$0xf]
        %v971 = vld [vmem:[%s962 + $0x20] sm:$0xf]
        %v972 = vld [vmem:[%s962 + $0x24] sm:$0xf]
        %v973 = vld [vmem:[%s962 + $0x28] sm:$0xf]
        %v974 = vld [vmem:[%s962 + $0x2c] sm:$0xf]
        %v975 = vld [vmem:[%s962 + $0x30] sm:$0xf]
        %v976 = vld [vmem:[%s962 + $0x34] sm:$0xf]
        %v977 = vld [vmem:[%s962 + $0x38] sm:$0xf]
        %v978 = vld [vmem:[%s962 + $0x3c] sm:$0xf]
        %v979 = vld [vmem:[#allocation4 + $0x1] sm:$0xff]
        %v980 = vld [vmem:[#allocation4 + $0x9] sm:$0xff]
        %v981 = vpack.c.bf16 %v980, %v979
        %s982 = scalar_lea.vmem [#allocation23], 448
        %v983 = vld [vmem:[%s982] sm:$0xf]
        %v984 = vld [vmem:[%s982 + $0x4] sm:$0xf]
        %v985 = vld [vmem:[%s982 + $0x8] sm:$0xf]
        %v986 = vld [vmem:[%s982 + $0xc] sm:$0xf]
        %v987 = vld [vmem:[%s982 + $0x10] sm:$0xf]
        %v988 = vld [vmem:[%s982 + $0x14] sm:$0xf]
        %v989 = vld [vmem:[%s982 + $0x18] sm:$0xf]
        %v990 = vld [vmem:[%s982 + $0x1c] sm:$0xf]
        %v991 = vld [vmem:[%s982 + $0x20] sm:$0xf]
        %v992 = vld [vmem:[%s982 + $0x24] sm:$0xf]
        %v993 = vld [vmem:[%s982 + $0x28] sm:$0xf]
        %v994 = vld [vmem:[%s982 + $0x2c] sm:$0xf]
        %v995 = vld [vmem:[%s982 + $0x30] sm:$0xf]
        %v996 = vld [vmem:[%s982 + $0x34] sm:$0xf]
        %v997 = vld [vmem:[%s982 + $0x38] sm:$0xf]
        %v998 = vld [vmem:[%s982 + $0x3c] sm:$0xf]
        %v1015 = vunpack.c.l.b16 %v983
        %v1016 = vunpack.c.l.b16 %v984
        %v1017 = vunpack.c.l.b16 %v985
        %v1018 = vunpack.c.l.b16 %v986
        %v1019 = vunpack.c.l.b16 %v987
        %v1020 = vunpack.c.l.b16 %v988
        %v1021 = vunpack.c.l.b16 %v989
        %v1022 = vunpack.c.l.b16 %v990
        %v1023 = vunpack.c.l.b16 %v991
        %v1024 = vunpack.c.l.b16 %v992
        %v1025 = vunpack.c.l.b16 %v993
        %v1026 = vunpack.c.l.b16 %v994
        %v1027 = vunpack.c.l.b16 %v995
        %v1028 = vunpack.c.l.b16 %v996
        %v1029 = vunpack.c.l.b16 %v997
        %v1030 = vunpack.c.l.b16 %v998
        %v1031 = vpack.c.b16 %v1016, %v1015
        %v1032 = vpack.c.b16 %v1018, %v1017
        %v1033 = vpack.c.b16 %v1020, %v1019
        %v1034 = vpack.c.b16 %v1022, %v1021
        %v1035 = vpack.c.b16 %v1024, %v1023
        %v1036 = vpack.c.b16 %v1026, %v1025
        %v1037 = vpack.c.b16 %v1028, %v1027
        %v1038 = vpack.c.b16 %v1030, %v1029
        %1047 = vmatprep.subr.bf16.mxu0 0
        %1048 = vmatpush1.bf16.msra.mxu0 %v1038
        %1049 = vmatprep.subr.bf16.mxu0 0
        %1050 = vmatpush1.bf16.msra.mxu0 %v1037
        %1051 = vmatprep.subr.bf16.mxu0 0
        %1052 = vmatpush1.bf16.msra.mxu0 %v1036
        %1053 = vmatprep.subr.bf16.mxu0 0
        %1054 = vmatpush1.bf16.msra.mxu0 %v1035
        %1055 = vmatprep.subr.bf16.mxu0 0
        %1056 = vmatpush1.bf16.msra.mxu0 %v1034
        %1057 = vmatprep.subr.bf16.mxu0 0
        %1058 = vmatpush1.bf16.msra.mxu0 %v1033
        %1059 = vmatprep.subr.bf16.mxu0 0
        %1060 = vmatpush1.bf16.msra.mxu0 %v1032
        %1061 = vmatprep.subr.bf16.mxu0 0
        %1062 = vmatpush1.bf16.msra.mxu0 %v1031
        %1063 = vmatprep.subr.bf16.mxu0 0
        %1064 = vmatpush2.bf16.msra.mxu0 0
        %1065 = vmatprep.subr.bf16.mxu0 0
        %1066 = vmatpush2.bf16.msra.mxu0 0
        %1067 = vmatprep.subr.bf16.mxu0 0
        %1068 = vmatpush2.bf16.msra.mxu0 0
        %1069 = vmatprep.subr.bf16.mxu0 0
        %1070 = vmatpush2.bf16.msra.mxu0 0
        %1071 = vmatprep.subr.bf16.mxu0 0
        %1072 = vmatpush2.bf16.msra.mxu0 0
        %1073 = vmatprep.subr.bf16.mxu0 0
        %1074 = vmatpush2.bf16.msra.mxu0 0
        %1075 = vmatprep.subr.bf16.mxu0 0
        %1076 = vmatpush2.bf16.msra.mxu0 0
        %1077 = vmatprep.subr.bf16.mxu0 0
        %1078 = vmatpush2.bf16.msra.mxu0 0
        %1079 = vmatprep.mubr.bf16.mxu0 0
        %1080 = vmatmul.mubr.bf16.gmra.mxu0 %v981
        %v1081 = vpop.f32.mrf.mxu0
        %v1082 = vadd.f32 0.0, %v1081
        %v1083 = vpop.f32.mrf.mxu0
        %v1084 = vpop.f32.mrf.mxu0
        %v1085 = vadd.f32 0.0, %v1084
        %v1086 = vpop.f32.mrf.mxu0
        %1087 = vdwg.mxu0
        %v1104 = vunpack.c.l.b16 %v963
        %v1105 = vunpack.c.l.b16 %v964
        %v1106 = vunpack.c.l.b16 %v965
        %v1107 = vunpack.c.l.b16 %v966
        %v1108 = vunpack.c.l.b16 %v967
        %v1109 = vunpack.c.l.b16 %v968
        %v1110 = vunpack.c.l.b16 %v969
        %v1111 = vunpack.c.l.b16 %v970
        %v1112 = vunpack.c.l.b16 %v971
        %v1113 = vunpack.c.l.b16 %v972
        %v1114 = vunpack.c.l.b16 %v973
        %v1115 = vunpack.c.l.b16 %v974
        %v1116 = vunpack.c.l.b16 %v975
        %v1117 = vunpack.c.l.b16 %v976
        %v1118 = vunpack.c.l.b16 %v977
        %v1119 = vunpack.c.l.b16 %v978
        %v1120 = vpack.c.b16 %v1105, %v1104
        %v1121 = vpack.c.b16 %v1107, %v1106
        %v1122 = vpack.c.b16 %v1109, %v1108
        %v1123 = vpack.c.b16 %v1111, %v1110
        %v1124 = vpack.c.b16 %v1113, %v1112
        %v1125 = vpack.c.b16 %v1115, %v1114
        %v1126 = vpack.c.b16 %v1117, %v1116
        %v1127 = vpack.c.b16 %v1119, %v1118
        %1136 = vmatprep.subr.bf16.mxu0 0
        %1137 = vmatpush1.bf16.msra.mxu0 %v1127
        %1138 = vmatprep.subr.bf16.mxu0 0
        %1139 = vmatpush1.bf16.msra.mxu0 %v1126
        %1140 = vmatprep.subr.bf16.mxu0 0
        %1141 = vmatpush1.bf16.msra.mxu0 %v1125
        %1142 = vmatprep.subr.bf16.mxu0 0
        %1143 = vmatpush1.bf16.msra.mxu0 %v1124
        %1144 = vmatprep.subr.bf16.mxu0 0
        %1145 = vmatpush1.bf16.msra.mxu0 %v1123
        %1146 = vmatprep.subr.bf16.mxu0 0
        %1147 = vmatpush1.bf16.msra.mxu0 %v1122
        %1148 = vmatprep.subr.bf16.mxu0 0
        %1149 = vmatpush1.bf16.msra.mxu0 %v1121
        %1150 = vmatprep.subr.bf16.mxu0 0
        %1151 = vmatpush1.bf16.msra.mxu0 %v1120
        %1152 = vmatprep.subr.bf16.mxu0 0
        %1153 = vmatpush2.bf16.msra.mxu0 0
        %1154 = vmatprep.subr.bf16.mxu0 0
        %1155 = vmatpush2.bf16.msra.mxu0 0
        %1156 = vmatprep.subr.bf16.mxu0 0
        %1157 = vmatpush2.bf16.msra.mxu0 0
        %1158 = vmatprep.subr.bf16.mxu0 0
        %1159 = vmatpush2.bf16.msra.mxu0 0
        %1160 = vmatprep.subr.bf16.mxu0 0
        %1161 = vmatpush2.bf16.msra.mxu0 0
        %1162 = vmatprep.subr.bf16.mxu0 0
        %1163 = vmatpush2.bf16.msra.mxu0 0
        %1164 = vmatprep.subr.bf16.mxu0 0
        %1165 = vmatpush2.bf16.msra.mxu0 0
        %1166 = vmatprep.subr.bf16.mxu0 0
        %1167 = vmatpush2.bf16.msra.mxu0 0
        %1168 = vmatprep.mubr.bf16.mxu0 0
        %1169 = vmatmul.mubr.bf16.gmra.mxu0 %v961
        %v1170 = vpop.f32.mrf.mxu0
        %v1171 = vadd.f32 %v1082, %v1170
        %v1172 = vpop.f32.mrf.mxu0
        %v1173 = vpop.f32.mrf.mxu0
        %v1174 = vadd.f32 %v1085, %v1173
        %v1175 = vpop.f32.mrf.mxu0
        %1176 = vdwg.mxu0
        %v1177 = vld [vmem:[#allocation4 + $0x2] sm:$0xff]
        %v1178 = vld [vmem:[#allocation4 + $0xa] sm:$0xff]
        %v1179 = vpack.c.bf16 %v1178, %v1177
        %s1180 = scalar_lea.vmem [#allocation23], 512
        %v1181 = vld [vmem:[%s1180] sm:$0xf]
        %v1182 = vld [vmem:[%s1180 + $0x4] sm:$0xf]
        %v1183 = vld [vmem:[%s1180 + $0x8] sm:$0xf]
        %v1184 = vld [vmem:[%s1180 + $0xc] sm:$0xf]
        %v1185 = vld [vmem:[%s1180 + $0x10] sm:$0xf]
        %v1186 = vld [vmem:[%s1180 + $0x14] sm:$0xf]
        %v1187 = vld [vmem:[%s1180 + $0x18] sm:$0xf]
        %v1188 = vld [vmem:[%s1180 + $0x1c] sm:$0xf]
        %v1189 = vld [vmem:[%s1180 + $0x20] sm:$0xf]
        %v1190 = vld [vmem:[%s1180 + $0x24] sm:$0xf]
        %v1191 = vld [vmem:[%s1180 + $0x28] sm:$0xf]
        %v1192 = vld [vmem:[%s1180 + $0x2c] sm:$0xf]
        %v1193 = vld [vmem:[%s1180 + $0x30] sm:$0xf]
        %v1194 = vld [vmem:[%s1180 + $0x34] sm:$0xf]
        %v1195 = vld [vmem:[%s1180 + $0x38] sm:$0xf]
        %v1196 = vld [vmem:[%s1180 + $0x3c] sm:$0xf]
        %v1213 = vunpack.c.l.b16 %v1181
        %v1214 = vunpack.c.l.b16 %v1182
        %v1215 = vunpack.c.l.b16 %v1183
        %v1216 = vunpack.c.l.b16 %v1184
        %v1217 = vunpack.c.l.b16 %v1185
        %v1218 = vunpack.c.l.b16 %v1186
        %v1219 = vunpack.c.l.b16 %v1187
        %v1220 = vunpack.c.l.b16 %v1188
        %v1221 = vunpack.c.l.b16 %v1189
        %v1222 = vunpack.c.l.b16 %v1190
        %v1223 = vunpack.c.l.b16 %v1191
        %v1224 = vunpack.c.l.b16 %v1192
        %v1225 = vunpack.c.l.b16 %v1193
        %v1226 = vunpack.c.l.b16 %v1194
        %v1227 = vunpack.c.l.b16 %v1195
        %v1228 = vunpack.c.l.b16 %v1196
        %v1229 = vpack.c.b16 %v1214, %v1213
        %v1230 = vpack.c.b16 %v1216, %v1215
        %v1231 = vpack.c.b16 %v1218, %v1217
        %v1232 = vpack.c.b16 %v1220, %v1219
        %v1233 = vpack.c.b16 %v1222, %v1221
        %v1234 = vpack.c.b16 %v1224, %v1223
        %v1235 = vpack.c.b16 %v1226, %v1225
        %v1236 = vpack.c.b16 %v1228, %v1227
        %1245 = vmatprep.subr.bf16.mxu0 0
        %1246 = vmatpush1.bf16.msra.mxu0 %v1236
        %1247 = vmatprep.subr.bf16.mxu0 0
        %1248 = vmatpush1.bf16.msra.mxu0 %v1235
        %1249 = vmatprep.subr.bf16.mxu0 0
        %1250 = vmatpush1.bf16.msra.mxu0 %v1234
        %1251 = vmatprep.subr.bf16.mxu0 0
        %1252 = vmatpush1.bf16.msra.mxu0 %v1233
        %1253 = vmatprep.subr.bf16.mxu0 0
        %1254 = vmatpush1.bf16.msra.mxu0 %v1232
        %1255 = vmatprep.subr.bf16.mxu0 0
        %1256 = vmatpush1.bf16.msra.mxu0 %v1231
        %1257 = vmatprep.subr.bf16.mxu0 0
        %1258 = vmatpush1.bf16.msra.mxu0 %v1230
        %1259 = vmatprep.subr.bf16.mxu0 0
        %1260 = vmatpush1.bf16.msra.mxu0 %v1229
        %1261 = vmatprep.subr.bf16.mxu0 0
        %1262 = vmatpush2.bf16.msra.mxu0 0
        %1263 = vmatprep.subr.bf16.mxu0 0
        %1264 = vmatpush2.bf16.msra.mxu0 0
        %1265 = vmatprep.subr.bf16.mxu0 0
        %1266 = vmatpush2.bf16.msra.mxu0 0
        %1267 = vmatprep.subr.bf16.mxu0 0
        %1268 = vmatpush2.bf16.msra.mxu0 0
        %1269 = vmatprep.subr.bf16.mxu0 0
        %1270 = vmatpush2.bf16.msra.mxu0 0
        %1271 = vmatprep.subr.bf16.mxu0 0
        %1272 = vmatpush2.bf16.msra.mxu0 0
        %1273 = vmatprep.subr.bf16.mxu0 0
        %1274 = vmatpush2.bf16.msra.mxu0 0
        %1275 = vmatprep.subr.bf16.mxu0 0
        %1276 = vmatpush2.bf16.msra.mxu0 0
        %1277 = vmatprep.mubr.bf16.mxu0 0
        %1278 = vmatmul.mubr.bf16.gmra.mxu0 %v1179
        %v1279 = vpop.f32.mrf.mxu0
        %v1280 = vadd.f32 0.0, %v1279
        %v1281 = vpop.f32.mrf.mxu0
        %v1282 = vpop.f32.mrf.mxu0
        %v1283 = vadd.f32 0.0, %v1282
        %v1284 = vpop.f32.mrf.mxu0
        %1285 = vdwg.mxu0
        %v1286 = vadd.f32 %v1171, %v1280
        %v1287 = vadd.f32 %v1174, %v1283
        %v1288 = vld [vmem:[#allocation28 + $0x2] sm:$0x1]
        %v1289 = vlaneseq
        %v1290 = vshrl.u32 %v1289, 7
        %v1291 = vsub.s32 0, %v1290
        %v1292 = vrot.slane %v1288, %v1291
        %v1293 = vadd.f32 %v1286, %v1292
        %v1294 = vadd.f32 %v1287, %v1292
        %v1295 = vld [vmem:[#allocation3 + $0x1] sm:$0xff]
        %v1296 = vld [vmem:[#allocation3 + $0x9] sm:$0xff]
        %v1297 = vadd.f32 %v1293, %v1295
        %v1298 = vadd.f32 %v1294, %v1296
        %v1299 = vmax.f32 %v1297, 0.0
        %v1300 = vmax.f32 %v1298, 0.0
        %1301 = vst [vmem:[#allocation5 + $0x1] sm:$0xff] %v1299
        %1302 = vst [vmem:[#allocation5 + $0x9] sm:$0xff] %v1300
        %v1303 = vld [vmem:[#allocation5] sm:$0xff]
        %v1304 = vld [vmem:[#allocation5 + $0x8] sm:$0xff]
        %v1305 = vpack.c.bf16 %v1304, %v1303
        %s1306 = scalar_lea.vmem [#allocation23], 576
        %v1307 = vld [vmem:[%s1306] sm:$0xf]
        %v1308 = vld [vmem:[%s1306 + $0x4] sm:$0xf]
        %v1309 = vld [vmem:[%s1306 + $0x8] sm:$0xf]
        %v1310 = vld [vmem:[%s1306 + $0xc] sm:$0xf]
        %v1311 = vld [vmem:[%s1306 + $0x10] sm:$0xf]
        %v1312 = vld [vmem:[%s1306 + $0x14] sm:$0xf]
        %v1313 = vld [vmem:[%s1306 + $0x18] sm:$0xf]
        %v1314 = vld [vmem:[%s1306 + $0x1c] sm:$0xf]
        %v1315 = vld [vmem:[%s1306 + $0x20] sm:$0xf]
        %v1316 = vld [vmem:[%s1306 + $0x24] sm:$0xf]
        %v1317 = vld [vmem:[%s1306 + $0x28] sm:$0xf]
        %v1318 = vld [vmem:[%s1306 + $0x2c] sm:$0xf]
        %v1319 = vld [vmem:[%s1306 + $0x30] sm:$0xf]
        %v1320 = vld [vmem:[%s1306 + $0x34] sm:$0xf]
        %v1321 = vld [vmem:[%s1306 + $0x38] sm:$0xf]
        %v1322 = vld [vmem:[%s1306 + $0x3c] sm:$0xf]
        %v1323 = vld [vmem:[#allocation5 + $0x1] sm:$0xff]
        %v1324 = vld [vmem:[#allocation5 + $0x9] sm:$0xff]
        %v1325 = vpack.c.bf16 %v1324, %v1323
        %s1326 = scalar_lea.vmem [#allocation23], 640
        %v1327 = vld [vmem:[%s1326] sm:$0xf]
        %v1328 = vld [vmem:[%s1326 + $0x4] sm:$0xf]
        %v1329 = vld [vmem:[%s1326 + $0x8] sm:$0xf]
        %v1330 = vld [vmem:[%s1326 + $0xc] sm:$0xf]
        %v1331 = vld [vmem:[%s1326 + $0x10] sm:$0xf]
        %v1332 = vld [vmem:[%s1326 + $0x14] sm:$0xf]
        %v1333 = vld [vmem:[%s1326 + $0x18] sm:$0xf]
        %v1334 = vld [vmem:[%s1326 + $0x1c] sm:$0xf]
        %v1335 = vld [vmem:[%s1326 + $0x20] sm:$0xf]
        %v1336 = vld [vmem:[%s1326 + $0x24] sm:$0xf]
        %v1337 = vld [vmem:[%s1326 + $0x28] sm:$0xf]
        %v1338 = vld [vmem:[%s1326 + $0x2c] sm:$0xf]
        %v1339 = vld [vmem:[%s1326 + $0x30] sm:$0xf]
        %v1340 = vld [vmem:[%s1326 + $0x34] sm:$0xf]
        %v1341 = vld [vmem:[%s1326 + $0x38] sm:$0xf]
        %v1342 = vld [vmem:[%s1326 + $0x3c] sm:$0xf]
        %v1359 = vunpack.c.l.b16 %v1327
        %v1360 = vunpack.c.l.b16 %v1328
        %v1361 = vunpack.c.l.b16 %v1329
        %v1362 = vunpack.c.l.b16 %v1330
        %v1363 = vunpack.c.l.b16 %v1331
        %v1364 = vunpack.c.l.b16 %v1332
        %v1365 = vunpack.c.l.b16 %v1333
        %v1366 = vunpack.c.l.b16 %v1334
        %v1367 = vunpack.c.l.b16 %v1335
        %v1368 = vunpack.c.l.b16 %v1336
        %v1369 = vunpack.c.l.b16 %v1337
        %v1370 = vunpack.c.l.b16 %v1338
        %v1371 = vunpack.c.l.b16 %v1339
        %v1372 = vunpack.c.l.b16 %v1340
        %v1373 = vunpack.c.l.b16 %v1341
        %v1374 = vunpack.c.l.b16 %v1342
        %v1375 = vpack.c.b16 %v1360, %v1359
        %v1376 = vpack.c.b16 %v1362, %v1361
        %v1377 = vpack.c.b16 %v1364, %v1363
        %v1378 = vpack.c.b16 %v1366, %v1365
        %v1379 = vpack.c.b16 %v1368, %v1367
        %v1380 = vpack.c.b16 %v1370, %v1369
        %v1381 = vpack.c.b16 %v1372, %v1371
        %v1382 = vpack.c.b16 %v1374, %v1373
        %1391 = vmatprep.subr.bf16.mxu0 0
        %1392 = vmatpush1.bf16.msra.mxu0 %v1382
        %1393 = vmatprep.subr.bf16.mxu0 0
        %1394 = vmatpush1.bf16.msra.mxu0 %v1381
        %1395 = vmatprep.subr.bf16.mxu0 0
        %1396 = vmatpush1.bf16.msra.mxu0 %v1380
        %1397 = vmatprep.subr.bf16.mxu0 0
        %1398 = vmatpush1.bf16.msra.mxu0 %v1379
        %1399 = vmatprep.subr.bf16.mxu0 0
        %1400 = vmatpush1.bf16.msra.mxu0 %v1378
        %1401 = vmatprep.subr.bf16.mxu0 0
        %1402 = vmatpush1.bf16.msra.mxu0 %v1377
        %1403 = vmatprep.subr.bf16.mxu0 0
        %1404 = vmatpush1.bf16.msra.mxu0 %v1376
        %1405 = vmatprep.subr.bf16.mxu0 0
        %1406 = vmatpush1.bf16.msra.mxu0 %v1375
        %1407 = vmatprep.subr.bf16.mxu0 0
        %1408 = vmatpush2.bf16.msra.mxu0 0
        %1409 = vmatprep.subr.bf16.mxu0 0
        %1410 = vmatpush2.bf16.msra.mxu0 0
        %1411 = vmatprep.subr.bf16.mxu0 0
        %1412 = vmatpush2.bf16.msra.mxu0 0
        %1413 = vmatprep.subr.bf16.mxu0 0
        %1414 = vmatpush2.bf16.msra.mxu0 0
        %1415 = vmatprep.subr.bf16.mxu0 0
        %1416 = vmatpush2.bf16.msra.mxu0 0
        %1417 = vmatprep.subr.bf16.mxu0 0
        %1418 = vmatpush2.bf16.msra.mxu0 0
        %1419 = vmatprep.subr.bf16.mxu0 0
        %1420 = vmatpush2.bf16.msra.mxu0 0
        %1421 = vmatprep.subr.bf16.mxu0 0
        %1422 = vmatpush2.bf16.msra.mxu0 0
        %1423 = vmatprep.mubr.bf16.mxu0 0
        %1424 = vmatmul.mubr.bf16.gmra.mxu0 %v1325
        %v1425 = vpop.f32.mrf.mxu0
        %v1426 = vadd.f32 0.0, %v1425
        %v1427 = vpop.f32.mrf.mxu0
        %v1428 = vpop.f32.mrf.mxu0
        %v1429 = vadd.f32 0.0, %v1428
        %v1430 = vpop.f32.mrf.mxu0
        %1431 = vdwg.mxu0
        %v1448 = vunpack.c.l.b16 %v1307
        %v1449 = vunpack.c.l.b16 %v1308
        %v1450 = vunpack.c.l.b16 %v1309
        %v1451 = vunpack.c.l.b16 %v1310
        %v1452 = vunpack.c.l.b16 %v1311
        %v1453 = vunpack.c.l.b16 %v1312
        %v1454 = vunpack.c.l.b16 %v1313
        %v1455 = vunpack.c.l.b16 %v1314
        %v1456 = vunpack.c.l.b16 %v1315
        %v1457 = vunpack.c.l.b16 %v1316
        %v1458 = vunpack.c.l.b16 %v1317
        %v1459 = vunpack.c.l.b16 %v1318
        %v1460 = vunpack.c.l.b16 %v1319
        %v1461 = vunpack.c.l.b16 %v1320
        %v1462 = vunpack.c.l.b16 %v1321
        %v1463 = vunpack.c.l.b16 %v1322
        %v1464 = vpack.c.b16 %v1449, %v1448
        %v1465 = vpack.c.b16 %v1451, %v1450
        %v1466 = vpack.c.b16 %v1453, %v1452
        %v1467 = vpack.c.b16 %v1455, %v1454
        %v1468 = vpack.c.b16 %v1457, %v1456
        %v1469 = vpack.c.b16 %v1459, %v1458
        %v1470 = vpack.c.b16 %v1461, %v1460
        %v1471 = vpack.c.b16 %v1463, %v1462
        %1480 = vmatprep.subr.bf16.mxu0 0
        %1481 = vmatpush1.bf16.msra.mxu0 %v1471
        %1482 = vmatprep.subr.bf16.mxu0 0
        %1483 = vmatpush1.bf16.msra.mxu0 %v1470
        %1484 = vmatprep.subr.bf16.mxu0 0
        %1485 = vmatpush1.bf16.msra.mxu0 %v1469
        %1486 = vmatprep.subr.bf16.mxu0 0
        %1487 = vmatpush1.bf16.msra.mxu0 %v1468
        %1488 = vmatprep.subr.bf16.mxu0 0
        %1489 = vmatpush1.bf16.msra.mxu0 %v1467
        %1490 = vmatprep.subr.bf16.mxu0 0
        %1491 = vmatpush1.bf16.msra.mxu0 %v1466
        %1492 = vmatprep.subr.bf16.mxu0 0
        %1493 = vmatpush1.bf16.msra.mxu0 %v1465
        %1494 = vmatprep.subr.bf16.mxu0 0
        %1495 = vmatpush1.bf16.msra.mxu0 %v1464
        %1496 = vmatprep.subr.bf16.mxu0 0
        %1497 = vmatpush2.bf16.msra.mxu0 0
        %1498 = vmatprep.subr.bf16.mxu0 0
        %1499 = vmatpush2.bf16.msra.mxu0 0
        %1500 = vmatprep.subr.bf16.mxu0 0
        %1501 = vmatpush2.bf16.msra.mxu0 0
        %1502 = vmatprep.subr.bf16.mxu0 0
        %1503 = vmatpush2.bf16.msra.mxu0 0
        %1504 = vmatprep.subr.bf16.mxu0 0
        %1505 = vmatpush2.bf16.msra.mxu0 0
        %1506 = vmatprep.subr.bf16.mxu0 0
        %1507 = vmatpush2.bf16.msra.mxu0 0
        %1508 = vmatprep.subr.bf16.mxu0 0
        %1509 = vmatpush2.bf16.msra.mxu0 0
        %1510 = vmatprep.subr.bf16.mxu0 0
        %1511 = vmatpush2.bf16.msra.mxu0 0
        %1512 = vmatprep.mubr.bf16.mxu0 0
        %1513 = vmatmul.mubr.bf16.gmra.mxu0 %v1305
        %v1514 = vpop.f32.mrf.mxu0
        %v1515 = vadd.f32 %v1426, %v1514
        %v1516 = vpop.f32.mrf.mxu0
        %v1517 = vpop.f32.mrf.mxu0
        %v1518 = vadd.f32 %v1429, %v1517
        %v1519 = vpop.f32.mrf.mxu0
        %1520 = vdwg.mxu0
        %v1521 = vld [vmem:[#allocation5 + $0x2] sm:$0xff]
        %v1522 = vld [vmem:[#allocation5 + $0xa] sm:$0xff]
        %v1523 = vpack.c.bf16 %v1522, %v1521
        %s1524 = scalar_lea.vmem [#allocation23], 704
        %v1525 = vld [vmem:[%s1524] sm:$0xf]
        %v1526 = vld [vmem:[%s1524 + $0x4] sm:$0xf]
        %v1527 = vld [vmem:[%s1524 + $0x8] sm:$0xf]
        %v1528 = vld [vmem:[%s1524 + $0xc] sm:$0xf]
        %v1529 = vld [vmem:[%s1524 + $0x10] sm:$0xf]
        %v1530 = vld [vmem:[%s1524 + $0x14] sm:$0xf]
        %v1531 = vld [vmem:[%s1524 + $0x18] sm:$0xf]
        %v1532 = vld [vmem:[%s1524 + $0x1c] sm:$0xf]
        %v1533 = vld [vmem:[%s1524 + $0x20] sm:$0xf]
        %v1534 = vld [vmem:[%s1524 + $0x24] sm:$0xf]
        %v1535 = vld [vmem:[%s1524 + $0x28] sm:$0xf]
        %v1536 = vld [vmem:[%s1524 + $0x2c] sm:$0xf]
        %v1537 = vld [vmem:[%s1524 + $0x30] sm:$0xf]
        %v1538 = vld [vmem:[%s1524 + $0x34] sm:$0xf]
        %v1539 = vld [vmem:[%s1524 + $0x38] sm:$0xf]
        %v1540 = vld [vmem:[%s1524 + $0x3c] sm:$0xf]
        %v1557 = vunpack.c.l.b16 %v1525
        %v1558 = vunpack.c.l.b16 %v1526
        %v1559 = vunpack.c.l.b16 %v1527
        %v1560 = vunpack.c.l.b16 %v1528
        %v1561 = vunpack.c.l.b16 %v1529
        %v1562 = vunpack.c.l.b16 %v1530
        %v1563 = vunpack.c.l.b16 %v1531
        %v1564 = vunpack.c.l.b16 %v1532
        %v1565 = vunpack.c.l.b16 %v1533
        %v1566 = vunpack.c.l.b16 %v1534
        %v1567 = vunpack.c.l.b16 %v1535
        %v1568 = vunpack.c.l.b16 %v1536
        %v1569 = vunpack.c.l.b16 %v1537
        %v1570 = vunpack.c.l.b16 %v1538
        %v1571 = vunpack.c.l.b16 %v1539
        %v1572 = vunpack.c.l.b16 %v1540
        %v1573 = vpack.c.b16 %v1558, %v1557
        %v1574 = vpack.c.b16 %v1560, %v1559
        %v1575 = vpack.c.b16 %v1562, %v1561
        %v1576 = vpack.c.b16 %v1564, %v1563
        %v1577 = vpack.c.b16 %v1566, %v1565
        %v1578 = vpack.c.b16 %v1568, %v1567
        %v1579 = vpack.c.b16 %v1570, %v1569
        %v1580 = vpack.c.b16 %v1572, %v1571
        %1589 = vmatprep.subr.bf16.mxu0 0
        %1590 = vmatpush1.bf16.msra.mxu0 %v1580
        %1591 = vmatprep.subr.bf16.mxu0 0
        %1592 = vmatpush1.bf16.msra.mxu0 %v1579
        %1593 = vmatprep.subr.bf16.mxu0 0
        %1594 = vmatpush1.bf16.msra.mxu0 %v1578
        %1595 = vmatprep.subr.bf16.mxu0 0
        %1596 = vmatpush1.bf16.msra.mxu0 %v1577
        %1597 = vmatprep.subr.bf16.mxu0 0
        %1598 = vmatpush1.bf16.msra.mxu0 %v1576
        %1599 = vmatprep.subr.bf16.mxu0 0
        %1600 = vmatpush1.bf16.msra.mxu0 %v1575
        %1601 = vmatprep.subr.bf16.mxu0 0
        %1602 = vmatpush1.bf16.msra.mxu0 %v1574
        %1603 = vmatprep.subr.bf16.mxu0 0
        %1604 = vmatpush1.bf16.msra.mxu0 %v1573
        %1605 = vmatprep.subr.bf16.mxu0 0
        %1606 = vmatpush2.bf16.msra.mxu0 0
        %1607 = vmatprep.subr.bf16.mxu0 0
        %1608 = vmatpush2.bf16.msra.mxu0 0
        %1609 = vmatprep.subr.bf16.mxu0 0
        %1610 = vmatpush2.bf16.msra.mxu0 0
        %1611 = vmatprep.subr.bf16.mxu0 0
        %1612 = vmatpush2.bf16.msra.mxu0 0
        %1613 = vmatprep.subr.bf16.mxu0 0
        %1614 = vmatpush2.bf16.msra.mxu0 0
        %1615 = vmatprep.subr.bf16.mxu0 0
        %1616 = vmatpush2.bf16.msra.mxu0 0
        %1617 = vmatprep.subr.bf16.mxu0 0
        %1618 = vmatpush2.bf16.msra.mxu0 0
        %1619 = vmatprep.subr.bf16.mxu0 0
        %1620 = vmatpush2.bf16.msra.mxu0 0
        %1621 = vmatprep.mubr.bf16.mxu0 0
        %1622 = vmatmul.mubr.bf16.gmra.mxu0 %v1523
        %v1623 = vpop.f32.mrf.mxu0
        %v1624 = vadd.f32 0.0, %v1623
        %v1625 = vpop.f32.mrf.mxu0
        %v1626 = vpop.f32.mrf.mxu0
        %v1627 = vadd.f32 0.0, %v1626
        %v1628 = vpop.f32.mrf.mxu0
        %1629 = vdwg.mxu0
        %v1630 = vadd.f32 %v1515, %v1624
        %v1631 = vadd.f32 %v1518, %v1627
        %v1632 = vld [vmem:[#allocation28 + $0x3] sm:$0x1]
        %v1633 = vlaneseq
        %v1634 = vshrl.u32 %v1633, 7
        %v1635 = vsub.s32 0, %v1634
        %v1636 = vrot.slane %v1632, %v1635
        %v1637 = vadd.f32 %v1630, %v1636
        %v1638 = vadd.f32 %v1631, %v1636
        %v1639 = vmax.f32 %v1637, 0.0
        %v1640 = vmax.f32 %v1638, 0.0
        %1641 = vst [vmem:[#allocation6 + $0x1] sm:$0xff] %v1639
        %1642 = vst [vmem:[#allocation6 + $0x9] sm:$0xff] %v1640
        %v1643 = vld [vmem:[#allocation6] sm:$0xff]
        %v1644 = vld [vmem:[#allocation6 + $0x8] sm:$0xff]
        %v1645 = vpack.c.bf16 %v1644, %v1643
        %s1646 = scalar_lea.vmem [#allocation23], 768
        %v1647 = vld [vmem:[%s1646] sm:$0xf]
        %v1648 = vld [vmem:[%s1646 + $0x4] sm:$0xf]
        %v1649 = vld [vmem:[%s1646 + $0x8] sm:$0xf]
        %v1650 = vld [vmem:[%s1646 + $0xc] sm:$0xf]
        %v1651 = vld [vmem:[%s1646 + $0x10] sm:$0xf]
        %v1652 = vld [vmem:[%s1646 + $0x14] sm:$0xf]
        %v1653 = vld [vmem:[%s1646 + $0x18] sm:$0xf]
        %v1654 = vld [vmem:[%s1646 + $0x1c] sm:$0xf]
        %v1655 = vld [vmem:[%s1646 + $0x20] sm:$0xf]
        %v1656 = vld [vmem:[%s1646 + $0x24] sm:$0xf]
        %v1657 = vld [vmem:[%s1646 + $0x28] sm:$0xf]
        %v1658 = vld [vmem:[%s1646 + $0x2c] sm:$0xf]
        %v1659 = vld [vmem:[%s1646 + $0x30] sm:$0xf]
        %v1660 = vld [vmem:[%s1646 + $0x34] sm:$0xf]
        %v1661 = vld [vmem:[%s1646 + $0x38] sm:$0xf]
        %v1662 = vld [vmem:[%s1646 + $0x3c] sm:$0xf]
        %v1663 = vld [vmem:[#allocation6 + $0x1] sm:$0xff]
        %v1664 = vld [vmem:[#allocation6 + $0x9] sm:$0xff]
        %v1665 = vpack.c.bf16 %v1664, %v1663
        %s1666 = scalar_lea.vmem [#allocation23], 832
        %v1667 = vld [vmem:[%s1666] sm:$0xf]
        %v1668 = vld [vmem:[%s1666 + $0x4] sm:$0xf]
        %v1669 = vld [vmem:[%s1666 + $0x8] sm:$0xf]
        %v1670 = vld [vmem:[%s1666 + $0xc] sm:$0xf]
        %v1671 = vld [vmem:[%s1666 + $0x10] sm:$0xf]
        %v1672 = vld [vmem:[%s1666 + $0x14] sm:$0xf]
        %v1673 = vld [vmem:[%s1666 + $0x18] sm:$0xf]
        %v1674 = vld [vmem:[%s1666 + $0x1c] sm:$0xf]
        %v1675 = vld [vmem:[%s1666 + $0x20] sm:$0xf]
        %v1676 = vld [vmem:[%s1666 + $0x24] sm:$0xf]
        %v1677 = vld [vmem:[%s1666 + $0x28] sm:$0xf]
        %v1678 = vld [vmem:[%s1666 + $0x2c] sm:$0xf]
        %v1679 = vld [vmem:[%s1666 + $0x30] sm:$0xf]
        %v1680 = vld [vmem:[%s1666 + $0x34] sm:$0xf]
        %v1681 = vld [vmem:[%s1666 + $0x38] sm:$0xf]
        %v1682 = vld [vmem:[%s1666 + $0x3c] sm:$0xf]
        %v1699 = vunpack.c.l.b16 %v1667
        %v1700 = vunpack.c.l.b16 %v1668
        %v1701 = vunpack.c.l.b16 %v1669
        %v1702 = vunpack.c.l.b16 %v1670
        %v1703 = vunpack.c.l.b16 %v1671
        %v1704 = vunpack.c.l.b16 %v1672
        %v1705 = vunpack.c.l.b16 %v1673
        %v1706 = vunpack.c.l.b16 %v1674
        %v1707 = vunpack.c.l.b16 %v1675
        %v1708 = vunpack.c.l.b16 %v1676
        %v1709 = vunpack.c.l.b16 %v1677
        %v1710 = vunpack.c.l.b16 %v1678
        %v1711 = vunpack.c.l.b16 %v1679
        %v1712 = vunpack.c.l.b16 %v1680
        %v1713 = vunpack.c.l.b16 %v1681
        %v1714 = vunpack.c.l.b16 %v1682
        %v1715 = vpack.c.b16 %v1700, %v1699
        %v1716 = vpack.c.b16 %v1702, %v1701
        %v1717 = vpack.c.b16 %v1704, %v1703
        %v1718 = vpack.c.b16 %v1706, %v1705
        %v1719 = vpack.c.b16 %v1708, %v1707
        %v1720 = vpack.c.b16 %v1710, %v1709
        %v1721 = vpack.c.b16 %v1712, %v1711
        %v1722 = vpack.c.b16 %v1714, %v1713
        %1731 = vmatprep.subr.bf16.mxu0 0
        %1732 = vmatpush1.bf16.msra.mxu0 %v1722
        %1733 = vmatprep.subr.bf16.mxu0 0
        %1734 = vmatpush1.bf16.msra.mxu0 %v1721
        %1735 = vmatprep.subr.bf16.mxu0 0
        %1736 = vmatpush1.bf16.msra.mxu0 %v1720
        %1737 = vmatprep.subr.bf16.mxu0 0
        %1738 = vmatpush1.bf16.msra.mxu0 %v1719
        %1739 = vmatprep.subr.bf16.mxu0 0
        %1740 = vmatpush1.bf16.msra.mxu0 %v1718
        %1741 = vmatprep.subr.bf16.mxu0 0
        %1742 = vmatpush1.bf16.msra.mxu0 %v1717
        %1743 = vmatprep.subr.bf16.mxu0 0
        %1744 = vmatpush1.bf16.msra.mxu0 %v1716
        %1745 = vmatprep.subr.bf16.mxu0 0
        %1746 = vmatpush1.bf16.msra.mxu0 %v1715
        %1747 = vmatprep.subr.bf16.mxu0 0
        %1748 = vmatpush2.bf16.msra.mxu0 0
        %1749 = vmatprep.subr.bf16.mxu0 0
        %1750 = vmatpush2.bf16.msra.mxu0 0
        %1751 = vmatprep.subr.bf16.mxu0 0
        %1752 = vmatpush2.bf16.msra.mxu0 0
        %1753 = vmatprep.subr.bf16.mxu0 0
        %1754 = vmatpush2.bf16.msra.mxu0 0
        %1755 = vmatprep.subr.bf16.mxu0 0
        %1756 = vmatpush2.bf16.msra.mxu0 0
        %1757 = vmatprep.subr.bf16.mxu0 0
        %1758 = vmatpush2.bf16.msra.mxu0 0
        %1759 = vmatprep.subr.bf16.mxu0 0
        %1760 = vmatpush2.bf16.msra.mxu0 0
        %1761 = vmatprep.subr.bf16.mxu0 0
        %1762 = vmatpush2.bf16.msra.mxu0 0
        %1763 = vmatprep.mubr.bf16.mxu0 0
        %1764 = vmatmul.mubr.bf16.gmra.mxu0 %v1665
        %v1765 = vpop.f32.mrf.mxu0
        %v1766 = vadd.f32 0.0, %v1765
        %v1767 = vpop.f32.mrf.mxu0
        %v1768 = vpop.f32.mrf.mxu0
        %v1769 = vadd.f32 0.0, %v1768
        %v1770 = vpop.f32.mrf.mxu0
        %1771 = vdwg.mxu0
        %v1788 = vunpack.c.l.b16 %v1647
        %v1789 = vunpack.c.l.b16 %v1648
        %v1790 = vunpack.c.l.b16 %v1649
        %v1791 = vunpack.c.l.b16 %v1650
        %v1792 = vunpack.c.l.b16 %v1651
        %v1793 = vunpack.c.l.b16 %v1652
        %v1794 = vunpack.c.l.b16 %v1653
        %v1795 = vunpack.c.l.b16 %v1654
        %v1796 = vunpack.c.l.b16 %v1655
        %v1797 = vunpack.c.l.b16 %v1656
        %v1798 = vunpack.c.l.b16 %v1657
        %v1799 = vunpack.c.l.b16 %v1658
        %v1800 = vunpack.c.l.b16 %v1659
        %v1801 = vunpack.c.l.b16 %v1660
        %v1802 = vunpack.c.l.b16 %v1661
        %v1803 = vunpack.c.l.b16 %v1662
        %v1804 = vpack.c.b16 %v1789, %v1788
        %v1805 = vpack.c.b16 %v1791, %v1790
        %v1806 = vpack.c.b16 %v1793, %v1792
        %v1807 = vpack.c.b16 %v1795, %v1794
        %v1808 = vpack.c.b16 %v1797, %v1796
        %v1809 = vpack.c.b16 %v1799, %v1798
        %v1810 = vpack.c.b16 %v1801, %v1800
        %v1811 = vpack.c.b16 %v1803, %v1802
        %1820 = vmatprep.subr.bf16.mxu0 0
        %1821 = vmatpush1.bf16.msra.mxu0 %v1811
        %1822 = vmatprep.subr.bf16.mxu0 0
        %1823 = vmatpush1.bf16.msra.mxu0 %v1810
        %1824 = vmatprep.subr.bf16.mxu0 0
        %1825 = vmatpush1.bf16.msra.mxu0 %v1809
        %1826 = vmatprep.subr.bf16.mxu0 0
        %1827 = vmatpush1.bf16.msra.mxu0 %v1808
        %1828 = vmatprep.subr.bf16.mxu0 0
        %1829 = vmatpush1.bf16.msra.mxu0 %v1807
        %1830 = vmatprep.subr.bf16.mxu0 0
        %1831 = vmatpush1.bf16.msra.mxu0 %v1806
        %1832 = vmatprep.subr.bf16.mxu0 0
        %1833 = vmatpush1.bf16.msra.mxu0 %v1805
        %1834 = vmatprep.subr.bf16.mxu0 0
        %1835 = vmatpush1.bf16.msra.mxu0 %v1804
        %1836 = vmatprep.subr.bf16.mxu0 0
        %1837 = vmatpush2.bf16.msra.mxu0 0
        %1838 = vmatprep.subr.bf16.mxu0 0
        %1839 = vmatpush2.bf16.msra.mxu0 0
        %1840 = vmatprep.subr.bf16.mxu0 0
        %1841 = vmatpush2.bf16.msra.mxu0 0
        %1842 = vmatprep.subr.bf16.mxu0 0
        %1843 = vmatpush2.bf16.msra.mxu0 0
        %1844 = vmatprep.subr.bf16.mxu0 0
        %1845 = vmatpush2.bf16.msra.mxu0 0
        %1846 = vmatprep.subr.bf16.mxu0 0
        %1847 = vmatpush2.bf16.msra.mxu0 0
        %1848 = vmatprep.subr.bf16.mxu0 0
        %1849 = vmatpush2.bf16.msra.mxu0 0
        %1850 = vmatprep.subr.bf16.mxu0 0
        %1851 = vmatpush2.bf16.msra.mxu0 0
        %1852 = vmatprep.mubr.bf16.mxu0 0
        %1853 = vmatmul.mubr.bf16.gmra.mxu0 %v1645
        %v1854 = vpop.f32.mrf.mxu0
        %v1855 = vadd.f32 %v1766, %v1854
        %v1856 = vpop.f32.mrf.mxu0
        %v1857 = vpop.f32.mrf.mxu0
        %v1858 = vadd.f32 %v1769, %v1857
        %v1859 = vpop.f32.mrf.mxu0
        %1860 = vdwg.mxu0
        %v1861 = vld [vmem:[#allocation6 + $0x2] sm:$0xff]
        %v1862 = vld [vmem:[#allocation6 + $0xa] sm:$0xff]
        %v1863 = vpack.c.bf16 %v1862, %v1861
        %s1864 = scalar_lea.vmem [#allocation23], 896
        %v1865 = vld [vmem:[%s1864] sm:$0xf]
        %v1866 = vld [vmem:[%s1864 + $0x4] sm:$0xf]
        %v1867 = vld [vmem:[%s1864 + $0x8] sm:$0xf]
        %v1868 = vld [vmem:[%s1864 + $0xc] sm:$0xf]
        %v1869 = vld [vmem:[%s1864 + $0x10] sm:$0xf]
        %v1870 = vld [vmem:[%s1864 + $0x14] sm:$0xf]
        %v1871 = vld [vmem:[%s1864 + $0x18] sm:$0xf]
        %v1872 = vld [vmem:[%s1864 + $0x1c] sm:$0xf]
        %v1873 = vld [vmem:[%s1864 + $0x20] sm:$0xf]
        %v1874 = vld [vmem:[%s1864 + $0x24] sm:$0xf]
        %v1875 = vld [vmem:[%s1864 + $0x28] sm:$0xf]
        %v1876 = vld [vmem:[%s1864 + $0x2c] sm:$0xf]
        %v1877 = vld [vmem:[%s1864 + $0x30] sm:$0xf]
        %v1878 = vld [vmem:[%s1864 + $0x34] sm:$0xf]
        %v1879 = vld [vmem:[%s1864 + $0x38] sm:$0xf]
        %v1880 = vld [vmem:[%s1864 + $0x3c] sm:$0xf]
        %v1897 = vunpack.c.l.b16 %v1865
        %v1898 = vunpack.c.l.b16 %v1866
        %v1899 = vunpack.c.l.b16 %v1867
        %v1900 = vunpack.c.l.b16 %v1868
        %v1901 = vunpack.c.l.b16 %v1869
        %v1902 = vunpack.c.l.b16 %v1870
        %v1903 = vunpack.c.l.b16 %v1871
        %v1904 = vunpack.c.l.b16 %v1872
        %v1905 = vunpack.c.l.b16 %v1873
        %v1906 = vunpack.c.l.b16 %v1874
        %v1907 = vunpack.c.l.b16 %v1875
        %v1908 = vunpack.c.l.b16 %v1876
        %v1909 = vunpack.c.l.b16 %v1877
        %v1910 = vunpack.c.l.b16 %v1878
        %v1911 = vunpack.c.l.b16 %v1879
        %v1912 = vunpack.c.l.b16 %v1880
        %v1913 = vpack.c.b16 %v1898, %v1897
        %v1914 = vpack.c.b16 %v1900, %v1899
        %v1915 = vpack.c.b16 %v1902, %v1901
        %v1916 = vpack.c.b16 %v1904, %v1903
        %v1917 = vpack.c.b16 %v1906, %v1905
        %v1918 = vpack.c.b16 %v1908, %v1907
        %v1919 = vpack.c.b16 %v1910, %v1909
        %v1920 = vpack.c.b16 %v1912, %v1911
        %1929 = vmatprep.subr.bf16.mxu0 0
        %1930 = vmatpush1.bf16.msra.mxu0 %v1920
        %1931 = vmatprep.subr.bf16.mxu0 0
        %1932 = vmatpush1.bf16.msra.mxu0 %v1919
        %1933 = vmatprep.subr.bf16.mxu0 0
        %1934 = vmatpush1.bf16.msra.mxu0 %v1918
        %1935 = vmatprep.subr.bf16.mxu0 0
        %1936 = vmatpush1.bf16.msra.mxu0 %v1917
        %1937 = vmatprep.subr.bf16.mxu0 0
        %1938 = vmatpush1.bf16.msra.mxu0 %v1916
        %1939 = vmatprep.subr.bf16.mxu0 0
        %1940 = vmatpush1.bf16.msra.mxu0 %v1915
        %1941 = vmatprep.subr.bf16.mxu0 0
        %1942 = vmatpush1.bf16.msra.mxu0 %v1914
        %1943 = vmatprep.subr.bf16.mxu0 0
        %1944 = vmatpush1.bf16.msra.mxu0 %v1913
        %1945 = vmatprep.subr.bf16.mxu0 0
        %1946 = vmatpush2.bf16.msra.mxu0 0
        %1947 = vmatprep.subr.bf16.mxu0 0
        %1948 = vmatpush2.bf16.msra.mxu0 0
        %1949 = vmatprep.subr.bf16.mxu0 0
        %1950 = vmatpush2.bf16.msra.mxu0 0
        %1951 = vmatprep.subr.bf16.mxu0 0
        %1952 = vmatpush2.bf16.msra.mxu0 0
        %1953 = vmatprep.subr.bf16.mxu0 0
        %1954 = vmatpush2.bf16.msra.mxu0 0
        %1955 = vmatprep.subr.bf16.mxu0 0
        %1956 = vmatpush2.bf16.msra.mxu0 0
        %1957 = vmatprep.subr.bf16.mxu0 0
        %1958 = vmatpush2.bf16.msra.mxu0 0
        %1959 = vmatprep.subr.bf16.mxu0 0
        %1960 = vmatpush2.bf16.msra.mxu0 0
        %1961 = vmatprep.mubr.bf16.mxu0 0
        %1962 = vmatmul.mubr.bf16.gmra.mxu0 %v1863
        %v1963 = vpop.f32.mrf.mxu0
        %v1964 = vadd.f32 0.0, %v1963
        %v1965 = vpop.f32.mrf.mxu0
        %v1966 = vpop.f32.mrf.mxu0
        %v1967 = vadd.f32 0.0, %v1966
        %v1968 = vpop.f32.mrf.mxu0
        %1969 = vdwg.mxu0
        %v1970 = vadd.f32 %v1855, %v1964
        %v1971 = vadd.f32 %v1858, %v1967
        %v1972 = vld [vmem:[#allocation28 + $0x4] sm:$0x1]
        %v1973 = vlaneseq
        %v1974 = vshrl.u32 %v1973, 7
        %v1975 = vsub.s32 0, %v1974
        %v1976 = vrot.slane %v1972, %v1975
        %v1977 = vadd.f32 %v1970, %v1976
        %v1978 = vadd.f32 %v1971, %v1976
        %v1979 = vld [vmem:[#allocation5 + $0x1] sm:$0xff]
        %v1980 = vld [vmem:[#allocation5 + $0x9] sm:$0xff]
        %v1981 = vadd.f32 %v1977, %v1979
        %v1982 = vadd.f32 %v1978, %v1980
        %v1983 = vmax.f32 %v1981, 0.0
        %v1984 = vmax.f32 %v1982, 0.0
        %1985 = vst [vmem:[#allocation7 + $0x1] sm:$0xff] %v1983
        %1986 = vst [vmem:[#allocation7 + $0x9] sm:$0xff] %v1984
        %v1987 = vld [vmem:[#allocation7] ss:$2 sm:$0xff]
        %v1988 = vpack.c.bf16 %v1987, %v1987
        %s1989 = scalar_lea.vmem [#allocation23], 960
        %v1990 = vld [vmem:[%s1989] sm:$0xf]
        %v1991 = vld [vmem:[%s1989 + $0x4] sm:$0xf]
        %v1992 = vld [vmem:[%s1989 + $0x8] sm:$0xf]
        %v1993 = vld [vmem:[%s1989 + $0xc] sm:$0xf]
        %v1994 = vld [vmem:[%s1989 + $0x10] sm:$0xf]
        %v1995 = vld [vmem:[%s1989 + $0x14] sm:$0xf]
        %v1996 = vld [vmem:[%s1989 + $0x18] sm:$0xf]
        %v1997 = vld [vmem:[%s1989 + $0x1c] sm:$0xf]
        %v1998 = vld [vmem:[%s1989 + $0x20] sm:$0xf]
        %v1999 = vld [vmem:[%s1989 + $0x24] sm:$0xf]
        %v2000 = vld [vmem:[%s1989 + $0x28] sm:$0xf]
        %v2001 = vld [vmem:[%s1989 + $0x2c] sm:$0xf]
        %v2002 = vld [vmem:[%s1989 + $0x30] sm:$0xf]
        %v2003 = vld [vmem:[%s1989 + $0x34] sm:$0xf]
        %v2004 = vld [vmem:[%s1989 + $0x38] sm:$0xf]
        %v2005 = vld [vmem:[%s1989 + $0x3c] sm:$0xf]
        %s2006 = scalar_lea.vmem [#allocation7], 1
        %v2007 = vld [vmem:[%s2006] ss:$2 sm:$0xff]
        %v2008 = vpack.c.bf16 %v2007, %v2007
        %v2009 = vld [vmem:[#allocation26] sm:$0xff]
        %v2010 = vld [vmem:[#allocation26 + $0x8] sm:$0xff]
        %v2011 = vld [vmem:[#allocation26 + $0x10] sm:$0xff]
        %v2012 = vld [vmem:[#allocation26 + $0x18] sm:$0xff]
        %v2013 = vld [vmem:[#allocation26 + $0x20] sm:$0xff]
        %v2014 = vld [vmem:[#allocation26 + $0x28] sm:$0xff]
        %v2015 = vld [vmem:[#allocation26 + $0x30] sm:$0xff]
        %v2016 = vld [vmem:[#allocation26 + $0x38] sm:$0xff]
        %v2017 = vld [vmem:[#allocation26 + $0x40] sm:$0xff]
        %v2018 = vld [vmem:[#allocation26 + $0x48] sm:$0xff]
        %v2019 = vld [vmem:[#allocation26 + $0x50] sm:$0xff]
        %v2020 = vld [vmem:[#allocation26 + $0x58] sm:$0xff]
        %v2021 = vld [vmem:[#allocation26 + $0x60] sm:$0xff]
        %v2022 = vld [vmem:[#allocation26 + $0x68] sm:$0xff]
        %v2023 = vld [vmem:[#allocation26 + $0x70] sm:$0xff]
        %v2024 = vld [vmem:[#allocation26 + $0x78] sm:$0xff]
        %v2041 = vunpack.c.l.b16 %v2009
        %v2042 = vunpack.c.h.b16 %v2009
        %v2043 = vunpack.c.l.b16 %v2010
        %v2044 = vunpack.c.h.b16 %v2010
        %v2045 = vunpack.c.l.b16 %v2011
        %v2046 = vunpack.c.h.b16 %v2011
        %v2047 = vunpack.c.l.b16 %v2012
        %v2048 = vunpack.c.h.b16 %v2012
        %v2049 = vunpack.c.l.b16 %v2013
        %v2050 = vunpack.c.h.b16 %v2013
        %v2051 = vunpack.c.l.b16 %v2014
        %v2052 = vunpack.c.h.b16 %v2014
        %v2053 = vunpack.c.l.b16 %v2015
        %v2054 = vunpack.c.h.b16 %v2015
        %v2055 = vunpack.c.l.b16 %v2016
        %v2056 = vunpack.c.h.b16 %v2016
        %v2057 = vunpack.c.l.b16 %v2017
        %v2058 = vunpack.c.h.b16 %v2017
        %v2059 = vunpack.c.l.b16 %v2018
        %v2060 = vunpack.c.h.b16 %v2018
        %v2061 = vunpack.c.l.b16 %v2019
        %v2062 = vunpack.c.h.b16 %v2019
        %v2063 = vunpack.c.l.b16 %v2020
        %v2064 = vunpack.c.h.b16 %v2020
        %v2065 = vunpack.c.l.b16 %v2021
        %v2066 = vunpack.c.h.b16 %v2021
        %v2067 = vunpack.c.l.b16 %v2022
        %v2068 = vunpack.c.h.b16 %v2022
        %v2069 = vunpack.c.l.b16 %v2023
        %v2070 = vunpack.c.h.b16 %v2023
        %v2071 = vunpack.c.l.b16 %v2024
        %v2072 = vunpack.c.h.b16 %v2024
        %v2073 = vpack.c.b16 %v2043, %v2041
        %v2074 = vpack.c.b16 %v2044, %v2042
        %v2075 = vpack.c.b16 %v2047, %v2045
        %v2076 = vpack.c.b16 %v2048, %v2046
        %v2077 = vpack.c.b16 %v2051, %v2049
        %v2078 = vpack.c.b16 %v2052, %v2050
        %v2079 = vpack.c.b16 %v2055, %v2053
        %v2080 = vpack.c.b16 %v2056, %v2054
        %v2081 = vpack.c.b16 %v2059, %v2057
        %v2082 = vpack.c.b16 %v2060, %v2058
        %v2083 = vpack.c.b16 %v2063, %v2061
        %v2084 = vpack.c.b16 %v2064, %v2062
        %v2085 = vpack.c.b16 %v2067, %v2065
        %v2086 = vpack.c.b16 %v2068, %v2066
        %v2087 = vpack.c.b16 %v2071, %v2069
        %v2088 = vpack.c.b16 %v2072, %v2070
        %2105 = vmatprep.subr.bf16.mxu0 %v2088
        %2106 = vmatpush1.bf16.msra.mxu0 %v2087
        %2107 = vmatprep.subr.bf16.mxu0 %v2086
        %2108 = vmatpush1.bf16.msra.mxu0 %v2085
        %2109 = vmatprep.subr.bf16.mxu0 %v2084
        %2110 = vmatpush1.bf16.msra.mxu0 %v2083
        %2111 = vmatprep.subr.bf16.mxu0 %v2082
        %2112 = vmatpush1.bf16.msra.mxu0 %v2081
        %2113 = vmatprep.subr.bf16.mxu0 %v2080
        %2114 = vmatpush1.bf16.msra.mxu0 %v2079
        %2115 = vmatprep.subr.bf16.mxu0 %v2078
        %2116 = vmatpush1.bf16.msra.mxu0 %v2077
        %2117 = vmatprep.subr.bf16.mxu0 %v2076
        %2118 = vmatpush1.bf16.msra.mxu0 %v2075
        %2119 = vmatprep.subr.bf16.mxu0 %v2074
        %2120 = vmatpush1.bf16.msra.mxu0 %v2073
        %2121 = vmatprep.subr.bf16.mxu0 0
        %2122 = vmatpush2.bf16.msra.mxu0 0
        %2123 = vmatprep.subr.bf16.mxu0 0
        %2124 = vmatpush2.bf16.msra.mxu0 0
        %2125 = vmatprep.subr.bf16.mxu0 0
        %2126 = vmatpush2.bf16.msra.mxu0 0
        %2127 = vmatprep.subr.bf16.mxu0 0
        %2128 = vmatpush2.bf16.msra.mxu0 0
        %2129 = vmatprep.subr.bf16.mxu0 0
        %2130 = vmatpush2.bf16.msra.mxu0 0
        %2131 = vmatprep.subr.bf16.mxu0 0
        %2132 = vmatpush2.bf16.msra.mxu0 0
        %2133 = vmatprep.subr.bf16.mxu0 0
        %2134 = vmatpush2.bf16.msra.mxu0 0
        %2135 = vmatprep.subr.bf16.mxu0 0
        %2136 = vmatpush2.bf16.msra.mxu0 0
        %2137 = vmatprep.mubr.bf16.mxu0 0
        %2138 = vmatmul.mubr.bf16.gmra.mxu0 %v2008
        %v2139 = vpop.f32.mrf.mxu0
        %v2140 = vadd.f32 0.0, %v2139
        %v2141 = vpop.f32.mrf.mxu0
        %v2142 = vadd.f32 0.0, %v2141
        %v2143 = vpop.f32.mrf.mxu0
        %v2144 = vpop.f32.mrf.mxu0
        %2145 = vdwg.mxu0
        %v2162 = vunpack.c.l.b16 %v1990
        %v2163 = vunpack.c.l.b16 %v1991
        %v2164 = vunpack.c.l.b16 %v1992
        %v2165 = vunpack.c.l.b16 %v1993
        %v2166 = vunpack.c.l.b16 %v1994
        %v2167 = vunpack.c.l.b16 %v1995
        %v2168 = vunpack.c.l.b16 %v1996
        %v2169 = vunpack.c.l.b16 %v1997
        %v2170 = vunpack.c.l.b16 %v1998
        %v2171 = vunpack.c.l.b16 %v1999
        %v2172 = vunpack.c.l.b16 %v2000
        %v2173 = vunpack.c.l.b16 %v2001
        %v2174 = vunpack.c.l.b16 %v2002
        %v2175 = vunpack.c.l.b16 %v2003
        %v2176 = vunpack.c.l.b16 %v2004
        %v2177 = vunpack.c.l.b16 %v2005
        %v2178 = vpack.c.b16 %v2163, %v2162
        %v2179 = vpack.c.b16 %v2165, %v2164
        %v2180 = vpack.c.b16 %v2167, %v2166
        %v2181 = vpack.c.b16 %v2169, %v2168
        %v2182 = vpack.c.b16 %v2171, %v2170
        %v2183 = vpack.c.b16 %v2173, %v2172
        %v2184 = vpack.c.b16 %v2175, %v2174
        %v2185 = vpack.c.b16 %v2177, %v2176
        %2194 = vmatprep.subr.bf16.mxu0 0
        %2195 = vmatpush1.bf16.msra.mxu0 %v2185
        %2196 = vmatprep.subr.bf16.mxu0 0
        %2197 = vmatpush1.bf16.msra.mxu0 %v2184
        %2198 = vmatprep.subr.bf16.mxu0 0
        %2199 = vmatpush1.bf16.msra.mxu0 %v2183
        %2200 = vmatprep.subr.bf16.mxu0 0
        %2201 = vmatpush1.bf16.msra.mxu0 %v2182
        %2202 = vmatprep.subr.bf16.mxu0 0
        %2203 = vmatpush1.bf16.msra.mxu0 %v2181
        %2204 = vmatprep.subr.bf16.mxu0 0
        %2205 = vmatpush1.bf16.msra.mxu0 %v2180
        %2206 = vmatprep.subr.bf16.mxu0 0
        %2207 = vmatpush1.bf16.msra.mxu0 %v2179
        %2208 = vmatprep.subr.bf16.mxu0 0
        %2209 = vmatpush1.bf16.msra.mxu0 %v2178
        %2210 = vmatprep.subr.bf16.mxu0 0
        %2211 = vmatpush2.bf16.msra.mxu0 0
        %2212 = vmatprep.subr.bf16.mxu0 0
        %2213 = vmatpush2.bf16.msra.mxu0 0
        %2214 = vmatprep.subr.bf16.mxu0 0
        %2215 = vmatpush2.bf16.msra.mxu0 0
        %2216 = vmatprep.subr.bf16.mxu0 0
        %2217 = vmatpush2.bf16.msra.mxu0 0
        %2218 = vmatprep.subr.bf16.mxu0 0
        %2219 = vmatpush2.bf16.msra.mxu0 0
        %2220 = vmatprep.subr.bf16.mxu0 0
        %2221 = vmatpush2.bf16.msra.mxu0 0
        %2222 = vmatprep.subr.bf16.mxu0 0
        %2223 = vmatpush2.bf16.msra.mxu0 0
        %2224 = vmatprep.subr.bf16.mxu0 0
        %2225 = vmatpush2.bf16.msra.mxu0 0
        %2226 = vmatprep.mubr.bf16.mxu0 0
        %2227 = vmatmul.mubr.bf16.gmra.mxu0 %v1988
        %v2228 = vpop.f32.mrf.mxu0
        %v2229 = vadd.f32 %v2140, %v2228
        %v2230 = vpop.f32.mrf.mxu0
        %v2231 = vpop.f32.mrf.mxu0
        %v2232 = vpop.f32.mrf.mxu0
        %2233 = vdwg.mxu0
        %s2234 = scalar_lea.vmem [#allocation7], 2
        %v2235 = vld [vmem:[%s2234] ss:$2 sm:$0xff]
        %v2236 = vpack.c.bf16 %v2235, %v2235
        %s2237 = scalar_lea.vmem [#allocation23], 1024
        %v2238 = vld [vmem:[%s2237] sm:$0xf]
        %v2239 = vld [vmem:[%s2237 + $0x4] sm:$0xf]
        %v2240 = vld [vmem:[%s2237 + $0x8] sm:$0xf]
        %v2241 = vld [vmem:[%s2237 + $0xc] sm:$0xf]
        %v2242 = vld [vmem:[%s2237 + $0x10] sm:$0xf]
        %v2243 = vld [vmem:[%s2237 + $0x14] sm:$0xf]
        %v2244 = vld [vmem:[%s2237 + $0x18] sm:$0xf]
        %v2245 = vld [vmem:[%s2237 + $0x1c] sm:$0xf]
        %v2246 = vld [vmem:[%s2237 + $0x20] sm:$0xf]
        %v2247 = vld [vmem:[%s2237 + $0x24] sm:$0xf]
        %v2248 = vld [vmem:[%s2237 + $0x28] sm:$0xf]
        %v2249 = vld [vmem:[%s2237 + $0x2c] sm:$0xf]
        %v2250 = vld [vmem:[%s2237 + $0x30] sm:$0xf]
        %v2251 = vld [vmem:[%s2237 + $0x34] sm:$0xf]
        %v2252 = vld [vmem:[%s2237 + $0x38] sm:$0xf]
        %v2253 = vld [vmem:[%s2237 + $0x3c] sm:$0xf]
        %v2270 = vunpack.c.l.b16 %v2238
        %v2271 = vunpack.c.l.b16 %v2239
        %v2272 = vunpack.c.l.b16 %v2240
        %v2273 = vunpack.c.l.b16 %v2241
        %v2274 = vunpack.c.l.b16 %v2242
        %v2275 = vunpack.c.l.b16 %v2243
        %v2276 = vunpack.c.l.b16 %v2244
        %v2277 = vunpack.c.l.b16 %v2245
        %v2278 = vunpack.c.l.b16 %v2246
        %v2279 = vunpack.c.l.b16 %v2247
        %v2280 = vunpack.c.l.b16 %v2248
        %v2281 = vunpack.c.l.b16 %v2249
        %v2282 = vunpack.c.l.b16 %v2250
        %v2283 = vunpack.c.l.b16 %v2251
        %v2284 = vunpack.c.l.b16 %v2252
        %v2285 = vunpack.c.l.b16 %v2253
        %v2286 = vpack.c.b16 %v2271, %v2270
        %v2287 = vpack.c.b16 %v2273, %v2272
        %v2288 = vpack.c.b16 %v2275, %v2274
        %v2289 = vpack.c.b16 %v2277, %v2276
        %v2290 = vpack.c.b16 %v2279, %v2278
        %v2291 = vpack.c.b16 %v2281, %v2280
        %v2292 = vpack.c.b16 %v2283, %v2282
        %v2293 = vpack.c.b16 %v2285, %v2284
        %2302 = vmatprep.subr.bf16.mxu0 0
        %2303 = vmatpush1.bf16.msra.mxu0 %v2293
        %2304 = vmatprep.subr.bf16.mxu0 0
        %2305 = vmatpush1.bf16.msra.mxu0 %v2292
        %2306 = vmatprep.subr.bf16.mxu0 0
        %2307 = vmatpush1.bf16.msra.mxu0 %v2291
        %2308 = vmatprep.subr.bf16.mxu0 0
        %2309 = vmatpush1.bf16.msra.mxu0 %v2290
        %2310 = vmatprep.subr.bf16.mxu0 0
        %2311 = vmatpush1.bf16.msra.mxu0 %v2289
        %2312 = vmatprep.subr.bf16.mxu0 0
        %2313 = vmatpush1.bf16.msra.mxu0 %v2288
        %2314 = vmatprep.subr.bf16.mxu0 0
        %2315 = vmatpush1.bf16.msra.mxu0 %v2287
        %2316 = vmatprep.subr.bf16.mxu0 0
        %2317 = vmatpush1.bf16.msra.mxu0 %v2286
        %2318 = vmatprep.subr.bf16.mxu0 0
        %2319 = vmatpush2.bf16.msra.mxu0 0
        %2320 = vmatprep.subr.bf16.mxu0 0
        %2321 = vmatpush2.bf16.msra.mxu0 0
        %2322 = vmatprep.subr.bf16.mxu0 0
        %2323 = vmatpush2.bf16.msra.mxu0 0
        %2324 = vmatprep.subr.bf16.mxu0 0
        %2325 = vmatpush2.bf16.msra.mxu0 0
        %2326 = vmatprep.subr.bf16.mxu0 0
        %2327 = vmatpush2.bf16.msra.mxu0 0
        %2328 = vmatprep.subr.bf16.mxu0 0
        %2329 = vmatpush2.bf16.msra.mxu0 0
        %2330 = vmatprep.subr.bf16.mxu0 0
        %2331 = vmatpush2.bf16.msra.mxu0 0
        %2332 = vmatprep.subr.bf16.mxu0 0
        %2333 = vmatpush2.bf16.msra.mxu0 0
        %2334 = vmatprep.mubr.bf16.mxu0 0
        %2335 = vmatmul.mubr.bf16.gmra.mxu0 %v2236
        %v2336 = vpop.f32.mrf.mxu0
        %v2337 = vadd.f32 0.0, %v2336
        %v2338 = vpop.f32.mrf.mxu0
        %v2339 = vpop.f32.mrf.mxu0
        %v2340 = vpop.f32.mrf.mxu0
        %2341 = vdwg.mxu0
        %v2342 = vadd.f32 %v2229, %v2337
        %v2343 = vld [vmem:[#allocation28 + $0x6] sm:$0x1]
        %v2344 = vlaneseq
        %v2345 = vshrl.u32 %v2344, 7
        %v2346 = vsub.s32 0, %v2345
        %v2347 = vrot.slane %v2343, %v2346
        %v2348 = vadd.f32 %v2342, %v2347
        %v2349 = vmax.f32 %v2348, 0.0
        %2350 = vst [vmem:[#allocation9 + $0x1] sm:$0xff] %v2349
        %v2351 = vld [vmem:[#allocation28 + $0x5] sm:$0x1]
        %v2352 = vlaneseq
        %v2353 = vshrl.u32 %v2352, 7
        %v2354 = vsub.s32 0, %v2353
        %v2355 = vrot.slane %v2351, %v2354
        %v2356 = vadd.f32 %v2142, %v2355
        %2357 = vst [vmem:[#allocation8] sm:$0xff] %v2356
        %v2358 = vld [vmem:[#allocation9] sm:$0xff]
        %v2359 = vpack.c.bf16 %v2358, %v2358
        %s2360 = scalar_lea.vmem [#allocation23], 1088
        %v2361 = vld [vmem:[%s2360] sm:$0xf]
        %v2362 = vld [vmem:[%s2360 + $0x4] sm:$0xf]
        %v2363 = vld [vmem:[%s2360 + $0x8] sm:$0xf]
        %v2364 = vld [vmem:[%s2360 + $0xc] sm:$0xf]
        %v2365 = vld [vmem:[%s2360 + $0x10] sm:$0xf]
        %v2366 = vld [vmem:[%s2360 + $0x14] sm:$0xf]
        %v2367 = vld [vmem:[%s2360 + $0x18] sm:$0xf]
        %v2368 = vld [vmem:[%s2360 + $0x1c] sm:$0xf]
        %v2369 = vld [vmem:[%s2360 + $0x20] sm:$0xf]
        %v2370 = vld [vmem:[%s2360 + $0x24] sm:$0xf]
        %v2371 = vld [vmem:[%s2360 + $0x28] sm:$0xf]
        %v2372 = vld [vmem:[%s2360 + $0x2c] sm:$0xf]
        %v2373 = vld [vmem:[%s2360 + $0x30] sm:$0xf]
        %v2374 = vld [vmem:[%s2360 + $0x34] sm:$0xf]
        %v2375 = vld [vmem:[%s2360 + $0x38] sm:$0xf]
        %v2376 = vld [vmem:[%s2360 + $0x3c] sm:$0xf]
        %v2377 = vld [vmem:[#allocation9 + $0x1] sm:$0xff]
        %v2378 = vpack.c.bf16 %v2377, %v2377
        %s2379 = scalar_lea.vmem [#allocation23], 1152
        %v2380 = vld [vmem:[%s2379] sm:$0xf]
        %v2381 = vld [vmem:[%s2379 + $0x4] sm:$0xf]
        %v2382 = vld [vmem:[%s2379 + $0x8] sm:$0xf]
        %v2383 = vld [vmem:[%s2379 + $0xc] sm:$0xf]
        %v2384 = vld [vmem:[%s2379 + $0x10] sm:$0xf]
        %v2385 = vld [vmem:[%s2379 + $0x14] sm:$0xf]
        %v2386 = vld [vmem:[%s2379 + $0x18] sm:$0xf]
        %v2387 = vld [vmem:[%s2379 + $0x1c] sm:$0xf]
        %v2388 = vld [vmem:[%s2379 + $0x20] sm:$0xf]
        %v2389 = vld [vmem:[%s2379 + $0x24] sm:$0xf]
        %v2390 = vld [vmem:[%s2379 + $0x28] sm:$0xf]
        %v2391 = vld [vmem:[%s2379 + $0x2c] sm:$0xf]
        %v2392 = vld [vmem:[%s2379 + $0x30] sm:$0xf]
        %v2393 = vld [vmem:[%s2379 + $0x34] sm:$0xf]
        %v2394 = vld [vmem:[%s2379 + $0x38] sm:$0xf]
        %v2395 = vld [vmem:[%s2379 + $0x3c] sm:$0xf]
        %v2412 = vunpack.c.l.b16 %v2380
        %v2413 = vunpack.c.l.b16 %v2381
        %v2414 = vunpack.c.l.b16 %v2382
        %v2415 = vunpack.c.l.b16 %v2383
        %v2416 = vunpack.c.l.b16 %v2384
        %v2417 = vunpack.c.l.b16 %v2385
        %v2418 = vunpack.c.l.b16 %v2386
        %v2419 = vunpack.c.l.b16 %v2387
        %v2420 = vunpack.c.l.b16 %v2388
        %v2421 = vunpack.c.l.b16 %v2389
        %v2422 = vunpack.c.l.b16 %v2390
        %v2423 = vunpack.c.l.b16 %v2391
        %v2424 = vunpack.c.l.b16 %v2392
        %v2425 = vunpack.c.l.b16 %v2393
        %v2426 = vunpack.c.l.b16 %v2394
        %v2427 = vunpack.c.l.b16 %v2395
        %v2428 = vpack.c.b16 %v2413, %v2412
        %v2429 = vpack.c.b16 %v2415, %v2414
        %v2430 = vpack.c.b16 %v2417, %v2416
        %v2431 = vpack.c.b16 %v2419, %v2418
        %v2432 = vpack.c.b16 %v2421, %v2420
        %v2433 = vpack.c.b16 %v2423, %v2422
        %v2434 = vpack.c.b16 %v2425, %v2424
        %v2435 = vpack.c.b16 %v2427, %v2426
        %2444 = vmatprep.subr.bf16.mxu0 0
        %2445 = vmatpush1.bf16.msra.mxu0 %v2435
        %2446 = vmatprep.subr.bf16.mxu0 0
        %2447 = vmatpush1.bf16.msra.mxu0 %v2434
        %2448 = vmatprep.subr.bf16.mxu0 0
        %2449 = vmatpush1.bf16.msra.mxu0 %v2433
        %2450 = vmatprep.subr.bf16.mxu0 0
        %2451 = vmatpush1.bf16.msra.mxu0 %v2432
        %2452 = vmatprep.subr.bf16.mxu0 0
        %2453 = vmatpush1.bf16.msra.mxu0 %v2431
        %2454 = vmatprep.subr.bf16.mxu0 0
        %2455 = vmatpush1.bf16.msra.mxu0 %v2430
        %2456 = vmatprep.subr.bf16.mxu0 0
        %2457 = vmatpush1.bf16.msra.mxu0 %v2429
        %2458 = vmatprep.subr.bf16.mxu0 0
        %2459 = vmatpush1.bf16.msra.mxu0 %v2428
        %2460 = vmatprep.subr.bf16.mxu0 0
        %2461 = vmatpush2.bf16.msra.mxu0 0
        %2462 = vmatprep.subr.bf16.mxu0 0
        %2463 = vmatpush2.bf16.msra.mxu0 0
        %2464 = vmatprep.subr.bf16.mxu0 0
        %2465 = vmatpush2.bf16.msra.mxu0 0
        %2466 = vmatprep.subr.bf16.mxu0 0
        %2467 = vmatpush2.bf16.msra.mxu0 0
        %2468 = vmatprep.subr.bf16.mxu0 0
        %2469 = vmatpush2.bf16.msra.mxu0 0
        %2470 = vmatprep.subr.bf16.mxu0 0
        %2471 = vmatpush2.bf16.msra.mxu0 0
        %2472 = vmatprep.subr.bf16.mxu0 0
        %2473 = vmatpush2.bf16.msra.mxu0 0
        %2474 = vmatprep.subr.bf16.mxu0 0
        %2475 = vmatpush2.bf16.msra.mxu0 0
        %2476 = vmatprep.mubr.bf16.mxu0 0
        %2477 = vmatmul.mubr.bf16.gmra.mxu0 %v2378
        %v2478 = vpop.f32.mrf.mxu0
        %v2479 = vadd.f32 0.0, %v2478
        %v2480 = vpop.f32.mrf.mxu0
        %v2481 = vpop.f32.mrf.mxu0
        %v2482 = vpop.f32.mrf.mxu0
        %2483 = vdwg.mxu0
        %v2500 = vunpack.c.l.b16 %v2361
        %v2501 = vunpack.c.l.b16 %v2362
        %v2502 = vunpack.c.l.b16 %v2363
        %v2503 = vunpack.c.l.b16 %v2364
        %v2504 = vunpack.c.l.b16 %v2365
        %v2505 = vunpack.c.l.b16 %v2366
        %v2506 = vunpack.c.l.b16 %v2367
        %v2507 = vunpack.c.l.b16 %v2368
        %v2508 = vunpack.c.l.b16 %v2369
        %v2509 = vunpack.c.l.b16 %v2370
        %v2510 = vunpack.c.l.b16 %v2371
        %v2511 = vunpack.c.l.b16 %v2372
        %v2512 = vunpack.c.l.b16 %v2373
        %v2513 = vunpack.c.l.b16 %v2374
        %v2514 = vunpack.c.l.b16 %v2375
        %v2515 = vunpack.c.l.b16 %v2376
        %v2516 = vpack.c.b16 %v2501, %v2500
        %v2517 = vpack.c.b16 %v2503, %v2502
        %v2518 = vpack.c.b16 %v2505, %v2504
        %v2519 = vpack.c.b16 %v2507, %v2506
        %v2520 = vpack.c.b16 %v2509, %v2508
        %v2521 = vpack.c.b16 %v2511, %v2510
        %v2522 = vpack.c.b16 %v2513, %v2512
        %v2523 = vpack.c.b16 %v2515, %v2514
        %2532 = vmatprep.subr.bf16.mxu0 0
        %2533 = vmatpush1.bf16.msra.mxu0 %v2523
        %2534 = vmatprep.subr.bf16.mxu0 0
        %2535 = vmatpush1.bf16.msra.mxu0 %v2522
        %2536 = vmatprep.subr.bf16.mxu0 0
        %2537 = vmatpush1.bf16.msra.mxu0 %v2521
        %2538 = vmatprep.subr.bf16.mxu0 0
        %2539 = vmatpush1.bf16.msra.mxu0 %v2520
        %2540 = vmatprep.subr.bf16.mxu0 0
        %2541 = vmatpush1.bf16.msra.mxu0 %v2519
        %2542 = vmatprep.subr.bf16.mxu0 0
        %2543 = vmatpush1.bf16.msra.mxu0 %v2518
        %2544 = vmatprep.subr.bf16.mxu0 0
        %2545 = vmatpush1.bf16.msra.mxu0 %v2517
        %2546 = vmatprep.subr.bf16.mxu0 0
        %2547 = vmatpush1.bf16.msra.mxu0 %v2516
        %2548 = vmatprep.subr.bf16.mxu0 0
        %2549 = vmatpush2.bf16.msra.mxu0 0
        %2550 = vmatprep.subr.bf16.mxu0 0
        %2551 = vmatpush2.bf16.msra.mxu0 0
        %2552 = vmatprep.subr.bf16.mxu0 0
        %2553 = vmatpush2.bf16.msra.mxu0 0
        %2554 = vmatprep.subr.bf16.mxu0 0
        %2555 = vmatpush2.bf16.msra.mxu0 0
        %2556 = vmatprep.subr.bf16.mxu0 0
        %2557 = vmatpush2.bf16.msra.mxu0 0
        %2558 = vmatprep.subr.bf16.mxu0 0
        %2559 = vmatpush2.bf16.msra.mxu0 0
        %2560 = vmatprep.subr.bf16.mxu0 0
        %2561 = vmatpush2.bf16.msra.mxu0 0
        %2562 = vmatprep.subr.bf16.mxu0 0
        %2563 = vmatpush2.bf16.msra.mxu0 0
        %2564 = vmatprep.mubr.bf16.mxu0 0
        %2565 = vmatmul.mubr.bf16.gmra.mxu0 %v2359
        %v2566 = vpop.f32.mrf.mxu0
        %v2567 = vadd.f32 %v2479, %v2566
        %v2568 = vpop.f32.mrf.mxu0
        %v2569 = vpop.f32.mrf.mxu0
        %v2570 = vpop.f32.mrf.mxu0
        %2571 = vdwg.mxu0
        %v2572 = vld [vmem:[#allocation9 + $0x2] sm:$0xff]
        %v2573 = vpack.c.bf16 %v2572, %v2572
        %s2574 = scalar_lea.vmem [#allocation23], 1216
        %v2575 = vld [vmem:[%s2574] sm:$0xf]
        %v2576 = vld [vmem:[%s2574 + $0x4] sm:$0xf]
        %v2577 = vld [vmem:[%s2574 + $0x8] sm:$0xf]
        %v2578 = vld [vmem:[%s2574 + $0xc] sm:$0xf]
        %v2579 = vld [vmem:[%s2574 + $0x10] sm:$0xf]
        %v2580 = vld [vmem:[%s2574 + $0x14] sm:$0xf]
        %v2581 = vld [vmem:[%s2574 + $0x18] sm:$0xf]
        %v2582 = vld [vmem:[%s2574 + $0x1c] sm:$0xf]
        %v2583 = vld [vmem:[%s2574 + $0x20] sm:$0xf]
        %v2584 = vld [vmem:[%s2574 + $0x24] sm:$0xf]
        %v2585 = vld [vmem:[%s2574 + $0x28] sm:$0xf]
        %v2586 = vld [vmem:[%s2574 + $0x2c] sm:$0xf]
        %v2587 = vld [vmem:[%s2574 + $0x30] sm:$0xf]
        %v2588 = vld [vmem:[%s2574 + $0x34] sm:$0xf]
        %v2589 = vld [vmem:[%s2574 + $0x38] sm:$0xf]
        %v2590 = vld [vmem:[%s2574 + $0x3c] sm:$0xf]
        %v2607 = vunpack.c.l.b16 %v2575
        %v2608 = vunpack.c.l.b16 %v2576
        %v2609 = vunpack.c.l.b16 %v2577
        %v2610 = vunpack.c.l.b16 %v2578
        %v2611 = vunpack.c.l.b16 %v2579
        %v2612 = vunpack.c.l.b16 %v2580
        %v2613 = vunpack.c.l.b16 %v2581
        %v2614 = vunpack.c.l.b16 %v2582
        %v2615 = vunpack.c.l.b16 %v2583
        %v2616 = vunpack.c.l.b16 %v2584
        %v2617 = vunpack.c.l.b16 %v2585
        %v2618 = vunpack.c.l.b16 %v2586
        %v2619 = vunpack.c.l.b16 %v2587
        %v2620 = vunpack.c.l.b16 %v2588
        %v2621 = vunpack.c.l.b16 %v2589
        %v2622 = vunpack.c.l.b16 %v2590
        %v2623 = vpack.c.b16 %v2608, %v2607
        %v2624 = vpack.c.b16 %v2610, %v2609
        %v2625 = vpack.c.b16 %v2612, %v2611
        %v2626 = vpack.c.b16 %v2614, %v2613
        %v2627 = vpack.c.b16 %v2616, %v2615
        %v2628 = vpack.c.b16 %v2618, %v2617
        %v2629 = vpack.c.b16 %v2620, %v2619
        %v2630 = vpack.c.b16 %v2622, %v2621
        %2639 = vmatprep.subr.bf16.mxu0 0
        %2640 = vmatpush1.bf16.msra.mxu0 %v2630
        %2641 = vmatprep.subr.bf16.mxu0 0
        %2642 = vmatpush1.bf16.msra.mxu0 %v2629
        %2643 = vmatprep.subr.bf16.mxu0 0
        %2644 = vmatpush1.bf16.msra.mxu0 %v2628
        %2645 = vmatprep.subr.bf16.mxu0 0
        %2646 = vmatpush1.bf16.msra.mxu0 %v2627
        %2647 = vmatprep.subr.bf16.mxu0 0
        %2648 = vmatpush1.bf16.msra.mxu0 %v2626
        %2649 = vmatprep.subr.bf16.mxu0 0
        %2650 = vmatpush1.bf16.msra.mxu0 %v2625
        %2651 = vmatprep.subr.bf16.mxu0 0
        %2652 = vmatpush1.bf16.msra.mxu0 %v2624
        %2653 = vmatprep.subr.bf16.mxu0 0
        %2654 = vmatpush1.bf16.msra.mxu0 %v2623
        %2655 = vmatprep.subr.bf16.mxu0 0
        %2656 = vmatpush2.bf16.msra.mxu0 0
        %2657 = vmatprep.subr.bf16.mxu0 0
        %2658 = vmatpush2.bf16.msra.mxu0 0
        %2659 = vmatprep.subr.bf16.mxu0 0
        %2660 = vmatpush2.bf16.msra.mxu0 0
        %2661 = vmatprep.subr.bf16.mxu0 0
        %2662 = vmatpush2.bf16.msra.mxu0 0
        %2663 = vmatprep.subr.bf16.mxu0 0
        %2664 = vmatpush2.bf16.msra.mxu0 0
        %2665 = vmatprep.subr.bf16.mxu0 0
        %2666 = vmatpush2.bf16.msra.mxu0 0
        %2667 = vmatprep.subr.bf16.mxu0 0
        %2668 = vmatpush2.bf16.msra.mxu0 0
        %2669 = vmatprep.subr.bf16.mxu0 0
        %2670 = vmatpush2.bf16.msra.mxu0 0
        %2671 = vmatprep.mubr.bf16.mxu0 0
        %2672 = vmatmul.mubr.bf16.gmra.mxu0 %v2573
        %v2673 = vpop.f32.mrf.mxu0
        %v2674 = vadd.f32 0.0, %v2673
        %v2675 = vpop.f32.mrf.mxu0
        %v2676 = vpop.f32.mrf.mxu0
        %v2677 = vpop.f32.mrf.mxu0
        %2678 = vdwg.mxu0
        %v2679 = vadd.f32 %v2567, %v2674
        %v2680 = vld [vmem:[#allocation28 + $0x7] sm:$0x1]
        %v2681 = vlaneseq
        %v2682 = vshrl.u32 %v2681, 7
        %v2683 = vsub.s32 0, %v2682
        %v2684 = vrot.slane %v2680, %v2683
        %v2685 = vadd.f32 %v2679, %v2684
        %v2686 = vld [vmem:[#allocation8] sm:$0xff]
        %v2687 = vadd.f32 %v2685, %v2686
        %v2688 = vmax.f32 %v2687, 0.0
        %2689 = vst [vmem:[#allocation10 + $0x1] sm:$0xff] %v2688
        %v2690 = vld [vmem:[#allocation10] sm:$0xff]
        %v2691 = vpack.c.bf16 %v2690, %v2690
        %s2692 = scalar_lea.vmem [#allocation23], 1280
        %v2693 = vld [vmem:[%s2692] sm:$0xf]
        %v2694 = vld [vmem:[%s2692 + $0x4] sm:$0xf]
        %v2695 = vld [vmem:[%s2692 + $0x8] sm:$0xf]
        %v2696 = vld [vmem:[%s2692 + $0xc] sm:$0xf]
        %v2697 = vld [vmem:[%s2692 + $0x10] sm:$0xf]
        %v2698 = vld [vmem:[%s2692 + $0x14] sm:$0xf]
        %v2699 = vld [vmem:[%s2692 + $0x18] sm:$0xf]
        %v2700 = vld [vmem:[%s2692 + $0x1c] sm:$0xf]
        %v2701 = vld [vmem:[%s2692 + $0x20] sm:$0xf]
        %v2702 = vld [vmem:[%s2692 + $0x24] sm:$0xf]
        %v2703 = vld [vmem:[%s2692 + $0x28] sm:$0xf]
        %v2704 = vld [vmem:[%s2692 + $0x2c] sm:$0xf]
        %v2705 = vld [vmem:[%s2692 + $0x30] sm:$0xf]
        %v2706 = vld [vmem:[%s2692 + $0x34] sm:$0xf]
        %v2707 = vld [vmem:[%s2692 + $0x38] sm:$0xf]
        %v2708 = vld [vmem:[%s2692 + $0x3c] sm:$0xf]
        %v2709 = vld [vmem:[#allocation10 + $0x1] sm:$0xff]
        %v2710 = vpack.c.bf16 %v2709, %v2709
        %s2711 = scalar_lea.vmem [#allocation23], 1344
        %v2712 = vld [vmem:[%s2711] sm:$0xf]
        %v2713 = vld [vmem:[%s2711 + $0x4] sm:$0xf]
        %v2714 = vld [vmem:[%s2711 + $0x8] sm:$0xf]
        %v2715 = vld [vmem:[%s2711 + $0xc] sm:$0xf]
        %v2716 = vld [vmem:[%s2711 + $0x10] sm:$0xf]
        %v2717 = vld [vmem:[%s2711 + $0x14] sm:$0xf]
        %v2718 = vld [vmem:[%s2711 + $0x18] sm:$0xf]
        %v2719 = vld [vmem:[%s2711 + $0x1c] sm:$0xf]
        %v2720 = vld [vmem:[%s2711 + $0x20] sm:$0xf]
        %v2721 = vld [vmem:[%s2711 + $0x24] sm:$0xf]
        %v2722 = vld [vmem:[%s2711 + $0x28] sm:$0xf]
        %v2723 = vld [vmem:[%s2711 + $0x2c] sm:$0xf]
        %v2724 = vld [vmem:[%s2711 + $0x30] sm:$0xf]
        %v2725 = vld [vmem:[%s2711 + $0x34] sm:$0xf]
        %v2726 = vld [vmem:[%s2711 + $0x38] sm:$0xf]
        %v2727 = vld [vmem:[%s2711 + $0x3c] sm:$0xf]
        %v2744 = vunpack.c.l.b16 %v2712
        %v2745 = vunpack.c.l.b16 %v2713
        %v2746 = vunpack.c.l.b16 %v2714
        %v2747 = vunpack.c.l.b16 %v2715
        %v2748 = vunpack.c.l.b16 %v2716
        %v2749 = vunpack.c.l.b16 %v2717
        %v2750 = vunpack.c.l.b16 %v2718
        %v2751 = vunpack.c.l.b16 %v2719
        %v2752 = vunpack.c.l.b16 %v2720
        %v2753 = vunpack.c.l.b16 %v2721
        %v2754 = vunpack.c.l.b16 %v2722
        %v2755 = vunpack.c.l.b16 %v2723
        %v2756 = vunpack.c.l.b16 %v2724
        %v2757 = vunpack.c.l.b16 %v2725
        %v2758 = vunpack.c.l.b16 %v2726
        %v2759 = vunpack.c.l.b16 %v2727
        %v2760 = vpack.c.b16 %v2745, %v2744
        %v2761 = vpack.c.b16 %v2747, %v2746
        %v2762 = vpack.c.b16 %v2749, %v2748
        %v2763 = vpack.c.b16 %v2751, %v2750
        %v2764 = vpack.c.b16 %v2753, %v2752
        %v2765 = vpack.c.b16 %v2755, %v2754
        %v2766 = vpack.c.b16 %v2757, %v2756
        %v2767 = vpack.c.b16 %v2759, %v2758
        %2776 = vmatprep.subr.bf16.mxu0 0
        %2777 = vmatpush1.bf16.msra.mxu0 %v2767
        %2778 = vmatprep.subr.bf16.mxu0 0
        %2779 = vmatpush1.bf16.msra.mxu0 %v2766
        %2780 = vmatprep.subr.bf16.mxu0 0
        %2781 = vmatpush1.bf16.msra.mxu0 %v2765
        %2782 = vmatprep.subr.bf16.mxu0 0
        %2783 = vmatpush1.bf16.msra.mxu0 %v2764
        %2784 = vmatprep.subr.bf16.mxu0 0
        %2785 = vmatpush1.bf16.msra.mxu0 %v2763
        %2786 = vmatprep.subr.bf16.mxu0 0
        %2787 = vmatpush1.bf16.msra.mxu0 %v2762
        %2788 = vmatprep.subr.bf16.mxu0 0
        %2789 = vmatpush1.bf16.msra.mxu0 %v2761
        %2790 = vmatprep.subr.bf16.mxu0 0
        %2791 = vmatpush1.bf16.msra.mxu0 %v2760
        %2792 = vmatprep.subr.bf16.mxu0 0
        %2793 = vmatpush2.bf16.msra.mxu0 0
        %2794 = vmatprep.subr.bf16.mxu0 0
        %2795 = vmatpush2.bf16.msra.mxu0 0
        %2796 = vmatprep.subr.bf16.mxu0 0
        %2797 = vmatpush2.bf16.msra.mxu0 0
        %2798 = vmatprep.subr.bf16.mxu0 0
        %2799 = vmatpush2.bf16.msra.mxu0 0
        %2800 = vmatprep.subr.bf16.mxu0 0
        %2801 = vmatpush2.bf16.msra.mxu0 0
        %2802 = vmatprep.subr.bf16.mxu0 0
        %2803 = vmatpush2.bf16.msra.mxu0 0
        %2804 = vmatprep.subr.bf16.mxu0 0
        %2805 = vmatpush2.bf16.msra.mxu0 0
        %2806 = vmatprep.subr.bf16.mxu0 0
        %2807 = vmatpush2.bf16.msra.mxu0 0
        %2808 = vmatprep.mubr.bf16.mxu0 0
        %2809 = vmatmul.mubr.bf16.gmra.mxu0 %v2710
        %v2810 = vpop.f32.mrf.mxu0
        %v2811 = vadd.f32 0.0, %v2810
        %v2812 = vpop.f32.mrf.mxu0
        %v2813 = vpop.f32.mrf.mxu0
        %v2814 = vpop.f32.mrf.mxu0
        %2815 = vdwg.mxu0
        %v2832 = vunpack.c.l.b16 %v2693
        %v2833 = vunpack.c.l.b16 %v2694
        %v2834 = vunpack.c.l.b16 %v2695
        %v2835 = vunpack.c.l.b16 %v2696
        %v2836 = vunpack.c.l.b16 %v2697
        %v2837 = vunpack.c.l.b16 %v2698
        %v2838 = vunpack.c.l.b16 %v2699
        %v2839 = vunpack.c.l.b16 %v2700
        %v2840 = vunpack.c.l.b16 %v2701
        %v2841 = vunpack.c.l.b16 %v2702
        %v2842 = vunpack.c.l.b16 %v2703
        %v2843 = vunpack.c.l.b16 %v2704
        %v2844 = vunpack.c.l.b16 %v2705
        %v2845 = vunpack.c.l.b16 %v2706
        %v2846 = vunpack.c.l.b16 %v2707
        %v2847 = vunpack.c.l.b16 %v2708
        %v2848 = vpack.c.b16 %v2833, %v2832
        %v2849 = vpack.c.b16 %v2835, %v2834
        %v2850 = vpack.c.b16 %v2837, %v2836
        %v2851 = vpack.c.b16 %v2839, %v2838
        %v2852 = vpack.c.b16 %v2841, %v2840
        %v2853 = vpack.c.b16 %v2843, %v2842
        %v2854 = vpack.c.b16 %v2845, %v2844
        %v2855 = vpack.c.b16 %v2847, %v2846
        %2864 = vmatprep.subr.bf16.mxu0 0
        %2865 = vmatpush1.bf16.msra.mxu0 %v2855
        %2866 = vmatprep.subr.bf16.mxu0 0
        %2867 = vmatpush1.bf16.msra.mxu0 %v2854
        %2868 = vmatprep.subr.bf16.mxu0 0
        %2869 = vmatpush1.bf16.msra.mxu0 %v2853
        %2870 = vmatprep.subr.bf16.mxu0 0
        %2871 = vmatpush1.bf16.msra.mxu0 %v2852
        %2872 = vmatprep.subr.bf16.mxu0 0
        %2873 = vmatpush1.bf16.msra.mxu0 %v2851
        %2874 = vmatprep.subr.bf16.mxu0 0
        %2875 = vmatpush1.bf16.msra.mxu0 %v2850
        %2876 = vmatprep.subr.bf16.mxu0 0
        %2877 = vmatpush1.bf16.msra.mxu0 %v2849
        %2878 = vmatprep.subr.bf16.mxu0 0
        %2879 = vmatpush1.bf16.msra.mxu0 %v2848
        %2880 = vmatprep.subr.bf16.mxu0 0
        %2881 = vmatpush2.bf16.msra.mxu0 0
        %2882 = vmatprep.subr.bf16.mxu0 0
        %2883 = vmatpush2.bf16.msra.mxu0 0
        %2884 = vmatprep.subr.bf16.mxu0 0
        %2885 = vmatpush2.bf16.msra.mxu0 0
        %2886 = vmatprep.subr.bf16.mxu0 0
        %2887 = vmatpush2.bf16.msra.mxu0 0
        %2888 = vmatprep.subr.bf16.mxu0 0
        %2889 = vmatpush2.bf16.msra.mxu0 0
        %2890 = vmatprep.subr.bf16.mxu0 0
        %2891 = vmatpush2.bf16.msra.mxu0 0
        %2892 = vmatprep.subr.bf16.mxu0 0
        %2893 = vmatpush2.bf16.msra.mxu0 0
        %2894 = vmatprep.subr.bf16.mxu0 0
        %2895 = vmatpush2.bf16.msra.mxu0 0
        %2896 = vmatprep.mubr.bf16.mxu0 0
        %2897 = vmatmul.mubr.bf16.gmra.mxu0 %v2691
        %v2898 = vpop.f32.mrf.mxu0
        %v2899 = vadd.f32 %v2811, %v2898
        %v2900 = vpop.f32.mrf.mxu0
        %v2901 = vpop.f32.mrf.mxu0
        %v2902 = vpop.f32.mrf.mxu0
        %2903 = vdwg.mxu0
        %v2904 = vld [vmem:[#allocation10 + $0x2] sm:$0xff]
        %v2905 = vpack.c.bf16 %v2904, %v2904
        %s2906 = scalar_lea.vmem [#allocation23], 1408
        %v2907 = vld [vmem:[%s2906] sm:$0xf]
        %v2908 = vld [vmem:[%s2906 + $0x4] sm:$0xf]
        %v2909 = vld [vmem:[%s2906 + $0x8] sm:$0xf]
        %v2910 = vld [vmem:[%s2906 + $0xc] sm:$0xf]
        %v2911 = vld [vmem:[%s2906 + $0x10] sm:$0xf]
        %v2912 = vld [vmem:[%s2906 + $0x14] sm:$0xf]
        %v2913 = vld [vmem:[%s2906 + $0x18] sm:$0xf]
        %v2914 = vld [vmem:[%s2906 + $0x1c] sm:$0xf]
        %v2915 = vld [vmem:[%s2906 + $0x20] sm:$0xf]
        %v2916 = vld [vmem:[%s2906 + $0x24] sm:$0xf]
        %v2917 = vld [vmem:[%s2906 + $0x28] sm:$0xf]
        %v2918 = vld [vmem:[%s2906 + $0x2c] sm:$0xf]
        %v2919 = vld [vmem:[%s2906 + $0x30] sm:$0xf]
        %v2920 = vld [vmem:[%s2906 + $0x34] sm:$0xf]
        %v2921 = vld [vmem:[%s2906 + $0x38] sm:$0xf]
        %v2922 = vld [vmem:[%s2906 + $0x3c] sm:$0xf]
        %v2939 = vunpack.c.l.b16 %v2907
        %v2940 = vunpack.c.l.b16 %v2908
        %v2941 = vunpack.c.l.b16 %v2909
        %v2942 = vunpack.c.l.b16 %v2910
        %v2943 = vunpack.c.l.b16 %v2911
        %v2944 = vunpack.c.l.b16 %v2912
        %v2945 = vunpack.c.l.b16 %v2913
        %v2946 = vunpack.c.l.b16 %v2914
        %v2947 = vunpack.c.l.b16 %v2915
        %v2948 = vunpack.c.l.b16 %v2916
        %v2949 = vunpack.c.l.b16 %v2917
        %v2950 = vunpack.c.l.b16 %v2918
        %v2951 = vunpack.c.l.b16 %v2919
        %v2952 = vunpack.c.l.b16 %v2920
        %v2953 = vunpack.c.l.b16 %v2921
        %v2954 = vunpack.c.l.b16 %v2922
        %v2955 = vpack.c.b16 %v2940, %v2939
        %v2956 = vpack.c.b16 %v2942, %v2941
        %v2957 = vpack.c.b16 %v2944, %v2943
        %v2958 = vpack.c.b16 %v2946, %v2945
        %v2959 = vpack.c.b16 %v2948, %v2947
        %v2960 = vpack.c.b16 %v2950, %v2949
        %v2961 = vpack.c.b16 %v2952, %v2951
        %v2962 = vpack.c.b16 %v2954, %v2953
        %2971 = vmatprep.subr.bf16.mxu0 0
        %2972 = vmatpush1.bf16.msra.mxu0 %v2962
        %2973 = vmatprep.subr.bf16.mxu0 0
        %2974 = vmatpush1.bf16.msra.mxu0 %v2961
        %2975 = vmatprep.subr.bf16.mxu0 0
        %2976 = vmatpush1.bf16.msra.mxu0 %v2960
        %2977 = vmatprep.subr.bf16.mxu0 0
        %2978 = vmatpush1.bf16.msra.mxu0 %v2959
        %2979 = vmatprep.subr.bf16.mxu0 0
        %2980 = vmatpush1.bf16.msra.mxu0 %v2958
        %2981 = vmatprep.subr.bf16.mxu0 0
        %2982 = vmatpush1.bf16.msra.mxu0 %v2957
        %2983 = vmatprep.subr.bf16.mxu0 0
        %2984 = vmatpush1.bf16.msra.mxu0 %v2956
        %2985 = vmatprep.subr.bf16.mxu0 0
        %2986 = vmatpush1.bf16.msra.mxu0 %v2955
        %2987 = vmatprep.subr.bf16.mxu0 0
        %2988 = vmatpush2.bf16.msra.mxu0 0
        %2989 = vmatprep.subr.bf16.mxu0 0
        %2990 = vmatpush2.bf16.msra.mxu0 0
        %2991 = vmatprep.subr.bf16.mxu0 0
        %2992 = vmatpush2.bf16.msra.mxu0 0
        %2993 = vmatprep.subr.bf16.mxu0 0
        %2994 = vmatpush2.bf16.msra.mxu0 0
        %2995 = vmatprep.subr.bf16.mxu0 0
        %2996 = vmatpush2.bf16.msra.mxu0 0
        %2997 = vmatprep.subr.bf16.mxu0 0
        %2998 = vmatpush2.bf16.msra.mxu0 0
        %2999 = vmatprep.subr.bf16.mxu0 0
        %3000 = vmatpush2.bf16.msra.mxu0 0
        %3001 = vmatprep.subr.bf16.mxu0 0
        %3002 = vmatpush2.bf16.msra.mxu0 0
        %3003 = vmatprep.mubr.bf16.mxu0 0
        %3004 = vmatmul.mubr.bf16.gmra.mxu0 %v2905
        %v3005 = vpop.f32.mrf.mxu0
        %v3006 = vadd.f32 0.0, %v3005
        %v3007 = vpop.f32.mrf.mxu0
        %v3008 = vpop.f32.mrf.mxu0
        %v3009 = vpop.f32.mrf.mxu0
        %3010 = vdwg.mxu0
        %v3011 = vadd.f32 %v2899, %v3006
        %v3012 = vld [vmem:[#allocation28 + $0x8] sm:$0x1]
        %v3013 = vlaneseq
        %v3014 = vshrl.u32 %v3013, 7
        %v3015 = vsub.s32 0, %v3014
        %v3016 = vrot.slane %v3012, %v3015
        %v3017 = vadd.f32 %v3011, %v3016
        %v3018 = vmax.f32 %v3017, 0.0
        %3019 = vst [vmem:[#allocation11 + $0x1] sm:$0xff] %v3018
        %v3020 = vld [vmem:[#allocation11] sm:$0xff]
        %v3021 = vpack.c.bf16 %v3020, %v3020
        %s3022 = scalar_lea.vmem [#allocation23], 1472
        %v3023 = vld [vmem:[%s3022] sm:$0xf]
        %v3024 = vld [vmem:[%s3022 + $0x4] sm:$0xf]
        %v3025 = vld [vmem:[%s3022 + $0x8] sm:$0xf]
        %v3026 = vld [vmem:[%s3022 + $0xc] sm:$0xf]
        %v3027 = vld [vmem:[%s3022 + $0x10] sm:$0xf]
        %v3028 = vld [vmem:[%s3022 + $0x14] sm:$0xf]
        %v3029 = vld [vmem:[%s3022 + $0x18] sm:$0xf]
        %v3030 = vld [vmem:[%s3022 + $0x1c] sm:$0xf]
        %v3031 = vld [vmem:[%s3022 + $0x20] sm:$0xf]
        %v3032 = vld [vmem:[%s3022 + $0x24] sm:$0xf]
        %v3033 = vld [vmem:[%s3022 + $0x28] sm:$0xf]
        %v3034 = vld [vmem:[%s3022 + $0x2c] sm:$0xf]
        %v3035 = vld [vmem:[%s3022 + $0x30] sm:$0xf]
        %v3036 = vld [vmem:[%s3022 + $0x34] sm:$0xf]
        %v3037 = vld [vmem:[%s3022 + $0x38] sm:$0xf]
        %v3038 = vld [vmem:[%s3022 + $0x3c] sm:$0xf]
        %v3039 = vld [vmem:[#allocation11 + $0x1] sm:$0xff]
        %v3040 = vpack.c.bf16 %v3039, %v3039
        %s3041 = scalar_lea.vmem [#allocation23], 1536
        %v3042 = vld [vmem:[%s3041] sm:$0xf]
        %v3043 = vld [vmem:[%s3041 + $0x4] sm:$0xf]
        %v3044 = vld [vmem:[%s3041 + $0x8] sm:$0xf]
        %v3045 = vld [vmem:[%s3041 + $0xc] sm:$0xf]
        %v3046 = vld [vmem:[%s3041 + $0x10] sm:$0xf]
        %v3047 = vld [vmem:[%s3041 + $0x14] sm:$0xf]
        %v3048 = vld [vmem:[%s3041 + $0x18] sm:$0xf]
        %v3049 = vld [vmem:[%s3041 + $0x1c] sm:$0xf]
        %v3050 = vld [vmem:[%s3041 + $0x20] sm:$0xf]
        %v3051 = vld [vmem:[%s3041 + $0x24] sm:$0xf]
        %v3052 = vld [vmem:[%s3041 + $0x28] sm:$0xf]
        %v3053 = vld [vmem:[%s3041 + $0x2c] sm:$0xf]
        %v3054 = vld [vmem:[%s3041 + $0x30] sm:$0xf]
        %v3055 = vld [vmem:[%s3041 + $0x34] sm:$0xf]
        %v3056 = vld [vmem:[%s3041 + $0x38] sm:$0xf]
        %v3057 = vld [vmem:[%s3041 + $0x3c] sm:$0xf]
        %v3074 = vunpack.c.l.b16 %v3042
        %v3075 = vunpack.c.l.b16 %v3043
        %v3076 = vunpack.c.l.b16 %v3044
        %v3077 = vunpack.c.l.b16 %v3045
        %v3078 = vunpack.c.l.b16 %v3046
        %v3079 = vunpack.c.l.b16 %v3047
        %v3080 = vunpack.c.l.b16 %v3048
        %v3081 = vunpack.c.l.b16 %v3049
        %v3082 = vunpack.c.l.b16 %v3050
        %v3083 = vunpack.c.l.b16 %v3051
        %v3084 = vunpack.c.l.b16 %v3052
        %v3085 = vunpack.c.l.b16 %v3053
        %v3086 = vunpack.c.l.b16 %v3054
        %v3087 = vunpack.c.l.b16 %v3055
        %v3088 = vunpack.c.l.b16 %v3056
        %v3089 = vunpack.c.l.b16 %v3057
        %v3090 = vpack.c.b16 %v3075, %v3074
        %v3091 = vpack.c.b16 %v3077, %v3076
        %v3092 = vpack.c.b16 %v3079, %v3078
        %v3093 = vpack.c.b16 %v3081, %v3080
        %v3094 = vpack.c.b16 %v3083, %v3082
        %v3095 = vpack.c.b16 %v3085, %v3084
        %v3096 = vpack.c.b16 %v3087, %v3086
        %v3097 = vpack.c.b16 %v3089, %v3088
        %3106 = vmatprep.subr.bf16.mxu0 0
        %3107 = vmatpush1.bf16.msra.mxu0 %v3097
        %3108 = vmatprep.subr.bf16.mxu0 0
        %3109 = vmatpush1.bf16.msra.mxu0 %v3096
        %3110 = vmatprep.subr.bf16.mxu0 0
        %3111 = vmatpush1.bf16.msra.mxu0 %v3095
        %3112 = vmatprep.subr.bf16.mxu0 0
        %3113 = vmatpush1.bf16.msra.mxu0 %v3094
        %3114 = vmatprep.subr.bf16.mxu0 0
        %3115 = vmatpush1.bf16.msra.mxu0 %v3093
        %3116 = vmatprep.subr.bf16.mxu0 0
        %3117 = vmatpush1.bf16.msra.mxu0 %v3092
        %3118 = vmatprep.subr.bf16.mxu0 0
        %3119 = vmatpush1.bf16.msra.mxu0 %v3091
        %3120 = vmatprep.subr.bf16.mxu0 0
        %3121 = vmatpush1.bf16.msra.mxu0 %v3090
        %3122 = vmatprep.subr.bf16.mxu0 0
        %3123 = vmatpush2.bf16.msra.mxu0 0
        %3124 = vmatprep.subr.bf16.mxu0 0
        %3125 = vmatpush2.bf16.msra.mxu0 0
        %3126 = vmatprep.subr.bf16.mxu0 0
        %3127 = vmatpush2.bf16.msra.mxu0 0
        %3128 = vmatprep.subr.bf16.mxu0 0
        %3129 = vmatpush2.bf16.msra.mxu0 0
        %3130 = vmatprep.subr.bf16.mxu0 0
        %3131 = vmatpush2.bf16.msra.mxu0 0
        %3132 = vmatprep.subr.bf16.mxu0 0
        %3133 = vmatpush2.bf16.msra.mxu0 0
        %3134 = vmatprep.subr.bf16.mxu0 0
        %3135 = vmatpush2.bf16.msra.mxu0 0
        %3136 = vmatprep.subr.bf16.mxu0 0
        %3137 = vmatpush2.bf16.msra.mxu0 0
        %3138 = vmatprep.mubr.bf16.mxu0 0
        %3139 = vmatmul.mubr.bf16.gmra.mxu0 %v3040
        %v3140 = vpop.f32.mrf.mxu0
        %v3141 = vadd.f32 0.0, %v3140
        %v3142 = vpop.f32.mrf.mxu0
        %v3143 = vpop.f32.mrf.mxu0
        %v3144 = vpop.f32.mrf.mxu0
        %3145 = vdwg.mxu0
        %v3162 = vunpack.c.l.b16 %v3023
        %v3163 = vunpack.c.l.b16 %v3024
        %v3164 = vunpack.c.l.b16 %v3025
        %v3165 = vunpack.c.l.b16 %v3026
        %v3166 = vunpack.c.l.b16 %v3027
        %v3167 = vunpack.c.l.b16 %v3028
        %v3168 = vunpack.c.l.b16 %v3029
        %v3169 = vunpack.c.l.b16 %v3030
        %v3170 = vunpack.c.l.b16 %v3031
        %v3171 = vunpack.c.l.b16 %v3032
        %v3172 = vunpack.c.l.b16 %v3033
        %v3173 = vunpack.c.l.b16 %v3034
        %v3174 = vunpack.c.l.b16 %v3035
        %v3175 = vunpack.c.l.b16 %v3036
        %v3176 = vunpack.c.l.b16 %v3037
        %v3177 = vunpack.c.l.b16 %v3038
        %v3178 = vpack.c.b16 %v3163, %v3162
        %v3179 = vpack.c.b16 %v3165, %v3164
        %v3180 = vpack.c.b16 %v3167, %v3166
        %v3181 = vpack.c.b16 %v3169, %v3168
        %v3182 = vpack.c.b16 %v3171, %v3170
        %v3183 = vpack.c.b16 %v3173, %v3172
        %v3184 = vpack.c.b16 %v3175, %v3174
        %v3185 = vpack.c.b16 %v3177, %v3176
        %3194 = vmatprep.subr.bf16.mxu0 0
        %3195 = vmatpush1.bf16.msra.mxu0 %v3185
        %3196 = vmatprep.subr.bf16.mxu0 0
        %3197 = vmatpush1.bf16.msra.mxu0 %v3184
        %3198 = vmatprep.subr.bf16.mxu0 0
        %3199 = vmatpush1.bf16.msra.mxu0 %v3183
        %3200 = vmatprep.subr.bf16.mxu0 0
        %3201 = vmatpush1.bf16.msra.mxu0 %v3182
        %3202 = vmatprep.subr.bf16.mxu0 0
        %3203 = vmatpush1.bf16.msra.mxu0 %v3181
        %3204 = vmatprep.subr.bf16.mxu0 0
        %3205 = vmatpush1.bf16.msra.mxu0 %v3180
        %3206 = vmatprep.subr.bf16.mxu0 0
        %3207 = vmatpush1.bf16.msra.mxu0 %v3179
        %3208 = vmatprep.subr.bf16.mxu0 0
        %3209 = vmatpush1.bf16.msra.mxu0 %v3178
        %3210 = vmatprep.subr.bf16.mxu0 0
        %3211 = vmatpush2.bf16.msra.mxu0 0
        %3212 = vmatprep.subr.bf16.mxu0 0
        %3213 = vmatpush2.bf16.msra.mxu0 0
        %3214 = vmatprep.subr.bf16.mxu0 0
        %3215 = vmatpush2.bf16.msra.mxu0 0
        %3216 = vmatprep.subr.bf16.mxu0 0
        %3217 = vmatpush2.bf16.msra.mxu0 0
        %3218 = vmatprep.subr.bf16.mxu0 0
        %3219 = vmatpush2.bf16.msra.mxu0 0
        %3220 = vmatprep.subr.bf16.mxu0 0
        %3221 = vmatpush2.bf16.msra.mxu0 0
        %3222 = vmatprep.subr.bf16.mxu0 0
        %3223 = vmatpush2.bf16.msra.mxu0 0
        %3224 = vmatprep.subr.bf16.mxu0 0
        %3225 = vmatpush2.bf16.msra.mxu0 0
        %3226 = vmatprep.mubr.bf16.mxu0 0
        %3227 = vmatmul.mubr.bf16.gmra.mxu0 %v3021
        %v3228 = vpop.f32.mrf.mxu0
        %v3229 = vadd.f32 %v3141, %v3228
        %v3230 = vpop.f32.mrf.mxu0
        %v3231 = vpop.f32.mrf.mxu0
        %v3232 = vpop.f32.mrf.mxu0
        %3233 = vdwg.mxu0
        %v3234 = vld [vmem:[#allocation11 + $0x2] sm:$0xff]
        %v3235 = vpack.c.bf16 %v3234, %v3234
        %s3236 = scalar_lea.vmem [#allocation23], 1600
        %v3237 = vld [vmem:[%s3236] sm:$0xf]
        %v3238 = vld [vmem:[%s3236 + $0x4] sm:$0xf]
        %v3239 = vld [vmem:[%s3236 + $0x8] sm:$0xf]
        %v3240 = vld [vmem:[%s3236 + $0xc] sm:$0xf]
        %v3241 = vld [vmem:[%s3236 + $0x10] sm:$0xf]
        %v3242 = vld [vmem:[%s3236 + $0x14] sm:$0xf]
        %v3243 = vld [vmem:[%s3236 + $0x18] sm:$0xf]
        %v3244 = vld [vmem:[%s3236 + $0x1c] sm:$0xf]
        %v3245 = vld [vmem:[%s3236 + $0x20] sm:$0xf]
        %v3246 = vld [vmem:[%s3236 + $0x24] sm:$0xf]
        %v3247 = vld [vmem:[%s3236 + $0x28] sm:$0xf]
        %v3248 = vld [vmem:[%s3236 + $0x2c] sm:$0xf]
        %v3249 = vld [vmem:[%s3236 + $0x30] sm:$0xf]
        %v3250 = vld [vmem:[%s3236 + $0x34] sm:$0xf]
        %v3251 = vld [vmem:[%s3236 + $0x38] sm:$0xf]
        %v3252 = vld [vmem:[%s3236 + $0x3c] sm:$0xf]
        %v3269 = vunpack.c.l.b16 %v3237
        %v3270 = vunpack.c.l.b16 %v3238
        %v3271 = vunpack.c.l.b16 %v3239
        %v3272 = vunpack.c.l.b16 %v3240
        %v3273 = vunpack.c.l.b16 %v3241
        %v3274 = vunpack.c.l.b16 %v3242
        %v3275 = vunpack.c.l.b16 %v3243
        %v3276 = vunpack.c.l.b16 %v3244
        %v3277 = vunpack.c.l.b16 %v3245
        %v3278 = vunpack.c.l.b16 %v3246
        %v3279 = vunpack.c.l.b16 %v3247
        %v3280 = vunpack.c.l.b16 %v3248
        %v3281 = vunpack.c.l.b16 %v3249
        %v3282 = vunpack.c.l.b16 %v3250
        %v3283 = vunpack.c.l.b16 %v3251
        %v3284 = vunpack.c.l.b16 %v3252
        %v3285 = vpack.c.b16 %v3270, %v3269
        %v3286 = vpack.c.b16 %v3272, %v3271
        %v3287 = vpack.c.b16 %v3274, %v3273
        %v3288 = vpack.c.b16 %v3276, %v3275
        %v3289 = vpack.c.b16 %v3278, %v3277
        %v3290 = vpack.c.b16 %v3280, %v3279
        %v3291 = vpack.c.b16 %v3282, %v3281
        %v3292 = vpack.c.b16 %v3284, %v3283
        %3301 = vmatprep.subr.bf16.mxu0 0
        %3302 = vmatpush1.bf16.msra.mxu0 %v3292
        %3303 = vmatprep.subr.bf16.mxu0 0
        %3304 = vmatpush1.bf16.msra.mxu0 %v3291
        %3305 = vmatprep.subr.bf16.mxu0 0
        %3306 = vmatpush1.bf16.msra.mxu0 %v3290
        %3307 = vmatprep.subr.bf16.mxu0 0
        %3308 = vmatpush1.bf16.msra.mxu0 %v3289
        %3309 = vmatprep.subr.bf16.mxu0 0
        %3310 = vmatpush1.bf16.msra.mxu0 %v3288
        %3311 = vmatprep.subr.bf16.mxu0 0
        %3312 = vmatpush1.bf16.msra.mxu0 %v3287
        %3313 = vmatprep.subr.bf16.mxu0 0
        %3314 = vmatpush1.bf16.msra.mxu0 %v3286
        %3315 = vmatprep.subr.bf16.mxu0 0
        %3316 = vmatpush1.bf16.msra.mxu0 %v3285
        %3317 = vmatprep.subr.bf16.mxu0 0
        %3318 = vmatpush2.bf16.msra.mxu0 0
        %3319 = vmatprep.subr.bf16.mxu0 0
        %3320 = vmatpush2.bf16.msra.mxu0 0
        %3321 = vmatprep.subr.bf16.mxu0 0
        %3322 = vmatpush2.bf16.msra.mxu0 0
        %3323 = vmatprep.subr.bf16.mxu0 0
        %3324 = vmatpush2.bf16.msra.mxu0 0
        %3325 = vmatprep.subr.bf16.mxu0 0
        %3326 = vmatpush2.bf16.msra.mxu0 0
        %3327 = vmatprep.subr.bf16.mxu0 0
        %3328 = vmatpush2.bf16.msra.mxu0 0
        %3329 = vmatprep.subr.bf16.mxu0 0
        %3330 = vmatpush2.bf16.msra.mxu0 0
        %3331 = vmatprep.subr.bf16.mxu0 0
        %3332 = vmatpush2.bf16.msra.mxu0 0
        %3333 = vmatprep.mubr.bf16.mxu0 0
        %3334 = vmatmul.mubr.bf16.gmra.mxu0 %v3235
        %v3335 = vpop.f32.mrf.mxu0
        %v3336 = vadd.f32 0.0, %v3335
        %v3337 = vpop.f32.mrf.mxu0
        %v3338 = vpop.f32.mrf.mxu0
        %v3339 = vpop.f32.mrf.mxu0
        %3340 = vdwg.mxu0
        %v3341 = vadd.f32 %v3229, %v3336
        %v3342 = vld [vmem:[#allocation28 + $0x9] sm:$0x1]
        %v3343 = vlaneseq
        %v3344 = vshrl.u32 %v3343, 7
        %v3345 = vsub.s32 0, %v3344
        %v3346 = vrot.slane %v3342, %v3345
        %v3347 = vadd.f32 %v3341, %v3346
        %v3348 = vld [vmem:[#allocation10 + $0x1] sm:$0xff]
        %v3349 = vadd.f32 %v3347, %v3348
        %v3350 = vmax.f32 %v3349, 0.0
        %3351 = vst [vmem:[#allocation12 + $0x1] sm:$0xff] %v3350
        %v3352 = vld [vmem:[#allocation12] ss:$2 sm:$0xf]
        %v3353 = vpack.c.bf16 %v3352, %v3352
        %s3354 = scalar_lea.vmem [#allocation23], 1664
        %v3355 = vld [vmem:[%s3354] sm:$0xf]
        %v3356 = vld [vmem:[%s3354 + $0x4] sm:$0xf]
        %v3357 = vld [vmem:[%s3354 + $0x8] sm:$0xf]
        %v3358 = vld [vmem:[%s3354 + $0xc] sm:$0xf]
        %v3359 = vld [vmem:[%s3354 + $0x10] sm:$0xf]
        %v3360 = vld [vmem:[%s3354 + $0x14] sm:$0xf]
        %v3361 = vld [vmem:[%s3354 + $0x18] sm:$0xf]
        %v3362 = vld [vmem:[%s3354 + $0x1c] sm:$0xf]
        %v3363 = vld [vmem:[%s3354 + $0x20] sm:$0xf]
        %v3364 = vld [vmem:[%s3354 + $0x24] sm:$0xf]
        %v3365 = vld [vmem:[%s3354 + $0x28] sm:$0xf]
        %v3366 = vld [vmem:[%s3354 + $0x2c] sm:$0xf]
        %v3367 = vld [vmem:[%s3354 + $0x30] sm:$0xf]
        %v3368 = vld [vmem:[%s3354 + $0x34] sm:$0xf]
        %v3369 = vld [vmem:[%s3354 + $0x38] sm:$0xf]
        %v3370 = vld [vmem:[%s3354 + $0x3c] sm:$0xf]
        %s3371 = scalar_lea.vmem [#allocation12], 1
        %v3372 = vld [vmem:[%s3371] ss:$2 sm:$0xf]
        %v3373 = vpack.c.bf16 %v3372, %v3372
        %s3374 = scalar_lea.vmem [#allocation26], 128
        %v3375 = vld [vmem:[%s3374] sm:$0xff]
        %v3376 = vld [vmem:[%s3374 + $0x8] sm:$0xff]
        %v3377 = vld [vmem:[%s3374 + $0x10] sm:$0xff]
        %v3378 = vld [vmem:[%s3374 + $0x18] sm:$0xff]
        %v3379 = vld [vmem:[%s3374 + $0x20] sm:$0xff]
        %v3380 = vld [vmem:[%s3374 + $0x28] sm:$0xff]
        %v3381 = vld [vmem:[%s3374 + $0x30] sm:$0xff]
        %v3382 = vld [vmem:[%s3374 + $0x38] sm:$0xff]
        %v3383 = vld [vmem:[%s3374 + $0x40] sm:$0xff]
        %v3384 = vld [vmem:[%s3374 + $0x48] sm:$0xff]
        %v3385 = vld [vmem:[%s3374 + $0x50] sm:$0xff]
        %v3386 = vld [vmem:[%s3374 + $0x58] sm:$0xff]
        %v3387 = vld [vmem:[%s3374 + $0x60] sm:$0xff]
        %v3388 = vld [vmem:[%s3374 + $0x68] sm:$0xff]
        %v3389 = vld [vmem:[%s3374 + $0x70] sm:$0xff]
        %v3390 = vld [vmem:[%s3374 + $0x78] sm:$0xff]
        %v3407 = vunpack.c.l.b16 %v3375
        %v3408 = vunpack.c.h.b16 %v3375
        %v3409 = vunpack.c.l.b16 %v3376
        %v3410 = vunpack.c.h.b16 %v3376
        %v3411 = vunpack.c.l.b16 %v3377
        %v3412 = vunpack.c.h.b16 %v3377
        %v3413 = vunpack.c.l.b16 %v3378
        %v3414 = vunpack.c.h.b16 %v3378
        %v3415 = vunpack.c.l.b16 %v3379
        %v3416 = vunpack.c.h.b16 %v3379
        %v3417 = vunpack.c.l.b16 %v3380
        %v3418 = vunpack.c.h.b16 %v3380
        %v3419 = vunpack.c.l.b16 %v3381
        %v3420 = vunpack.c.h.b16 %v3381
        %v3421 = vunpack.c.l.b16 %v3382
        %v3422 = vunpack.c.h.b16 %v3382
        %v3423 = vunpack.c.l.b16 %v3383
        %v3424 = vunpack.c.h.b16 %v3383
        %v3425 = vunpack.c.l.b16 %v3384
        %v3426 = vunpack.c.h.b16 %v3384
        %v3427 = vunpack.c.l.b16 %v3385
        %v3428 = vunpack.c.h.b16 %v3385
        %v3429 = vunpack.c.l.b16 %v3386
        %v3430 = vunpack.c.h.b16 %v3386
        %v3431 = vunpack.c.l.b16 %v3387
        %v3432 = vunpack.c.h.b16 %v3387
        %v3433 = vunpack.c.l.b16 %v3388
        %v3434 = vunpack.c.h.b16 %v3388
        %v3435 = vunpack.c.l.b16 %v3389
        %v3436 = vunpack.c.h.b16 %v3389
        %v3437 = vunpack.c.l.b16 %v3390
        %v3438 = vunpack.c.h.b16 %v3390
        %v3439 = vpack.c.b16 %v3409, %v3407
        %v3440 = vpack.c.b16 %v3410, %v3408
        %v3441 = vpack.c.b16 %v3413, %v3411
        %v3442 = vpack.c.b16 %v3414, %v3412
        %v3443 = vpack.c.b16 %v3417, %v3415
        %v3444 = vpack.c.b16 %v3418, %v3416
        %v3445 = vpack.c.b16 %v3421, %v3419
        %v3446 = vpack.c.b16 %v3422, %v3420
        %v3447 = vpack.c.b16 %v3425, %v3423
        %v3448 = vpack.c.b16 %v3426, %v3424
        %v3449 = vpack.c.b16 %v3429, %v3427
        %v3450 = vpack.c.b16 %v3430, %v3428
        %v3451 = vpack.c.b16 %v3433, %v3431
        %v3452 = vpack.c.b16 %v3434, %v3432
        %v3453 = vpack.c.b16 %v3437, %v3435
        %v3454 = vpack.c.b16 %v3438, %v3436
        %3471 = vmatprep.subr.bf16.mxu0 %v3454
        %3472 = vmatpush1.bf16.msra.mxu0 %v3453
        %3473 = vmatprep.subr.bf16.mxu0 %v3452
        %3474 = vmatpush1.bf16.msra.mxu0 %v3451
        %3475 = vmatprep.subr.bf16.mxu0 %v3450
        %3476 = vmatpush1.bf16.msra.mxu0 %v3449
        %3477 = vmatprep.subr.bf16.mxu0 %v3448
        %3478 = vmatpush1.bf16.msra.mxu0 %v3447
        %3479 = vmatprep.subr.bf16.mxu0 %v3446
        %3480 = vmatpush1.bf16.msra.mxu0 %v3445
        %3481 = vmatprep.subr.bf16.mxu0 %v3444
        %3482 = vmatpush1.bf16.msra.mxu0 %v3443
        %3483 = vmatprep.subr.bf16.mxu0 %v3442
        %3484 = vmatpush1.bf16.msra.mxu0 %v3441
        %3485 = vmatprep.subr.bf16.mxu0 %v3440
        %3486 = vmatpush1.bf16.msra.mxu0 %v3439
        %3487 = vmatprep.subr.bf16.mxu0 0
        %3488 = vmatpush2.bf16.msra.mxu0 0
        %3489 = vmatprep.subr.bf16.mxu0 0
        %3490 = vmatpush2.bf16.msra.mxu0 0
        %3491 = vmatprep.subr.bf16.mxu0 0
        %3492 = vmatpush2.bf16.msra.mxu0 0
        %3493 = vmatprep.subr.bf16.mxu0 0
        %3494 = vmatpush2.bf16.msra.mxu0 0
        %3495 = vmatprep.subr.bf16.mxu0 0
        %3496 = vmatpush2.bf16.msra.mxu0 0
        %3497 = vmatprep.subr.bf16.mxu0 0
        %3498 = vmatpush2.bf16.msra.mxu0 0
        %3499 = vmatprep.subr.bf16.mxu0 0
        %3500 = vmatpush2.bf16.msra.mxu0 0
        %3501 = vmatprep.subr.bf16.mxu0 0
        %3502 = vmatpush2.bf16.msra.mxu0 0
        %3503 = vmatprep.mubr.bf16.mxu0 0
        %3504 = vmatmul.mubr.bf16.gmra.mxu0 %v3373
        %v3505 = vpop.f32.mrf.mxu0
        %v3506 = vadd.f32 0.0, %v3505
        %v3507 = vpop.f32.mrf.mxu0
        %v3508 = vadd.f32 0.0, %v3507
        %v3509 = vpop.f32.mrf.mxu0
        %v3510 = vpop.f32.mrf.mxu0
        %3511 = vdwg.mxu0
        %v3528 = vunpack.c.l.b16 %v3355
        %v3529 = vunpack.c.l.b16 %v3356
        %v3530 = vunpack.c.l.b16 %v3357
        %v3531 = vunpack.c.l.b16 %v3358
        %v3532 = vunpack.c.l.b16 %v3359
        %v3533 = vunpack.c.l.b16 %v3360
        %v3534 = vunpack.c.l.b16 %v3361
        %v3535 = vunpack.c.l.b16 %v3362
        %v3536 = vunpack.c.l.b16 %v3363
        %v3537 = vunpack.c.l.b16 %v3364
        %v3538 = vunpack.c.l.b16 %v3365
        %v3539 = vunpack.c.l.b16 %v3366
        %v3540 = vunpack.c.l.b16 %v3367
        %v3541 = vunpack.c.l.b16 %v3368
        %v3542 = vunpack.c.l.b16 %v3369
        %v3543 = vunpack.c.l.b16 %v3370
        %v3544 = vpack.c.b16 %v3529, %v3528
        %v3545 = vpack.c.b16 %v3531, %v3530
        %v3546 = vpack.c.b16 %v3533, %v3532
        %v3547 = vpack.c.b16 %v3535, %v3534
        %v3548 = vpack.c.b16 %v3537, %v3536
        %v3549 = vpack.c.b16 %v3539, %v3538
        %v3550 = vpack.c.b16 %v3541, %v3540
        %v3551 = vpack.c.b16 %v3543, %v3542
        %3560 = vmatprep.subr.bf16.mxu0 0
        %3561 = vmatpush1.bf16.msra.mxu0 %v3551
        %3562 = vmatprep.subr.bf16.mxu0 0
        %3563 = vmatpush1.bf16.msra.mxu0 %v3550
        %3564 = vmatprep.subr.bf16.mxu0 0
        %3565 = vmatpush1.bf16.msra.mxu0 %v3549
        %3566 = vmatprep.subr.bf16.mxu0 0
        %3567 = vmatpush1.bf16.msra.mxu0 %v3548
        %3568 = vmatprep.subr.bf16.mxu0 0
        %3569 = vmatpush1.bf16.msra.mxu0 %v3547
        %3570 = vmatprep.subr.bf16.mxu0 0
        %3571 = vmatpush1.bf16.msra.mxu0 %v3546
        %3572 = vmatprep.subr.bf16.mxu0 0
        %3573 = vmatpush1.bf16.msra.mxu0 %v3545
        %3574 = vmatprep.subr.bf16.mxu0 0
        %3575 = vmatpush1.bf16.msra.mxu0 %v3544
        %3576 = vmatprep.subr.bf16.mxu0 0
        %3577 = vmatpush2.bf16.msra.mxu0 0
        %3578 = vmatprep.subr.bf16.mxu0 0
        %3579 = vmatpush2.bf16.msra.mxu0 0
        %3580 = vmatprep.subr.bf16.mxu0 0
        %3581 = vmatpush2.bf16.msra.mxu0 0
        %3582 = vmatprep.subr.bf16.mxu0 0
        %3583 = vmatpush2.bf16.msra.mxu0 0
        %3584 = vmatprep.subr.bf16.mxu0 0
        %3585 = vmatpush2.bf16.msra.mxu0 0
        %3586 = vmatprep.subr.bf16.mxu0 0
        %3587 = vmatpush2.bf16.msra.mxu0 0
        %3588 = vmatprep.subr.bf16.mxu0 0
        %3589 = vmatpush2.bf16.msra.mxu0 0
        %3590 = vmatprep.subr.bf16.mxu0 0
        %3591 = vmatpush2.bf16.msra.mxu0 0
        %3592 = vmatprep.mubr.bf16.mxu0 0
        %3593 = vmatmul.mubr.bf16.gmra.mxu0 %v3353
        %v3594 = vpop.f32.mrf.mxu0
        %v3595 = vadd.f32 %v3506, %v3594
        %v3596 = vpop.f32.mrf.mxu0
        %v3597 = vpop.f32.mrf.mxu0
        %v3598 = vpop.f32.mrf.mxu0
        %3599 = vdwg.mxu0
        %s3600 = scalar_lea.vmem [#allocation12], 2
        %v3601 = vld [vmem:[%s3600] ss:$2 sm:$0xf]
        %v3602 = vpack.c.bf16 %v3601, %v3601
        %s3603 = scalar_lea.vmem [#allocation23], 1728
        %v3604 = vld [vmem:[%s3603] sm:$0xf]
        %v3605 = vld [vmem:[%s3603 + $0x4] sm:$0xf]
        %v3606 = vld [vmem:[%s3603 + $0x8] sm:$0xf]
        %v3607 = vld [vmem:[%s3603 + $0xc] sm:$0xf]
        %v3608 = vld [vmem:[%s3603 + $0x10] sm:$0xf]
        %v3609 = vld [vmem:[%s3603 + $0x14] sm:$0xf]
        %v3610 = vld [vmem:[%s3603 + $0x18] sm:$0xf]
        %v3611 = vld [vmem:[%s3603 + $0x1c] sm:$0xf]
        %v3612 = vld [vmem:[%s3603 + $0x20] sm:$0xf]
        %v3613 = vld [vmem:[%s3603 + $0x24] sm:$0xf]
        %v3614 = vld [vmem:[%s3603 + $0x28] sm:$0xf]
        %v3615 = vld [vmem:[%s3603 + $0x2c] sm:$0xf]
        %v3616 = vld [vmem:[%s3603 + $0x30] sm:$0xf]
        %v3617 = vld [vmem:[%s3603 + $0x34] sm:$0xf]
        %v3618 = vld [vmem:[%s3603 + $0x38] sm:$0xf]
        %v3619 = vld [vmem:[%s3603 + $0x3c] sm:$0xf]
        %v3636 = vunpack.c.l.b16 %v3604
        %v3637 = vunpack.c.l.b16 %v3605
        %v3638 = vunpack.c.l.b16 %v3606
        %v3639 = vunpack.c.l.b16 %v3607
        %v3640 = vunpack.c.l.b16 %v3608
        %v3641 = vunpack.c.l.b16 %v3609
        %v3642 = vunpack.c.l.b16 %v3610
        %v3643 = vunpack.c.l.b16 %v3611
        %v3644 = vunpack.c.l.b16 %v3612
        %v3645 = vunpack.c.l.b16 %v3613
        %v3646 = vunpack.c.l.b16 %v3614
        %v3647 = vunpack.c.l.b16 %v3615
        %v3648 = vunpack.c.l.b16 %v3616
        %v3649 = vunpack.c.l.b16 %v3617
        %v3650 = vunpack.c.l.b16 %v3618
        %v3651 = vunpack.c.l.b16 %v3619
        %v3652 = vpack.c.b16 %v3637, %v3636
        %v3653 = vpack.c.b16 %v3639, %v3638
        %v3654 = vpack.c.b16 %v3641, %v3640
        %v3655 = vpack.c.b16 %v3643, %v3642
        %v3656 = vpack.c.b16 %v3645, %v3644
        %v3657 = vpack.c.b16 %v3647, %v3646
        %v3658 = vpack.c.b16 %v3649, %v3648
        %v3659 = vpack.c.b16 %v3651, %v3650
        %3668 = vmatprep.subr.bf16.mxu0 0
        %3669 = vmatpush1.bf16.msra.mxu0 %v3659
        %3670 = vmatprep.subr.bf16.mxu0 0
        %3671 = vmatpush1.bf16.msra.mxu0 %v3658
        %3672 = vmatprep.subr.bf16.mxu0 0
        %3673 = vmatpush1.bf16.msra.mxu0 %v3657
        %3674 = vmatprep.subr.bf16.mxu0 0
        %3675 = vmatpush1.bf16.msra.mxu0 %v3656
        %3676 = vmatprep.subr.bf16.mxu0 0
        %3677 = vmatpush1.bf16.msra.mxu0 %v3655
        %3678 = vmatprep.subr.bf16.mxu0 0
        %3679 = vmatpush1.bf16.msra.mxu0 %v3654
        %3680 = vmatprep.subr.bf16.mxu0 0
        %3681 = vmatpush1.bf16.msra.mxu0 %v3653
        %3682 = vmatprep.subr.bf16.mxu0 0
        %3683 = vmatpush1.bf16.msra.mxu0 %v3652
        %3684 = vmatprep.subr.bf16.mxu0 0
        %3685 = vmatpush2.bf16.msra.mxu0 0
        %3686 = vmatprep.subr.bf16.mxu0 0
        %3687 = vmatpush2.bf16.msra.mxu0 0
        %3688 = vmatprep.subr.bf16.mxu0 0
        %3689 = vmatpush2.bf16.msra.mxu0 0
        %3690 = vmatprep.subr.bf16.mxu0 0
        %3691 = vmatpush2.bf16.msra.mxu0 0
        %3692 = vmatprep.subr.bf16.mxu0 0
        %3693 = vmatpush2.bf16.msra.mxu0 0
        %3694 = vmatprep.subr.bf16.mxu0 0
        %3695 = vmatpush2.bf16.msra.mxu0 0
        %3696 = vmatprep.subr.bf16.mxu0 0
        %3697 = vmatpush2.bf16.msra.mxu0 0
        %3698 = vmatprep.subr.bf16.mxu0 0
        %3699 = vmatpush2.bf16.msra.mxu0 0
        %3700 = vmatprep.mubr.bf16.mxu0 0
        %3701 = vmatmul.mubr.bf16.gmra.mxu0 %v3602
        %v3702 = vpop.f32.mrf.mxu0
        %v3703 = vadd.f32 0.0, %v3702
        %v3704 = vpop.f32.mrf.mxu0
        %v3705 = vpop.f32.mrf.mxu0
        %v3706 = vpop.f32.mrf.mxu0
        %3707 = vdwg.mxu0
        %v3708 = vadd.f32 %v3595, %v3703
        %v3709 = vld [vmem:[#allocation28 + $0xb] sm:$0x1]
        %v3710 = vlaneseq
        %v3711 = vshrl.u32 %v3710, 7
        %v3712 = vsub.s32 0, %v3711
        %v3713 = vrot.slane %v3709, %v3712
        %v3714 = vadd.f32 %v3708, %v3713
        %v3715 = vmax.f32 %v3714, 0.0
        %3716 = vst [vmem:[#allocation14 + $0x1] sm:$0xf] %v3715
        %v3717 = vld [vmem:[#allocation28 + $0xa] sm:$0x1]
        %v3718 = vlaneseq
        %v3719 = vshrl.u32 %v3718, 7
        %v3720 = vsub.s32 0, %v3719
        %v3721 = vrot.slane %v3717, %v3720
        %v3722 = vadd.f32 %v3508, %v3721
        %3723 = vst [vmem:[#allocation13] sm:$0xf] %v3722
        %v3724 = vld [vmem:[#allocation14] sm:$0xf]
        %v3725 = vpack.c.bf16 %v3724, %v3724
        %s3726 = scalar_lea.vmem [#allocation23], 1792
        %v3727 = vld [vmem:[%s3726] sm:$0xf]
        %v3728 = vld [vmem:[%s3726 + $0x4] sm:$0xf]
        %v3729 = vld [vmem:[%s3726 + $0x8] sm:$0xf]
        %v3730 = vld [vmem:[%s3726 + $0xc] sm:$0xf]
        %v3731 = vld [vmem:[%s3726 + $0x10] sm:$0xf]
        %v3732 = vld [vmem:[%s3726 + $0x14] sm:$0xf]
        %v3733 = vld [vmem:[%s3726 + $0x18] sm:$0xf]
        %v3734 = vld [vmem:[%s3726 + $0x1c] sm:$0xf]
        %v3735 = vld [vmem:[%s3726 + $0x20] sm:$0xf]
        %v3736 = vld [vmem:[%s3726 + $0x24] sm:$0xf]
        %v3737 = vld [vmem:[%s3726 + $0x28] sm:$0xf]
        %v3738 = vld [vmem:[%s3726 + $0x2c] sm:$0xf]
        %v3739 = vld [vmem:[%s3726 + $0x30] sm:$0xf]
        %v3740 = vld [vmem:[%s3726 + $0x34] sm:$0xf]
        %v3741 = vld [vmem:[%s3726 + $0x38] sm:$0xf]
        %v3742 = vld [vmem:[%s3726 + $0x3c] sm:$0xf]
        %v3743 = vld [vmem:[#allocation14 + $0x1] sm:$0xf]
        %v3744 = vpack.c.bf16 %v3743, %v3743
        %s3745 = scalar_lea.vmem [#allocation23], 1856
        %v3746 = vld [vmem:[%s3745] sm:$0xf]
        %v3747 = vld [vmem:[%s3745 + $0x4] sm:$0xf]
        %v3748 = vld [vmem:[%s3745 + $0x8] sm:$0xf]
        %v3749 = vld [vmem:[%s3745 + $0xc] sm:$0xf]
        %v3750 = vld [vmem:[%s3745 + $0x10] sm:$0xf]
        %v3751 = vld [vmem:[%s3745 + $0x14] sm:$0xf]
        %v3752 = vld [vmem:[%s3745 + $0x18] sm:$0xf]
        %v3753 = vld [vmem:[%s3745 + $0x1c] sm:$0xf]
        %v3754 = vld [vmem:[%s3745 + $0x20] sm:$0xf]
        %v3755 = vld [vmem:[%s3745 + $0x24] sm:$0xf]
        %v3756 = vld [vmem:[%s3745 + $0x28] sm:$0xf]
        %v3757 = vld [vmem:[%s3745 + $0x2c] sm:$0xf]
        %v3758 = vld [vmem:[%s3745 + $0x30] sm:$0xf]
        %v3759 = vld [vmem:[%s3745 + $0x34] sm:$0xf]
        %v3760 = vld [vmem:[%s3745 + $0x38] sm:$0xf]
        %v3761 = vld [vmem:[%s3745 + $0x3c] sm:$0xf]
        %v3778 = vunpack.c.l.b16 %v3746
        %v3779 = vunpack.c.l.b16 %v3747
        %v3780 = vunpack.c.l.b16 %v3748
        %v3781 = vunpack.c.l.b16 %v3749
        %v3782 = vunpack.c.l.b16 %v3750
        %v3783 = vunpack.c.l.b16 %v3751
        %v3784 = vunpack.c.l.b16 %v3752
        %v3785 = vunpack.c.l.b16 %v3753
        %v3786 = vunpack.c.l.b16 %v3754
        %v3787 = vunpack.c.l.b16 %v3755
        %v3788 = vunpack.c.l.b16 %v3756
        %v3789 = vunpack.c.l.b16 %v3757
        %v3790 = vunpack.c.l.b16 %v3758
        %v3791 = vunpack.c.l.b16 %v3759
        %v3792 = vunpack.c.l.b16 %v3760
        %v3793 = vunpack.c.l.b16 %v3761
        %v3794 = vpack.c.b16 %v3779, %v3778
        %v3795 = vpack.c.b16 %v3781, %v3780
        %v3796 = vpack.c.b16 %v3783, %v3782
        %v3797 = vpack.c.b16 %v3785, %v3784
        %v3798 = vpack.c.b16 %v3787, %v3786
        %v3799 = vpack.c.b16 %v3789, %v3788
        %v3800 = vpack.c.b16 %v3791, %v3790
        %v3801 = vpack.c.b16 %v3793, %v3792
        %3810 = vmatprep.subr.bf16.mxu0 0
        %3811 = vmatpush1.bf16.msra.mxu0 %v3801
        %3812 = vmatprep.subr.bf16.mxu0 0
        %3813 = vmatpush1.bf16.msra.mxu0 %v3800
        %3814 = vmatprep.subr.bf16.mxu0 0
        %3815 = vmatpush1.bf16.msra.mxu0 %v3799
        %3816 = vmatprep.subr.bf16.mxu0 0
        %3817 = vmatpush1.bf16.msra.mxu0 %v3798
        %3818 = vmatprep.subr.bf16.mxu0 0
        %3819 = vmatpush1.bf16.msra.mxu0 %v3797
        %3820 = vmatprep.subr.bf16.mxu0 0
        %3821 = vmatpush1.bf16.msra.mxu0 %v3796
        %3822 = vmatprep.subr.bf16.mxu0 0
        %3823 = vmatpush1.bf16.msra.mxu0 %v3795
        %3824 = vmatprep.subr.bf16.mxu0 0
        %3825 = vmatpush1.bf16.msra.mxu0 %v3794
        %3826 = vmatprep.subr.bf16.mxu0 0
        %3827 = vmatpush2.bf16.msra.mxu0 0
        %3828 = vmatprep.subr.bf16.mxu0 0
        %3829 = vmatpush2.bf16.msra.mxu0 0
        %3830 = vmatprep.subr.bf16.mxu0 0
        %3831 = vmatpush2.bf16.msra.mxu0 0
        %3832 = vmatprep.subr.bf16.mxu0 0
        %3833 = vmatpush2.bf16.msra.mxu0 0
        %3834 = vmatprep.subr.bf16.mxu0 0
        %3835 = vmatpush2.bf16.msra.mxu0 0
        %3836 = vmatprep.subr.bf16.mxu0 0
        %3837 = vmatpush2.bf16.msra.mxu0 0
        %3838 = vmatprep.subr.bf16.mxu0 0
        %3839 = vmatpush2.bf16.msra.mxu0 0
        %3840 = vmatprep.subr.bf16.mxu0 0
        %3841 = vmatpush2.bf16.msra.mxu0 0
        %3842 = vmatprep.mubr.bf16.mxu0 0
        %3843 = vmatmul.mubr.bf16.gmra.mxu0 %v3744
        %v3844 = vpop.f32.mrf.mxu0
        %v3845 = vadd.f32 0.0, %v3844
        %v3846 = vpop.f32.mrf.mxu0
        %v3847 = vpop.f32.mrf.mxu0
        %v3848 = vpop.f32.mrf.mxu0
        %3849 = vdwg.mxu0
        %v3866 = vunpack.c.l.b16 %v3727
        %v3867 = vunpack.c.l.b16 %v3728
        %v3868 = vunpack.c.l.b16 %v3729
        %v3869 = vunpack.c.l.b16 %v3730
        %v3870 = vunpack.c.l.b16 %v3731
        %v3871 = vunpack.c.l.b16 %v3732
        %v3872 = vunpack.c.l.b16 %v3733
        %v3873 = vunpack.c.l.b16 %v3734
        %v3874 = vunpack.c.l.b16 %v3735
        %v3875 = vunpack.c.l.b16 %v3736
        %v3876 = vunpack.c.l.b16 %v3737
        %v3877 = vunpack.c.l.b16 %v3738
        %v3878 = vunpack.c.l.b16 %v3739
        %v3879 = vunpack.c.l.b16 %v3740
        %v3880 = vunpack.c.l.b16 %v3741
        %v3881 = vunpack.c.l.b16 %v3742
        %v3882 = vpack.c.b16 %v3867, %v3866
        %v3883 = vpack.c.b16 %v3869, %v3868
        %v3884 = vpack.c.b16 %v3871, %v3870
        %v3885 = vpack.c.b16 %v3873, %v3872
        %v3886 = vpack.c.b16 %v3875, %v3874
        %v3887 = vpack.c.b16 %v3877, %v3876
        %v3888 = vpack.c.b16 %v3879, %v3878
        %v3889 = vpack.c.b16 %v3881, %v3880
        %3898 = vmatprep.subr.bf16.mxu0 0
        %3899 = vmatpush1.bf16.msra.mxu0 %v3889
        %3900 = vmatprep.subr.bf16.mxu0 0
        %3901 = vmatpush1.bf16.msra.mxu0 %v3888
        %3902 = vmatprep.subr.bf16.mxu0 0
        %3903 = vmatpush1.bf16.msra.mxu0 %v3887
        %3904 = vmatprep.subr.bf16.mxu0 0
        %3905 = vmatpush1.bf16.msra.mxu0 %v3886
        %3906 = vmatprep.subr.bf16.mxu0 0
        %3907 = vmatpush1.bf16.msra.mxu0 %v3885
        %3908 = vmatprep.subr.bf16.mxu0 0
        %3909 = vmatpush1.bf16.msra.mxu0 %v3884
        %3910 = vmatprep.subr.bf16.mxu0 0
        %3911 = vmatpush1.bf16.msra.mxu0 %v3883
        %3912 = vmatprep.subr.bf16.mxu0 0
        %3913 = vmatpush1.bf16.msra.mxu0 %v3882
        %3914 = vmatprep.subr.bf16.mxu0 0
        %3915 = vmatpush2.bf16.msra.mxu0 0
        %3916 = vmatprep.subr.bf16.mxu0 0
        %3917 = vmatpush2.bf16.msra.mxu0 0
        %3918 = vmatprep.subr.bf16.mxu0 0
        %3919 = vmatpush2.bf16.msra.mxu0 0
        %3920 = vmatprep.subr.bf16.mxu0 0
        %3921 = vmatpush2.bf16.msra.mxu0 0
        %3922 = vmatprep.subr.bf16.mxu0 0
        %3923 = vmatpush2.bf16.msra.mxu0 0
        %3924 = vmatprep.subr.bf16.mxu0 0
        %3925 = vmatpush2.bf16.msra.mxu0 0
        %3926 = vmatprep.subr.bf16.mxu0 0
        %3927 = vmatpush2.bf16.msra.mxu0 0
        %3928 = vmatprep.subr.bf16.mxu0 0
        %3929 = vmatpush2.bf16.msra.mxu0 0
        %3930 = vmatprep.mubr.bf16.mxu0 0
        %3931 = vmatmul.mubr.bf16.gmra.mxu0 %v3725
        %v3932 = vpop.f32.mrf.mxu0
        %v3933 = vadd.f32 %v3845, %v3932
        %v3934 = vpop.f32.mrf.mxu0
        %v3935 = vpop.f32.mrf.mxu0
        %v3936 = vpop.f32.mrf.mxu0
        %3937 = vdwg.mxu0
        %v3938 = vld [vmem:[#allocation14 + $0x2] sm:$0xf]
        %v3939 = vpack.c.bf16 %v3938, %v3938
        %s3940 = scalar_lea.vmem [#allocation23], 1920
        %v3941 = vld [vmem:[%s3940] sm:$0xf]
        %v3942 = vld [vmem:[%s3940 + $0x4] sm:$0xf]
        %v3943 = vld [vmem:[%s3940 + $0x8] sm:$0xf]
        %v3944 = vld [vmem:[%s3940 + $0xc] sm:$0xf]
        %v3945 = vld [vmem:[%s3940 + $0x10] sm:$0xf]
        %v3946 = vld [vmem:[%s3940 + $0x14] sm:$0xf]
        %v3947 = vld [vmem:[%s3940 + $0x18] sm:$0xf]
        %v3948 = vld [vmem:[%s3940 + $0x1c] sm:$0xf]
        %v3949 = vld [vmem:[%s3940 + $0x20] sm:$0xf]
        %v3950 = vld [vmem:[%s3940 + $0x24] sm:$0xf]
        %v3951 = vld [vmem:[%s3940 + $0x28] sm:$0xf]
        %v3952 = vld [vmem:[%s3940 + $0x2c] sm:$0xf]
        %v3953 = vld [vmem:[%s3940 + $0x30] sm:$0xf]
        %v3954 = vld [vmem:[%s3940 + $0x34] sm:$0xf]
        %v3955 = vld [vmem:[%s3940 + $0x38] sm:$0xf]
        %v3956 = vld [vmem:[%s3940 + $0x3c] sm:$0xf]
        %v3973 = vunpack.c.l.b16 %v3941
        %v3974 = vunpack.c.l.b16 %v3942
        %v3975 = vunpack.c.l.b16 %v3943
        %v3976 = vunpack.c.l.b16 %v3944
        %v3977 = vunpack.c.l.b16 %v3945
        %v3978 = vunpack.c.l.b16 %v3946
        %v3979 = vunpack.c.l.b16 %v3947
        %v3980 = vunpack.c.l.b16 %v3948
        %v3981 = vunpack.c.l.b16 %v3949
        %v3982 = vunpack.c.l.b16 %v3950
        %v3983 = vunpack.c.l.b16 %v3951
        %v3984 = vunpack.c.l.b16 %v3952
        %v3985 = vunpack.c.l.b16 %v3953
        %v3986 = vunpack.c.l.b16 %v3954
        %v3987 = vunpack.c.l.b16 %v3955
        %v3988 = vunpack.c.l.b16 %v3956
        %v3989 = vpack.c.b16 %v3974, %v3973
        %v3990 = vpack.c.b16 %v3976, %v3975
        %v3991 = vpack.c.b16 %v3978, %v3977
        %v3992 = vpack.c.b16 %v3980, %v3979
        %v3993 = vpack.c.b16 %v3982, %v3981
        %v3994 = vpack.c.b16 %v3984, %v3983
        %v3995 = vpack.c.b16 %v3986, %v3985
        %v3996 = vpack.c.b16 %v3988, %v3987
        %4005 = vmatprep.subr.bf16.mxu0 0
        %4006 = vmatpush1.bf16.msra.mxu0 %v3996
        %4007 = vmatprep.subr.bf16.mxu0 0
        %4008 = vmatpush1.bf16.msra.mxu0 %v3995
        %4009 = vmatprep.subr.bf16.mxu0 0
        %4010 = vmatpush1.bf16.msra.mxu0 %v3994
        %4011 = vmatprep.subr.bf16.mxu0 0
        %4012 = vmatpush1.bf16.msra.mxu0 %v3993
        %4013 = vmatprep.subr.bf16.mxu0 0
        %4014 = vmatpush1.bf16.msra.mxu0 %v3992
        %4015 = vmatprep.subr.bf16.mxu0 0
        %4016 = vmatpush1.bf16.msra.mxu0 %v3991
        %4017 = vmatprep.subr.bf16.mxu0 0
        %4018 = vmatpush1.bf16.msra.mxu0 %v3990
        %4019 = vmatprep.subr.bf16.mxu0 0
        %4020 = vmatpush1.bf16.msra.mxu0 %v3989
        %4021 = vmatprep.subr.bf16.mxu0 0
        %4022 = vmatpush2.bf16.msra.mxu0 0
        %4023 = vmatprep.subr.bf16.mxu0 0
        %4024 = vmatpush2.bf16.msra.mxu0 0
        %4025 = vmatprep.subr.bf16.mxu0 0
        %4026 = vmatpush2.bf16.msra.mxu0 0
        %4027 = vmatprep.subr.bf16.mxu0 0
        %4028 = vmatpush2.bf16.msra.mxu0 0
        %4029 = vmatprep.subr.bf16.mxu0 0
        %4030 = vmatpush2.bf16.msra.mxu0 0
        %4031 = vmatprep.subr.bf16.mxu0 0
        %4032 = vmatpush2.bf16.msra.mxu0 0
        %4033 = vmatprep.subr.bf16.mxu0 0
        %4034 = vmatpush2.bf16.msra.mxu0 0
        %4035 = vmatprep.subr.bf16.mxu0 0
        %4036 = vmatpush2.bf16.msra.mxu0 0
        %4037 = vmatprep.mubr.bf16.mxu0 0
        %4038 = vmatmul.mubr.bf16.gmra.mxu0 %v3939
        %v4039 = vpop.f32.mrf.mxu0
        %v4040 = vadd.f32 0.0, %v4039
        %v4041 = vpop.f32.mrf.mxu0
        %v4042 = vpop.f32.mrf.mxu0
        %v4043 = vpop.f32.mrf.mxu0
        %4044 = vdwg.mxu0
        %v4045 = vadd.f32 %v3933, %v4040
        %v4046 = vld [vmem:[#allocation28 + $0xc] sm:$0x1]
        %v4047 = vlaneseq
        %v4048 = vshrl.u32 %v4047, 7
        %v4049 = vsub.s32 0, %v4048
        %v4050 = vrot.slane %v4046, %v4049
        %v4051 = vadd.f32 %v4045, %v4050
        %v4052 = vld [vmem:[#allocation13] sm:$0xf]
        %v4053 = vadd.f32 %v4051, %v4052
        %v4054 = vmax.f32 %v4053, 0.0
        %4055 = vst [vmem:[#allocation15 + $0x1] sm:$0xf] %v4054
        %v4056 = vld [vmem:[#allocation15] sm:$0xf]
        %v4057 = vpack.c.bf16 %v4056, %v4056
        %s4058 = scalar_lea.vmem [#allocation23], 1984
        %v4059 = vld [vmem:[%s4058] sm:$0xf]
        %v4060 = vld [vmem:[%s4058 + $0x4] sm:$0xf]
        %v4061 = vld [vmem:[%s4058 + $0x8] sm:$0xf]
        %v4062 = vld [vmem:[%s4058 + $0xc] sm:$0xf]
        %v4063 = vld [vmem:[%s4058 + $0x10] sm:$0xf]
        %v4064 = vld [vmem:[%s4058 + $0x14] sm:$0xf]
        %v4065 = vld [vmem:[%s4058 + $0x18] sm:$0xf]
        %v4066 = vld [vmem:[%s4058 + $0x1c] sm:$0xf]
        %v4067 = vld [vmem:[%s4058 + $0x20] sm:$0xf]
        %v4068 = vld [vmem:[%s4058 + $0x24] sm:$0xf]
        %v4069 = vld [vmem:[%s4058 + $0x28] sm:$0xf]
        %v4070 = vld [vmem:[%s4058 + $0x2c] sm:$0xf]
        %v4071 = vld [vmem:[%s4058 + $0x30] sm:$0xf]
        %v4072 = vld [vmem:[%s4058 + $0x34] sm:$0xf]
        %v4073 = vld [vmem:[%s4058 + $0x38] sm:$0xf]
        %v4074 = vld [vmem:[%s4058 + $0x3c] sm:$0xf]
        %v4075 = vld [vmem:[#allocation15 + $0x1] sm:$0xf]
        %v4076 = vpack.c.bf16 %v4075, %v4075
        %s4077 = scalar_lea.vmem [#allocation23], 2048
        %v4078 = vld [vmem:[%s4077] sm:$0xf]
        %v4079 = vld [vmem:[%s4077 + $0x4] sm:$0xf]
        %v4080 = vld [vmem:[%s4077 + $0x8] sm:$0xf]
        %v4081 = vld [vmem:[%s4077 + $0xc] sm:$0xf]
        %v4082 = vld [vmem:[%s4077 + $0x10] sm:$0xf]
        %v4083 = vld [vmem:[%s4077 + $0x14] sm:$0xf]
        %v4084 = vld [vmem:[%s4077 + $0x18] sm:$0xf]
        %v4085 = vld [vmem:[%s4077 + $0x1c] sm:$0xf]
        %v4086 = vld [vmem:[%s4077 + $0x20] sm:$0xf]
        %v4087 = vld [vmem:[%s4077 + $0x24] sm:$0xf]
        %v4088 = vld [vmem:[%s4077 + $0x28] sm:$0xf]
        %v4089 = vld [vmem:[%s4077 + $0x2c] sm:$0xf]
        %v4090 = vld [vmem:[%s4077 + $0x30] sm:$0xf]
        %v4091 = vld [vmem:[%s4077 + $0x34] sm:$0xf]
        %v4092 = vld [vmem:[%s4077 + $0x38] sm:$0xf]
        %v4093 = vld [vmem:[%s4077 + $0x3c] sm:$0xf]
        %v4110 = vunpack.c.l.b16 %v4078
        %v4111 = vunpack.c.l.b16 %v4079
        %v4112 = vunpack.c.l.b16 %v4080
        %v4113 = vunpack.c.l.b16 %v4081
        %v4114 = vunpack.c.l.b16 %v4082
        %v4115 = vunpack.c.l.b16 %v4083
        %v4116 = vunpack.c.l.b16 %v4084
        %v4117 = vunpack.c.l.b16 %v4085
        %v4118 = vunpack.c.l.b16 %v4086
        %v4119 = vunpack.c.l.b16 %v4087
        %v4120 = vunpack.c.l.b16 %v4088
        %v4121 = vunpack.c.l.b16 %v4089
        %v4122 = vunpack.c.l.b16 %v4090
        %v4123 = vunpack.c.l.b16 %v4091
        %v4124 = vunpack.c.l.b16 %v4092
        %v4125 = vunpack.c.l.b16 %v4093
        %v4126 = vpack.c.b16 %v4111, %v4110
        %v4127 = vpack.c.b16 %v4113, %v4112
        %v4128 = vpack.c.b16 %v4115, %v4114
        %v4129 = vpack.c.b16 %v4117, %v4116
        %v4130 = vpack.c.b16 %v4119, %v4118
        %v4131 = vpack.c.b16 %v4121, %v4120
        %v4132 = vpack.c.b16 %v4123, %v4122
        %v4133 = vpack.c.b16 %v4125, %v4124
        %4142 = vmatprep.subr.bf16.mxu0 0
        %4143 = vmatpush1.bf16.msra.mxu0 %v4133
        %4144 = vmatprep.subr.bf16.mxu0 0
        %4145 = vmatpush1.bf16.msra.mxu0 %v4132
        %4146 = vmatprep.subr.bf16.mxu0 0
        %4147 = vmatpush1.bf16.msra.mxu0 %v4131
        %4148 = vmatprep.subr.bf16.mxu0 0
        %4149 = vmatpush1.bf16.msra.mxu0 %v4130
        %4150 = vmatprep.subr.bf16.mxu0 0
        %4151 = vmatpush1.bf16.msra.mxu0 %v4129
        %4152 = vmatprep.subr.bf16.mxu0 0
        %4153 = vmatpush1.bf16.msra.mxu0 %v4128
        %4154 = vmatprep.subr.bf16.mxu0 0
        %4155 = vmatpush1.bf16.msra.mxu0 %v4127
        %4156 = vmatprep.subr.bf16.mxu0 0
        %4157 = vmatpush1.bf16.msra.mxu0 %v4126
        %4158 = vmatprep.subr.bf16.mxu0 0
        %4159 = vmatpush2.bf16.msra.mxu0 0
        %4160 = vmatprep.subr.bf16.mxu0 0
        %4161 = vmatpush2.bf16.msra.mxu0 0
        %4162 = vmatprep.subr.bf16.mxu0 0
        %4163 = vmatpush2.bf16.msra.mxu0 0
        %4164 = vmatprep.subr.bf16.mxu0 0
        %4165 = vmatpush2.bf16.msra.mxu0 0
        %4166 = vmatprep.subr.bf16.mxu0 0
        %4167 = vmatpush2.bf16.msra.mxu0 0
        %4168 = vmatprep.subr.bf16.mxu0 0
        %4169 = vmatpush2.bf16.msra.mxu0 0
        %4170 = vmatprep.subr.bf16.mxu0 0
        %4171 = vmatpush2.bf16.msra.mxu0 0
        %4172 = vmatprep.subr.bf16.mxu0 0
        %4173 = vmatpush2.bf16.msra.mxu0 0
        %4174 = vmatprep.mubr.bf16.mxu0 0
        %4175 = vmatmul.mubr.bf16.gmra.mxu0 %v4076
        %v4176 = vpop.f32.mrf.mxu0
        %v4177 = vadd.f32 0.0, %v4176
        %v4178 = vpop.f32.mrf.mxu0
        %v4179 = vpop.f32.mrf.mxu0
        %v4180 = vpop.f32.mrf.mxu0
        %4181 = vdwg.mxu0
        %v4198 = vunpack.c.l.b16 %v4059
        %v4199 = vunpack.c.l.b16 %v4060
        %v4200 = vunpack.c.l.b16 %v4061
        %v4201 = vunpack.c.l.b16 %v4062
        %v4202 = vunpack.c.l.b16 %v4063
        %v4203 = vunpack.c.l.b16 %v4064
        %v4204 = vunpack.c.l.b16 %v4065
        %v4205 = vunpack.c.l.b16 %v4066
        %v4206 = vunpack.c.l.b16 %v4067
        %v4207 = vunpack.c.l.b16 %v4068
        %v4208 = vunpack.c.l.b16 %v4069
        %v4209 = vunpack.c.l.b16 %v4070
        %v4210 = vunpack.c.l.b16 %v4071
        %v4211 = vunpack.c.l.b16 %v4072
        %v4212 = vunpack.c.l.b16 %v4073
        %v4213 = vunpack.c.l.b16 %v4074
        %v4214 = vpack.c.b16 %v4199, %v4198
        %v4215 = vpack.c.b16 %v4201, %v4200
        %v4216 = vpack.c.b16 %v4203, %v4202
        %v4217 = vpack.c.b16 %v4205, %v4204
        %v4218 = vpack.c.b16 %v4207, %v4206
        %v4219 = vpack.c.b16 %v4209, %v4208
        %v4220 = vpack.c.b16 %v4211, %v4210
        %v4221 = vpack.c.b16 %v4213, %v4212
        %4230 = vmatprep.subr.bf16.mxu0 0
        %4231 = vmatpush1.bf16.msra.mxu0 %v4221
        %4232 = vmatprep.subr.bf16.mxu0 0
        %4233 = vmatpush1.bf16.msra.mxu0 %v4220
        %4234 = vmatprep.subr.bf16.mxu0 0
        %4235 = vmatpush1.bf16.msra.mxu0 %v4219
        %4236 = vmatprep.subr.bf16.mxu0 0
        %4237 = vmatpush1.bf16.msra.mxu0 %v4218
        %4238 = vmatprep.subr.bf16.mxu0 0
        %4239 = vmatpush1.bf16.msra.mxu0 %v4217
        %4240 = vmatprep.subr.bf16.mxu0 0
        %4241 = vmatpush1.bf16.msra.mxu0 %v4216
        %4242 = vmatprep.subr.bf16.mxu0 0
        %4243 = vmatpush1.bf16.msra.mxu0 %v4215
        %4244 = vmatprep.subr.bf16.mxu0 0
        %4245 = vmatpush1.bf16.msra.mxu0 %v4214
        %4246 = vmatprep.subr.bf16.mxu0 0
        %4247 = vmatpush2.bf16.msra.mxu0 0
        %4248 = vmatprep.subr.bf16.mxu0 0
        %4249 = vmatpush2.bf16.msra.mxu0 0
        %4250 = vmatprep.subr.bf16.mxu0 0
        %4251 = vmatpush2.bf16.msra.mxu0 0
        %4252 = vmatprep.subr.bf16.mxu0 0
        %4253 = vmatpush2.bf16.msra.mxu0 0
        %4254 = vmatprep.subr.bf16.mxu0 0
        %4255 = vmatpush2.bf16.msra.mxu0 0
        %4256 = vmatprep.subr.bf16.mxu0 0
        %4257 = vmatpush2.bf16.msra.mxu0 0
        %4258 = vmatprep.subr.bf16.mxu0 0
        %4259 = vmatpush2.bf16.msra.mxu0 0
        %4260 = vmatprep.subr.bf16.mxu0 0
        %4261 = vmatpush2.bf16.msra.mxu0 0
        %4262 = vmatprep.mubr.bf16.mxu0 0
        %4263 = vmatmul.mubr.bf16.gmra.mxu0 %v4057
        %v4264 = vpop.f32.mrf.mxu0
        %v4265 = vadd.f32 %v4177, %v4264
        %v4266 = vpop.f32.mrf.mxu0
        %v4267 = vpop.f32.mrf.mxu0
        %v4268 = vpop.f32.mrf.mxu0
        %4269 = vdwg.mxu0
        %v4270 = vld [vmem:[#allocation15 + $0x2] sm:$0xf]
        %v4271 = vpack.c.bf16 %v4270, %v4270
        %s4272 = scalar_lea.vmem [#allocation23], 2112
        %v4273 = vld [vmem:[%s4272] sm:$0xf]
        %v4274 = vld [vmem:[%s4272 + $0x4] sm:$0xf]
        %v4275 = vld [vmem:[%s4272 + $0x8] sm:$0xf]
        %v4276 = vld [vmem:[%s4272 + $0xc] sm:$0xf]
        %v4277 = vld [vmem:[%s4272 + $0x10] sm:$0xf]
        %v4278 = vld [vmem:[%s4272 + $0x14] sm:$0xf]
        %v4279 = vld [vmem:[%s4272 + $0x18] sm:$0xf]
        %v4280 = vld [vmem:[%s4272 + $0x1c] sm:$0xf]
        %v4281 = vld [vmem:[%s4272 + $0x20] sm:$0xf]
        %v4282 = vld [vmem:[%s4272 + $0x24] sm:$0xf]
        %v4283 = vld [vmem:[%s4272 + $0x28] sm:$0xf]
        %v4284 = vld [vmem:[%s4272 + $0x2c] sm:$0xf]
        %v4285 = vld [vmem:[%s4272 + $0x30] sm:$0xf]
        %v4286 = vld [vmem:[%s4272 + $0x34] sm:$0xf]
        %v4287 = vld [vmem:[%s4272 + $0x38] sm:$0xf]
        %v4288 = vld [vmem:[%s4272 + $0x3c] sm:$0xf]
        %v4305 = vunpack.c.l.b16 %v4273
        %v4306 = vunpack.c.l.b16 %v4274
        %v4307 = vunpack.c.l.b16 %v4275
        %v4308 = vunpack.c.l.b16 %v4276
        %v4309 = vunpack.c.l.b16 %v4277
        %v4310 = vunpack.c.l.b16 %v4278
        %v4311 = vunpack.c.l.b16 %v4279
        %v4312 = vunpack.c.l.b16 %v4280
        %v4313 = vunpack.c.l.b16 %v4281
        %v4314 = vunpack.c.l.b16 %v4282
        %v4315 = vunpack.c.l.b16 %v4283
        %v4316 = vunpack.c.l.b16 %v4284
        %v4317 = vunpack.c.l.b16 %v4285
        %v4318 = vunpack.c.l.b16 %v4286
        %v4319 = vunpack.c.l.b16 %v4287
        %v4320 = vunpack.c.l.b16 %v4288
        %v4321 = vpack.c.b16 %v4306, %v4305
        %v4322 = vpack.c.b16 %v4308, %v4307
        %v4323 = vpack.c.b16 %v4310, %v4309
        %v4324 = vpack.c.b16 %v4312, %v4311
        %v4325 = vpack.c.b16 %v4314, %v4313
        %v4326 = vpack.c.b16 %v4316, %v4315
        %v4327 = vpack.c.b16 %v4318, %v4317
        %v4328 = vpack.c.b16 %v4320, %v4319
        %4337 = vmatprep.subr.bf16.mxu0 0
        %4338 = vmatpush1.bf16.msra.mxu0 %v4328
        %4339 = vmatprep.subr.bf16.mxu0 0
        %4340 = vmatpush1.bf16.msra.mxu0 %v4327
        %4341 = vmatprep.subr.bf16.mxu0 0
        %4342 = vmatpush1.bf16.msra.mxu0 %v4326
        %4343 = vmatprep.subr.bf16.mxu0 0
        %4344 = vmatpush1.bf16.msra.mxu0 %v4325
        %4345 = vmatprep.subr.bf16.mxu0 0
        %4346 = vmatpush1.bf16.msra.mxu0 %v4324
        %4347 = vmatprep.subr.bf16.mxu0 0
        %4348 = vmatpush1.bf16.msra.mxu0 %v4323
        %4349 = vmatprep.subr.bf16.mxu0 0
        %4350 = vmatpush1.bf16.msra.mxu0 %v4322
        %4351 = vmatprep.subr.bf16.mxu0 0
        %4352 = vmatpush1.bf16.msra.mxu0 %v4321
        %4353 = vmatprep.subr.bf16.mxu0 0
        %4354 = vmatpush2.bf16.msra.mxu0 0
        %4355 = vmatprep.subr.bf16.mxu0 0
        %4356 = vmatpush2.bf16.msra.mxu0 0
        %4357 = vmatprep.subr.bf16.mxu0 0
        %4358 = vmatpush2.bf16.msra.mxu0 0
        %4359 = vmatprep.subr.bf16.mxu0 0
        %4360 = vmatpush2.bf16.msra.mxu0 0
        %4361 = vmatprep.subr.bf16.mxu0 0
        %4362 = vmatpush2.bf16.msra.mxu0 0
        %4363 = vmatprep.subr.bf16.mxu0 0
        %4364 = vmatpush2.bf16.msra.mxu0 0
        %4365 = vmatprep.subr.bf16.mxu0 0
        %4366 = vmatpush2.bf16.msra.mxu0 0
        %4367 = vmatprep.subr.bf16.mxu0 0
        %4368 = vmatpush2.bf16.msra.mxu0 0
        %4369 = vmatprep.mubr.bf16.mxu0 0
        %4370 = vmatmul.mubr.bf16.gmra.mxu0 %v4271
        %v4371 = vpop.f32.mrf.mxu0
        %v4372 = vadd.f32 0.0, %v4371
        %v4373 = vpop.f32.mrf.mxu0
        %v4374 = vpop.f32.mrf.mxu0
        %v4375 = vpop.f32.mrf.mxu0
        %4376 = vdwg.mxu0
        %v4377 = vadd.f32 %v4265, %v4372
        %v4378 = vld [vmem:[#allocation28 + $0xd] sm:$0x1]
        %v4379 = vlaneseq
        %v4380 = vshrl.u32 %v4379, 7
        %v4381 = vsub.s32 0, %v4380
        %v4382 = vrot.slane %v4378, %v4381
        %v4383 = vadd.f32 %v4377, %v4382
        %v4384 = vmax.f32 %v4383, 0.0
        %4385 = vst [vmem:[#allocation16 + $0x1] sm:$0xf] %v4384
        %v4386 = vld [vmem:[#allocation16] sm:$0xf]
        %v4387 = vpack.c.bf16 %v4386, %v4386
        %s4388 = scalar_lea.vmem [#allocation23], 2176
        %v4389 = vld [vmem:[%s4388] sm:$0xf]
        %v4390 = vld [vmem:[%s4388 + $0x4] sm:$0xf]
        %v4391 = vld [vmem:[%s4388 + $0x8] sm:$0xf]
        %v4392 = vld [vmem:[%s4388 + $0xc] sm:$0xf]
        %v4393 = vld [vmem:[%s4388 + $0x10] sm:$0xf]
        %v4394 = vld [vmem:[%s4388 + $0x14] sm:$0xf]
        %v4395 = vld [vmem:[%s4388 + $0x18] sm:$0xf]
        %v4396 = vld [vmem:[%s4388 + $0x1c] sm:$0xf]
        %v4397 = vld [vmem:[%s4388 + $0x20] sm:$0xf]
        %v4398 = vld [vmem:[%s4388 + $0x24] sm:$0xf]
        %v4399 = vld [vmem:[%s4388 + $0x28] sm:$0xf]
        %v4400 = vld [vmem:[%s4388 + $0x2c] sm:$0xf]
        %v4401 = vld [vmem:[%s4388 + $0x30] sm:$0xf]
        %v4402 = vld [vmem:[%s4388 + $0x34] sm:$0xf]
        %v4403 = vld [vmem:[%s4388 + $0x38] sm:$0xf]
        %v4404 = vld [vmem:[%s4388 + $0x3c] sm:$0xf]
        %v4405 = vld [vmem:[#allocation16 + $0x1] sm:$0xf]
        %v4406 = vpack.c.bf16 %v4405, %v4405
        %s4407 = scalar_lea.vmem [#allocation23], 2240
        %v4408 = vld [vmem:[%s4407] sm:$0xf]
        %v4409 = vld [vmem:[%s4407 + $0x4] sm:$0xf]
        %v4410 = vld [vmem:[%s4407 + $0x8] sm:$0xf]
        %v4411 = vld [vmem:[%s4407 + $0xc] sm:$0xf]
        %v4412 = vld [vmem:[%s4407 + $0x10] sm:$0xf]
        %v4413 = vld [vmem:[%s4407 + $0x14] sm:$0xf]
        %v4414 = vld [vmem:[%s4407 + $0x18] sm:$0xf]
        %v4415 = vld [vmem:[%s4407 + $0x1c] sm:$0xf]
        %v4416 = vld [vmem:[%s4407 + $0x20] sm:$0xf]
        %v4417 = vld [vmem:[%s4407 + $0x24] sm:$0xf]
        %v4418 = vld [vmem:[%s4407 + $0x28] sm:$0xf]
        %v4419 = vld [vmem:[%s4407 + $0x2c] sm:$0xf]
        %v4420 = vld [vmem:[%s4407 + $0x30] sm:$0xf]
        %v4421 = vld [vmem:[%s4407 + $0x34] sm:$0xf]
        %v4422 = vld [vmem:[%s4407 + $0x38] sm:$0xf]
        %v4423 = vld [vmem:[%s4407 + $0x3c] sm:$0xf]
        %v4440 = vunpack.c.l.b16 %v4408
        %v4441 = vunpack.c.l.b16 %v4409
        %v4442 = vunpack.c.l.b16 %v4410
        %v4443 = vunpack.c.l.b16 %v4411
        %v4444 = vunpack.c.l.b16 %v4412
        %v4445 = vunpack.c.l.b16 %v4413
        %v4446 = vunpack.c.l.b16 %v4414
        %v4447 = vunpack.c.l.b16 %v4415
        %v4448 = vunpack.c.l.b16 %v4416
        %v4449 = vunpack.c.l.b16 %v4417
        %v4450 = vunpack.c.l.b16 %v4418
        %v4451 = vunpack.c.l.b16 %v4419
        %v4452 = vunpack.c.l.b16 %v4420
        %v4453 = vunpack.c.l.b16 %v4421
        %v4454 = vunpack.c.l.b16 %v4422
        %v4455 = vunpack.c.l.b16 %v4423
        %v4456 = vpack.c.b16 %v4441, %v4440
        %v4457 = vpack.c.b16 %v4443, %v4442
        %v4458 = vpack.c.b16 %v4445, %v4444
        %v4459 = vpack.c.b16 %v4447, %v4446
        %v4460 = vpack.c.b16 %v4449, %v4448
        %v4461 = vpack.c.b16 %v4451, %v4450
        %v4462 = vpack.c.b16 %v4453, %v4452
        %v4463 = vpack.c.b16 %v4455, %v4454
        %4472 = vmatprep.subr.bf16.mxu0 0
        %4473 = vmatpush1.bf16.msra.mxu0 %v4463
        %4474 = vmatprep.subr.bf16.mxu0 0
        %4475 = vmatpush1.bf16.msra.mxu0 %v4462
        %4476 = vmatprep.subr.bf16.mxu0 0
        %4477 = vmatpush1.bf16.msra.mxu0 %v4461
        %4478 = vmatprep.subr.bf16.mxu0 0
        %4479 = vmatpush1.bf16.msra.mxu0 %v4460
        %4480 = vmatprep.subr.bf16.mxu0 0
        %4481 = vmatpush1.bf16.msra.mxu0 %v4459
        %4482 = vmatprep.subr.bf16.mxu0 0
        %4483 = vmatpush1.bf16.msra.mxu0 %v4458
        %4484 = vmatprep.subr.bf16.mxu0 0
        %4485 = vmatpush1.bf16.msra.mxu0 %v4457
        %4486 = vmatprep.subr.bf16.mxu0 0
        %4487 = vmatpush1.bf16.msra.mxu0 %v4456
        %4488 = vmatprep.subr.bf16.mxu0 0
        %4489 = vmatpush2.bf16.msra.mxu0 0
        %4490 = vmatprep.subr.bf16.mxu0 0
        %4491 = vmatpush2.bf16.msra.mxu0 0
        %4492 = vmatprep.subr.bf16.mxu0 0
        %4493 = vmatpush2.bf16.msra.mxu0 0
        %4494 = vmatprep.subr.bf16.mxu0 0
        %4495 = vmatpush2.bf16.msra.mxu0 0
        %4496 = vmatprep.subr.bf16.mxu0 0
        %4497 = vmatpush2.bf16.msra.mxu0 0
        %4498 = vmatprep.subr.bf16.mxu0 0
        %4499 = vmatpush2.bf16.msra.mxu0 0
        %4500 = vmatprep.subr.bf16.mxu0 0
        %4501 = vmatpush2.bf16.msra.mxu0 0
        %4502 = vmatprep.subr.bf16.mxu0 0
        %4503 = vmatpush2.bf16.msra.mxu0 0
        %4504 = vmatprep.mubr.bf16.mxu0 0
        %4505 = vmatmul.mubr.bf16.gmra.mxu0 %v4406
        %v4506 = vpop.f32.mrf.mxu0
        %v4507 = vadd.f32 0.0, %v4506
        %v4508 = vpop.f32.mrf.mxu0
        %v4509 = vpop.f32.mrf.mxu0
        %v4510 = vpop.f32.mrf.mxu0
        %4511 = vdwg.mxu0
        %v4528 = vunpack.c.l.b16 %v4389
        %v4529 = vunpack.c.l.b16 %v4390
        %v4530 = vunpack.c.l.b16 %v4391
        %v4531 = vunpack.c.l.b16 %v4392
        %v4532 = vunpack.c.l.b16 %v4393
        %v4533 = vunpack.c.l.b16 %v4394
        %v4534 = vunpack.c.l.b16 %v4395
        %v4535 = vunpack.c.l.b16 %v4396
        %v4536 = vunpack.c.l.b16 %v4397
        %v4537 = vunpack.c.l.b16 %v4398
        %v4538 = vunpack.c.l.b16 %v4399
        %v4539 = vunpack.c.l.b16 %v4400
        %v4540 = vunpack.c.l.b16 %v4401
        %v4541 = vunpack.c.l.b16 %v4402
        %v4542 = vunpack.c.l.b16 %v4403
        %v4543 = vunpack.c.l.b16 %v4404
        %v4544 = vpack.c.b16 %v4529, %v4528
        %v4545 = vpack.c.b16 %v4531, %v4530
        %v4546 = vpack.c.b16 %v4533, %v4532
        %v4547 = vpack.c.b16 %v4535, %v4534
        %v4548 = vpack.c.b16 %v4537, %v4536
        %v4549 = vpack.c.b16 %v4539, %v4538
        %v4550 = vpack.c.b16 %v4541, %v4540
        %v4551 = vpack.c.b16 %v4543, %v4542
        %4560 = vmatprep.subr.bf16.mxu0 0
        %4561 = vmatpush1.bf16.msra.mxu0 %v4551
        %4562 = vmatprep.subr.bf16.mxu0 0
        %4563 = vmatpush1.bf16.msra.mxu0 %v4550
        %4564 = vmatprep.subr.bf16.mxu0 0
        %4565 = vmatpush1.bf16.msra.mxu0 %v4549
        %4566 = vmatprep.subr.bf16.mxu0 0
        %4567 = vmatpush1.bf16.msra.mxu0 %v4548
        %4568 = vmatprep.subr.bf16.mxu0 0
        %4569 = vmatpush1.bf16.msra.mxu0 %v4547
        %4570 = vmatprep.subr.bf16.mxu0 0
        %4571 = vmatpush1.bf16.msra.mxu0 %v4546
        %4572 = vmatprep.subr.bf16.mxu0 0
        %4573 = vmatpush1.bf16.msra.mxu0 %v4545
        %4574 = vmatprep.subr.bf16.mxu0 0
        %4575 = vmatpush1.bf16.msra.mxu0 %v4544
        %4576 = vmatprep.subr.bf16.mxu0 0
        %4577 = vmatpush2.bf16.msra.mxu0 0
        %4578 = vmatprep.subr.bf16.mxu0 0
        %4579 = vmatpush2.bf16.msra.mxu0 0
        %4580 = vmatprep.subr.bf16.mxu0 0
        %4581 = vmatpush2.bf16.msra.mxu0 0
        %4582 = vmatprep.subr.bf16.mxu0 0
        %4583 = vmatpush2.bf16.msra.mxu0 0
        %4584 = vmatprep.subr.bf16.mxu0 0
        %4585 = vmatpush2.bf16.msra.mxu0 0
        %4586 = vmatprep.subr.bf16.mxu0 0
        %4587 = vmatpush2.bf16.msra.mxu0 0
        %4588 = vmatprep.subr.bf16.mxu0 0
        %4589 = vmatpush2.bf16.msra.mxu0 0
        %4590 = vmatprep.subr.bf16.mxu0 0
        %4591 = vmatpush2.bf16.msra.mxu0 0
        %4592 = vmatprep.mubr.bf16.mxu0 0
        %4593 = vmatmul.mubr.bf16.gmra.mxu0 %v4387
        %v4594 = vpop.f32.mrf.mxu0
        %v4595 = vadd.f32 %v4507, %v4594
        %v4596 = vpop.f32.mrf.mxu0
        %v4597 = vpop.f32.mrf.mxu0
        %v4598 = vpop.f32.mrf.mxu0
        %4599 = vdwg.mxu0
        %v4600 = vld [vmem:[#allocation16 + $0x2] sm:$0xf]
        %v4601 = vpack.c.bf16 %v4600, %v4600
        %s4602 = scalar_lea.vmem [#allocation23], 2304
        %v4603 = vld [vmem:[%s4602] sm:$0xf]
        %v4604 = vld [vmem:[%s4602 + $0x4] sm:$0xf]
        %v4605 = vld [vmem:[%s4602 + $0x8] sm:$0xf]
        %v4606 = vld [vmem:[%s4602 + $0xc] sm:$0xf]
        %v4607 = vld [vmem:[%s4602 + $0x10] sm:$0xf]
        %v4608 = vld [vmem:[%s4602 + $0x14] sm:$0xf]
        %v4609 = vld [vmem:[%s4602 + $0x18] sm:$0xf]
        %v4610 = vld [vmem:[%s4602 + $0x1c] sm:$0xf]
        %v4611 = vld [vmem:[%s4602 + $0x20] sm:$0xf]
        %v4612 = vld [vmem:[%s4602 + $0x24] sm:$0xf]
        %v4613 = vld [vmem:[%s4602 + $0x28] sm:$0xf]
        %v4614 = vld [vmem:[%s4602 + $0x2c] sm:$0xf]
        %v4615 = vld [vmem:[%s4602 + $0x30] sm:$0xf]
        %v4616 = vld [vmem:[%s4602 + $0x34] sm:$0xf]
        %v4617 = vld [vmem:[%s4602 + $0x38] sm:$0xf]
        %v4618 = vld [vmem:[%s4602 + $0x3c] sm:$0xf]
        %v4635 = vunpack.c.l.b16 %v4603
        %v4636 = vunpack.c.l.b16 %v4604
        %v4637 = vunpack.c.l.b16 %v4605
        %v4638 = vunpack.c.l.b16 %v4606
        %v4639 = vunpack.c.l.b16 %v4607
        %v4640 = vunpack.c.l.b16 %v4608
        %v4641 = vunpack.c.l.b16 %v4609
        %v4642 = vunpack.c.l.b16 %v4610
        %v4643 = vunpack.c.l.b16 %v4611
        %v4644 = vunpack.c.l.b16 %v4612
        %v4645 = vunpack.c.l.b16 %v4613
        %v4646 = vunpack.c.l.b16 %v4614
        %v4647 = vunpack.c.l.b16 %v4615
        %v4648 = vunpack.c.l.b16 %v4616
        %v4649 = vunpack.c.l.b16 %v4617
        %v4650 = vunpack.c.l.b16 %v4618
        %v4651 = vpack.c.b16 %v4636, %v4635
        %v4652 = vpack.c.b16 %v4638, %v4637
        %v4653 = vpack.c.b16 %v4640, %v4639
        %v4654 = vpack.c.b16 %v4642, %v4641
        %v4655 = vpack.c.b16 %v4644, %v4643
        %v4656 = vpack.c.b16 %v4646, %v4645
        %v4657 = vpack.c.b16 %v4648, %v4647
        %v4658 = vpack.c.b16 %v4650, %v4649
        %4667 = vmatprep.subr.bf16.mxu0 0
        %4668 = vmatpush1.bf16.msra.mxu0 %v4658
        %4669 = vmatprep.subr.bf16.mxu0 0
        %4670 = vmatpush1.bf16.msra.mxu0 %v4657
        %4671 = vmatprep.subr.bf16.mxu0 0
        %4672 = vmatpush1.bf16.msra.mxu0 %v4656
        %4673 = vmatprep.subr.bf16.mxu0 0
        %4674 = vmatpush1.bf16.msra.mxu0 %v4655
        %4675 = vmatprep.subr.bf16.mxu0 0
        %4676 = vmatpush1.bf16.msra.mxu0 %v4654
        %4677 = vmatprep.subr.bf16.mxu0 0
        %4678 = vmatpush1.bf16.msra.mxu0 %v4653
        %4679 = vmatprep.subr.bf16.mxu0 0
        %4680 = vmatpush1.bf16.msra.mxu0 %v4652
        %4681 = vmatprep.subr.bf16.mxu0 0
        %4682 = vmatpush1.bf16.msra.mxu0 %v4651
        %4683 = vmatprep.subr.bf16.mxu0 0
        %4684 = vmatpush2.bf16.msra.mxu0 0
        %4685 = vmatprep.subr.bf16.mxu0 0
        %4686 = vmatpush2.bf16.msra.mxu0 0
        %4687 = vmatprep.subr.bf16.mxu0 0
        %4688 = vmatpush2.bf16.msra.mxu0 0
        %4689 = vmatprep.subr.bf16.mxu0 0
        %4690 = vmatpush2.bf16.msra.mxu0 0
        %4691 = vmatprep.subr.bf16.mxu0 0
        %4692 = vmatpush2.bf16.msra.mxu0 0
        %4693 = vmatprep.subr.bf16.mxu0 0
        %4694 = vmatpush2.bf16.msra.mxu0 0
        %4695 = vmatprep.subr.bf16.mxu0 0
        %4696 = vmatpush2.bf16.msra.mxu0 0
        %4697 = vmatprep.subr.bf16.mxu0 0
        %4698 = vmatpush2.bf16.msra.mxu0 0
        %4699 = vmatprep.mubr.bf16.mxu0 0
        %4700 = vmatmul.mubr.bf16.gmra.mxu0 %v4601
        %v4701 = vpop.f32.mrf.mxu0
        %v4702 = vadd.f32 0.0, %v4701
        %v4703 = vpop.f32.mrf.mxu0
        %v4704 = vpop.f32.mrf.mxu0
        %v4705 = vpop.f32.mrf.mxu0
        %4706 = vdwg.mxu0
        %v4707 = vadd.f32 %v4595, %v4702
        %v4708 = vld [vmem:[#allocation28 + $0xe] sm:$0x1]
        %v4709 = vlaneseq
        %v4710 = vshrl.u32 %v4709, 7
        %v4711 = vsub.s32 0, %v4710
        %v4712 = vrot.slane %v4708, %v4711
        %v4713 = vadd.f32 %v4707, %v4712
        %v4714 = vld [vmem:[#allocation15 + $0x1] sm:$0xf]
        %v4715 = vadd.f32 %v4713, %v4714
        %v4716 = vmax.f32 %v4715, 0.0
        %4717 = vst [vmem:[#allocation17 + $0x1] sm:$0xf] %v4716
        %v4718 = vld [vmem:[#allocation17] ss:$2 sm:$0x3]
        %v4719 = vpack.c.bf16 %v4718, %v4718
        %s4720 = scalar_lea.vmem [#allocation23], 2368
        %v4721 = vld [vmem:[%s4720] sm:$0xf]
        %v4722 = vld [vmem:[%s4720 + $0x4] sm:$0xf]
        %v4723 = vld [vmem:[%s4720 + $0x8] sm:$0xf]
        %v4724 = vld [vmem:[%s4720 + $0xc] sm:$0xf]
        %v4725 = vld [vmem:[%s4720 + $0x10] sm:$0xf]
        %v4726 = vld [vmem:[%s4720 + $0x14] sm:$0xf]
        %v4727 = vld [vmem:[%s4720 + $0x18] sm:$0xf]
        %v4728 = vld [vmem:[%s4720 + $0x1c] sm:$0xf]
        %v4729 = vld [vmem:[%s4720 + $0x20] sm:$0xf]
        %v4730 = vld [vmem:[%s4720 + $0x24] sm:$0xf]
        %v4731 = vld [vmem:[%s4720 + $0x28] sm:$0xf]
        %v4732 = vld [vmem:[%s4720 + $0x2c] sm:$0xf]
        %v4733 = vld [vmem:[%s4720 + $0x30] sm:$0xf]
        %v4734 = vld [vmem:[%s4720 + $0x34] sm:$0xf]
        %v4735 = vld [vmem:[%s4720 + $0x38] sm:$0xf]
        %v4736 = vld [vmem:[%s4720 + $0x3c] sm:$0xf]
        %s4737 = scalar_lea.vmem [#allocation17], 1
        %v4738 = vld [vmem:[%s4737] ss:$2 sm:$0x3]
        %v4739 = vpack.c.bf16 %v4738, %v4738
        %s4740 = scalar_lea.vmem [#allocation26], 256
        %v4741 = vld [vmem:[%s4740] sm:$0xff]
        %v4742 = vld [vmem:[%s4740 + $0x8] sm:$0xff]
        %v4743 = vld [vmem:[%s4740 + $0x10] sm:$0xff]
        %v4744 = vld [vmem:[%s4740 + $0x18] sm:$0xff]
        %v4745 = vld [vmem:[%s4740 + $0x20] sm:$0xff]
        %v4746 = vld [vmem:[%s4740 + $0x28] sm:$0xff]
        %v4747 = vld [vmem:[%s4740 + $0x30] sm:$0xff]
        %v4748 = vld [vmem:[%s4740 + $0x38] sm:$0xff]
        %v4749 = vld [vmem:[%s4740 + $0x40] sm:$0xff]
        %v4750 = vld [vmem:[%s4740 + $0x48] sm:$0xff]
        %v4751 = vld [vmem:[%s4740 + $0x50] sm:$0xff]
        %v4752 = vld [vmem:[%s4740 + $0x58] sm:$0xff]
        %v4753 = vld [vmem:[%s4740 + $0x60] sm:$0xff]
        %v4754 = vld [vmem:[%s4740 + $0x68] sm:$0xff]
        %v4755 = vld [vmem:[%s4740 + $0x70] sm:$0xff]
        %v4756 = vld [vmem:[%s4740 + $0x78] sm:$0xff]
        %v4773 = vunpack.c.l.b16 %v4741
        %v4774 = vunpack.c.h.b16 %v4741
        %v4775 = vunpack.c.l.b16 %v4742
        %v4776 = vunpack.c.h.b16 %v4742
        %v4777 = vunpack.c.l.b16 %v4743
        %v4778 = vunpack.c.h.b16 %v4743
        %v4779 = vunpack.c.l.b16 %v4744
        %v4780 = vunpack.c.h.b16 %v4744
        %v4781 = vunpack.c.l.b16 %v4745
        %v4782 = vunpack.c.h.b16 %v4745
        %v4783 = vunpack.c.l.b16 %v4746
        %v4784 = vunpack.c.h.b16 %v4746
        %v4785 = vunpack.c.l.b16 %v4747
        %v4786 = vunpack.c.h.b16 %v4747
        %v4787 = vunpack.c.l.b16 %v4748
        %v4788 = vunpack.c.h.b16 %v4748
        %v4789 = vunpack.c.l.b16 %v4749
        %v4790 = vunpack.c.h.b16 %v4749
        %v4791 = vunpack.c.l.b16 %v4750
        %v4792 = vunpack.c.h.b16 %v4750
        %v4793 = vunpack.c.l.b16 %v4751
        %v4794 = vunpack.c.h.b16 %v4751
        %v4795 = vunpack.c.l.b16 %v4752
        %v4796 = vunpack.c.h.b16 %v4752
        %v4797 = vunpack.c.l.b16 %v4753
        %v4798 = vunpack.c.h.b16 %v4753
        %v4799 = vunpack.c.l.b16 %v4754
        %v4800 = vunpack.c.h.b16 %v4754
        %v4801 = vunpack.c.l.b16 %v4755
        %v4802 = vunpack.c.h.b16 %v4755
        %v4803 = vunpack.c.l.b16 %v4756
        %v4804 = vunpack.c.h.b16 %v4756
        %v4805 = vpack.c.b16 %v4775, %v4773
        %v4806 = vpack.c.b16 %v4776, %v4774
        %v4807 = vpack.c.b16 %v4779, %v4777
        %v4808 = vpack.c.b16 %v4780, %v4778
        %v4809 = vpack.c.b16 %v4783, %v4781
        %v4810 = vpack.c.b16 %v4784, %v4782
        %v4811 = vpack.c.b16 %v4787, %v4785
        %v4812 = vpack.c.b16 %v4788, %v4786
        %v4813 = vpack.c.b16 %v4791, %v4789
        %v4814 = vpack.c.b16 %v4792, %v4790
        %v4815 = vpack.c.b16 %v4795, %v4793
        %v4816 = vpack.c.b16 %v4796, %v4794
        %v4817 = vpack.c.b16 %v4799, %v4797
        %v4818 = vpack.c.b16 %v4800, %v4798
        %v4819 = vpack.c.b16 %v4803, %v4801
        %v4820 = vpack.c.b16 %v4804, %v4802
        %4837 = vmatprep.subr.bf16.mxu0 %v4820
        %4838 = vmatpush1.bf16.msra.mxu0 %v4819
        %4839 = vmatprep.subr.bf16.mxu0 %v4818
        %4840 = vmatpush1.bf16.msra.mxu0 %v4817
        %4841 = vmatprep.subr.bf16.mxu0 %v4816
        %4842 = vmatpush1.bf16.msra.mxu0 %v4815
        %4843 = vmatprep.subr.bf16.mxu0 %v4814
        %4844 = vmatpush1.bf16.msra.mxu0 %v4813
        %4845 = vmatprep.subr.bf16.mxu0 %v4812
        %4846 = vmatpush1.bf16.msra.mxu0 %v4811
        %4847 = vmatprep.subr.bf16.mxu0 %v4810
        %4848 = vmatpush1.bf16.msra.mxu0 %v4809
        %4849 = vmatprep.subr.bf16.mxu0 %v4808
        %4850 = vmatpush1.bf16.msra.mxu0 %v4807
        %4851 = vmatprep.subr.bf16.mxu0 %v4806
        %4852 = vmatpush1.bf16.msra.mxu0 %v4805
        %4853 = vmatprep.subr.bf16.mxu0 0
        %4854 = vmatpush2.bf16.msra.mxu0 0
        %4855 = vmatprep.subr.bf16.mxu0 0
        %4856 = vmatpush2.bf16.msra.mxu0 0
        %4857 = vmatprep.subr.bf16.mxu0 0
        %4858 = vmatpush2.bf16.msra.mxu0 0
        %4859 = vmatprep.subr.bf16.mxu0 0
        %4860 = vmatpush2.bf16.msra.mxu0 0
        %4861 = vmatprep.subr.bf16.mxu0 0
        %4862 = vmatpush2.bf16.msra.mxu0 0
        %4863 = vmatprep.subr.bf16.mxu0 0
        %4864 = vmatpush2.bf16.msra.mxu0 0
        %4865 = vmatprep.subr.bf16.mxu0 0
        %4866 = vmatpush2.bf16.msra.mxu0 0
        %4867 = vmatprep.subr.bf16.mxu0 0
        %4868 = vmatpush2.bf16.msra.mxu0 0
        %4869 = vmatprep.mubr.bf16.mxu0 0
        %4870 = vmatmul.mubr.bf16.gmra.mxu0 %v4739
        %v4871 = vpop.f32.mrf.mxu0
        %v4872 = vadd.f32 0.0, %v4871
        %v4873 = vpop.f32.mrf.mxu0
        %v4874 = vadd.f32 0.0, %v4873
        %v4875 = vpop.f32.mrf.mxu0
        %v4876 = vpop.f32.mrf.mxu0
        %4877 = vdwg.mxu0
        %v4894 = vunpack.c.l.b16 %v4721
        %v4895 = vunpack.c.l.b16 %v4722
        %v4896 = vunpack.c.l.b16 %v4723
        %v4897 = vunpack.c.l.b16 %v4724
        %v4898 = vunpack.c.l.b16 %v4725
        %v4899 = vunpack.c.l.b16 %v4726
        %v4900 = vunpack.c.l.b16 %v4727
        %v4901 = vunpack.c.l.b16 %v4728
        %v4902 = vunpack.c.l.b16 %v4729
        %v4903 = vunpack.c.l.b16 %v4730
        %v4904 = vunpack.c.l.b16 %v4731
        %v4905 = vunpack.c.l.b16 %v4732
        %v4906 = vunpack.c.l.b16 %v4733
        %v4907 = vunpack.c.l.b16 %v4734
        %v4908 = vunpack.c.l.b16 %v4735
        %v4909 = vunpack.c.l.b16 %v4736
        %v4910 = vpack.c.b16 %v4895, %v4894
        %v4911 = vpack.c.b16 %v4897, %v4896
        %v4912 = vpack.c.b16 %v4899, %v4898
        %v4913 = vpack.c.b16 %v4901, %v4900
        %v4914 = vpack.c.b16 %v4903, %v4902
        %v4915 = vpack.c.b16 %v4905, %v4904
        %v4916 = vpack.c.b16 %v4907, %v4906
        %v4917 = vpack.c.b16 %v4909, %v4908
        %4926 = vmatprep.subr.bf16.mxu0 0
        %4927 = vmatpush1.bf16.msra.mxu0 %v4917
        %4928 = vmatprep.subr.bf16.mxu0 0
        %4929 = vmatpush1.bf16.msra.mxu0 %v4916
        %4930 = vmatprep.subr.bf16.mxu0 0
        %4931 = vmatpush1.bf16.msra.mxu0 %v4915
        %4932 = vmatprep.subr.bf16.mxu0 0
        %4933 = vmatpush1.bf16.msra.mxu0 %v4914
        %4934 = vmatprep.subr.bf16.mxu0 0
        %4935 = vmatpush1.bf16.msra.mxu0 %v4913
        %4936 = vmatprep.subr.bf16.mxu0 0
        %4937 = vmatpush1.bf16.msra.mxu0 %v4912
        %4938 = vmatprep.subr.bf16.mxu0 0
        %4939 = vmatpush1.bf16.msra.mxu0 %v4911
        %4940 = vmatprep.subr.bf16.mxu0 0
        %4941 = vmatpush1.bf16.msra.mxu0 %v4910
        %4942 = vmatprep.subr.bf16.mxu0 0
        %4943 = vmatpush2.bf16.msra.mxu0 0
        %4944 = vmatprep.subr.bf16.mxu0 0
        %4945 = vmatpush2.bf16.msra.mxu0 0
        %4946 = vmatprep.subr.bf16.mxu0 0
        %4947 = vmatpush2.bf16.msra.mxu0 0
        %4948 = vmatprep.subr.bf16.mxu0 0
        %4949 = vmatpush2.bf16.msra.mxu0 0
        %4950 = vmatprep.subr.bf16.mxu0 0
        %4951 = vmatpush2.bf16.msra.mxu0 0
        %4952 = vmatprep.subr.bf16.mxu0 0
        %4953 = vmatpush2.bf16.msra.mxu0 0
        %4954 = vmatprep.subr.bf16.mxu0 0
        %4955 = vmatpush2.bf16.msra.mxu0 0
        %4956 = vmatprep.subr.bf16.mxu0 0
        %4957 = vmatpush2.bf16.msra.mxu0 0
        %4958 = vmatprep.mubr.bf16.mxu0 0
        %4959 = vmatmul.mubr.bf16.gmra.mxu0 %v4719
        %v4960 = vpop.f32.mrf.mxu0
        %v4961 = vadd.f32 %v4872, %v4960
        %v4962 = vpop.f32.mrf.mxu0
        %v4963 = vpop.f32.mrf.mxu0
        %v4964 = vpop.f32.mrf.mxu0
        %4965 = vdwg.mxu0
        %s4966 = scalar_lea.vmem [#allocation17], 2
        %v4967 = vld [vmem:[%s4966] ss:$2 sm:$0x3]
        %v4968 = vpack.c.bf16 %v4967, %v4967
        %s4969 = scalar_lea.vmem [#allocation23], 2432
        %v4970 = vld [vmem:[%s4969] sm:$0xf]
        %v4971 = vld [vmem:[%s4969 + $0x4] sm:$0xf]
        %v4972 = vld [vmem:[%s4969 + $0x8] sm:$0xf]
        %v4973 = vld [vmem:[%s4969 + $0xc] sm:$0xf]
        %v4974 = vld [vmem:[%s4969 + $0x10] sm:$0xf]
        %v4975 = vld [vmem:[%s4969 + $0x14] sm:$0xf]
        %v4976 = vld [vmem:[%s4969 + $0x18] sm:$0xf]
        %v4977 = vld [vmem:[%s4969 + $0x1c] sm:$0xf]
        %v4978 = vld [vmem:[%s4969 + $0x20] sm:$0xf]
        %v4979 = vld [vmem:[%s4969 + $0x24] sm:$0xf]
        %v4980 = vld [vmem:[%s4969 + $0x28] sm:$0xf]
        %v4981 = vld [vmem:[%s4969 + $0x2c] sm:$0xf]
        %v4982 = vld [vmem:[%s4969 + $0x30] sm:$0xf]
        %v4983 = vld [vmem:[%s4969 + $0x34] sm:$0xf]
        %v4984 = vld [vmem:[%s4969 + $0x38] sm:$0xf]
        %v4985 = vld [vmem:[%s4969 + $0x3c] sm:$0xf]
        %v5002 = vunpack.c.l.b16 %v4970
        %v5003 = vunpack.c.l.b16 %v4971
        %v5004 = vunpack.c.l.b16 %v4972
        %v5005 = vunpack.c.l.b16 %v4973
        %v5006 = vunpack.c.l.b16 %v4974
        %v5007 = vunpack.c.l.b16 %v4975
        %v5008 = vunpack.c.l.b16 %v4976
        %v5009 = vunpack.c.l.b16 %v4977
        %v5010 = vunpack.c.l.b16 %v4978
        %v5011 = vunpack.c.l.b16 %v4979
        %v5012 = vunpack.c.l.b16 %v4980
        %v5013 = vunpack.c.l.b16 %v4981
        %v5014 = vunpack.c.l.b16 %v4982
        %v5015 = vunpack.c.l.b16 %v4983
        %v5016 = vunpack.c.l.b16 %v4984
        %v5017 = vunpack.c.l.b16 %v4985
        %v5018 = vpack.c.b16 %v5003, %v5002
        %v5019 = vpack.c.b16 %v5005, %v5004
        %v5020 = vpack.c.b16 %v5007, %v5006
        %v5021 = vpack.c.b16 %v5009, %v5008
        %v5022 = vpack.c.b16 %v5011, %v5010
        %v5023 = vpack.c.b16 %v5013, %v5012
        %v5024 = vpack.c.b16 %v5015, %v5014
        %v5025 = vpack.c.b16 %v5017, %v5016
        %5034 = vmatprep.subr.bf16.mxu0 0
        %5035 = vmatpush1.bf16.msra.mxu0 %v5025
        %5036 = vmatprep.subr.bf16.mxu0 0
        %5037 = vmatpush1.bf16.msra.mxu0 %v5024
        %5038 = vmatprep.subr.bf16.mxu0 0
        %5039 = vmatpush1.bf16.msra.mxu0 %v5023
        %5040 = vmatprep.subr.bf16.mxu0 0
        %5041 = vmatpush1.bf16.msra.mxu0 %v5022
        %5042 = vmatprep.subr.bf16.mxu0 0
        %5043 = vmatpush1.bf16.msra.mxu0 %v5021
        %5044 = vmatprep.subr.bf16.mxu0 0
        %5045 = vmatpush1.bf16.msra.mxu0 %v5020
        %5046 = vmatprep.subr.bf16.mxu0 0
        %5047 = vmatpush1.bf16.msra.mxu0 %v5019
        %5048 = vmatprep.subr.bf16.mxu0 0
        %5049 = vmatpush1.bf16.msra.mxu0 %v5018
        %5050 = vmatprep.subr.bf16.mxu0 0
        %5051 = vmatpush2.bf16.msra.mxu0 0
        %5052 = vmatprep.subr.bf16.mxu0 0
        %5053 = vmatpush2.bf16.msra.mxu0 0
        %5054 = vmatprep.subr.bf16.mxu0 0
        %5055 = vmatpush2.bf16.msra.mxu0 0
        %5056 = vmatprep.subr.bf16.mxu0 0
        %5057 = vmatpush2.bf16.msra.mxu0 0
        %5058 = vmatprep.subr.bf16.mxu0 0
        %5059 = vmatpush2.bf16.msra.mxu0 0
        %5060 = vmatprep.subr.bf16.mxu0 0
        %5061 = vmatpush2.bf16.msra.mxu0 0
        %5062 = vmatprep.subr.bf16.mxu0 0
        %5063 = vmatpush2.bf16.msra.mxu0 0
        %5064 = vmatprep.subr.bf16.mxu0 0
        %5065 = vmatpush2.bf16.msra.mxu0 0
        %5066 = vmatprep.mubr.bf16.mxu0 0
        %5067 = vmatmul.mubr.bf16.gmra.mxu0 %v4968
        %v5068 = vpop.f32.mrf.mxu0
        %v5069 = vadd.f32 0.0, %v5068
        %v5070 = vpop.f32.mrf.mxu0
        %v5071 = vpop.f32.mrf.mxu0
        %v5072 = vpop.f32.mrf.mxu0
        %5073 = vdwg.mxu0
        %v5074 = vadd.f32 %v4961, %v5069
        %v5075 = vld [vmem:[#allocation28 + $0x10] sm:$0x1]
        %v5076 = vlaneseq
        %v5077 = vshrl.u32 %v5076, 7
        %v5078 = vsub.s32 0, %v5077
        %v5079 = vrot.slane %v5075, %v5078
        %v5080 = vadd.f32 %v5074, %v5079
        %v5081 = vmax.f32 %v5080, 0.0
        %5082 = vst [vmem:[#allocation19 + $0x1] sm:$0x3] %v5081
        %v5083 = vld [vmem:[#allocation28 + $0xf] sm:$0x1]
        %v5084 = vlaneseq
        %v5085 = vshrl.u32 %v5084, 7
        %v5086 = vsub.s32 0, %v5085
        %v5087 = vrot.slane %v5083, %v5086
        %v5088 = vadd.f32 %v4874, %v5087
        %5089 = vst [vmem:[#allocation18] sm:$0x3] %v5088
        %v5090 = vld [vmem:[#allocation19] sm:$0x3]
        %v5091 = vpack.c.bf16 %v5090, %v5090
        %s5092 = scalar_lea.vmem [#allocation23], 2496
        %v5093 = vld [vmem:[%s5092] sm:$0xf]
        %v5094 = vld [vmem:[%s5092 + $0x4] sm:$0xf]
        %v5095 = vld [vmem:[%s5092 + $0x8] sm:$0xf]
        %v5096 = vld [vmem:[%s5092 + $0xc] sm:$0xf]
        %v5097 = vld [vmem:[%s5092 + $0x10] sm:$0xf]
        %v5098 = vld [vmem:[%s5092 + $0x14] sm:$0xf]
        %v5099 = vld [vmem:[%s5092 + $0x18] sm:$0xf]
        %v5100 = vld [vmem:[%s5092 + $0x1c] sm:$0xf]
        %v5101 = vld [vmem:[%s5092 + $0x20] sm:$0xf]
        %v5102 = vld [vmem:[%s5092 + $0x24] sm:$0xf]
        %v5103 = vld [vmem:[%s5092 + $0x28] sm:$0xf]
        %v5104 = vld [vmem:[%s5092 + $0x2c] sm:$0xf]
        %v5105 = vld [vmem:[%s5092 + $0x30] sm:$0xf]
        %v5106 = vld [vmem:[%s5092 + $0x34] sm:$0xf]
        %v5107 = vld [vmem:[%s5092 + $0x38] sm:$0xf]
        %v5108 = vld [vmem:[%s5092 + $0x3c] sm:$0xf]
        %v5109 = vld [vmem:[#allocation19 + $0x1] sm:$0x3]
        %v5110 = vpack.c.bf16 %v5109, %v5109
        %s5111 = scalar_lea.vmem [#allocation23], 2560
        %v5112 = vld [vmem:[%s5111] sm:$0xf]
        %v5113 = vld [vmem:[%s5111 + $0x4] sm:$0xf]
        %v5114 = vld [vmem:[%s5111 + $0x8] sm:$0xf]
        %v5115 = vld [vmem:[%s5111 + $0xc] sm:$0xf]
        %v5116 = vld [vmem:[%s5111 + $0x10] sm:$0xf]
        %v5117 = vld [vmem:[%s5111 + $0x14] sm:$0xf]
        %v5118 = vld [vmem:[%s5111 + $0x18] sm:$0xf]
        %v5119 = vld [vmem:[%s5111 + $0x1c] sm:$0xf]
        %v5120 = vld [vmem:[%s5111 + $0x20] sm:$0xf]
        %v5121 = vld [vmem:[%s5111 + $0x24] sm:$0xf]
        %v5122 = vld [vmem:[%s5111 + $0x28] sm:$0xf]
        %v5123 = vld [vmem:[%s5111 + $0x2c] sm:$0xf]
        %v5124 = vld [vmem:[%s5111 + $0x30] sm:$0xf]
        %v5125 = vld [vmem:[%s5111 + $0x34] sm:$0xf]
        %v5126 = vld [vmem:[%s5111 + $0x38] sm:$0xf]
        %v5127 = vld [vmem:[%s5111 + $0x3c] sm:$0xf]
        %v5144 = vunpack.c.l.b16 %v5112
        %v5145 = vunpack.c.l.b16 %v5113
        %v5146 = vunpack.c.l.b16 %v5114
        %v5147 = vunpack.c.l.b16 %v5115
        %v5148 = vunpack.c.l.b16 %v5116
        %v5149 = vunpack.c.l.b16 %v5117
        %v5150 = vunpack.c.l.b16 %v5118
        %v5151 = vunpack.c.l.b16 %v5119
        %v5152 = vunpack.c.l.b16 %v5120
        %v5153 = vunpack.c.l.b16 %v5121
        %v5154 = vunpack.c.l.b16 %v5122
        %v5155 = vunpack.c.l.b16 %v5123
        %v5156 = vunpack.c.l.b16 %v5124
        %v5157 = vunpack.c.l.b16 %v5125
        %v5158 = vunpack.c.l.b16 %v5126
        %v5159 = vunpack.c.l.b16 %v5127
        %v5160 = vpack.c.b16 %v5145, %v5144
        %v5161 = vpack.c.b16 %v5147, %v5146
        %v5162 = vpack.c.b16 %v5149, %v5148
        %v5163 = vpack.c.b16 %v5151, %v5150
        %v5164 = vpack.c.b16 %v5153, %v5152
        %v5165 = vpack.c.b16 %v5155, %v5154
        %v5166 = vpack.c.b16 %v5157, %v5156
        %v5167 = vpack.c.b16 %v5159, %v5158
        %5176 = vmatprep.subr.bf16.mxu0 0
        %5177 = vmatpush1.bf16.msra.mxu0 %v5167
        %5178 = vmatprep.subr.bf16.mxu0 0
        %5179 = vmatpush1.bf16.msra.mxu0 %v5166
        %5180 = vmatprep.subr.bf16.mxu0 0
        %5181 = vmatpush1.bf16.msra.mxu0 %v5165
        %5182 = vmatprep.subr.bf16.mxu0 0
        %5183 = vmatpush1.bf16.msra.mxu0 %v5164
        %5184 = vmatprep.subr.bf16.mxu0 0
        %5185 = vmatpush1.bf16.msra.mxu0 %v5163
        %5186 = vmatprep.subr.bf16.mxu0 0
        %5187 = vmatpush1.bf16.msra.mxu0 %v5162
        %5188 = vmatprep.subr.bf16.mxu0 0
        %5189 = vmatpush1.bf16.msra.mxu0 %v5161
        %5190 = vmatprep.subr.bf16.mxu0 0
        %5191 = vmatpush1.bf16.msra.mxu0 %v5160
        %5192 = vmatprep.subr.bf16.mxu0 0
        %5193 = vmatpush2.bf16.msra.mxu0 0
        %5194 = vmatprep.subr.bf16.mxu0 0
        %5195 = vmatpush2.bf16.msra.mxu0 0
        %5196 = vmatprep.subr.bf16.mxu0 0
        %5197 = vmatpush2.bf16.msra.mxu0 0
        %5198 = vmatprep.subr.bf16.mxu0 0
        %5199 = vmatpush2.bf16.msra.mxu0 0
        %5200 = vmatprep.subr.bf16.mxu0 0
        %5201 = vmatpush2.bf16.msra.mxu0 0
        %5202 = vmatprep.subr.bf16.mxu0 0
        %5203 = vmatpush2.bf16.msra.mxu0 0
        %5204 = vmatprep.subr.bf16.mxu0 0
        %5205 = vmatpush2.bf16.msra.mxu0 0
        %5206 = vmatprep.subr.bf16.mxu0 0
        %5207 = vmatpush2.bf16.msra.mxu0 0
        %5208 = vmatprep.mubr.bf16.mxu0 0
        %5209 = vmatmul.mubr.bf16.gmra.mxu0 %v5110
        %v5210 = vpop.f32.mrf.mxu0
        %v5211 = vadd.f32 0.0, %v5210
        %v5212 = vpop.f32.mrf.mxu0
        %v5213 = vpop.f32.mrf.mxu0
        %v5214 = vpop.f32.mrf.mxu0
        %5215 = vdwg.mxu0
        %v5232 = vunpack.c.l.b16 %v5093
        %v5233 = vunpack.c.l.b16 %v5094
        %v5234 = vunpack.c.l.b16 %v5095
        %v5235 = vunpack.c.l.b16 %v5096
        %v5236 = vunpack.c.l.b16 %v5097
        %v5237 = vunpack.c.l.b16 %v5098
        %v5238 = vunpack.c.l.b16 %v5099
        %v5239 = vunpack.c.l.b16 %v5100
        %v5240 = vunpack.c.l.b16 %v5101
        %v5241 = vunpack.c.l.b16 %v5102
        %v5242 = vunpack.c.l.b16 %v5103
        %v5243 = vunpack.c.l.b16 %v5104
        %v5244 = vunpack.c.l.b16 %v5105
        %v5245 = vunpack.c.l.b16 %v5106
        %v5246 = vunpack.c.l.b16 %v5107
        %v5247 = vunpack.c.l.b16 %v5108
        %v5248 = vpack.c.b16 %v5233, %v5232
        %v5249 = vpack.c.b16 %v5235, %v5234
        %v5250 = vpack.c.b16 %v5237, %v5236
        %v5251 = vpack.c.b16 %v5239, %v5238
        %v5252 = vpack.c.b16 %v5241, %v5240
        %v5253 = vpack.c.b16 %v5243, %v5242
        %v5254 = vpack.c.b16 %v5245, %v5244
        %v5255 = vpack.c.b16 %v5247, %v5246
        %5264 = vmatprep.subr.bf16.mxu0 0
        %5265 = vmatpush1.bf16.msra.mxu0 %v5255
        %5266 = vmatprep.subr.bf16.mxu0 0
        %5267 = vmatpush1.bf16.msra.mxu0 %v5254
        %5268 = vmatprep.subr.bf16.mxu0 0
        %5269 = vmatpush1.bf16.msra.mxu0 %v5253
        %5270 = vmatprep.subr.bf16.mxu0 0
        %5271 = vmatpush1.bf16.msra.mxu0 %v5252
        %5272 = vmatprep.subr.bf16.mxu0 0
        %5273 = vmatpush1.bf16.msra.mxu0 %v5251
        %5274 = vmatprep.subr.bf16.mxu0 0
        %5275 = vmatpush1.bf16.msra.mxu0 %v5250
        %5276 = vmatprep.subr.bf16.mxu0 0
        %5277 = vmatpush1.bf16.msra.mxu0 %v5249
        %5278 = vmatprep.subr.bf16.mxu0 0
        %5279 = vmatpush1.bf16.msra.mxu0 %v5248
        %5280 = vmatprep.subr.bf16.mxu0 0
        %5281 = vmatpush2.bf16.msra.mxu0 0
        %5282 = vmatprep.subr.bf16.mxu0 0
        %5283 = vmatpush2.bf16.msra.mxu0 0
        %5284 = vmatprep.subr.bf16.mxu0 0
        %5285 = vmatpush2.bf16.msra.mxu0 0
        %5286 = vmatprep.subr.bf16.mxu0 0
        %5287 = vmatpush2.bf16.msra.mxu0 0
        %5288 = vmatprep.subr.bf16.mxu0 0
        %5289 = vmatpush2.bf16.msra.mxu0 0
        %5290 = vmatprep.subr.bf16.mxu0 0
        %5291 = vmatpush2.bf16.msra.mxu0 0
        %5292 = vmatprep.subr.bf16.mxu0 0
        %5293 = vmatpush2.bf16.msra.mxu0 0
        %5294 = vmatprep.subr.bf16.mxu0 0
        %5295 = vmatpush2.bf16.msra.mxu0 0
        %5296 = vmatprep.mubr.bf16.mxu0 0
        %5297 = vmatmul.mubr.bf16.gmra.mxu0 %v5091
        %v5298 = vpop.f32.mrf.mxu0
        %v5299 = vadd.f32 %v5211, %v5298
        %v5300 = vpop.f32.mrf.mxu0
        %v5301 = vpop.f32.mrf.mxu0
        %v5302 = vpop.f32.mrf.mxu0
        %5303 = vdwg.mxu0
        %v5304 = vld [vmem:[#allocation19 + $0x2] sm:$0x3]
        %v5305 = vpack.c.bf16 %v5304, %v5304
        %s5306 = scalar_lea.vmem [#allocation23], 2624
        %v5307 = vld [vmem:[%s5306] sm:$0xf]
        %v5308 = vld [vmem:[%s5306 + $0x4] sm:$0xf]
        %v5309 = vld [vmem:[%s5306 + $0x8] sm:$0xf]
        %v5310 = vld [vmem:[%s5306 + $0xc] sm:$0xf]
        %v5311 = vld [vmem:[%s5306 + $0x10] sm:$0xf]
        %v5312 = vld [vmem:[%s5306 + $0x14] sm:$0xf]
        %v5313 = vld [vmem:[%s5306 + $0x18] sm:$0xf]
        %v5314 = vld [vmem:[%s5306 + $0x1c] sm:$0xf]
        %v5315 = vld [vmem:[%s5306 + $0x20] sm:$0xf]
        %v5316 = vld [vmem:[%s5306 + $0x24] sm:$0xf]
        %v5317 = vld [vmem:[%s5306 + $0x28] sm:$0xf]
        %v5318 = vld [vmem:[%s5306 + $0x2c] sm:$0xf]
        %v5319 = vld [vmem:[%s5306 + $0x30] sm:$0xf]
        %v5320 = vld [vmem:[%s5306 + $0x34] sm:$0xf]
        %v5321 = vld [vmem:[%s5306 + $0x38] sm:$0xf]
        %v5322 = vld [vmem:[%s5306 + $0x3c] sm:$0xf]
        %v5339 = vunpack.c.l.b16 %v5307
        %v5340 = vunpack.c.l.b16 %v5308
        %v5341 = vunpack.c.l.b16 %v5309
        %v5342 = vunpack.c.l.b16 %v5310
        %v5343 = vunpack.c.l.b16 %v5311
        %v5344 = vunpack.c.l.b16 %v5312
        %v5345 = vunpack.c.l.b16 %v5313
        %v5346 = vunpack.c.l.b16 %v5314
        %v5347 = vunpack.c.l.b16 %v5315
        %v5348 = vunpack.c.l.b16 %v5316
        %v5349 = vunpack.c.l.b16 %v5317
        %v5350 = vunpack.c.l.b16 %v5318
        %v5351 = vunpack.c.l.b16 %v5319
        %v5352 = vunpack.c.l.b16 %v5320
        %v5353 = vunpack.c.l.b16 %v5321
        %v5354 = vunpack.c.l.b16 %v5322
        %v5355 = vpack.c.b16 %v5340, %v5339
        %v5356 = vpack.c.b16 %v5342, %v5341
        %v5357 = vpack.c.b16 %v5344, %v5343
        %v5358 = vpack.c.b16 %v5346, %v5345
        %v5359 = vpack.c.b16 %v5348, %v5347
        %v5360 = vpack.c.b16 %v5350, %v5349
        %v5361 = vpack.c.b16 %v5352, %v5351
        %v5362 = vpack.c.b16 %v5354, %v5353
        %5371 = vmatprep.subr.bf16.mxu0 0
        %5372 = vmatpush1.bf16.msra.mxu0 %v5362
        %5373 = vmatprep.subr.bf16.mxu0 0
        %5374 = vmatpush1.bf16.msra.mxu0 %v5361
        %5375 = vmatprep.subr.bf16.mxu0 0
        %5376 = vmatpush1.bf16.msra.mxu0 %v5360
        %5377 = vmatprep.subr.bf16.mxu0 0
        %5378 = vmatpush1.bf16.msra.mxu0 %v5359
        %5379 = vmatprep.subr.bf16.mxu0 0
        %5380 = vmatpush1.bf16.msra.mxu0 %v5358
        %5381 = vmatprep.subr.bf16.mxu0 0
        %5382 = vmatpush1.bf16.msra.mxu0 %v5357
        %5383 = vmatprep.subr.bf16.mxu0 0
        %5384 = vmatpush1.bf16.msra.mxu0 %v5356
        %5385 = vmatprep.subr.bf16.mxu0 0
        %5386 = vmatpush1.bf16.msra.mxu0 %v5355
        %5387 = vmatprep.subr.bf16.mxu0 0
        %5388 = vmatpush2.bf16.msra.mxu0 0
        %5389 = vmatprep.subr.bf16.mxu0 0
        %5390 = vmatpush2.bf16.msra.mxu0 0
        %5391 = vmatprep.subr.bf16.mxu0 0
        %5392 = vmatpush2.bf16.msra.mxu0 0
        %5393 = vmatprep.subr.bf16.mxu0 0
        %5394 = vmatpush2.bf16.msra.mxu0 0
        %5395 = vmatprep.subr.bf16.mxu0 0
        %5396 = vmatpush2.bf16.msra.mxu0 0
        %5397 = vmatprep.subr.bf16.mxu0 0
        %5398 = vmatpush2.bf16.msra.mxu0 0
        %5399 = vmatprep.subr.bf16.mxu0 0
        %5400 = vmatpush2.bf16.msra.mxu0 0
        %5401 = vmatprep.subr.bf16.mxu0 0
        %5402 = vmatpush2.bf16.msra.mxu0 0
        %5403 = vmatprep.mubr.bf16.mxu0 0
        %5404 = vmatmul.mubr.bf16.gmra.mxu0 %v5305
        %v5405 = vpop.f32.mrf.mxu0
        %v5406 = vadd.f32 0.0, %v5405
        %v5407 = vpop.f32.mrf.mxu0
        %v5408 = vpop.f32.mrf.mxu0
        %v5409 = vpop.f32.mrf.mxu0
        %5410 = vdwg.mxu0
        %v5411 = vadd.f32 %v5299, %v5406
        %v5412 = vld [vmem:[#allocation28 + $0x11] sm:$0x1]
        %v5413 = vlaneseq
        %v5414 = vshrl.u32 %v5413, 7
        %v5415 = vsub.s32 0, %v5414
        %v5416 = vrot.slane %v5412, %v5415
        %v5417 = vadd.f32 %v5411, %v5416
        %v5418 = vld [vmem:[#allocation18] sm:$0x3]
        %v5419 = vadd.f32 %v5417, %v5418
        %v5420 = vmax.f32 %v5419, 0.0
        %5421 = vst [vmem:[#allocation20 + $0x1] sm:$0x3] %v5420
        %v5422 = vld [vmem:[#allocation20] sm:$0x3]
        %v5423 = vpack.c.bf16 %v5422, %v5422
        %s5424 = scalar_lea.vmem [#allocation23], 2688
        %v5425 = vld [vmem:[%s5424] sm:$0xf]
        %v5426 = vld [vmem:[%s5424 + $0x4] sm:$0xf]
        %v5427 = vld [vmem:[%s5424 + $0x8] sm:$0xf]
        %v5428 = vld [vmem:[%s5424 + $0xc] sm:$0xf]
        %v5429 = vld [vmem:[%s5424 + $0x10] sm:$0xf]
        %v5430 = vld [vmem:[%s5424 + $0x14] sm:$0xf]
        %v5431 = vld [vmem:[%s5424 + $0x18] sm:$0xf]
        %v5432 = vld [vmem:[%s5424 + $0x1c] sm:$0xf]
        %v5433 = vld [vmem:[%s5424 + $0x20] sm:$0xf]
        %v5434 = vld [vmem:[%s5424 + $0x24] sm:$0xf]
        %v5435 = vld [vmem:[%s5424 + $0x28] sm:$0xf]
        %v5436 = vld [vmem:[%s5424 + $0x2c] sm:$0xf]
        %v5437 = vld [vmem:[%s5424 + $0x30] sm:$0xf]
        %v5438 = vld [vmem:[%s5424 + $0x34] sm:$0xf]
        %v5439 = vld [vmem:[%s5424 + $0x38] sm:$0xf]
        %v5440 = vld [vmem:[%s5424 + $0x3c] sm:$0xf]
        %v5441 = vld [vmem:[#allocation20 + $0x1] sm:$0x3]
        %v5442 = vpack.c.bf16 %v5441, %v5441
        %s5443 = scalar_lea.vmem [#allocation23], 2752
        %v5444 = vld [vmem:[%s5443] sm:$0xf]
        %v5445 = vld [vmem:[%s5443 + $0x4] sm:$0xf]
        %v5446 = vld [vmem:[%s5443 + $0x8] sm:$0xf]
        %v5447 = vld [vmem:[%s5443 + $0xc] sm:$0xf]
        %v5448 = vld [vmem:[%s5443 + $0x10] sm:$0xf]
        %v5449 = vld [vmem:[%s5443 + $0x14] sm:$0xf]
        %v5450 = vld [vmem:[%s5443 + $0x18] sm:$0xf]
        %v5451 = vld [vmem:[%s5443 + $0x1c] sm:$0xf]
        %v5452 = vld [vmem:[%s5443 + $0x20] sm:$0xf]
        %v5453 = vld [vmem:[%s5443 + $0x24] sm:$0xf]
        %v5454 = vld [vmem:[%s5443 + $0x28] sm:$0xf]
        %v5455 = vld [vmem:[%s5443 + $0x2c] sm:$0xf]
        %v5456 = vld [vmem:[%s5443 + $0x30] sm:$0xf]
        %v5457 = vld [vmem:[%s5443 + $0x34] sm:$0xf]
        %v5458 = vld [vmem:[%s5443 + $0x38] sm:$0xf]
        %v5459 = vld [vmem:[%s5443 + $0x3c] sm:$0xf]
        %v5476 = vunpack.c.l.b16 %v5444
        %v5477 = vunpack.c.l.b16 %v5445
        %v5478 = vunpack.c.l.b16 %v5446
        %v5479 = vunpack.c.l.b16 %v5447
        %v5480 = vunpack.c.l.b16 %v5448
        %v5481 = vunpack.c.l.b16 %v5449
        %v5482 = vunpack.c.l.b16 %v5450
        %v5483 = vunpack.c.l.b16 %v5451
        %v5484 = vunpack.c.l.b16 %v5452
        %v5485 = vunpack.c.l.b16 %v5453
        %v5486 = vunpack.c.l.b16 %v5454
        %v5487 = vunpack.c.l.b16 %v5455
        %v5488 = vunpack.c.l.b16 %v5456
        %v5489 = vunpack.c.l.b16 %v5457
        %v5490 = vunpack.c.l.b16 %v5458
        %v5491 = vunpack.c.l.b16 %v5459
        %v5492 = vpack.c.b16 %v5477, %v5476
        %v5493 = vpack.c.b16 %v5479, %v5478
        %v5494 = vpack.c.b16 %v5481, %v5480
        %v5495 = vpack.c.b16 %v5483, %v5482
        %v5496 = vpack.c.b16 %v5485, %v5484
        %v5497 = vpack.c.b16 %v5487, %v5486
        %v5498 = vpack.c.b16 %v5489, %v5488
        %v5499 = vpack.c.b16 %v5491, %v5490
        %5508 = vmatprep.subr.bf16.mxu0 0
        %5509 = vmatpush1.bf16.msra.mxu0 %v5499
        %5510 = vmatprep.subr.bf16.mxu0 0
        %5511 = vmatpush1.bf16.msra.mxu0 %v5498
        %5512 = vmatprep.subr.bf16.mxu0 0
        %5513 = vmatpush1.bf16.msra.mxu0 %v5497
        %5514 = vmatprep.subr.bf16.mxu0 0
        %5515 = vmatpush1.bf16.msra.mxu0 %v5496
        %5516 = vmatprep.subr.bf16.mxu0 0
        %5517 = vmatpush1.bf16.msra.mxu0 %v5495
        %5518 = vmatprep.subr.bf16.mxu0 0
        %5519 = vmatpush1.bf16.msra.mxu0 %v5494
        %5520 = vmatprep.subr.bf16.mxu0 0
        %5521 = vmatpush1.bf16.msra.mxu0 %v5493
        %5522 = vmatprep.subr.bf16.mxu0 0
        %5523 = vmatpush1.bf16.msra.mxu0 %v5492
        %5524 = vmatprep.subr.bf16.mxu0 0
        %5525 = vmatpush2.bf16.msra.mxu0 0
        %5526 = vmatprep.subr.bf16.mxu0 0
        %5527 = vmatpush2.bf16.msra.mxu0 0
        %5528 = vmatprep.subr.bf16.mxu0 0
        %5529 = vmatpush2.bf16.msra.mxu0 0
        %5530 = vmatprep.subr.bf16.mxu0 0
        %5531 = vmatpush2.bf16.msra.mxu0 0
        %5532 = vmatprep.subr.bf16.mxu0 0
        %5533 = vmatpush2.bf16.msra.mxu0 0
        %5534 = vmatprep.subr.bf16.mxu0 0
        %5535 = vmatpush2.bf16.msra.mxu0 0
        %5536 = vmatprep.subr.bf16.mxu0 0
        %5537 = vmatpush2.bf16.msra.mxu0 0
        %5538 = vmatprep.subr.bf16.mxu0 0
        %5539 = vmatpush2.bf16.msra.mxu0 0
        %5540 = vmatprep.mubr.bf16.mxu0 0
        %5541 = vmatmul.mubr.bf16.gmra.mxu0 %v5442
        %v5542 = vpop.f32.mrf.mxu0
        %v5543 = vadd.f32 0.0, %v5542
        %v5544 = vpop.f32.mrf.mxu0
        %v5545 = vpop.f32.mrf.mxu0
        %v5546 = vpop.f32.mrf.mxu0
        %5547 = vdwg.mxu0
        %v5564 = vunpack.c.l.b16 %v5425
        %v5565 = vunpack.c.l.b16 %v5426
        %v5566 = vunpack.c.l.b16 %v5427
        %v5567 = vunpack.c.l.b16 %v5428
        %v5568 = vunpack.c.l.b16 %v5429
        %v5569 = vunpack.c.l.b16 %v5430
        %v5570 = vunpack.c.l.b16 %v5431
        %v5571 = vunpack.c.l.b16 %v5432
        %v5572 = vunpack.c.l.b16 %v5433
        %v5573 = vunpack.c.l.b16 %v5434
        %v5574 = vunpack.c.l.b16 %v5435
        %v5575 = vunpack.c.l.b16 %v5436
        %v5576 = vunpack.c.l.b16 %v5437
        %v5577 = vunpack.c.l.b16 %v5438
        %v5578 = vunpack.c.l.b16 %v5439
        %v5579 = vunpack.c.l.b16 %v5440
        %v5580 = vpack.c.b16 %v5565, %v5564
        %v5581 = vpack.c.b16 %v5567, %v5566
        %v5582 = vpack.c.b16 %v5569, %v5568
        %v5583 = vpack.c.b16 %v5571, %v5570
        %v5584 = vpack.c.b16 %v5573, %v5572
        %v5585 = vpack.c.b16 %v5575, %v5574
        %v5586 = vpack.c.b16 %v5577, %v5576
        %v5587 = vpack.c.b16 %v5579, %v5578
        %5596 = vmatprep.subr.bf16.mxu0 0
        %5597 = vmatpush1.bf16.msra.mxu0 %v5587
        %5598 = vmatprep.subr.bf16.mxu0 0
        %5599 = vmatpush1.bf16.msra.mxu0 %v5586
        %5600 = vmatprep.subr.bf16.mxu0 0
        %5601 = vmatpush1.bf16.msra.mxu0 %v5585
        %5602 = vmatprep.subr.bf16.mxu0 0
        %5603 = vmatpush1.bf16.msra.mxu0 %v5584
        %5604 = vmatprep.subr.bf16.mxu0 0
        %5605 = vmatpush1.bf16.msra.mxu0 %v5583
        %5606 = vmatprep.subr.bf16.mxu0 0
        %5607 = vmatpush1.bf16.msra.mxu0 %v5582
        %5608 = vmatprep.subr.bf16.mxu0 0
        %5609 = vmatpush1.bf16.msra.mxu0 %v5581
        %5610 = vmatprep.subr.bf16.mxu0 0
        %5611 = vmatpush1.bf16.msra.mxu0 %v5580
        %5612 = vmatprep.subr.bf16.mxu0 0
        %5613 = vmatpush2.bf16.msra.mxu0 0
        %5614 = vmatprep.subr.bf16.mxu0 0
        %5615 = vmatpush2.bf16.msra.mxu0 0
        %5616 = vmatprep.subr.bf16.mxu0 0
        %5617 = vmatpush2.bf16.msra.mxu0 0
        %5618 = vmatprep.subr.bf16.mxu0 0
        %5619 = vmatpush2.bf16.msra.mxu0 0
        %5620 = vmatprep.subr.bf16.mxu0 0
        %5621 = vmatpush2.bf16.msra.mxu0 0
        %5622 = vmatprep.subr.bf16.mxu0 0
        %5623 = vmatpush2.bf16.msra.mxu0 0
        %5624 = vmatprep.subr.bf16.mxu0 0
        %5625 = vmatpush2.bf16.msra.mxu0 0
        %5626 = vmatprep.subr.bf16.mxu0 0
        %5627 = vmatpush2.bf16.msra.mxu0 0
        %5628 = vmatprep.mubr.bf16.mxu0 0
        %5629 = vmatmul.mubr.bf16.gmra.mxu0 %v5423
        %v5630 = vpop.f32.mrf.mxu0
        %v5631 = vadd.f32 %v5543, %v5630
        %v5632 = vpop.f32.mrf.mxu0
        %v5633 = vpop.f32.mrf.mxu0
        %v5634 = vpop.f32.mrf.mxu0
        %5635 = vdwg.mxu0
        %v5636 = vld [vmem:[#allocation20 + $0x2] sm:$0x3]
        %v5637 = vpack.c.bf16 %v5636, %v5636
        %s5638 = scalar_lea.vmem [#allocation23], 2816
        %v5639 = vld [vmem:[%s5638] sm:$0xf]
        %v5640 = vld [vmem:[%s5638 + $0x4] sm:$0xf]
        %v5641 = vld [vmem:[%s5638 + $0x8] sm:$0xf]
        %v5642 = vld [vmem:[%s5638 + $0xc] sm:$0xf]
        %v5643 = vld [vmem:[%s5638 + $0x10] sm:$0xf]
        %v5644 = vld [vmem:[%s5638 + $0x14] sm:$0xf]
        %v5645 = vld [vmem:[%s5638 + $0x18] sm:$0xf]
        %v5646 = vld [vmem:[%s5638 + $0x1c] sm:$0xf]
        %v5647 = vld [vmem:[%s5638 + $0x20] sm:$0xf]
        %v5648 = vld [vmem:[%s5638 + $0x24] sm:$0xf]
        %v5649 = vld [vmem:[%s5638 + $0x28] sm:$0xf]
        %v5650 = vld [vmem:[%s5638 + $0x2c] sm:$0xf]
        %v5651 = vld [vmem:[%s5638 + $0x30] sm:$0xf]
        %v5652 = vld [vmem:[%s5638 + $0x34] sm:$0xf]
        %v5653 = vld [vmem:[%s5638 + $0x38] sm:$0xf]
        %v5654 = vld [vmem:[%s5638 + $0x3c] sm:$0xf]
        %v5671 = vunpack.c.l.b16 %v5639
        %v5672 = vunpack.c.l.b16 %v5640
        %v5673 = vunpack.c.l.b16 %v5641
        %v5674 = vunpack.c.l.b16 %v5642
        %v5675 = vunpack.c.l.b16 %v5643
        %v5676 = vunpack.c.l.b16 %v5644
        %v5677 = vunpack.c.l.b16 %v5645
        %v5678 = vunpack.c.l.b16 %v5646
        %v5679 = vunpack.c.l.b16 %v5647
        %v5680 = vunpack.c.l.b16 %v5648
        %v5681 = vunpack.c.l.b16 %v5649
        %v5682 = vunpack.c.l.b16 %v5650
        %v5683 = vunpack.c.l.b16 %v5651
        %v5684 = vunpack.c.l.b16 %v5652
        %v5685 = vunpack.c.l.b16 %v5653
        %v5686 = vunpack.c.l.b16 %v5654
        %v5687 = vpack.c.b16 %v5672, %v5671
        %v5688 = vpack.c.b16 %v5674, %v5673
        %v5689 = vpack.c.b16 %v5676, %v5675
        %v5690 = vpack.c.b16 %v5678, %v5677
        %v5691 = vpack.c.b16 %v5680, %v5679
        %v5692 = vpack.c.b16 %v5682, %v5681
        %v5693 = vpack.c.b16 %v5684, %v5683
        %v5694 = vpack.c.b16 %v5686, %v5685
        %5703 = vmatprep.subr.bf16.mxu0 0
        %5704 = vmatpush1.bf16.msra.mxu0 %v5694
        %5705 = vmatprep.subr.bf16.mxu0 0
        %5706 = vmatpush1.bf16.msra.mxu0 %v5693
        %5707 = vmatprep.subr.bf16.mxu0 0
        %5708 = vmatpush1.bf16.msra.mxu0 %v5692
        %5709 = vmatprep.subr.bf16.mxu0 0
        %5710 = vmatpush1.bf16.msra.mxu0 %v5691
        %5711 = vmatprep.subr.bf16.mxu0 0
        %5712 = vmatpush1.bf16.msra.mxu0 %v5690
        %5713 = vmatprep.subr.bf16.mxu0 0
        %5714 = vmatpush1.bf16.msra.mxu0 %v5689
        %5715 = vmatprep.subr.bf16.mxu0 0
        %5716 = vmatpush1.bf16.msra.mxu0 %v5688
        %5717 = vmatprep.subr.bf16.mxu0 0
        %5718 = vmatpush1.bf16.msra.mxu0 %v5687
        %5719 = vmatprep.subr.bf16.mxu0 0
        %5720 = vmatpush2.bf16.msra.mxu0 0
        %5721 = vmatprep.subr.bf16.mxu0 0
        %5722 = vmatpush2.bf16.msra.mxu0 0
        %5723 = vmatprep.subr.bf16.mxu0 0
        %5724 = vmatpush2.bf16.msra.mxu0 0
        %5725 = vmatprep.subr.bf16.mxu0 0
        %5726 = vmatpush2.bf16.msra.mxu0 0
        %5727 = vmatprep.subr.bf16.mxu0 0
        %5728 = vmatpush2.bf16.msra.mxu0 0
        %5729 = vmatprep.subr.bf16.mxu0 0
        %5730 = vmatpush2.bf16.msra.mxu0 0
        %5731 = vmatprep.subr.bf16.mxu0 0
        %5732 = vmatpush2.bf16.msra.mxu0 0
        %5733 = vmatprep.subr.bf16.mxu0 0
        %5734 = vmatpush2.bf16.msra.mxu0 0
        %5735 = vmatprep.mubr.bf16.mxu0 0
        %5736 = vmatmul.mubr.bf16.gmra.mxu0 %v5637
        %v5737 = vpop.f32.mrf.mxu0
        %v5738 = vadd.f32 0.0, %v5737
        %v5739 = vpop.f32.mrf.mxu0
        %v5740 = vpop.f32.mrf.mxu0
        %v5741 = vpop.f32.mrf.mxu0
        %5742 = vdwg.mxu0
        %v5743 = vadd.f32 %v5631, %v5738
        %v5744 = vld [vmem:[#allocation28 + $0x12] sm:$0x1]
        %v5745 = vlaneseq
        %v5746 = vshrl.u32 %v5745, 7
        %v5747 = vsub.s32 0, %v5746
        %v5748 = vrot.slane %v5744, %v5747
        %v5749 = vadd.f32 %v5743, %v5748
        %v5750 = vmax.f32 %v5749, 0.0
        %5751 = vst [vmem:[#allocation21 + $0x1] sm:$0x3] %v5750
        %v5752 = vld [vmem:[#allocation21] sm:$0x3]
        %v5753 = vpack.c.bf16 %v5752, %v5752
        %s5754 = scalar_lea.vmem [#allocation23], 2880
        %v5755 = vld [vmem:[%s5754] sm:$0xf]
        %v5756 = vld [vmem:[%s5754 + $0x4] sm:$0xf]
        %v5757 = vld [vmem:[%s5754 + $0x8] sm:$0xf]
        %v5758 = vld [vmem:[%s5754 + $0xc] sm:$0xf]
        %v5759 = vld [vmem:[%s5754 + $0x10] sm:$0xf]
        %v5760 = vld [vmem:[%s5754 + $0x14] sm:$0xf]
        %v5761 = vld [vmem:[%s5754 + $0x18] sm:$0xf]
        %v5762 = vld [vmem:[%s5754 + $0x1c] sm:$0xf]
        %v5763 = vld [vmem:[%s5754 + $0x20] sm:$0xf]
        %v5764 = vld [vmem:[%s5754 + $0x24] sm:$0xf]
        %v5765 = vld [vmem:[%s5754 + $0x28] sm:$0xf]
        %v5766 = vld [vmem:[%s5754 + $0x2c] sm:$0xf]
        %v5767 = vld [vmem:[%s5754 + $0x30] sm:$0xf]
        %v5768 = vld [vmem:[%s5754 + $0x34] sm:$0xf]
        %v5769 = vld [vmem:[%s5754 + $0x38] sm:$0xf]
        %v5770 = vld [vmem:[%s5754 + $0x3c] sm:$0xf]
        %v5771 = vld [vmem:[#allocation21 + $0x1] sm:$0x3]
        %v5772 = vpack.c.bf16 %v5771, %v5771
        %s5773 = scalar_lea.vmem [#allocation23], 2944
        %v5774 = vld [vmem:[%s5773] sm:$0xf]
        %v5775 = vld [vmem:[%s5773 + $0x4] sm:$0xf]
        %v5776 = vld [vmem:[%s5773 + $0x8] sm:$0xf]
        %v5777 = vld [vmem:[%s5773 + $0xc] sm:$0xf]
        %v5778 = vld [vmem:[%s5773 + $0x10] sm:$0xf]
        %v5779 = vld [vmem:[%s5773 + $0x14] sm:$0xf]
        %v5780 = vld [vmem:[%s5773 + $0x18] sm:$0xf]
        %v5781 = vld [vmem:[%s5773 + $0x1c] sm:$0xf]
        %v5782 = vld [vmem:[%s5773 + $0x20] sm:$0xf]
        %v5783 = vld [vmem:[%s5773 + $0x24] sm:$0xf]
        %v5784 = vld [vmem:[%s5773 + $0x28] sm:$0xf]
        %v5785 = vld [vmem:[%s5773 + $0x2c] sm:$0xf]
        %v5786 = vld [vmem:[%s5773 + $0x30] sm:$0xf]
        %v5787 = vld [vmem:[%s5773 + $0x34] sm:$0xf]
        %v5788 = vld [vmem:[%s5773 + $0x38] sm:$0xf]
        %v5789 = vld [vmem:[%s5773 + $0x3c] sm:$0xf]
        %v5806 = vunpack.c.l.b16 %v5774
        %v5807 = vunpack.c.l.b16 %v5775
        %v5808 = vunpack.c.l.b16 %v5776
        %v5809 = vunpack.c.l.b16 %v5777
        %v5810 = vunpack.c.l.b16 %v5778
        %v5811 = vunpack.c.l.b16 %v5779
        %v5812 = vunpack.c.l.b16 %v5780
        %v5813 = vunpack.c.l.b16 %v5781
        %v5814 = vunpack.c.l.b16 %v5782
        %v5815 = vunpack.c.l.b16 %v5783
        %v5816 = vunpack.c.l.b16 %v5784
        %v5817 = vunpack.c.l.b16 %v5785
        %v5818 = vunpack.c.l.b16 %v5786
        %v5819 = vunpack.c.l.b16 %v5787
        %v5820 = vunpack.c.l.b16 %v5788
        %v5821 = vunpack.c.l.b16 %v5789
        %v5822 = vpack.c.b16 %v5807, %v5806
        %v5823 = vpack.c.b16 %v5809, %v5808
        %v5824 = vpack.c.b16 %v5811, %v5810
        %v5825 = vpack.c.b16 %v5813, %v5812
        %v5826 = vpack.c.b16 %v5815, %v5814
        %v5827 = vpack.c.b16 %v5817, %v5816
        %v5828 = vpack.c.b16 %v5819, %v5818
        %v5829 = vpack.c.b16 %v5821, %v5820
        %5838 = vmatprep.subr.bf16.mxu0 0
        %5839 = vmatpush1.bf16.msra.mxu0 %v5829
        %5840 = vmatprep.subr.bf16.mxu0 0
        %5841 = vmatpush1.bf16.msra.mxu0 %v5828
        %5842 = vmatprep.subr.bf16.mxu0 0
        %5843 = vmatpush1.bf16.msra.mxu0 %v5827
        %5844 = vmatprep.subr.bf16.mxu0 0
        %5845 = vmatpush1.bf16.msra.mxu0 %v5826
        %5846 = vmatprep.subr.bf16.mxu0 0
        %5847 = vmatpush1.bf16.msra.mxu0 %v5825
        %5848 = vmatprep.subr.bf16.mxu0 0
        %5849 = vmatpush1.bf16.msra.mxu0 %v5824
        %5850 = vmatprep.subr.bf16.mxu0 0
        %5851 = vmatpush1.bf16.msra.mxu0 %v5823
        %5852 = vmatprep.subr.bf16.mxu0 0
        %5853 = vmatpush1.bf16.msra.mxu0 %v5822
        %5854 = vmatprep.subr.bf16.mxu0 0
        %5855 = vmatpush2.bf16.msra.mxu0 0
        %5856 = vmatprep.subr.bf16.mxu0 0
        %5857 = vmatpush2.bf16.msra.mxu0 0
        %5858 = vmatprep.subr.bf16.mxu0 0
        %5859 = vmatpush2.bf16.msra.mxu0 0
        %5860 = vmatprep.subr.bf16.mxu0 0
        %5861 = vmatpush2.bf16.msra.mxu0 0
        %5862 = vmatprep.subr.bf16.mxu0 0
        %5863 = vmatpush2.bf16.msra.mxu0 0
        %5864 = vmatprep.subr.bf16.mxu0 0
        %5865 = vmatpush2.bf16.msra.mxu0 0
        %5866 = vmatprep.subr.bf16.mxu0 0
        %5867 = vmatpush2.bf16.msra.mxu0 0
        %5868 = vmatprep.subr.bf16.mxu0 0
        %5869 = vmatpush2.bf16.msra.mxu0 0
        %5870 = vmatprep.mubr.bf16.mxu0 0
        %5871 = vmatmul.mubr.bf16.gmra.mxu0 %v5772
        %v5872 = vpop.f32.mrf.mxu0
        %v5873 = vadd.f32 0.0, %v5872
        %v5874 = vpop.f32.mrf.mxu0
        %v5875 = vpop.f32.mrf.mxu0
        %v5876 = vpop.f32.mrf.mxu0
        %5877 = vdwg.mxu0
        %v5894 = vunpack.c.l.b16 %v5755
        %v5895 = vunpack.c.l.b16 %v5756
        %v5896 = vunpack.c.l.b16 %v5757
        %v5897 = vunpack.c.l.b16 %v5758
        %v5898 = vunpack.c.l.b16 %v5759
        %v5899 = vunpack.c.l.b16 %v5760
        %v5900 = vunpack.c.l.b16 %v5761
        %v5901 = vunpack.c.l.b16 %v5762
        %v5902 = vunpack.c.l.b16 %v5763
        %v5903 = vunpack.c.l.b16 %v5764
        %v5904 = vunpack.c.l.b16 %v5765
        %v5905 = vunpack.c.l.b16 %v5766
        %v5906 = vunpack.c.l.b16 %v5767
        %v5907 = vunpack.c.l.b16 %v5768
        %v5908 = vunpack.c.l.b16 %v5769
        %v5909 = vunpack.c.l.b16 %v5770
        %v5910 = vpack.c.b16 %v5895, %v5894
        %v5911 = vpack.c.b16 %v5897, %v5896
        %v5912 = vpack.c.b16 %v5899, %v5898
        %v5913 = vpack.c.b16 %v5901, %v5900
        %v5914 = vpack.c.b16 %v5903, %v5902
        %v5915 = vpack.c.b16 %v5905, %v5904
        %v5916 = vpack.c.b16 %v5907, %v5906
        %v5917 = vpack.c.b16 %v5909, %v5908
        %5926 = vmatprep.subr.bf16.mxu0 0
        %5927 = vmatpush1.bf16.msra.mxu0 %v5917
        %5928 = vmatprep.subr.bf16.mxu0 0
        %5929 = vmatpush1.bf16.msra.mxu0 %v5916
        %5930 = vmatprep.subr.bf16.mxu0 0
        %5931 = vmatpush1.bf16.msra.mxu0 %v5915
        %5932 = vmatprep.subr.bf16.mxu0 0
        %5933 = vmatpush1.bf16.msra.mxu0 %v5914
        %5934 = vmatprep.subr.bf16.mxu0 0
        %5935 = vmatpush1.bf16.msra.mxu0 %v5913
        %5936 = vmatprep.subr.bf16.mxu0 0
        %5937 = vmatpush1.bf16.msra.mxu0 %v5912
        %5938 = vmatprep.subr.bf16.mxu0 0
        %5939 = vmatpush1.bf16.msra.mxu0 %v5911
        %5940 = vmatprep.subr.bf16.mxu0 0
        %5941 = vmatpush1.bf16.msra.mxu0 %v5910
        %5942 = vmatprep.subr.bf16.mxu0 0
        %5943 = vmatpush2.bf16.msra.mxu0 0
        %5944 = vmatprep.subr.bf16.mxu0 0
        %5945 = vmatpush2.bf16.msra.mxu0 0
        %5946 = vmatprep.subr.bf16.mxu0 0
        %5947 = vmatpush2.bf16.msra.mxu0 0
        %5948 = vmatprep.subr.bf16.mxu0 0
        %5949 = vmatpush2.bf16.msra.mxu0 0
        %5950 = vmatprep.subr.bf16.mxu0 0
        %5951 = vmatpush2.bf16.msra.mxu0 0
        %5952 = vmatprep.subr.bf16.mxu0 0
        %5953 = vmatpush2.bf16.msra.mxu0 0
        %5954 = vmatprep.subr.bf16.mxu0 0
        %5955 = vmatpush2.bf16.msra.mxu0 0
        %5956 = vmatprep.subr.bf16.mxu0 0
        %5957 = vmatpush2.bf16.msra.mxu0 0
        %5958 = vmatprep.mubr.bf16.mxu0 0
        %5959 = vmatmul.mubr.bf16.gmra.mxu0 %v5753
        %v5960 = vpop.f32.mrf.mxu0
        %v5961 = vadd.f32 %v5873, %v5960
        %v5962 = vpop.f32.mrf.mxu0
        %v5963 = vpop.f32.mrf.mxu0
        %v5964 = vpop.f32.mrf.mxu0
        %5965 = vdwg.mxu0
        %v5966 = vld [vmem:[#allocation21 + $0x2] sm:$0x3]
        %v5967 = vpack.c.bf16 %v5966, %v5966
        %s5968 = scalar_lea.vmem [#allocation23], 3008
        %v5969 = vld [vmem:[%s5968] sm:$0xf]
        %v5970 = vld [vmem:[%s5968 + $0x4] sm:$0xf]
        %v5971 = vld [vmem:[%s5968 + $0x8] sm:$0xf]
        %v5972 = vld [vmem:[%s5968 + $0xc] sm:$0xf]
        %v5973 = vld [vmem:[%s5968 + $0x10] sm:$0xf]
        %v5974 = vld [vmem:[%s5968 + $0x14] sm:$0xf]
        %v5975 = vld [vmem:[%s5968 + $0x18] sm:$0xf]
        %v5976 = vld [vmem:[%s5968 + $0x1c] sm:$0xf]
        %v5977 = vld [vmem:[%s5968 + $0x20] sm:$0xf]
        %v5978 = vld [vmem:[%s5968 + $0x24] sm:$0xf]
        %v5979 = vld [vmem:[%s5968 + $0x28] sm:$0xf]
        %v5980 = vld [vmem:[%s5968 + $0x2c] sm:$0xf]
        %v5981 = vld [vmem:[%s5968 + $0x30] sm:$0xf]
        %v5982 = vld [vmem:[%s5968 + $0x34] sm:$0xf]
        %v5983 = vld [vmem:[%s5968 + $0x38] sm:$0xf]
        %v5984 = vld [vmem:[%s5968 + $0x3c] sm:$0xf]
        %v6001 = vunpack.c.l.b16 %v5969
        %v6002 = vunpack.c.l.b16 %v5970
        %v6003 = vunpack.c.l.b16 %v5971
        %v6004 = vunpack.c.l.b16 %v5972
        %v6005 = vunpack.c.l.b16 %v5973
        %v6006 = vunpack.c.l.b16 %v5974
        %v6007 = vunpack.c.l.b16 %v5975
        %v6008 = vunpack.c.l.b16 %v5976
        %v6009 = vunpack.c.l.b16 %v5977
        %v6010 = vunpack.c.l.b16 %v5978
        %v6011 = vunpack.c.l.b16 %v5979
        %v6012 = vunpack.c.l.b16 %v5980
        %v6013 = vunpack.c.l.b16 %v5981
        %v6014 = vunpack.c.l.b16 %v5982
        %v6015 = vunpack.c.l.b16 %v5983
        %v6016 = vunpack.c.l.b16 %v5984
        %v6017 = vpack.c.b16 %v6002, %v6001
        %v6018 = vpack.c.b16 %v6004, %v6003
        %v6019 = vpack.c.b16 %v6006, %v6005
        %v6020 = vpack.c.b16 %v6008, %v6007
        %v6021 = vpack.c.b16 %v6010, %v6009
        %v6022 = vpack.c.b16 %v6012, %v6011
        %v6023 = vpack.c.b16 %v6014, %v6013
        %v6024 = vpack.c.b16 %v6016, %v6015
        %6033 = vmatprep.subr.bf16.mxu0 0
        %6034 = vmatpush1.bf16.msra.mxu0 %v6024
        %6035 = vmatprep.subr.bf16.mxu0 0
        %6036 = vmatpush1.bf16.msra.mxu0 %v6023
        %6037 = vmatprep.subr.bf16.mxu0 0
        %6038 = vmatpush1.bf16.msra.mxu0 %v6022
        %6039 = vmatprep.subr.bf16.mxu0 0
        %6040 = vmatpush1.bf16.msra.mxu0 %v6021
        %6041 = vmatprep.subr.bf16.mxu0 0
        %6042 = vmatpush1.bf16.msra.mxu0 %v6020
        %6043 = vmatprep.subr.bf16.mxu0 0
        %6044 = vmatpush1.bf16.msra.mxu0 %v6019
        %6045 = vmatprep.subr.bf16.mxu0 0
        %6046 = vmatpush1.bf16.msra.mxu0 %v6018
        %6047 = vmatprep.subr.bf16.mxu0 0
        %6048 = vmatpush1.bf16.msra.mxu0 %v6017
        %6049 = vmatprep.subr.bf16.mxu0 0
        %6050 = vmatpush2.bf16.msra.mxu0 0
        %6051 = vmatprep.subr.bf16.mxu0 0
        %6052 = vmatpush2.bf16.msra.mxu0 0
        %6053 = vmatprep.subr.bf16.mxu0 0
        %6054 = vmatpush2.bf16.msra.mxu0 0
        %6055 = vmatprep.subr.bf16.mxu0 0
        %6056 = vmatpush2.bf16.msra.mxu0 0
        %6057 = vmatprep.subr.bf16.mxu0 0
        %6058 = vmatpush2.bf16.msra.mxu0 0
        %6059 = vmatprep.subr.bf16.mxu0 0
        %6060 = vmatpush2.bf16.msra.mxu0 0
        %6061 = vmatprep.subr.bf16.mxu0 0
        %6062 = vmatpush2.bf16.msra.mxu0 0
        %6063 = vmatprep.subr.bf16.mxu0 0
        %6064 = vmatpush2.bf16.msra.mxu0 0
        %6065 = vmatprep.mubr.bf16.mxu0 0
        %6066 = vmatmul.mubr.bf16.gmra.mxu0 %v5967
        %v6067 = vpop.f32.mrf.mxu0
        %v6068 = vadd.f32 0.0, %v6067
        %v6069 = vpop.f32.mrf.mxu0
        %v6070 = vpop.f32.mrf.mxu0
        %v6071 = vpop.f32.mrf.mxu0
        %6072 = vdwg.mxu0
        %v6073 = vadd.f32 %v5961, %v6068
        %v6074 = vld [vmem:[#allocation28 + $0x13] sm:$0x1]
        %v6075 = vlaneseq
        %v6076 = vshrl.u32 %v6075, 7
        %v6077 = vsub.s32 0, %v6076
        %v6078 = vrot.slane %v6074, %v6077
        %v6079 = vadd.f32 %v6073, %v6078
        %v6080 = vld [vmem:[#allocation20 + $0x1] sm:$0x3]
        %v6081 = vadd.f32 %v6079, %v6080
        %v6082 = vmax.f32 %v6081, 0.0
        %6083 = vst [vmem:[#allocation22 + $0x1] sm:$0x3] %v6082
        %v6084 = vld [vmem:[#allocation22 + $0x1] sm:$0x3]
        %v6085 = vpack.c.bf16 %v6084, %v6084
        %s6086 = scalar_lea.vmem [#allocation23], 3072
        %v6087 = vld [vmem:[%s6086] sm:$0xf]
        %v6088 = vld [vmem:[%s6086 + $0x4] sm:$0xf]
        %v6089 = vld [vmem:[%s6086 + $0x8] sm:$0xf]
        %v6090 = vld [vmem:[%s6086 + $0xc] sm:$0xf]
        %v6091 = vld [vmem:[%s6086 + $0x10] sm:$0xf]
        %v6092 = vld [vmem:[%s6086 + $0x14] sm:$0xf]
        %v6093 = vld [vmem:[%s6086 + $0x18] sm:$0xf]
        %v6094 = vld [vmem:[%s6086 + $0x1c] sm:$0xf]
        %v6095 = vld [vmem:[%s6086 + $0x20] sm:$0xf]
        %v6096 = vld [vmem:[%s6086 + $0x24] sm:$0xf]
        %v6097 = vld [vmem:[%s6086 + $0x28] sm:$0xf]
        %v6098 = vld [vmem:[%s6086 + $0x2c] sm:$0xf]
        %v6099 = vld [vmem:[%s6086 + $0x30] sm:$0xf]
        %v6100 = vld [vmem:[%s6086 + $0x34] sm:$0xf]
        %v6101 = vld [vmem:[%s6086 + $0x38] sm:$0xf]
        %v6102 = vld [vmem:[%s6086 + $0x3c] sm:$0xf]
        %v6119 = vunpack.c.l.b16 %v6087
        %v6120 = vunpack.c.l.b16 %v6088
        %v6121 = vunpack.c.l.b16 %v6089
        %v6122 = vunpack.c.l.b16 %v6090
        %v6123 = vunpack.c.l.b16 %v6091
        %v6124 = vunpack.c.l.b16 %v6092
        %v6125 = vunpack.c.l.b16 %v6093
        %v6126 = vunpack.c.l.b16 %v6094
        %v6127 = vunpack.c.l.b16 %v6095
        %v6128 = vunpack.c.l.b16 %v6096
        %v6129 = vunpack.c.l.b16 %v6097
        %v6130 = vunpack.c.l.b16 %v6098
        %v6131 = vunpack.c.l.b16 %v6099
        %v6132 = vunpack.c.l.b16 %v6100
        %v6133 = vunpack.c.l.b16 %v6101
        %v6134 = vunpack.c.l.b16 %v6102
        %v6135 = vpack.c.b16 %v6120, %v6119
        %v6136 = vpack.c.b16 %v6122, %v6121
        %v6137 = vpack.c.b16 %v6124, %v6123
        %v6138 = vpack.c.b16 %v6126, %v6125
        %v6139 = vpack.c.b16 %v6128, %v6127
        %v6140 = vpack.c.b16 %v6130, %v6129
        %v6141 = vpack.c.b16 %v6132, %v6131
        %v6142 = vpack.c.b16 %v6134, %v6133
        %6151 = vmatprep.subr.bf16.mxu0 0
        %6152 = vmatpush1.bf16.msra.mxu0 %v6142
        %6153 = vmatprep.subr.bf16.mxu0 0
        %6154 = vmatpush1.bf16.msra.mxu0 %v6141
        %6155 = vmatprep.subr.bf16.mxu0 0
        %6156 = vmatpush1.bf16.msra.mxu0 %v6140
        %6157 = vmatprep.subr.bf16.mxu0 0
        %6158 = vmatpush1.bf16.msra.mxu0 %v6139
        %6159 = vmatprep.subr.bf16.mxu0 0
        %6160 = vmatpush1.bf16.msra.mxu0 %v6138
        %6161 = vmatprep.subr.bf16.mxu0 0
        %6162 = vmatpush1.bf16.msra.mxu0 %v6137
        %6163 = vmatprep.subr.bf16.mxu0 0
        %6164 = vmatpush1.bf16.msra.mxu0 %v6136
        %6165 = vmatprep.subr.bf16.mxu0 0
        %6166 = vmatpush1.bf16.msra.mxu0 %v6135
        %6167 = vmatprep.subr.bf16.mxu0 0
        %6168 = vmatpush2.bf16.msra.mxu0 0
        %6169 = vmatprep.subr.bf16.mxu0 0
        %6170 = vmatpush2.bf16.msra.mxu0 0
        %6171 = vmatprep.subr.bf16.mxu0 0
        %6172 = vmatpush2.bf16.msra.mxu0 0
        %6173 = vmatprep.subr.bf16.mxu0 0
        %6174 = vmatpush2.bf16.msra.mxu0 0
        %6175 = vmatprep.subr.bf16.mxu0 0
        %6176 = vmatpush2.bf16.msra.mxu0 0
        %6177 = vmatprep.subr.bf16.mxu0 0
        %6178 = vmatpush2.bf16.msra.mxu0 0
        %6179 = vmatprep.subr.bf16.mxu0 0
        %6180 = vmatpush2.bf16.msra.mxu0 0
        %6181 = vmatprep.subr.bf16.mxu0 0
        %6182 = vmatpush2.bf16.msra.mxu0 0
        %6183 = vmatprep.mubr.bf16.mxu0 0
        %6184 = vmatmul.mubr.bf16.gmra.mxu0 %v6085
        %v6185 = vpop.f32.mrf.mxu0
        %v6186 = vadd.f32 0.0, %v6185
        %v6187 = vpop.f32.mrf.mxu0
        %v6188 = vpop.f32.mrf.mxu0
        %v6189 = vpop.f32.mrf.mxu0
        %6190 = vdwg.mxu0
        %vm6191 = vcmask 1041408
        %v6192 = vsel %vm6191, %v6186, 0.0
        %v6193 = vrot.slane %v6192, 4
        %v6194 = vadd.f32 %v6192, %v6193
        %v6195 = vrot.slane %v6194, 2
        %v6196 = vadd.f32 %v6194, %v6195
        %v6197 = vrot.slane %v6196, 1
        %v6198 = vadd.f32 %v6196, %v6197
        %v6199 = vld [vmem:[#allocation28 + $0x14] sm:$0x1]
        %v6200 = vadd.f32 %v6198, %v6199
        %6201 = vst [vmem:[%s233] sm:$0x1] %v6200
        %s6202 = sand.u32 %s117, 1
        %s6203 = scalar_lea.sflag [#allocation25], %s6202
        %s6204 = sand.u32 %s117, 1
        %s6205 = scalar_lea.vmem [#allocation29], %s6204
        // Predicated region
        $region49: #{forward.1} parent=35 // pred_check
          %p6206 = pneg %p127
        $region50: #{forward.1} parent=35 // pred_check_branch
          %6208 = sbr.rel (%p6206) target = $region52
        $region51: #{forward.1} parent=35 // pred_region
          %s6210 = ssub.s32 16, 16
          %6211 = vsyncadd %s6203, %s6210
          %s6212 = smul.addr %s20, 16
          %s6213 = scalar_lea.hbm %s4, %s6212
          %s6215 = sshll.u32 %s6205, 4
          %s6216 = int_to_ptr.vmem [resolvable:$true] %s6215
          %6218 = dma.vmem_to_hbm [thread:$0]  %s6216, 16, %s6213, %s6203
        $region52: #{forward.1} parent=35 // pred_fallthru
          _
      $region36: #{forward.1} parent=5 // pred_fallthru
        _
      %p6219 = scmp.le.s32.totalorder 2, %s15
      // Predicated region
      $region53: #{forward.1} parent=5 // pred_check
        %p6220 = pneg %p6219
      $region54: #{forward.1} parent=5 // pred_check_branch
        %6222 = sbr.rel (%p6220) target = $region56
      $region55: #{forward.1} parent=5 // pred_region
        %s6223 = ssub.s32 %s15, 2
        // Predicated region
        $region57: #{forward.1} parent=55 // pred_check
          %p6224 = pneg %p133
        $region58: #{forward.1} parent=55 // pred_check_branch
          %6226 = sbr.rel (%p6224) target = $region60
        $region59: #{forward.1} parent=55 // pred_region
          %s6227 = sand.u32 %s118, 1
          %s6228 = scalar_lea.sflag [#allocation25], %s6227
          %s6229 = sand.u32 %s118, 1
          %s6230 = scalar_lea.vmem [#allocation29], %s6229
          %6231 = dma.done %s6228, 16
        $region60: #{forward.1} parent=55 // pred_fallthru
          _
      $region56: #{forward.1} parent=5 // pred_fallthru
        _
    $region6: #{forward.1} parent=1 // loop_footer
      %s19 = sadd.s32 1, %s15
    $region7: #{forward.1} parent=1 // loop_footer_branch
      %14 = sbr.rel target = $region3
    $region8: #{forward.1} parent=1 // loop_exit
      _
    %6232 = vsyncpa [#allocation24], 1
    %s6233 = scalar_lea.sflag [#allocation24], 1
    %6234 = vsyncpa %s6233, 1
    %6235 = vsyncpa [#allocation27], 1
    %6236 = vsyncpa [#allocation25], 1
    %s6237 = scalar_lea.sflag [#allocation25], 1
    %6238 = vsyncpa %s6237, 1

</llo_original>
